<compile_context>
chip_gen: v5e
topology: v5e:2x2
jax: 0.10.0
libtpu: 0.0.40
codegen_flags: <defaults>
</compile_context>

<pallas_src>
import functools

import jax
import jax.numpy as jnp
from jax.experimental import pallas as pl
from jax.experimental.pallas import tpu as pltpu

TM_MAX = 512        # row tile; >=512 amortizes per-step overhead
BN_EPS = 1e-5       # PyTorch BatchNorm2d default


def _cdiv(a, b):
    return -(-a // b)


def _ceil_to(x, m):
    return _cdiv(x, m) * m


@functools.lru_cache(maxsize=None)
def _vmem_limit():
    """Per-generation scoped-VMEM limit: ~3/4 of physical (96 MiB on v5e/v6e,
    48 MiB on v7x), with a conservative fallback if the query is unavailable."""
    cap = 128 * 1024 * 1024
    try:
        cap = int(pltpu.get_tpu_info().vmem_capacity_bytes)
    except Exception:
        pass
    return max(32 * 1024 * 1024, min((3 * cap) // 4, 100 * 1024 * 1024))


# --------------------------------------------------------------------------
# Pallas kernels
# --------------------------------------------------------------------------

def _fused_convt_bn_relu_kernel(a_ref, w_ref, gamma_ref, beta_ref, o_ref,
                                y_scr, sum_scr, sq_scr, scale_scr, shift_scr,
                                *, groups, inv_count, eps):
    """One ConvTranspose layer as a single group-merged matmul (N = groups*C)
    fused with train-mode BatchNorm (batch statistics) + ReLU.

    grid = (2, n_row_tiles), fully sequential:
      pass 0: y = A_tile @ W  -> resident bf16 VMEM slab; accumulate
              sublane-partial per-lane sum / sum-of-squares (VPU only).
      pass 1 (tile 0): one cross-sublane reduce + cross-phase aggregation,
              fold batch stats into per-lane scale/shift.
      pass 1 (all tiles): affine + ReLU from the slab, bf16 store.
    """
    p = pl.program_id(0)        # 0 = matmul+stats, 1 = normalize+ReLU
    i = pl.program_id(1)        # row-tile index
    tm = a_ref.shape[0]
    gc = w_ref.shape[1]
    c = gamma_ref.shape[1]

    row0 = pl.multiple_of(i * tm, tm)

    @pl.when(jnp.logical_and(p == 0, i == 0))
    def _init():
        sum_scr[...] = jnp.zeros_like(sum_scr)
        sq_scr[...] = jnp.zeros_like(sq_scr)

    @pl.when(p == 0)
    def _matmul_and_stats():
        y = jnp.dot(a_ref[...], w_ref[...],
                    preferred_element_type=jnp.float32)      # (tm, G*C) f32
        y_scr[pl.ds(row0, tm), :] = y.astype(y_scr.dtype)     # bf16 slab
        # Sublane-partial stats (layout-preserving reshape): pure VALU adds,
        # the single cross-sublane (XLU) reduce is deferred to pass 1.
        # Padded A rows are exact zeros, so they contribute 0 to the sums
        # while inv_count uses the true element count.
        yr = y.reshape(tm // 8, 8, gc)
        sum_scr[...] += jnp.sum(yr, axis=0)
        sq_scr[...] += jnp.sum(yr * yr, axis=0)

    @pl.when(jnp.logical_and(p == 1, i == 0))
    def _finalize_stats():
        s8 = sum_scr[...]                                      # (8, G*C)
        q8 = sq_scr[...]
        # Aggregate the G phase copies of each channel (static lane slices).
        s_tot = jnp.zeros((8, c), jnp.float32)
        q_tot = jnp.zeros((8, c), jnp.float32)
        for g in range(groups):
            s_tot = s_tot + s8[:, g * c:(g + 1) * c]
            q_tot = q_tot + q8[:, g * c:(g + 1) * c]
        mean = jnp.sum(s_tot, axis=0, keepdims=True) * inv_count     # (1, C)
        ex2 = jnp.sum(q_tot, axis=0, keepdims=True) * inv_count
        var = jnp.maximum(ex2 - mean * mean, 0.0)   # clamp: one-pass var can round < 0
        scale = gamma_ref[...] * jax.lax.rsqrt(var + eps)
        shift = beta_ref[...] - mean * scale
        # Tile per-channel scale/shift back to the (1, G*C) lane layout.
        scale_scr[...] = jnp.concatenate([scale] * groups, axis=1)
        shift_scr[...] = jnp.concatenate([shift] * groups, axis=1)

    @pl.when(p == 1)
    def _normalize():
        y = y_scr[pl.ds(row0, tm), :].astype(jnp.float32)
        out = jnp.maximum(y * scale_scr[...] + shift_scr[...], 0.0)
        o_ref[...] = out.astype(o_ref.dtype)


def _convt_tanh_kernel(a_ref, w_ref, o_ref):
    """Last layer: one group-merged matmul with a fused tanh epilogue (no BN)."""
    y = jnp.dot(a_ref[...], w_ref[...], preferred_element_type=jnp.float32)
    o_ref[...] = jnp.tanh(y).astype(o_ref.dtype)


# --------------------------------------------------------------------------
# pallas_call wrappers
# --------------------------------------------------------------------------

def _row_tiling(m):
    """16-aligned row tile (bf16 packing) with bounded padding waste."""
    tm = _ceil_to(_cdiv(m, _cdiv(m, TM_MAX)), 16)
    m_pad = _ceil_to(m, tm)
    return tm, m_pad


def _pad_rows(a, m_pad):
    m = a.shape[0]
    return a if m_pad == m else jnp.pad(a, ((0, m_pad - m), (0, 0)))


def fused_convt_bn_relu(a, w, gamma, beta, *, groups, count, eps=BN_EPS):
    """a: (M, K) patches; w: (K, G*C) bf16 group-merged weights.
    Returns (M_pad, G*C) bf16 BN(batch-stats)+ReLU output."""
    m, k = a.shape
    gc = w.shape[1]
    c = gc // groups
    assert c * groups == gc
    tm, m_pad = _row_tiling(m)
    n_tiles = m_pad // tm
    a_p = _pad_rows(a.astype(jnp.bfloat16), m_pad)   # bf16 operands, f32 accum
    gamma2 = gamma.reshape(1, c).astype(jnp.float32)
    beta2 = beta.reshape(1, c).astype(jnp.float32)
    kernel = functools.partial(_fused_convt_bn_relu_kernel,
                               groups=groups, inv_count=1.0 / count, eps=eps)
    return pl.pallas_call(
        kernel,
        out_shape=jax.ShapeDtypeStruct((m_pad, gc), jnp.bfloat16),
        grid=(2, n_tiles),
        in_specs=[
            # A tile; pinned to block 0 during pass 1 so it is not re-fetched.
            pl.BlockSpec((tm, k), lambda p, i: ((1 - p) * i, 0)),
            pl.BlockSpec((k, gc), lambda p, i: (0, 0)),
            pl.BlockSpec((1, c), lambda p, i: (0, 0)),
            pl.BlockSpec((1, c), lambda p, i: (0, 0)),
        ],
        # Output tiles are only written during pass 1.
        out_specs=pl.BlockSpec((tm, gc), lambda p, i: (i * p, 0)),
        scratch_shapes=[
            pltpu.VMEM((m_pad, gc), jnp.bfloat16),   # resident y slab (bf16)
            pltpu.VMEM((8, gc), jnp.float32),        # sublane-partial sum
            pltpu.VMEM((8, gc), jnp.float32),        # sublane-partial sum of sq
            pltpu.VMEM((1, gc), jnp.float32),        # folded scale
            pltpu.VMEM((1, gc), jnp.float32),        # folded shift
        ],
        compiler_params=pltpu.CompilerParams(
            dimension_semantics=("arbitrary", "arbitrary"),
            vmem_limit_bytes=_vmem_limit()),
    )(a_p, w, gamma2, beta2)


def convt_tanh(a, w):
    """Last layer: (M, K) patches @ (K, G*C) merged weights with fused tanh."""
    m, k = a.shape
    gc = w.shape[1]
    tm, m_pad = _row_tiling(m)
    a_p = _pad_rows(a.astype(jnp.bfloat16), m_pad)
    return pl.pallas_call(
        _convt_tanh_kernel,
        out_shape=jax.ShapeDtypeStruct((m_pad, gc), jnp.float32),
        grid=(m_pad // tm,),
        in_specs=[pl.BlockSpec((tm, k), lambda i: (i, 0)),
                  pl.BlockSpec((k, gc), lambda i: (0, 0))],
        out_specs=pl.BlockSpec((tm, gc), lambda i: (i, 0)),
        compiler_params=pltpu.CompilerParams(
            dimension_semantics=("parallel",),
            vmem_limit_bytes=_vmem_limit()),
    )(a_p, w)


# --------------------------------------------------------------------------
# ConvTranspose2d lowering (XLA layout glue)
# --------------------------------------------------------------------------

def _patches_3x3(x_nhwc):
    """Sub-pixel decomposition of ConvT(k=4, s=2, p=1): each of the 4 output
    phases reads a 2x2 window of the UN-dilated input; all phases share one
    3x3 im2col of the 1-padded input (no zero-dilation)."""
    n, h, w, c = x_nhwc.shape
    xp = jnp.pad(x_nhwc, ((0, 0), (1, 1), (1, 1), (0, 0)))
    cols = [xp[:, a:a + h, b:b + w, :] for a in range(3) for b in range(3)]
    return jnp.concatenate(cols, axis=-1).reshape(n * h * w, 9 * c), (n, h, w)


def _interleave_phases(y, n, h, w, c):
    """(M_pad, 4*C) phase-merged kernel output -> (N, 2H, 2W, C) NHWC.
    Row = (n*h + q)*w + r; lane = (2*pi + pj)*C + co; output pos (2q+pi, 2r+pj)."""
    y = y[:n * h * w, :].reshape(n, h, w, 2, 2, c)
    return y.transpose(0, 1, 3, 2, 4, 5).reshape(n, 2 * h, 2 * w, c)


def _weights_stride1_1x1(w):
    """ConvT(k=4, s=1, p=0) on a 1x1 input: out[:, oh, ow, :] = x @ w[:,:,oh,ow].
    -> (C_in, 16*C_out) merged weights; lane = (oh*4 + ow)*C_out + co."""
    cin, cout = w.shape[0], w.shape[1]
    return jnp.transpose(w, (0, 2, 3, 1)).reshape(cin, 16 * cout)


def _weights_stride2_subpixel(w):
    """Per-phase sub-kernels of ConvT(k=4, s=2, p=1) against the shared 3x3
    im2col, merged along N: lane = (2*pi + pj)*C_out + co,
    W[(a*3+b)*C_in + ci, lane] = w[ci, co, 3-(2a-pi), 3-(2b-pj)] if in range else 0."""
    cin, cout = w.shape[0], w.shape[1]
    zero = jnp.zeros((cin, cout), w.dtype)
    groups = []
    for pi in (0, 1):
        for pj in (0, 1):
            rows = []
            for a in range(3):
                kh = 2 * a - pi
                for b in range(3):
                    kw = 2 * b - pj
                    if 0 <= kh <= 3 and 0 <= kw <= 3:
                        rows.append(w[:, :, 3 - kh, 3 - kw])
                    else:
                        rows.append(zero)
            groups.append(jnp.concatenate(rows, axis=0))      # (9*C_in, C_out)
    return jnp.concatenate(groups, axis=1)                    # (9*C_in, 4*C_out)


# --------------------------------------------------------------------------
# Generator
# --------------------------------------------------------------------------

def init_generator_params(key, nz, ngf, nc):
    specs = [
        (nz,      ngf * 8, 1),   # 1x1   -> 4x4
        (ngf * 8, ngf * 4, 2),   # 4x4   -> 8x8
        (ngf * 4, ngf * 2, 2),   # 8x8   -> 16x16
        (ngf * 2, ngf,     2),   # 16x16 -> 32x32
        (ngf,     nc,      2),   # 32x32 -> 64x64
    ]
    params = []
    for idx, (cin, cout, stride) in enumerate(specs):
        key, wk, gk = jax.random.split(key, 3)
        # DCGAN-style deterministic init: conv ~ N(0, 0.02), BN gamma ~ N(1, 0.02)
        w = 0.02 * jax.random.normal(wk, (cin, cout, 4, 4), jnp.float32)
        wmat = (_weights_stride1_1x1(w) if stride == 1
                else _weights_stride2_subpixel(w))
        layer = {"wmat": wmat.astype(jnp.bfloat16)}   # group-merged, bf16 once
        if idx < len(specs) - 1:
            layer["gamma"] = 1.0 + 0.02 * jax.random.normal(gk, (cout,), jnp.float32)
            layer["beta"] = jnp.zeros((cout,), jnp.float32)
        params.append(layer)
    return params


def generator_forward(params, x_nchw):
    """x: (N, nz, 1, 1) -> (N, nc, 64, 64); matches the PyTorch Generator
    forward (train-mode BatchNorm batch statistics, biased variance).
    bf16 matmul operands / inter-layer activations are an intentional
    precision choice (f32 accumulation and f32 BN/tanh epilogues)."""
    n = x_nchw.shape[0]
    x = x_nchw.reshape(n, -1).astype(jnp.float32)               # (N, nz)

    # Layer 1: ConvT(nz, ngf*8, 4, 1, 0) + BN + ReLU   (1x1 -> 4x4)
    p0 = params[0]
    c = p0["gamma"].shape[0]
    g = p0["wmat"].shape[1] // c
    y = fused_convt_bn_relu(x, p0["wmat"], p0["gamma"], p0["beta"],
                            groups=g, count=n * 16)
    x = y[:n, :].reshape(n, 4, 4, c)                            # (N, 4, 4, C) bf16

    # Layers 2-4: ConvT(k4, s2, p1) + BN + ReLU
    for pr in params[1:-1]:
        patches, (n_, h, w) = _patches_3x3(x)
        c = pr["gamma"].shape[0]
        g = pr["wmat"].shape[1] // c
        y = fused_convt_bn_relu(patches, pr["wmat"], pr["gamma"], pr["beta"],
                                groups=g, count=n_ * (2 * h) * (2 * w))
        x = _interleave_phases(y, n_, h, w, c)

    # Layer 5: ConvT(k4, s2, p1) + Tanh
    pr = params[-1]
    patches, (n_, h, w) = _patches_3x3(x)
    c = pr["wmat"].shape[1] // 4
    y = convt_tanh(patches, pr["wmat"])
    x = _interleave_phases(y, n_, h, w, c)
    return jnp.transpose(x, (0, 3, 1, 2))                       # NHWC -> NCHW


if __name__ == "__main__":
    nz, ngf, nc, batch = 16, 8, 3, 2
    key = jax.random.PRNGKey(0)
    pkey, xkey = jax.random.split(key)
    params = init_generator_params(pkey, nz, ngf, nc)
    x = jax.random.normal(xkey, (batch, nz, 1, 1), jnp.float32)

    fwd = jax.jit(generator_forward)
    out = jax.block_until_ready(fwd(params, x))

    assert out.shape == (batch, nc, 64, 64), out.shape
    assert bool(jnp.all(jnp.isfinite(out)))
    assert bool(jnp.all(jnp.abs(out) <= 1.0 + 1e-6))   # tanh range
    print("KERNEL_OK")
</pallas_src>

<mosaic_0001>
module attributes {stable_mosaic.version = 11 : i64} {
  func.func @_fused_convt_bn_relu_kernel(%arg0: i32, %arg1: i32, %arg2: memref<16x16xbf16, #tpu.memory_space<vmem>>, %arg3: memref<16x1024xbf16, #tpu.memory_space<vmem>>, %arg4: memref<1x64xf32, #tpu.memory_space<vmem>>, %arg5: memref<1x64xf32, #tpu.memory_space<vmem>>, %arg6: memref<16x1024xbf16, #tpu.memory_space<vmem>>, %arg7: memref<16x1024xbf16, #tpu.memory_space<vmem>>, %arg8: memref<8x1024xf32, #tpu.memory_space<vmem>>, %arg9: memref<8x1024xf32, #tpu.memory_space<vmem>>, %arg10: memref<1x1024xf32, #tpu.memory_space<vmem>>, %arg11: memref<1x1024xf32, #tpu.memory_space<vmem>>) attributes {dimension_semantics = [#tpu.dimension_semantics<arbitrary>, #tpu.dimension_semantics<arbitrary>], iteration_bounds = array<i64: 2, 1>, scalar_prefetch = 0 : i64, scratch_operands = 5 : i64, tpu.core_type = #tpu.core_type<tc>, window_params = [{transform_indices = @transform_0, window_bounds = array<i64: 16, 16>}, {pipeline_mode = #tpu.pipeline_mode<synchronous>, transform_indices = @transform_1, window_bounds = array<i64: 16, 1024>}, {pipeline_mode = #tpu.pipeline_mode<synchronous>, transform_indices = @transform_2, window_bounds = array<i64: 1, 64>}, {pipeline_mode = #tpu.pipeline_mode<synchronous>, transform_indices = @transform_3, window_bounds = array<i64: 1, 64>}, {transform_indices = @transform_4, window_bounds = array<i64: 16, 1024>}]} {
    %c16_i32 = arith.constant 16 : i32
    %0 = arith.muli %arg1, %c16_i32 : i32
    %1 = tpu.assume_multiple %0, 16 : i32
    %c0_i32 = arith.constant 0 : i32
    %2 = arith.cmpi eq, %arg0, %c0_i32 : i32
    %c0_i32_0 = arith.constant 0 : i32
    %3 = arith.cmpi eq, %arg1, %c0_i32_0 : i32
    %4 = arith.andi %2, %3 : i1
    %5 = arith.extui %4 : i1 to i32
    %c0_i32_1 = arith.constant 0 : i32
    %6 = arith.cmpi ne, %5, %c0_i32_1 : i32
    scf.if %6 {
      %cst = arith.constant 0.000000e+00 : f32
      %18 = vector.broadcast %cst : f32 to vector<8x1024xf32>
      %c0 = arith.constant 0 : index
      %c0_8 = arith.constant 0 : index
      %19 = vector.load %arg8[%c0, %c0_8] : memref<8x1024xf32, #tpu.memory_space<vmem>>, vector<8x1024xf32>
      tpu.vector_store %arg8[%c0, %c0_8], %18 {strides = array<i32>} : memref<8x1024xf32, #tpu.memory_space<vmem>>, vector<8x1024xf32>,
      %cst_9 = arith.constant 0.000000e+00 : f32
      %20 = vector.broadcast %cst_9 : f32 to vector<8x1024xf32>
      %c0_10 = arith.constant 0 : index
      %c0_11 = arith.constant 0 : index
      %21 = vector.load %arg9[%c0_10, %c0_11] : memref<8x1024xf32, #tpu.memory_space<vmem>>, vector<8x1024xf32>
      tpu.vector_store %arg9[%c0_10, %c0_11], %20 {strides = array<i32>} : memref<8x1024xf32, #tpu.memory_space<vmem>>, vector<8x1024xf32>,
    } else {
    }
    %c0_i32_2 = arith.constant 0 : i32
    %7 = arith.cmpi eq, %arg0, %c0_i32_2 : i32
    %8 = arith.extui %7 : i1 to i32
    %c0_i32_3 = arith.constant 0 : i32
    %9 = arith.cmpi ne, %8, %c0_i32_3 : i32
    scf.if %9 {
      %c0 = arith.constant 0 : index
      %c0_8 = arith.constant 0 : index
      %18 = vector.load %arg2[%c0, %c0_8] : memref<16x16xbf16, #tpu.memory_space<vmem>>, vector<16x16xbf16>
      %c0_9 = arith.constant 0 : index
      %c0_10 = arith.constant 0 : index
      %19 = vector.load %arg3[%c0_9, %c0_10] : memref<16x1024xbf16, #tpu.memory_space<vmem>>, vector<16x1024xbf16>
      %cst = arith.constant dense<0.000000e+00> : vector<16x1024xf32>
      %20 = tpu.matmul %18, %19, %cst {dimension_numbers = #tpu.dot_dimension_numbers<[1], [0], [0], [1], [0, 0, 1, 1], [], []>} : vector<16x16xbf16>, vector<16x1024xbf16>, vector<16x1024xf32> -> vector<16x1024xf32>
      %21 = arith.truncf %20 : vector<16x1024xf32> to vector<16x1024xbf16>
      %22 = arith.index_cast %1 : i32 to index
      %c0_11 = arith.constant 0 : index
      %23 = vector.load %arg7[%22, %c0_11] : memref<16x1024xbf16, #tpu.memory_space<vmem>>, vector<16x1024xbf16>
      tpu.vector_store %arg7[%22, %c0_11], %21 {strides = array<i32>} : memref<16x1024xbf16, #tpu.memory_space<vmem>>, vector<16x1024xbf16>,
      %24 = vector.shape_cast %20 : vector<16x1024xf32> to vector<2x8x1024xf32>
      %c0_12 = arith.constant 0 : index
      %c0_13 = arith.constant 0 : index
      %25 = vector.load %arg8[%c0_12, %c0_13] : memref<8x1024xf32, #tpu.memory_space<vmem>>, vector<8x1024xf32>
      %cst_14 = arith.constant dense<0.000000e+00> : vector<8x1024xf32>
      %26 = vector.multi_reduction <add>, %24, %cst_14 [0] : vector<2x8x1024xf32> to vector<8x1024xf32>
      %27 = arith.addf %25, %26 : vector<8x1024xf32>
      %c0_15 = arith.constant 0 : index
      %c0_16 = arith.constant 0 : index
      %28 = vector.load %arg8[%c0_15, %c0_16] : memref<8x1024xf32, #tpu.memory_space<vmem>>, vector<8x1024xf32>
      tpu.vector_store %arg8[%c0_15, %c0_16], %27 {strides = array<i32>} : memref<8x1024xf32, #tpu.memory_space<vmem>>, vector<8x1024xf32>,
      %c0_17 = arith.constant 0 : index
      %c0_18 = arith.constant 0 : index
      %29 = vector.load %arg9[%c0_17, %c0_18] : memref<8x1024xf32, #tpu.memory_space<vmem>>, vector<8x1024xf32>
      %30 = arith.mulf %24, %24 : vector<2x8x1024xf32>
      %cst_19 = arith.constant dense<0.000000e+00> : vector<8x1024xf32>
      %31 = vector.multi_reduction <add>, %30, %cst_19 [0] : vector<2x8x1024xf32> to vector<8x1024xf32>
      %32 = arith.addf %29, %31 : vector<8x1024xf32>
      %c0_20 = arith.constant 0 : index
      %c0_21 = arith.constant 0 : index
      %33 = vector.load %arg9[%c0_20, %c0_21] : memref<8x1024xf32, #tpu.memory_space<vmem>>, vector<8x1024xf32>
      tpu.vector_store %arg9[%c0_20, %c0_21], %32 {strides = array<i32>} : memref<8x1024xf32, #tpu.memory_space<vmem>>, vector<8x1024xf32>,
    } else {
    }
    %c1_i32 = arith.constant 1 : i32
    %10 = arith.cmpi eq, %arg0, %c1_i32 : i32
    %c0_i32_4 = arith.constant 0 : i32
    %11 = arith.cmpi eq, %arg1, %c0_i32_4 : i32
    %12 = arith.andi %10, %11 : i1
    %13 = arith.extui %12 : i1 to i32
    %c0_i32_5 = arith.constant 0 : i32
    %14 = arith.cmpi ne, %13, %c0_i32_5 : i32
    scf.if %14 {
      %c0 = arith.constant 0 : index
      %c0_8 = arith.constant 0 : index
      %18 = vector.load %arg8[%c0, %c0_8] : memref<8x1024xf32, #tpu.memory_space<vmem>>, vector<8x1024xf32>
      %c0_9 = arith.constant 0 : index
      %c0_10 = arith.constant 0 : index
      %19 = vector.load %arg9[%c0_9, %c0_10] : memref<8x1024xf32, #tpu.memory_space<vmem>>, vector<8x1024xf32>
      %cst = arith.constant 0.000000e+00 : f32
      %20 = vector.broadcast %cst : f32 to vector<8x64xf32>
      %cst_11 = arith.constant 0.000000e+00 : f32
      %21 = vector.broadcast %cst_11 : f32 to vector<8x64xf32>
      %22 = vector.extract_strided_slice %18 {offsets = [0, 0], sizes = [8, 64], strides = [1, 1]} : vector<8x1024xf32> to vector<8x64xf32>
      %23 = arith.addf %20, %22 : vector<8x64xf32>
      %24 = vector.extract_strided_slice %19 {offsets = [0, 0], sizes = [8, 64], strides = [1, 1]} : vector<8x1024xf32> to vector<8x64xf32>
      %25 = arith.addf %21, %24 : vector<8x64xf32>
      %26 = vector.extract_strided_slice %18 {offsets = [0, 64], sizes = [8, 64], strides = [1, 1]} : vector<8x1024xf32> to vector<8x64xf32>
      %27 = arith.addf %23, %26 : vector<8x64xf32>
      %28 = vector.extract_strided_slice %19 {offsets = [0, 64], sizes = [8, 64], strides = [1, 1]} : vector<8x1024xf32> to vector<8x64xf32>
      %29 = arith.addf %25, %28 : vector<8x64xf32>
      %30 = vector.extract_strided_slice %18 {offsets = [0, 128], sizes = [8, 64], strides = [1, 1]} : vector<8x1024xf32> to vector<8x64xf32>
      %31 = arith.addf %27, %30 : vector<8x64xf32>
      %32 = vector.extract_strided_slice %19 {offsets = [0, 128], sizes = [8, 64], strides = [1, 1]} : vector<8x1024xf32> to vector<8x64xf32>
      %33 = arith.addf %29, %32 : vector<8x64xf32>
      %34 = vector.extract_strided_slice %18 {offsets = [0, 192], sizes = [8, 64], strides = [1, 1]} : vector<8x1024xf32> to vector<8x64xf32>
      %35 = arith.addf %31, %34 : vector<8x64xf32>
      %36 = vector.extract_strided_slice %19 {offsets = [0, 192], sizes = [8, 64], strides = [1, 1]} : vector<8x1024xf32> to vector<8x64xf32>
      %37 = arith.addf %33, %36 : vector<8x64xf32>
      %38 = vector.extract_strided_slice %18 {offsets = [0, 256], sizes = [8, 64], strides = [1, 1]} : vector<8x1024xf32> to vector<8x64xf32>
      %39 = arith.addf %35, %38 : vector<8x64xf32>
      %40 = vector.extract_strided_slice %19 {offsets = [0, 256], sizes = [8, 64], strides = [1, 1]} : vector<8x1024xf32> to vector<8x64xf32>
      %41 = arith.addf %37, %40 : vector<8x64xf32>
      %42 = vector.extract_strided_slice %18 {offsets = [0, 320], sizes = [8, 64], strides = [1, 1]} : vector<8x1024xf32> to vector<8x64xf32>
      %43 = arith.addf %39, %42 : vector<8x64xf32>
      %44 = vector.extract_strided_slice %19 {offsets = [0, 320], sizes = [8, 64], strides = [1, 1]} : vector<8x1024xf32> to vector<8x64xf32>
      %45 = arith.addf %41, %44 : vector<8x64xf32>
      %46 = vector.extract_strided_slice %18 {offsets = [0, 384], sizes = [8, 64], strides = [1, 1]} : vector<8x1024xf32> to vector<8x64xf32>
      %47 = arith.addf %43, %46 : vector<8x64xf32>
      %48 = vector.extract_strided_slice %19 {offsets = [0, 384], sizes = [8, 64], strides = [1, 1]} : vector<8x1024xf32> to vector<8x64xf32>
      %49 = arith.addf %45, %48 : vector<8x64xf32>
      %50 = vector.extract_strided_slice %18 {offsets = [0, 448], sizes = [8, 64], strides = [1, 1]} : vector<8x1024xf32> to vector<8x64xf32>
      %51 = arith.addf %47, %50 : vector<8x64xf32>
      %52 = vector.extract_strided_slice %19 {offsets = [0, 448], sizes = [8, 64], strides = [1, 1]} : vector<8x1024xf32> to vector<8x64xf32>
      %53 = arith.addf %49, %52 : vector<8x64xf32>
      %54 = vector.extract_strided_slice %18 {offsets = [0, 512], sizes = [8, 64], strides = [1, 1]} : vector<8x1024xf32> to vector<8x64xf32>
      %55 = arith.addf %51, %54 : vector<8x64xf32>
      %56 = vector.extract_strided_slice %19 {offsets = [0, 512], sizes = [8, 64], strides = [1, 1]} : vector<8x1024xf32> to vector<8x64xf32>
      %57 = arith.addf %53, %56 : vector<8x64xf32>
      %58 = vector.extract_strided_slice %18 {offsets = [0, 576], sizes = [8, 64], strides = [1, 1]} : vector<8x1024xf32> to vector<8x64xf32>
      %59 = arith.addf %55, %58 : vector<8x64xf32>
      %60 = vector.extract_strided_slice %19 {offsets = [0, 576], sizes = [8, 64], strides = [1, 1]} : vector<8x1024xf32> to vector<8x64xf32>
      %61 = arith.addf %57, %60 : vector<8x64xf32>
      %62 = vector.extract_strided_slice %18 {offsets = [0, 640], sizes = [8, 64], strides = [1, 1]} : vector<8x1024xf32> to vector<8x64xf32>
      %63 = arith.addf %59, %62 : vector<8x64xf32>
      %64 = vector.extract_strided_slice %19 {offsets = [0, 640], sizes = [8, 64], strides = [1, 1]} : vector<8x1024xf32> to vector<8x64xf32>
      %65 = arith.addf %61, %64 : vector<8x64xf32>
      %66 = vector.extract_strided_slice %18 {offsets = [0, 704], sizes = [8, 64], strides = [1, 1]} : vector<8x1024xf32> to vector<8x64xf32>
      %67 = arith.addf %63, %66 : vector<8x64xf32>
      %68 = vector.extract_strided_slice %19 {offsets = [0, 704], sizes = [8, 64], strides = [1, 1]} : vector<8x1024xf32> to vector<8x64xf32>
      %69 = arith.addf %65, %68 : vector<8x64xf32>
      %70 = vector.extract_strided_slice %18 {offsets = [0, 768], sizes = [8, 64], strides = [1, 1]} : vector<8x1024xf32> to vector<8x64xf32>
      %71 = arith.addf %67, %70 : vector<8x64xf32>
      %72 = vector.extract_strided_slice %19 {offsets = [0, 768], sizes = [8, 64], strides = [1, 1]} : vector<8x1024xf32> to vector<8x64xf32>
      %73 = arith.addf %69, %72 : vector<8x64xf32>
      %74 = vector.extract_strided_slice %18 {offsets = [0, 832], sizes = [8, 64], strides = [1, 1]} : vector<8x1024xf32> to vector<8x64xf32>
      %75 = arith.addf %71, %74 : vector<8x64xf32>
      %76 = vector.extract_strided_slice %19 {offsets = [0, 832], sizes = [8, 64], strides = [1, 1]} : vector<8x1024xf32> to vector<8x64xf32>
      %77 = arith.addf %73, %76 : vector<8x64xf32>
      %78 = vector.extract_strided_slice %18 {offsets = [0, 896], sizes = [8, 64], strides = [1, 1]} : vector<8x1024xf32> to vector<8x64xf32>
      %79 = arith.addf %75, %78 : vector<8x64xf32>
      %80 = vector.extract_strided_slice %19 {offsets = [0, 896], sizes = [8, 64], strides = [1, 1]} : vector<8x1024xf32> to vector<8x64xf32>
      %81 = arith.addf %77, %80 : vector<8x64xf32>
      %82 = vector.extract_strided_slice %18 {offsets = [0, 960], sizes = [8, 64], strides = [1, 1]} : vector<8x1024xf32> to vector<8x64xf32>
      %83 = arith.addf %79, %82 : vector<8x64xf32>
      %84 = vector.extract_strided_slice %19 {offsets = [0, 960], sizes = [8, 64], strides = [1, 1]} : vector<8x1024xf32> to vector<8x64xf32>
      %85 = arith.addf %81, %84 : vector<8x64xf32>
      %cst_12 = arith.constant dense<0.000000e+00> : vector<64xf32>
      %86 = vector.multi_reduction <add>, %83, %cst_12 [0] : vector<8x64xf32> to vector<64xf32>
      %87 = vector.shape_cast %86 : vector<64xf32> to vector<1x64xf32>
      %cst_13 = arith.constant 3.125000e-02 : f32
      %88 = vector.broadcast %cst_13 : f32 to vector<1x64xf32>
      %89 = arith.mulf %87, %88 : vector<1x64xf32>
      %cst_14 = arith.constant dense<0.000000e+00> : vector<64xf32>
      %90 = vector.multi_reduction <add>, %85, %cst_14 [0] : vector<8x64xf32> to vector<64xf32>
      %91 = vector.shape_cast %90 : vector<64xf32> to vector<1x64xf32>
      %cst_15 = arith.constant 3.125000e-02 : f32
      %92 = vector.broadcast %cst_15 : f32 to vector<1x64xf32>
      %93 = arith.mulf %91, %92 : vector<1x64xf32>
      %94 = arith.mulf %89, %89 : vector<1x64xf32>
      %95 = arith.subf %93, %94 : vector<1x64xf32>
      %cst_16 = arith.constant 0.000000e+00 : f32
      %96 = vector.broadcast %cst_16 : f32 to vector<1x64xf32>
      %97 = arith.maximumf %95, %96 : vector<1x64xf32>
      %c0_17 = arith.constant 0 : index
      %c0_18 = arith.constant 0 : index
      %98 = vector.load %arg4[%c0_17, %c0_18] : memref<1x64xf32, #tpu.memory_space<vmem>>, vector<1x64xf32>
      %cst_19 = arith.constant 9.99999974E-6 : f32
      %99 = vector.broadcast %cst_19 : f32 to vector<1x64xf32>
      %100 = arith.addf %97, %99 : vector<1x64xf32>
      %101 = math.rsqrt %100 : vector<1x64xf32>
      %102 = arith.mulf %98, %101 : vector<1x64xf32>
      %c0_20 = arith.constant 0 : index
      %c0_21 = arith.constant 0 : index
      %103 = vector.load %arg5[%c0_20, %c0_21] : memref<1x64xf32, #tpu.memory_space<vmem>>, vector<1x64xf32>
      %104 = arith.mulf %89, %102 : vector<1x64xf32>
      %105 = arith.subf %103, %104 : vector<1x64xf32>
      %106 = tpu.concatenate %102, %102, %102, %102, %102, %102, %102, %102, %102, %102, %102, %102, %102, %102, %102, %102 in 1 : vector<1x64xf32>, vector<1x64xf32>, vector<1x64xf32>, vector<1x64xf32>, vector<1x64xf32>, vector<1x64xf32>, vector<1x64xf32>, vector<1x64xf32>, vector<1x64xf32>, vector<1x64xf32>, vector<1x64xf32>, vector<1x64xf32>, vector<1x64xf32>, vector<1x64xf32>, vector<1x64xf32>, vector<1x64xf32> -> vector<1x1024xf32>
      %c0_22 = arith.constant 0 : index
      %c0_23 = arith.constant 0 : index
      %107 = vector.load %arg10[%c0_22, %c0_23] : memref<1x1024xf32, #tpu.memory_space<vmem>>, vector<1x1024xf32>
      tpu.vector_store %arg10[%c0_22, %c0_23], %106 {strides = array<i32>} : memref<1x1024xf32, #tpu.memory_space<vmem>>, vector<1x1024xf32>,
      %108 = tpu.concatenate %105, %105, %105, %105, %105, %105, %105, %105, %105, %105, %105, %105, %105, %105, %105, %105 in 1 : vector<1x64xf32>, vector<1x64xf32>, vector<1x64xf32>, vector<1x64xf32>, vector<1x64xf32>, vector<1x64xf32>, vector<1x64xf32>, vector<1x64xf32>, vector<1x64xf32>, vector<1x64xf32>, vector<1x64xf32>, vector<1x64xf32>, vector<1x64xf32>, vector<1x64xf32>, vector<1x64xf32>, vector<1x64xf32> -> vector<1x1024xf32>
      %c0_24 = arith.constant 0 : index
      %c0_25 = arith.constant 0 : index
      %109 = vector.load %arg11[%c0_24, %c0_25] : memref<1x1024xf32, #tpu.memory_space<vmem>>, vector<1x1024xf32>
      tpu.vector_store %arg11[%c0_24, %c0_25], %108 {strides = array<i32>} : memref<1x1024xf32, #tpu.memory_space<vmem>>, vector<1x1024xf32>,
    } else {
    }
    %c1_i32_6 = arith.constant 1 : i32
    %15 = arith.cmpi eq, %arg0, %c1_i32_6 : i32
    %16 = arith.extui %15 : i1 to i32
    %c0_i32_7 = arith.constant 0 : i32
    %17 = arith.cmpi ne, %16, %c0_i32_7 : i32
    scf.if %17 {
      %18 = arith.index_cast %1 : i32 to index
      %c0 = arith.constant 0 : index
      %19 = vector.load %arg7[%18, %c0] : memref<16x1024xbf16, #tpu.memory_space<vmem>>, vector<16x1024xbf16>
      %20 = arith.extf %19 : vector<16x1024xbf16> to vector<16x1024xf32>
      %c0_8 = arith.constant 0 : index
      %c0_9 = arith.constant 0 : index
      %21 = vector.load %arg10[%c0_8, %c0_9] : memref<1x1024xf32, #tpu.memory_space<vmem>>, vector<1x1024xf32>
      %22 = vector.broadcast %21 : vector<1x1024xf32> to vector<16x1024xf32>
      %23 = arith.mulf %20, %22 : vector<16x1024xf32>
      %c0_10 = arith.constant 0 : index
      %c0_11 = arith.constant 0 : index
      %24 = vector.load %arg11[%c0_10, %c0_11] : memref<1x1024xf32, #tpu.memory_space<vmem>>, vector<1x1024xf32>
      %25 = vector.broadcast %24 : vector<1x1024xf32> to vector<16x1024xf32>
      %26 = arith.addf %23, %25 : vector<16x1024xf32>
      %cst = arith.constant 0.000000e+00 : f32
      %27 = vector.broadcast %cst : f32 to vector<16x1024xf32>
      %28 = arith.maximumf %26, %27 : vector<16x1024xf32>
      %29 = arith.truncf %28 : vector<16x1024xf32> to vector<16x1024xbf16>
      %c0_12 = arith.constant 0 : index
      %c0_13 = arith.constant 0 : index
      %30 = vector.load %arg6[%c0_12, %c0_13] : memref<16x1024xbf16, #tpu.memory_space<vmem>>, vector<16x1024xbf16>
      tpu.vector_store %arg6[%c0_12, %c0_13], %29 {strides = array<i32>} : memref<16x1024xbf16, #tpu.memory_space<vmem>>, vector<16x1024xbf16>,
    } else {
    }
    return
  }
  func.func @transform_0(%arg0: i32, %arg1: i32) -> (i32, i32) {
    %c1_i32 = arith.constant 1 : i32
    %0 = arith.subi %c1_i32, %arg0 : i32
    %1 = arith.muli %0, %arg1 : i32
    %c0_i32 = arith.constant 0 : i32
    %c0_i32_0 = arith.constant 0 : i32
    return %1, %c0_i32 : i32, i32
  }
  func.func @transform_1(%arg0: i32, %arg1: i32) -> (i32, i32) {
    %c0_i32 = arith.constant 0 : i32
    %c0_i32_0 = arith.constant 0 : i32
    %c0_i32_1 = arith.constant 0 : i32
    return %c0_i32, %c0_i32_0 : i32, i32
  }
  func.func @transform_2(%arg0: i32, %arg1: i32) -> (i32, i32) {
    %c0_i32 = arith.constant 0 : i32
    %c0_i32_0 = arith.constant 0 : i32
    %c0_i32_1 = arith.constant 0 : i32
    return %c0_i32, %c0_i32_0 : i32, i32
  }
  func.func @transform_3(%arg0: i32, %arg1: i32) -> (i32, i32) {
    %c0_i32 = arith.constant 0 : i32
    %c0_i32_0 = arith.constant 0 : i32
    %c0_i32_1 = arith.constant 0 : i32
    return %c0_i32, %c0_i32_0 : i32, i32
  }
  func.func @transform_4(%arg0: i32, %arg1: i32) -> (i32, i32) {
    %0 = arith.muli %arg1, %arg0 : i32
    %c0_i32 = arith.constant 0 : i32
    %c0_i32_0 = arith.constant 0 : i32
    return %0, %c0_i32 : i32, i32
  }
}

module attributes {stable_mosaic.version = 11 : i64} {
  func.func @_fused_convt_bn_relu_kernel(%arg0: i32, %arg1: i32, %arg2: memref<32x576xbf16, #tpu.memory_space<vmem>>, %arg3: memref<576x128xbf16, #tpu.memory_space<vmem>>, %arg4: memref<1x32xf32, #tpu.memory_space<vmem>>, %arg5: memref<1x32xf32, #tpu.memory_space<vmem>>, %arg6: memref<32x128xbf16, #tpu.memory_space<vmem>>, %arg7: memref<32x128xbf16, #tpu.memory_space<vmem>>, %arg8: memref<8x128xf32, #tpu.memory_space<vmem>>, %arg9: memref<8x128xf32, #tpu.memory_space<vmem>>, %arg10: memref<1x128xf32, #tpu.memory_space<vmem>>, %arg11: memref<1x128xf32, #tpu.memory_space<vmem>>) attributes {dimension_semantics = [#tpu.dimension_semantics<arbitrary>, #tpu.dimension_semantics<arbitrary>], iteration_bounds = array<i64: 2, 1>, scalar_prefetch = 0 : i64, scratch_operands = 5 : i64, tpu.core_type = #tpu.core_type<tc>, window_params = [{transform_indices = @transform_0, window_bounds = array<i64: 32, 576>}, {pipeline_mode = #tpu.pipeline_mode<synchronous>, transform_indices = @transform_1, window_bounds = array<i64: 576, 128>}, {pipeline_mode = #tpu.pipeline_mode<synchronous>, transform_indices = @transform_2, window_bounds = array<i64: 1, 32>}, {pipeline_mode = #tpu.pipeline_mode<synchronous>, transform_indices = @transform_3, window_bounds = array<i64: 1, 32>}, {transform_indices = @transform_4, window_bounds = array<i64: 32, 128>}]} {
    %c32_i32 = arith.constant 32 : i32
    %0 = arith.muli %arg1, %c32_i32 : i32
    %1 = tpu.assume_multiple %0, 32 : i32
    %c0_i32 = arith.constant 0 : i32
    %2 = arith.cmpi eq, %arg0, %c0_i32 : i32
    %c0_i32_0 = arith.constant 0 : i32
    %3 = arith.cmpi eq, %arg1, %c0_i32_0 : i32
    %4 = arith.andi %2, %3 : i1
    %5 = arith.extui %4 : i1 to i32
    %c0_i32_1 = arith.constant 0 : i32
    %6 = arith.cmpi ne, %5, %c0_i32_1 : i32
    scf.if %6 {
      %cst = arith.constant 0.000000e+00 : f32
      %18 = vector.broadcast %cst : f32 to vector<8x128xf32>
      %c0 = arith.constant 0 : index
      %c0_8 = arith.constant 0 : index
      %19 = vector.load %arg8[%c0, %c0_8] : memref<8x128xf32, #tpu.memory_space<vmem>>, vector<8x128xf32>
      tpu.vector_store %arg8[%c0, %c0_8], %18 {strides = array<i32>} : memref<8x128xf32, #tpu.memory_space<vmem>>, vector<8x128xf32>,
      %cst_9 = arith.constant 0.000000e+00 : f32
      %20 = vector.broadcast %cst_9 : f32 to vector<8x128xf32>
      %c0_10 = arith.constant 0 : index
      %c0_11 = arith.constant 0 : index
      %21 = vector.load %arg9[%c0_10, %c0_11] : memref<8x128xf32, #tpu.memory_space<vmem>>, vector<8x128xf32>
      tpu.vector_store %arg9[%c0_10, %c0_11], %20 {strides = array<i32>} : memref<8x128xf32, #tpu.memory_space<vmem>>, vector<8x128xf32>,
    } else {
    }
    %c0_i32_2 = arith.constant 0 : i32
    %7 = arith.cmpi eq, %arg0, %c0_i32_2 : i32
    %8 = arith.extui %7 : i1 to i32
    %c0_i32_3 = arith.constant 0 : i32
    %9 = arith.cmpi ne, %8, %c0_i32_3 : i32
    scf.if %9 {
      %c0 = arith.constant 0 : index
      %c0_8 = arith.constant 0 : index
      %18 = vector.load %arg2[%c0, %c0_8] : memref<32x576xbf16, #tpu.memory_space<vmem>>, vector<32x576xbf16>
      %c0_9 = arith.constant 0 : index
      %c0_10 = arith.constant 0 : index
      %19 = vector.load %arg3[%c0_9, %c0_10] : memref<576x128xbf16, #tpu.memory_space<vmem>>, vector<576x128xbf16>
      %cst = arith.constant dense<0.000000e+00> : vector<32x128xf32>
      %20 = tpu.matmul %18, %19, %cst {dimension_numbers = #tpu.dot_dimension_numbers<[1], [0], [0], [1], [0, 0, 1, 1], [], []>} : vector<32x576xbf16>, vector<576x128xbf16>, vector<32x128xf32> -> vector<32x128xf32>
      %21 = arith.truncf %20 : vector<32x128xf32> to vector<32x128xbf16>
      %22 = arith.index_cast %1 : i32 to index
      %c0_11 = arith.constant 0 : index
      %23 = vector.load %arg7[%22, %c0_11] : memref<32x128xbf16, #tpu.memory_space<vmem>>, vector<32x128xbf16>
      tpu.vector_store %arg7[%22, %c0_11], %21 {strides = array<i32>} : memref<32x128xbf16, #tpu.memory_space<vmem>>, vector<32x128xbf16>,
      %24 = vector.shape_cast %20 : vector<32x128xf32> to vector<4x8x128xf32>
      %c0_12 = arith.constant 0 : index
      %c0_13 = arith.constant 0 : index
      %25 = vector.load %arg8[%c0_12, %c0_13] : memref<8x128xf32, #tpu.memory_space<vmem>>, vector<8x128xf32>
      %cst_14 = arith.constant dense<0.000000e+00> : vector<8x128xf32>
      %26 = vector.multi_reduction <add>, %24, %cst_14 [0] : vector<4x8x128xf32> to vector<8x128xf32>
      %27 = arith.addf %25, %26 : vector<8x128xf32>
      %c0_15 = arith.constant 0 : index
      %c0_16 = arith.constant 0 : index
      %28 = vector.load %arg8[%c0_15, %c0_16] : memref<8x128xf32, #tpu.memory_space<vmem>>, vector<8x128xf32>
      tpu.vector_store %arg8[%c0_15, %c0_16], %27 {strides = array<i32>} : memref<8x128xf32, #tpu.memory_space<vmem>>, vector<8x128xf32>,
      %c0_17 = arith.constant 0 : index
      %c0_18 = arith.constant 0 : index
      %29 = vector.load %arg9[%c0_17, %c0_18] : memref<8x128xf32, #tpu.memory_space<vmem>>, vector<8x128xf32>
      %30 = arith.mulf %24, %24 : vector<4x8x128xf32>
      %cst_19 = arith.constant dense<0.000000e+00> : vector<8x128xf32>
      %31 = vector.multi_reduction <add>, %30, %cst_19 [0] : vector<4x8x128xf32> to vector<8x128xf32>
      %32 = arith.addf %29, %31 : vector<8x128xf32>
      %c0_20 = arith.constant 0 : index
      %c0_21 = arith.constant 0 : index
      %33 = vector.load %arg9[%c0_20, %c0_21] : memref<8x128xf32, #tpu.memory_space<vmem>>, vector<8x128xf32>
      tpu.vector_store %arg9[%c0_20, %c0_21], %32 {strides = array<i32>} : memref<8x128xf32, #tpu.memory_space<vmem>>, vector<8x128xf32>,
    } else {
    }
    %c1_i32 = arith.constant 1 : i32
    %10 = arith.cmpi eq, %arg0, %c1_i32 : i32
    %c0_i32_4 = arith.constant 0 : i32
    %11 = arith.cmpi eq, %arg1, %c0_i32_4 : i32
    %12 = arith.andi %10, %11 : i1
    %13 = arith.extui %12 : i1 to i32
    %c0_i32_5 = arith.constant 0 : i32
    %14 = arith.cmpi ne, %13, %c0_i32_5 : i32
    scf.if %14 {
      %c0 = arith.constant 0 : index
      %c0_8 = arith.constant 0 : index
      %18 = vector.load %arg8[%c0, %c0_8] : memref<8x128xf32, #tpu.memory_space<vmem>>, vector<8x128xf32>
      %c0_9 = arith.constant 0 : index
      %c0_10 = arith.constant 0 : index
      %19 = vector.load %arg9[%c0_9, %c0_10] : memref<8x128xf32, #tpu.memory_space<vmem>>, vector<8x128xf32>
      %cst = arith.constant 0.000000e+00 : f32
      %20 = vector.broadcast %cst : f32 to vector<8x32xf32>
      %cst_11 = arith.constant 0.000000e+00 : f32
      %21 = vector.broadcast %cst_11 : f32 to vector<8x32xf32>
      %22 = vector.extract_strided_slice %18 {offsets = [0, 0], sizes = [8, 32], strides = [1, 1]} : vector<8x128xf32> to vector<8x32xf32>
      %23 = arith.addf %20, %22 : vector<8x32xf32>
      %24 = vector.extract_strided_slice %19 {offsets = [0, 0], sizes = [8, 32], strides = [1, 1]} : vector<8x128xf32> to vector<8x32xf32>
      %25 = arith.addf %21, %24 : vector<8x32xf32>
      %26 = vector.extract_strided_slice %18 {offsets = [0, 32], sizes = [8, 32], strides = [1, 1]} : vector<8x128xf32> to vector<8x32xf32>
      %27 = arith.addf %23, %26 : vector<8x32xf32>
      %28 = vector.extract_strided_slice %19 {offsets = [0, 32], sizes = [8, 32], strides = [1, 1]} : vector<8x128xf32> to vector<8x32xf32>
      %29 = arith.addf %25, %28 : vector<8x32xf32>
      %30 = vector.extract_strided_slice %18 {offsets = [0, 64], sizes = [8, 32], strides = [1, 1]} : vector<8x128xf32> to vector<8x32xf32>
      %31 = arith.addf %27, %30 : vector<8x32xf32>
      %32 = vector.extract_strided_slice %19 {offsets = [0, 64], sizes = [8, 32], strides = [1, 1]} : vector<8x128xf32> to vector<8x32xf32>
      %33 = arith.addf %29, %32 : vector<8x32xf32>
      %34 = vector.extract_strided_slice %18 {offsets = [0, 96], sizes = [8, 32], strides = [1, 1]} : vector<8x128xf32> to vector<8x32xf32>
      %35 = arith.addf %31, %34 : vector<8x32xf32>
      %36 = vector.extract_strided_slice %19 {offsets = [0, 96], sizes = [8, 32], strides = [1, 1]} : vector<8x128xf32> to vector<8x32xf32>
      %37 = arith.addf %33, %36 : vector<8x32xf32>
      %cst_12 = arith.constant dense<0.000000e+00> : vector<32xf32>
      %38 = vector.multi_reduction <add>, %35, %cst_12 [0] : vector<8x32xf32> to vector<32xf32>
      %39 = vector.shape_cast %38 : vector<32xf32> to vector<1x32xf32>
      %cst_13 = arith.constant 7.812500e-03 : f32
      %40 = vector.broadcast %cst_13 : f32 to vector<1x32xf32>
      %41 = arith.mulf %39, %40 : vector<1x32xf32>
      %cst_14 = arith.constant dense<0.000000e+00> : vector<32xf32>
      %42 = vector.multi_reduction <add>, %37, %cst_14 [0] : vector<8x32xf32> to vector<32xf32>
      %43 = vector.shape_cast %42 : vector<32xf32> to vector<1x32xf32>
      %cst_15 = arith.constant 7.812500e-03 : f32
      %44 = vector.broadcast %cst_15 : f32 to vector<1x32xf32>
      %45 = arith.mulf %43, %44 : vector<1x32xf32>
      %46 = arith.mulf %41, %41 : vector<1x32xf32>
      %47 = arith.subf %45, %46 : vector<1x32xf32>
      %cst_16 = arith.constant 0.000000e+00 : f32
      %48 = vector.broadcast %cst_16 : f32 to vector<1x32xf32>
      %49 = arith.maximumf %47, %48 : vector<1x32xf32>
      %c0_17 = arith.constant 0 : index
      %c0_18 = arith.constant 0 : index
      %50 = vector.load %arg4[%c0_17, %c0_18] : memref<1x32xf32, #tpu.memory_space<vmem>>, vector<1x32xf32>
      %cst_19 = arith.constant 9.99999974E-6 : f32
      %51 = vector.broadcast %cst_19 : f32 to vector<1x32xf32>
      %52 = arith.addf %49, %51 : vector<1x32xf32>
      %53 = math.rsqrt %52 : vector<1x32xf32>
      %54 = arith.mulf %50, %53 : vector<1x32xf32>
      %c0_20 = arith.constant 0 : index
      %c0_21 = arith.constant 0 : index
      %55 = vector.load %arg5[%c0_20, %c0_21] : memref<1x32xf32, #tpu.memory_space<vmem>>, vector<1x32xf32>
      %56 = arith.mulf %41, %54 : vector<1x32xf32>
      %57 = arith.subf %55, %56 : vector<1x32xf32>
      %58 = tpu.concatenate %54, %54, %54, %54 in 1 : vector<1x32xf32>, vector<1x32xf32>, vector<1x32xf32>, vector<1x32xf32> -> vector<1x128xf32>
      %c0_22 = arith.constant 0 : index
      %c0_23 = arith.constant 0 : index
      %59 = vector.load %arg10[%c0_22, %c0_23] : memref<1x128xf32, #tpu.memory_space<vmem>>, vector<1x128xf32>
      tpu.vector_store %arg10[%c0_22, %c0_23], %58 {strides = array<i32>} : memref<1x128xf32, #tpu.memory_space<vmem>>, vector<1x128xf32>,
      %60 = tpu.concatenate %57, %57, %57, %57 in 1 : vector<1x32xf32>, vector<1x32xf32>, vector<1x32xf32>, vector<1x32xf32> -> vector<1x128xf32>
      %c0_24 = arith.constant 0 : index
      %c0_25 = arith.constant 0 : index
      %61 = vector.load %arg11[%c0_24, %c0_25] : memref<1x128xf32, #tpu.memory_space<vmem>>, vector<1x128xf32>
      tpu.vector_store %arg11[%c0_24, %c0_25], %60 {strides = array<i32>} : memref<1x128xf32, #tpu.memory_space<vmem>>, vector<1x128xf32>,
    } else {
    }
    %c1_i32_6 = arith.constant 1 : i32
    %15 = arith.cmpi eq, %arg0, %c1_i32_6 : i32
    %16 = arith.extui %15 : i1 to i32
    %c0_i32_7 = arith.constant 0 : i32
    %17 = arith.cmpi ne, %16, %c0_i32_7 : i32
    scf.if %17 {
      %18 = arith.index_cast %1 : i32 to index
      %c0 = arith.constant 0 : index
      %19 = vector.load %arg7[%18, %c0] : memref<32x128xbf16, #tpu.memory_space<vmem>>, vector<32x128xbf16>
      %20 = arith.extf %19 : vector<32x128xbf16> to vector<32x128xf32>
      %c0_8 = arith.constant 0 : index
      %c0_9 = arith.constant 0 : index
      %21 = vector.load %arg10[%c0_8, %c0_9] : memref<1x128xf32, #tpu.memory_space<vmem>>, vector<1x128xf32>
      %22 = vector.broadcast %21 : vector<1x128xf32> to vector<32x128xf32>
      %23 = arith.mulf %20, %22 : vector<32x128xf32>
      %c0_10 = arith.constant 0 : index
      %c0_11 = arith.constant 0 : index
      %24 = vector.load %arg11[%c0_10, %c0_11] : memref<1x128xf32, #tpu.memory_space<vmem>>, vector<1x128xf32>
      %25 = vector.broadcast %24 : vector<1x128xf32> to vector<32x128xf32>
      %26 = arith.addf %23, %25 : vector<32x128xf32>
      %cst = arith.constant 0.000000e+00 : f32
      %27 = vector.broadcast %cst : f32 to vector<32x128xf32>
      %28 = arith.maximumf %26, %27 : vector<32x128xf32>
      %29 = arith.truncf %28 : vector<32x128xf32> to vector<32x128xbf16>
      %c0_12 = arith.constant 0 : index
      %c0_13 = arith.constant 0 : index
      %30 = vector.load %arg6[%c0_12, %c0_13] : memref<32x128xbf16, #tpu.memory_space<vmem>>, vector<32x128xbf16>
      tpu.vector_store %arg6[%c0_12, %c0_13], %29 {strides = array<i32>} : memref<32x128xbf16, #tpu.memory_space<vmem>>, vector<32x128xbf16>,
    } else {
    }
    return
  }
  func.func @transform_0(%arg0: i32, %arg1: i32) -> (i32, i32) {
    %c1_i32 = arith.constant 1 : i32
    %0 = arith.subi %c1_i32, %arg0 : i32
    %1 = arith.muli %0, %arg1 : i32
    %c0_i32 = arith.constant 0 : i32
    %c0_i32_0 = arith.constant 0 : i32
    return %1, %c0_i32 : i32, i32
  }
  func.func @transform_1(%arg0: i32, %arg1: i32) -> (i32, i32) {
    %c0_i32 = arith.constant 0 : i32
    %c0_i32_0 = arith.constant 0 : i32
    %c0_i32_1 = arith.constant 0 : i32
    return %c0_i32, %c0_i32_0 : i32, i32
  }
  func.func @transform_2(%arg0: i32, %arg1: i32) -> (i32, i32) {
    %c0_i32 = arith.constant 0 : i32
    %c0_i32_0 = arith.constant 0 : i32
    %c0_i32_1 = arith.constant 0 : i32
    return %c0_i32, %c0_i32_0 : i32, i32
  }
  func.func @transform_3(%arg0: i32, %arg1: i32) -> (i32, i32) {
    %c0_i32 = arith.constant 0 : i32
    %c0_i32_0 = arith.constant 0 : i32
    %c0_i32_1 = arith.constant 0 : i32
    return %c0_i32, %c0_i32_0 : i32, i32
  }
  func.func @transform_4(%arg0: i32, %arg1: i32) -> (i32, i32) {
    %0 = arith.muli %arg1, %arg0 : i32
    %c0_i32 = arith.constant 0 : i32
    %c0_i32_0 = arith.constant 0 : i32
    return %0, %c0_i32 : i32, i32
  }
}

module attributes {stable_mosaic.version = 11 : i64} {
  func.func @_fused_convt_bn_relu_kernel(%arg0: i32, %arg1: i32, %arg2: memref<128x288xbf16, #tpu.memory_space<vmem>>, %arg3: memref<288x64xbf16, #tpu.memory_space<vmem>>, %arg4: memref<1x16xf32, #tpu.memory_space<vmem>>, %arg5: memref<1x16xf32, #tpu.memory_space<vmem>>, %arg6: memref<128x64xbf16, #tpu.memory_space<vmem>>, %arg7: memref<128x64xbf16, #tpu.memory_space<vmem>>, %arg8: memref<8x64xf32, #tpu.memory_space<vmem>>, %arg9: memref<8x64xf32, #tpu.memory_space<vmem>>, %arg10: memref<1x64xf32, #tpu.memory_space<vmem>>, %arg11: memref<1x64xf32, #tpu.memory_space<vmem>>) attributes {dimension_semantics = [#tpu.dimension_semantics<arbitrary>, #tpu.dimension_semantics<arbitrary>], iteration_bounds = array<i64: 2, 1>, scalar_prefetch = 0 : i64, scratch_operands = 5 : i64, tpu.core_type = #tpu.core_type<tc>, window_params = [{transform_indices = @transform_0, window_bounds = array<i64: 128, 288>}, {pipeline_mode = #tpu.pipeline_mode<synchronous>, transform_indices = @transform_1, window_bounds = array<i64: 288, 64>}, {pipeline_mode = #tpu.pipeline_mode<synchronous>, transform_indices = @transform_2, window_bounds = array<i64: 1, 16>}, {pipeline_mode = #tpu.pipeline_mode<synchronous>, transform_indices = @transform_3, window_bounds = array<i64: 1, 16>}, {transform_indices = @transform_4, window_bounds = array<i64: 128, 64>}]} {
    %c128_i32 = arith.constant 128 : i32
    %0 = arith.muli %arg1, %c128_i32 : i32
    %1 = tpu.assume_multiple %0, 128 : i32
    %c0_i32 = arith.constant 0 : i32
    %2 = arith.cmpi eq, %arg0, %c0_i32 : i32
    %c0_i32_0 = arith.constant 0 : i32
    %3 = arith.cmpi eq, %arg1, %c0_i32_0 : i32
    %4 = arith.andi %2, %3 : i1
    %5 = arith.extui %4 : i1 to i32
    %c0_i32_1 = arith.constant 0 : i32
    %6 = arith.cmpi ne, %5, %c0_i32_1 : i32
    scf.if %6 {
      %cst = arith.constant 0.000000e+00 : f32
      %18 = vector.broadcast %cst : f32 to vector<8x64xf32>
      %c0 = arith.constant 0 : index
      %c0_8 = arith.constant 0 : index
      %19 = vector.load %arg8[%c0, %c0_8] : memref<8x64xf32, #tpu.memory_space<vmem>>, vector<8x64xf32>
      tpu.vector_store %arg8[%c0, %c0_8], %18 {strides = array<i32>} : memref<8x64xf32, #tpu.memory_space<vmem>>, vector<8x64xf32>,
      %cst_9 = arith.constant 0.000000e+00 : f32
      %20 = vector.broadcast %cst_9 : f32 to vector<8x64xf32>
      %c0_10 = arith.constant 0 : index
      %c0_11 = arith.constant 0 : index
      %21 = vector.load %arg9[%c0_10, %c0_11] : memref<8x64xf32, #tpu.memory_space<vmem>>, vector<8x64xf32>
      tpu.vector_store %arg9[%c0_10, %c0_11], %20 {strides = array<i32>} : memref<8x64xf32, #tpu.memory_space<vmem>>, vector<8x64xf32>,
    } else {
    }
    %c0_i32_2 = arith.constant 0 : i32
    %7 = arith.cmpi eq, %arg0, %c0_i32_2 : i32
    %8 = arith.extui %7 : i1 to i32
    %c0_i32_3 = arith.constant 0 : i32
    %9 = arith.cmpi ne, %8, %c0_i32_3 : i32
    scf.if %9 {
      %c0 = arith.constant 0 : index
      %c0_8 = arith.constant 0 : index
      %18 = vector.load %arg2[%c0, %c0_8] : memref<128x288xbf16, #tpu.memory_space<vmem>>, vector<128x288xbf16>
      %c0_9 = arith.constant 0 : index
      %c0_10 = arith.constant 0 : index
      %19 = vector.load %arg3[%c0_9, %c0_10] : memref<288x64xbf16, #tpu.memory_space<vmem>>, vector<288x64xbf16>
      %cst = arith.constant dense<0.000000e+00> : vector<128x64xf32>
      %20 = tpu.matmul %18, %19, %cst {dimension_numbers = #tpu.dot_dimension_numbers<[1], [0], [0], [1], [0, 0, 1, 1], [], []>} : vector<128x288xbf16>, vector<288x64xbf16>, vector<128x64xf32> -> vector<128x64xf32>
      %21 = arith.truncf %20 : vector<128x64xf32> to vector<128x64xbf16>
      %22 = arith.index_cast %1 : i32 to index
      %c0_11 = arith.constant 0 : index
      %23 = vector.load %arg7[%22, %c0_11] : memref<128x64xbf16, #tpu.memory_space<vmem>>, vector<128x64xbf16>
      tpu.vector_store %arg7[%22, %c0_11], %21 {strides = array<i32>} : memref<128x64xbf16, #tpu.memory_space<vmem>>, vector<128x64xbf16>,
      %24 = vector.shape_cast %20 : vector<128x64xf32> to vector<16x8x64xf32>
      %c0_12 = arith.constant 0 : index
      %c0_13 = arith.constant 0 : index
      %25 = vector.load %arg8[%c0_12, %c0_13] : memref<8x64xf32, #tpu.memory_space<vmem>>, vector<8x64xf32>
      %cst_14 = arith.constant dense<0.000000e+00> : vector<8x64xf32>
      %26 = vector.multi_reduction <add>, %24, %cst_14 [0] : vector<16x8x64xf32> to vector<8x64xf32>
      %27 = arith.addf %25, %26 : vector<8x64xf32>
      %c0_15 = arith.constant 0 : index
      %c0_16 = arith.constant 0 : index
      %28 = vector.load %arg8[%c0_15, %c0_16] : memref<8x64xf32, #tpu.memory_space<vmem>>, vector<8x64xf32>
      tpu.vector_store %arg8[%c0_15, %c0_16], %27 {strides = array<i32>} : memref<8x64xf32, #tpu.memory_space<vmem>>, vector<8x64xf32>,
      %c0_17 = arith.constant 0 : index
      %c0_18 = arith.constant 0 : index
      %29 = vector.load %arg9[%c0_17, %c0_18] : memref<8x64xf32, #tpu.memory_space<vmem>>, vector<8x64xf32>
      %30 = arith.mulf %24, %24 : vector<16x8x64xf32>
      %cst_19 = arith.constant dense<0.000000e+00> : vector<8x64xf32>
      %31 = vector.multi_reduction <add>, %30, %cst_19 [0] : vector<16x8x64xf32> to vector<8x64xf32>
      %32 = arith.addf %29, %31 : vector<8x64xf32>
      %c0_20 = arith.constant 0 : index
      %c0_21 = arith.constant 0 : index
      %33 = vector.load %arg9[%c0_20, %c0_21] : memref<8x64xf32, #tpu.memory_space<vmem>>, vector<8x64xf32>
      tpu.vector_store %arg9[%c0_20, %c0_21], %32 {strides = array<i32>} : memref<8x64xf32, #tpu.memory_space<vmem>>, vector<8x64xf32>,
    } else {
    }
    %c1_i32 = arith.constant 1 : i32
    %10 = arith.cmpi eq, %arg0, %c1_i32 : i32
    %c0_i32_4 = arith.constant 0 : i32
    %11 = arith.cmpi eq, %arg1, %c0_i32_4 : i32
    %12 = arith.andi %10, %11 : i1
    %13 = arith.extui %12 : i1 to i32
    %c0_i32_5 = arith.constant 0 : i32
    %14 = arith.cmpi ne, %13, %c0_i32_5 : i32
    scf.if %14 {
      %c0 = arith.constant 0 : index
      %c0_8 = arith.constant 0 : index
      %18 = vector.load %arg8[%c0, %c0_8] : memref<8x64xf32, #tpu.memory_space<vmem>>, vector<8x64xf32>
      %c0_9 = arith.constant 0 : index
      %c0_10 = arith.constant 0 : index
      %19 = vector.load %arg9[%c0_9, %c0_10] : memref<8x64xf32, #tpu.memory_space<vmem>>, vector<8x64xf32>
      %cst = arith.constant 0.000000e+00 : f32
      %20 = vector.broadcast %cst : f32 to vector<8x16xf32>
      %cst_11 = arith.constant 0.000000e+00 : f32
      %21 = vector.broadcast %cst_11 : f32 to vector<8x16xf32>
      %22 = vector.extract_strided_slice %18 {offsets = [0, 0], sizes = [8, 16], strides = [1, 1]} : vector<8x64xf32> to vector<8x16xf32>
      %23 = arith.addf %20, %22 : vector<8x16xf32>
      %24 = vector.extract_strided_slice %19 {offsets = [0, 0], sizes = [8, 16], strides = [1, 1]} : vector<8x64xf32> to vector<8x16xf32>
      %25 = arith.addf %21, %24 : vector<8x16xf32>
      %26 = vector.extract_strided_slice %18 {offsets = [0, 16], sizes = [8, 16], strides = [1, 1]} : vector<8x64xf32> to vector<8x16xf32>
      %27 = arith.addf %23, %26 : vector<8x16xf32>
      %28 = vector.extract_strided_slice %19 {offsets = [0, 16], sizes = [8, 16], strides = [1, 1]} : vector<8x64xf32> to vector<8x16xf32>
      %29 = arith.addf %25, %28 : vector<8x16xf32>
      %30 = vector.extract_strided_slice %18 {offsets = [0, 32], sizes = [8, 16], strides = [1, 1]} : vector<8x64xf32> to vector<8x16xf32>
      %31 = arith.addf %27, %30 : vector<8x16xf32>
      %32 = vector.extract_strided_slice %19 {offsets = [0, 32], sizes = [8, 16], strides = [1, 1]} : vector<8x64xf32> to vector<8x16xf32>
      %33 = arith.addf %29, %32 : vector<8x16xf32>
      %34 = vector.extract_strided_slice %18 {offsets = [0, 48], sizes = [8, 16], strides = [1, 1]} : vector<8x64xf32> to vector<8x16xf32>
      %35 = arith.addf %31, %34 : vector<8x16xf32>
      %36 = vector.extract_strided_slice %19 {offsets = [0, 48], sizes = [8, 16], strides = [1, 1]} : vector<8x64xf32> to vector<8x16xf32>
      %37 = arith.addf %33, %36 : vector<8x16xf32>
      %cst_12 = arith.constant dense<0.000000e+00> : vector<16xf32>
      %38 = vector.multi_reduction <add>, %35, %cst_12 [0] : vector<8x16xf32> to vector<16xf32>
      %39 = vector.shape_cast %38 : vector<16xf32> to vector<1x16xf32>
      %cst_13 = arith.constant 0.001953125 : f32
      %40 = vector.broadcast %cst_13 : f32 to vector<1x16xf32>
      %41 = arith.mulf %39, %40 : vector<1x16xf32>
      %cst_14 = arith.constant dense<0.000000e+00> : vector<16xf32>
      %42 = vector.multi_reduction <add>, %37, %cst_14 [0] : vector<8x16xf32> to vector<16xf32>
      %43 = vector.shape_cast %42 : vector<16xf32> to vector<1x16xf32>
      %cst_15 = arith.constant 0.001953125 : f32
      %44 = vector.broadcast %cst_15 : f32 to vector<1x16xf32>
      %45 = arith.mulf %43, %44 : vector<1x16xf32>
      %46 = arith.mulf %41, %41 : vector<1x16xf32>
      %47 = arith.subf %45, %46 : vector<1x16xf32>
      %cst_16 = arith.constant 0.000000e+00 : f32
      %48 = vector.broadcast %cst_16 : f32 to vector<1x16xf32>
      %49 = arith.maximumf %47, %48 : vector<1x16xf32>
      %c0_17 = arith.constant 0 : index
      %c0_18 = arith.constant 0 : index
      %50 = vector.load %arg4[%c0_17, %c0_18] : memref<1x16xf32, #tpu.memory_space<vmem>>, vector<1x16xf32>
      %cst_19 = arith.constant 9.99999974E-6 : f32
      %51 = vector.broadcast %cst_19 : f32 to vector<1x16xf32>
      %52 = arith.addf %49, %51 : vector<1x16xf32>
      %53 = math.rsqrt %52 : vector<1x16xf32>
      %54 = arith.mulf %50, %53 : vector<1x16xf32>
      %c0_20 = arith.constant 0 : index
      %c0_21 = arith.constant 0 : index
      %55 = vector.load %arg5[%c0_20, %c0_21] : memref<1x16xf32, #tpu.memory_space<vmem>>, vector<1x16xf32>
      %56 = arith.mulf %41, %54 : vector<1x16xf32>
      %57 = arith.subf %55, %56 : vector<1x16xf32>
      %58 = tpu.concatenate %54, %54, %54, %54 in 1 : vector<1x16xf32>, vector<1x16xf32>, vector<1x16xf32>, vector<1x16xf32> -> vector<1x64xf32>
      %c0_22 = arith.constant 0 : index
      %c0_23 = arith.constant 0 : index
      %59 = vector.load %arg10[%c0_22, %c0_23] : memref<1x64xf32, #tpu.memory_space<vmem>>, vector<1x64xf32>
      tpu.vector_store %arg10[%c0_22, %c0_23], %58 {strides = array<i32>} : memref<1x64xf32, #tpu.memory_space<vmem>>, vector<1x64xf32>,
      %60 = tpu.concatenate %57, %57, %57, %57 in 1 : vector<1x16xf32>, vector<1x16xf32>, vector<1x16xf32>, vector<1x16xf32> -> vector<1x64xf32>
      %c0_24 = arith.constant 0 : index
      %c0_25 = arith.constant 0 : index
      %61 = vector.load %arg11[%c0_24, %c0_25] : memref<1x64xf32, #tpu.memory_space<vmem>>, vector<1x64xf32>
      tpu.vector_store %arg11[%c0_24, %c0_25], %60 {strides = array<i32>} : memref<1x64xf32, #tpu.memory_space<vmem>>, vector<1x64xf32>,
    } else {
    }
    %c1_i32_6 = arith.constant 1 : i32
    %15 = arith.cmpi eq, %arg0, %c1_i32_6 : i32
    %16 = arith.extui %15 : i1 to i32
    %c0_i32_7 = arith.constant 0 : i32
    %17 = arith.cmpi ne, %16, %c0_i32_7 : i32
    scf.if %17 {
      %18 = arith.index_cast %1 : i32 to index
      %c0 = arith.constant 0 : index
      %19 = vector.load %arg7[%18, %c0] : memref<128x64xbf16, #tpu.memory_space<vmem>>, vector<128x64xbf16>
      %20 = arith.extf %19 : vector<128x64xbf16> to vector<128x64xf32>
      %c0_8 = arith.constant 0 : index
      %c0_9 = arith.constant 0 : index
      %21 = vector.load %arg10[%c0_8, %c0_9] : memref<1x64xf32, #tpu.memory_space<vmem>>, vector<1x64xf32>
      %22 = vector.broadcast %21 : vector<1x64xf32> to vector<128x64xf32>
      %23 = arith.mulf %20, %22 : vector<128x64xf32>
      %c0_10 = arith.constant 0 : index
      %c0_11 = arith.constant 0 : index
      %24 = vector.load %arg11[%c0_10, %c0_11] : memref<1x64xf32, #tpu.memory_space<vmem>>, vector<1x64xf32>
      %25 = vector.broadcast %24 : vector<1x64xf32> to vector<128x64xf32>
      %26 = arith.addf %23, %25 : vector<128x64xf32>
      %cst = arith.constant 0.000000e+00 : f32
      %27 = vector.broadcast %cst : f32 to vector<128x64xf32>
      %28 = arith.maximumf %26, %27 : vector<128x64xf32>
      %29 = arith.truncf %28 : vector<128x64xf32> to vector<128x64xbf16>
      %c0_12 = arith.constant 0 : index
      %c0_13 = arith.constant 0 : index
      %30 = vector.load %arg6[%c0_12, %c0_13] : memref<128x64xbf16, #tpu.memory_space<vmem>>, vector<128x64xbf16>
      tpu.vector_store %arg6[%c0_12, %c0_13], %29 {strides = array<i32>} : memref<128x64xbf16, #tpu.memory_space<vmem>>, vector<128x64xbf16>,
    } else {
    }
    return
  }
  func.func @transform_0(%arg0: i32, %arg1: i32) -> (i32, i32) {
    %c1_i32 = arith.constant 1 : i32
    %0 = arith.subi %c1_i32, %arg0 : i32
    %1 = arith.muli %0, %arg1 : i32
    %c0_i32 = arith.constant 0 : i32
    %c0_i32_0 = arith.constant 0 : i32
    return %1, %c0_i32 : i32, i32
  }
  func.func @transform_1(%arg0: i32, %arg1: i32) -> (i32, i32) {
    %c0_i32 = arith.constant 0 : i32
    %c0_i32_0 = arith.constant 0 : i32
    %c0_i32_1 = arith.constant 0 : i32
    return %c0_i32, %c0_i32_0 : i32, i32
  }
  func.func @transform_2(%arg0: i32, %arg1: i32) -> (i32, i32) {
    %c0_i32 = arith.constant 0 : i32
    %c0_i32_0 = arith.constant 0 : i32
    %c0_i32_1 = arith.constant 0 : i32
    return %c0_i32, %c0_i32_0 : i32, i32
  }
  func.func @transform_3(%arg0: i32, %arg1: i32) -> (i32, i32) {
    %c0_i32 = arith.constant 0 : i32
    %c0_i32_0 = arith.constant 0 : i32
    %c0_i32_1 = arith.constant 0 : i32
    return %c0_i32, %c0_i32_0 : i32, i32
  }
  func.func @transform_4(%arg0: i32, %arg1: i32) -> (i32, i32) {
    %0 = arith.muli %arg1, %arg0 : i32
    %c0_i32 = arith.constant 0 : i32
    %c0_i32_0 = arith.constant 0 : i32
    return %0, %c0_i32 : i32, i32
  }
}

module attributes {stable_mosaic.version = 11 : i64} {
  func.func @_fused_convt_bn_relu_kernel(%arg0: i32, %arg1: i32, %arg2: memref<512x144xbf16, #tpu.memory_space<vmem>>, %arg3: memref<144x32xbf16, #tpu.memory_space<vmem>>, %arg4: memref<1x8xf32, #tpu.memory_space<vmem>>, %arg5: memref<1x8xf32, #tpu.memory_space<vmem>>, %arg6: memref<512x32xbf16, #tpu.memory_space<vmem>>, %arg7: memref<512x32xbf16, #tpu.memory_space<vmem>>, %arg8: memref<8x32xf32, #tpu.memory_space<vmem>>, %arg9: memref<8x32xf32, #tpu.memory_space<vmem>>, %arg10: memref<1x32xf32, #tpu.memory_space<vmem>>, %arg11: memref<1x32xf32, #tpu.memory_space<vmem>>) attributes {dimension_semantics = [#tpu.dimension_semantics<arbitrary>, #tpu.dimension_semantics<arbitrary>], iteration_bounds = array<i64: 2, 1>, scalar_prefetch = 0 : i64, scratch_operands = 5 : i64, tpu.core_type = #tpu.core_type<tc>, window_params = [{transform_indices = @transform_0, window_bounds = array<i64: 512, 144>}, {pipeline_mode = #tpu.pipeline_mode<synchronous>, transform_indices = @transform_1, window_bounds = array<i64: 144, 32>}, {pipeline_mode = #tpu.pipeline_mode<synchronous>, transform_indices = @transform_2, window_bounds = array<i64: 1, 8>}, {pipeline_mode = #tpu.pipeline_mode<synchronous>, transform_indices = @transform_3, window_bounds = array<i64: 1, 8>}, {transform_indices = @transform_4, window_bounds = array<i64: 512, 32>}]} {
    %c512_i32 = arith.constant 512 : i32
    %0 = arith.muli %arg1, %c512_i32 : i32
    %1 = tpu.assume_multiple %0, 512 : i32
    %c0_i32 = arith.constant 0 : i32
    %2 = arith.cmpi eq, %arg0, %c0_i32 : i32
    %c0_i32_0 = arith.constant 0 : i32
    %3 = arith.cmpi eq, %arg1, %c0_i32_0 : i32
    %4 = arith.andi %2, %3 : i1
    %5 = arith.extui %4 : i1 to i32
    %c0_i32_1 = arith.constant 0 : i32
    %6 = arith.cmpi ne, %5, %c0_i32_1 : i32
    scf.if %6 {
      %cst = arith.constant 0.000000e+00 : f32
      %18 = vector.broadcast %cst : f32 to vector<8x32xf32>
      %c0 = arith.constant 0 : index
      %c0_8 = arith.constant 0 : index
      %19 = vector.load %arg8[%c0, %c0_8] : memref<8x32xf32, #tpu.memory_space<vmem>>, vector<8x32xf32>
      tpu.vector_store %arg8[%c0, %c0_8], %18 {strides = array<i32>} : memref<8x32xf32, #tpu.memory_space<vmem>>, vector<8x32xf32>,
      %cst_9 = arith.constant 0.000000e+00 : f32
      %20 = vector.broadcast %cst_9 : f32 to vector<8x32xf32>
      %c0_10 = arith.constant 0 : index
      %c0_11 = arith.constant 0 : index
      %21 = vector.load %arg9[%c0_10, %c0_11] : memref<8x32xf32, #tpu.memory_space<vmem>>, vector<8x32xf32>
      tpu.vector_store %arg9[%c0_10, %c0_11], %20 {strides = array<i32>} : memref<8x32xf32, #tpu.memory_space<vmem>>, vector<8x32xf32>,
    } else {
    }
    %c0_i32_2 = arith.constant 0 : i32
    %7 = arith.cmpi eq, %arg0, %c0_i32_2 : i32
    %8 = arith.extui %7 : i1 to i32
    %c0_i32_3 = arith.constant 0 : i32
    %9 = arith.cmpi ne, %8, %c0_i32_3 : i32
    scf.if %9 {
      %c0 = arith.constant 0 : index
      %c0_8 = arith.constant 0 : index
      %18 = vector.load %arg2[%c0, %c0_8] : memref<512x144xbf16, #tpu.memory_space<vmem>>, vector<512x144xbf16>
      %c0_9 = arith.constant 0 : index
      %c0_10 = arith.constant 0 : index
      %19 = vector.load %arg3[%c0_9, %c0_10] : memref<144x32xbf16, #tpu.memory_space<vmem>>, vector<144x32xbf16>
      %cst = arith.constant dense<0.000000e+00> : vector<512x32xf32>
      %20 = tpu.matmul %18, %19, %cst {dimension_numbers = #tpu.dot_dimension_numbers<[1], [0], [0], [1], [0, 0, 1, 1], [], []>} : vector<512x144xbf16>, vector<144x32xbf16>, vector<512x32xf32> -> vector<512x32xf32>
      %21 = arith.truncf %20 : vector<512x32xf32> to vector<512x32xbf16>
      %22 = arith.index_cast %1 : i32 to index
      %c0_11 = arith.constant 0 : index
      %23 = vector.load %arg7[%22, %c0_11] : memref<512x32xbf16, #tpu.memory_space<vmem>>, vector<512x32xbf16>
      tpu.vector_store %arg7[%22, %c0_11], %21 {strides = array<i32>} : memref<512x32xbf16, #tpu.memory_space<vmem>>, vector<512x32xbf16>,
      %24 = vector.shape_cast %20 : vector<512x32xf32> to vector<64x8x32xf32>
      %c0_12 = arith.constant 0 : index
      %c0_13 = arith.constant 0 : index
      %25 = vector.load %arg8[%c0_12, %c0_13] : memref<8x32xf32, #tpu.memory_space<vmem>>, vector<8x32xf32>
      %cst_14 = arith.constant dense<0.000000e+00> : vector<8x32xf32>
      %26 = vector.multi_reduction <add>, %24, %cst_14 [0] : vector<64x8x32xf32> to vector<8x32xf32>
      %27 = arith.addf %25, %26 : vector<8x32xf32>
      %c0_15 = arith.constant 0 : index
      %c0_16 = arith.constant 0 : index
      %28 = vector.load %arg8[%c0_15, %c0_16] : memref<8x32xf32, #tpu.memory_space<vmem>>, vector<8x32xf32>
      tpu.vector_store %arg8[%c0_15, %c0_16], %27 {strides = array<i32>} : memref<8x32xf32, #tpu.memory_space<vmem>>, vector<8x32xf32>,
      %c0_17 = arith.constant 0 : index
      %c0_18 = arith.constant 0 : index
      %29 = vector.load %arg9[%c0_17, %c0_18] : memref<8x32xf32, #tpu.memory_space<vmem>>, vector<8x32xf32>
      %30 = arith.mulf %24, %24 : vector<64x8x32xf32>
      %cst_19 = arith.constant dense<0.000000e+00> : vector<8x32xf32>
      %31 = vector.multi_reduction <add>, %30, %cst_19 [0] : vector<64x8x32xf32> to vector<8x32xf32>
      %32 = arith.addf %29, %31 : vector<8x32xf32>
      %c0_20 = arith.constant 0 : index
      %c0_21 = arith.constant 0 : index
      %33 = vector.load %arg9[%c0_20, %c0_21] : memref<8x32xf32, #tpu.memory_space<vmem>>, vector<8x32xf32>
      tpu.vector_store %arg9[%c0_20, %c0_21], %32 {strides = array<i32>} : memref<8x32xf32, #tpu.memory_space<vmem>>, vector<8x32xf32>,
    } else {
    }
    %c1_i32 = arith.constant 1 : i32
    %10 = arith.cmpi eq, %arg0, %c1_i32 : i32
    %c0_i32_4 = arith.constant 0 : i32
    %11 = arith.cmpi eq, %arg1, %c0_i32_4 : i32
    %12 = arith.andi %10, %11 : i1
    %13 = arith.extui %12 : i1 to i32
    %c0_i32_5 = arith.constant 0 : i32
    %14 = arith.cmpi ne, %13, %c0_i32_5 : i32
    scf.if %14 {
      %c0 = arith.constant 0 : index
      %c0_8 = arith.constant 0 : index
      %18 = vector.load %arg8[%c0, %c0_8] : memref<8x32xf32, #tpu.memory_space<vmem>>, vector<8x32xf32>
      %c0_9 = arith.constant 0 : index
      %c0_10 = arith.constant 0 : index
      %19 = vector.load %arg9[%c0_9, %c0_10] : memref<8x32xf32, #tpu.memory_space<vmem>>, vector<8x32xf32>
      %cst = arith.constant 0.000000e+00 : f32
      %20 = vector.broadcast %cst : f32 to vector<8x8xf32>
      %cst_11 = arith.constant 0.000000e+00 : f32
      %21 = vector.broadcast %cst_11 : f32 to vector<8x8xf32>
      %22 = vector.extract_strided_slice %18 {offsets = [0, 0], sizes = [8, 8], strides = [1, 1]} : vector<8x32xf32> to vector<8x8xf32>
      %23 = arith.addf %20, %22 : vector<8x8xf32>
      %24 = vector.extract_strided_slice %19 {offsets = [0, 0], sizes = [8, 8], strides = [1, 1]} : vector<8x32xf32> to vector<8x8xf32>
      %25 = arith.addf %21, %24 : vector<8x8xf32>
      %26 = vector.extract_strided_slice %18 {offsets = [0, 8], sizes = [8, 8], strides = [1, 1]} : vector<8x32xf32> to vector<8x8xf32>
      %27 = arith.addf %23, %26 : vector<8x8xf32>
      %28 = vector.extract_strided_slice %19 {offsets = [0, 8], sizes = [8, 8], strides = [1, 1]} : vector<8x32xf32> to vector<8x8xf32>
      %29 = arith.addf %25, %28 : vector<8x8xf32>
      %30 = vector.extract_strided_slice %18 {offsets = [0, 16], sizes = [8, 8], strides = [1, 1]} : vector<8x32xf32> to vector<8x8xf32>
      %31 = arith.addf %27, %30 : vector<8x8xf32>
      %32 = vector.extract_strided_slice %19 {offsets = [0, 16], sizes = [8, 8], strides = [1, 1]} : vector<8x32xf32> to vector<8x8xf32>
      %33 = arith.addf %29, %32 : vector<8x8xf32>
      %34 = vector.extract_strided_slice %18 {offsets = [0, 24], sizes = [8, 8], strides = [1, 1]} : vector<8x32xf32> to vector<8x8xf32>
      %35 = arith.addf %31, %34 : vector<8x8xf32>
      %36 = vector.extract_strided_slice %19 {offsets = [0, 24], sizes = [8, 8], strides = [1, 1]} : vector<8x32xf32> to vector<8x8xf32>
      %37 = arith.addf %33, %36 : vector<8x8xf32>
      %cst_12 = arith.constant dense<0.000000e+00> : vector<8xf32>
      %38 = vector.multi_reduction <add>, %35, %cst_12 [0] : vector<8x8xf32> to vector<8xf32>
      %39 = vector.shape_cast %38 : vector<8xf32> to vector<1x8xf32>
      %cst_13 = arith.constant 4.8828125E-4 : f32
      %40 = vector.broadcast %cst_13 : f32 to vector<1x8xf32>
      %41 = arith.mulf %39, %40 : vector<1x8xf32>
      %cst_14 = arith.constant dense<0.000000e+00> : vector<8xf32>
      %42 = vector.multi_reduction <add>, %37, %cst_14 [0] : vector<8x8xf32> to vector<8xf32>
      %43 = vector.shape_cast %42 : vector<8xf32> to vector<1x8xf32>
      %cst_15 = arith.constant 4.8828125E-4 : f32
      %44 = vector.broadcast %cst_15 : f32 to vector<1x8xf32>
      %45 = arith.mulf %43, %44 : vector<1x8xf32>
      %46 = arith.mulf %41, %41 : vector<1x8xf32>
      %47 = arith.subf %45, %46 : vector<1x8xf32>
      %cst_16 = arith.constant 0.000000e+00 : f32
      %48 = vector.broadcast %cst_16 : f32 to vector<1x8xf32>
      %49 = arith.maximumf %47, %48 : vector<1x8xf32>
      %c0_17 = arith.constant 0 : index
      %c0_18 = arith.constant 0 : index
      %50 = vector.load %arg4[%c0_17, %c0_18] : memref<1x8xf32, #tpu.memory_space<vmem>>, vector<1x8xf32>
      %cst_19 = arith.constant 9.99999974E-6 : f32
      %51 = vector.broadcast %cst_19 : f32 to vector<1x8xf32>
      %52 = arith.addf %49, %51 : vector<1x8xf32>
      %53 = math.rsqrt %52 : vector<1x8xf32>
      %54 = arith.mulf %50, %53 : vector<1x8xf32>
      %c0_20 = arith.constant 0 : index
      %c0_21 = arith.constant 0 : index
      %55 = vector.load %arg5[%c0_20, %c0_21] : memref<1x8xf32, #tpu.memory_space<vmem>>, vector<1x8xf32>
      %56 = arith.mulf %41, %54 : vector<1x8xf32>
      %57 = arith.subf %55, %56 : vector<1x8xf32>
      %58 = tpu.concatenate %54, %54, %54, %54 in 1 : vector<1x8xf32>, vector<1x8xf32>, vector<1x8xf32>, vector<1x8xf32> -> vector<1x32xf32>
      %c0_22 = arith.constant 0 : index
      %c0_23 = arith.constant 0 : index
      %59 = vector.load %arg10[%c0_22, %c0_23] : memref<1x32xf32, #tpu.memory_space<vmem>>, vector<1x32xf32>
      tpu.vector_store %arg10[%c0_22, %c0_23], %58 {strides = array<i32>} : memref<1x32xf32, #tpu.memory_space<vmem>>, vector<1x32xf32>,
      %60 = tpu.concatenate %57, %57, %57, %57 in 1 : vector<1x8xf32>, vector<1x8xf32>, vector<1x8xf32>, vector<1x8xf32> -> vector<1x32xf32>
      %c0_24 = arith.constant 0 : index
      %c0_25 = arith.constant 0 : index
      %61 = vector.load %arg11[%c0_24, %c0_25] : memref<1x32xf32, #tpu.memory_space<vmem>>, vector<1x32xf32>
      tpu.vector_store %arg11[%c0_24, %c0_25], %60 {strides = array<i32>} : memref<1x32xf32, #tpu.memory_space<vmem>>, vector<1x32xf32>,
    } else {
    }
    %c1_i32_6 = arith.constant 1 : i32
    %15 = arith.cmpi eq, %arg0, %c1_i32_6 : i32
    %16 = arith.extui %15 : i1 to i32
    %c0_i32_7 = arith.constant 0 : i32
    %17 = arith.cmpi ne, %16, %c0_i32_7 : i32
    scf.if %17 {
      %18 = arith.index_cast %1 : i32 to index
      %c0 = arith.constant 0 : index
      %19 = vector.load %arg7[%18, %c0] : memref<512x32xbf16, #tpu.memory_space<vmem>>, vector<512x32xbf16>
      %20 = arith.extf %19 : vector<512x32xbf16> to vector<512x32xf32>
      %c0_8 = arith.constant 0 : index
      %c0_9 = arith.constant 0 : index
      %21 = vector.load %arg10[%c0_8, %c0_9] : memref<1x32xf32, #tpu.memory_space<vmem>>, vector<1x32xf32>
      %22 = vector.broadcast %21 : vector<1x32xf32> to vector<512x32xf32>
      %23 = arith.mulf %20, %22 : vector<512x32xf32>
      %c0_10 = arith.constant 0 : index
      %c0_11 = arith.constant 0 : index
      %24 = vector.load %arg11[%c0_10, %c0_11] : memref<1x32xf32, #tpu.memory_space<vmem>>, vector<1x32xf32>
      %25 = vector.broadcast %24 : vector<1x32xf32> to vector<512x32xf32>
      %26 = arith.addf %23, %25 : vector<512x32xf32>
      %cst = arith.constant 0.000000e+00 : f32
      %27 = vector.broadcast %cst : f32 to vector<512x32xf32>
      %28 = arith.maximumf %26, %27 : vector<512x32xf32>
      %29 = arith.truncf %28 : vector<512x32xf32> to vector<512x32xbf16>
      %c0_12 = arith.constant 0 : index
      %c0_13 = arith.constant 0 : index
      %30 = vector.load %arg6[%c0_12, %c0_13] : memref<512x32xbf16, #tpu.memory_space<vmem>>, vector<512x32xbf16>
      tpu.vector_store %arg6[%c0_12, %c0_13], %29 {strides = array<i32>} : memref<512x32xbf16, #tpu.memory_space<vmem>>, vector<512x32xbf16>,
    } else {
    }
    return
  }
  func.func @transform_0(%arg0: i32, %arg1: i32) -> (i32, i32) {
    %c1_i32 = arith.constant 1 : i32
    %0 = arith.subi %c1_i32, %arg0 : i32
    %1 = arith.muli %0, %arg1 : i32
    %c0_i32 = arith.constant 0 : i32
    %c0_i32_0 = arith.constant 0 : i32
    return %1, %c0_i32 : i32, i32
  }
  func.func @transform_1(%arg0: i32, %arg1: i32) -> (i32, i32) {
    %c0_i32 = arith.constant 0 : i32
    %c0_i32_0 = arith.constant 0 : i32
    %c0_i32_1 = arith.constant 0 : i32
    return %c0_i32, %c0_i32_0 : i32, i32
  }
  func.func @transform_2(%arg0: i32, %arg1: i32) -> (i32, i32) {
    %c0_i32 = arith.constant 0 : i32
    %c0_i32_0 = arith.constant 0 : i32
    %c0_i32_1 = arith.constant 0 : i32
    return %c0_i32, %c0_i32_0 : i32, i32
  }
  func.func @transform_3(%arg0: i32, %arg1: i32) -> (i32, i32) {
    %c0_i32 = arith.constant 0 : i32
    %c0_i32_0 = arith.constant 0 : i32
    %c0_i32_1 = arith.constant 0 : i32
    return %c0_i32, %c0_i32_0 : i32, i32
  }
  func.func @transform_4(%arg0: i32, %arg1: i32) -> (i32, i32) {
    %0 = arith.muli %arg1, %arg0 : i32
    %c0_i32 = arith.constant 0 : i32
    %c0_i32_0 = arith.constant 0 : i32
    return %0, %c0_i32 : i32, i32
  }
}

module attributes {stable_mosaic.version = 11 : i64} {
  func.func @_convt_tanh_kernel(%arg0: i32, %arg1: memref<512x72xbf16, #tpu.memory_space<vmem>>, %arg2: memref<72x12xbf16, #tpu.memory_space<vmem>>, %arg3: memref<512x12xf32, #tpu.memory_space<vmem>>) attributes {dimension_semantics = [#tpu.dimension_semantics<parallel>], iteration_bounds = array<i64: 4>, scalar_prefetch = 0 : i64, scratch_operands = 0 : i64, tpu.core_type = #tpu.core_type<tc>, window_params = [{transform_indices = @transform_0, window_bounds = array<i64: 512, 72>}, {pipeline_mode = #tpu.pipeline_mode<synchronous>, transform_indices = @transform_1, window_bounds = array<i64: 72, 12>}, {transform_indices = @transform_2, window_bounds = array<i64: 512, 12>}]} {
    %c0 = arith.constant 0 : index
    %c0_0 = arith.constant 0 : index
    %0 = vector.load %arg1[%c0, %c0_0] : memref<512x72xbf16, #tpu.memory_space<vmem>>, vector<512x72xbf16>
    %c0_1 = arith.constant 0 : index
    %c0_2 = arith.constant 0 : index
    %1 = vector.load %arg2[%c0_1, %c0_2] : memref<72x12xbf16, #tpu.memory_space<vmem>>, vector<72x12xbf16>
    %cst = arith.constant dense<0.000000e+00> : vector<512x12xf32>
    %2 = tpu.matmul %0, %1, %cst {dimension_numbers = #tpu.dot_dimension_numbers<[1], [0], [0], [1], [0, 0, 1, 1], [], []>} : vector<512x72xbf16>, vector<72x12xbf16>, vector<512x12xf32> -> vector<512x12xf32>
    %3 = math.tanh %2 : vector<512x12xf32>
    %c0_3 = arith.constant 0 : index
    %c0_4 = arith.constant 0 : index
    %4 = vector.load %arg3[%c0_3, %c0_4] : memref<512x12xf32, #tpu.memory_space<vmem>>, vector<512x12xf32>
    tpu.vector_store %arg3[%c0_3, %c0_4], %3 {strides = array<i32>} : memref<512x12xf32, #tpu.memory_space<vmem>>, vector<512x12xf32>,
    return
  }
  func.func @transform_0(%arg0: i32) -> (i32, i32) {
    %c0_i32 = arith.constant 0 : i32
    %c0_i32_0 = arith.constant 0 : i32
    return %arg0, %c0_i32 : i32, i32
  }
  func.func @transform_1(%arg0: i32) -> (i32, i32) {
    %c0_i32 = arith.constant 0 : i32
    %c0_i32_0 = arith.constant 0 : i32
    %c0_i32_1 = arith.constant 0 : i32
    return %c0_i32, %c0_i32_0 : i32, i32
  }
  func.func @transform_2(%arg0: i32) -> (i32, i32) {
    %c0_i32 = arith.constant 0 : i32
    %c0_i32_0 = arith.constant 0 : i32
    return %arg0, %c0_i32 : i32, i32
  }
}

</mosaic_0001>

<llo_original>
// kernel: generator_forward.5
$region0: #{generator_forward.5}
  #allocation0 [shape = 'u32[]', space=smem, size = 0x4, offset = 0x4, fixed_abs, tag = 'smem constant byte address 0x4 - core index']
  #allocation1 [shape = 'u32[72,128]{1,0:T(1,128)}', space=vmem, size = 0x9000, scoped, tag = 'internal scratch']
  #allocation2 [shape = 'bf16[16,1024]{1,0:T(8,128)(2,1)}', space=vmem, size = 0x8000, scoped, tag = 'scratch operand']
  #allocation3 [shape = 'f32[8,1024]{1,0:T(8,128)}', space=vmem, size = 0x8000, scoped, tag = 'scratch operand']
  #allocation4 [shape = 'f32[8,1024]{1,0:T(8,128)}', space=vmem, size = 0x8000, scoped, tag = 'scratch operand']
  #allocation5 [shape = 'f32[1,1024]{1,0:T(1,128)}', space=vmem, size = 0x1000, scoped, tag = 'scratch operand']
  #allocation6 [shape = 'f32[1,1024]{1,0:T(1,128)}', space=vmem, size = 0x1000, scoped, tag = 'scratch operand']
  %s0 = inlined_call_operand.vmem [shape: bf16[16,16], index: 0, kind: input, shape index: {}]
  %s1 = inlined_call_operand.hbm [shape: bf16[16,1024], index: 1, kind: input, shape index: {}]
  %s2 = inlined_call_operand.hbm [shape: f32[1,64], index: 2, kind: input, shape index: {}]
  %s3 = inlined_call_operand.hbm [shape: f32[1,64], index: 3, kind: input, shape index: {}]
  %s4 = inlined_call_operand.vmem [shape: bf16[16,1024], index: 4, kind: output, shape index: {}]
  %s5 = sld [smem:[#allocation0]]
  $region77: #{generator_forward.5} parent=0
    _
  %s7 = ssub.s32 1, %s5
  %s8 = scalar_select 0, %s7, %s5
  $region1: #{generator_forward.5} parent=0
    #allocation7 [shape = 'u8[32768]{0}', space=vmem, size = 0x8000, scoped, tag = 'input window, operand 1, single buffered']
    #allocation8 [shape = 's32[2]{0}', space=sflag, size = 0x8, scoped, tag = 'scoped memory for generator_forward.5']
    #allocation9 [shape = 'u8[512]{0}', space=vmem, size = 0x400, scoped, tag = 'input window, operand 2, single buffered']
    #allocation10 [shape = 's32[1]{0}', space=sflag, size = 0x4, scoped, tag = 'scoped memory for generator_forward.5']
    #allocation11 [shape = 'u8[512]{0}', space=vmem, size = 0x400, scoped, tag = 'input window, operand 3, single buffered']
    %9 = vsyncpa [#allocation8], 0
    %10 = vsyncpa [#allocation10], 0
    loop: start=0, step=1, limit=4
    $region2: #{generator_forward.5} parent=1 // loop_pre_header
      _
    $region3: #{generator_forward.5} parent=1 // loop_header
      %s12 = sphi 0, %s16
      %p13 = scmp.ge.s32.totalorder %s12, 4
      %s19 = sphi 0, %s31
      %s20 = sphi 0, %s27
      %s21 = sphi 0, %s19
      %s22 = sphi 0, %s20
      %s23 = sphi 0, %s21
      %s24 = sphi 0, %s22
      %s38 = sphi 0, %s40
      %s41 = sphi 0, %s38
      %s42 = sphi 0, %s41
      %s58 = sphi 0, %s42
      %s62 = sphi 0, %s62
      %s64 = sphi 0, %s62
      %s65 = sphi 0, %s64
      %s79 = sphi 0, %s65
      %s83 = sphi 0, %s83
      %s85 = sphi 0, %s83
      %s86 = sphi 0, %s85
      %s100 = sphi 0, %s86
      %s104 = sphi 0, %s104
      %s106 = sphi 0, %s104
      %s107 = sphi 0, %s106
      %s121 = sphi 0, %s107
      %s129 = sphi 0, %s131
      %s132 = sphi 0, %s129
      %s133 = sphi 0, %s132
      %s149 = sphi 0, %s133
    $region4: #{generator_forward.5} parent=1 // loop_header_branch
      %15 = sbr.rel (%p13) target = $region8
    $region5: #{generator_forward.5} parent=1 // loop_body
      %s17 = ssub.s32 %s12, 1
      %s18 = ssub.s32 %s12, 2
      %s25 = sadd.s32 1, %s20
      %p26 = scmp.ge.s32.totalorder %s25, 1
      %s27 = scalar_select %p26, 0, %s25
      %s28 = sadd.s32 1, %s19
      %s29 = scalar_select %p26, %s28, %s19
      %p30 = scmp.ge.s32.totalorder %s29, 2
      %s31 = scalar_select %p30, 0, %s29
      %s32 = ssub.s32 1, %s19
      %s33 = smul.u32 %s32, %s20
      %s34 = ssub.s32 1, %s31
      %s35 = smul.u32 %s34, %s27
      %s36 = ssub.s32 %s33, %s35
      %p37 = scmp.eq.s32.totalorder %s36, 0
      %s39 = sadd.s32 %s38, 1
      %s40 = scalar_select %p37, %s38, %s39
      %p43 = pneg %p37
      %p44 = scmp.eq.s32.totalorder %s12, 1
      %p45 = por %p43, %p44
      %p46 = scmp.ne.s32.totalorder %s38, %s41
      %p47 = scmp.eq.s32.totalorder %s12, 0
      %p48 = por %p46, %p47
      %p49 = scmp.ne.s32.totalorder %s38, %s41
      %p50 = scmp.eq.s32.totalorder %s17, 1
      %p51 = por %p49, %p50
      %p52 = scmp.ne.s32.totalorder %s41, %s42
      %p53 = scmp.eq.s32.totalorder %s17, 0
      %p54 = por %p52, %p53
      %p55 = scmp.ne.s32.totalorder %s41, %s42
      %p56 = scmp.eq.s32.totalorder %s18, 1
      %p57 = por %p55, %p56
      %p59 = scmp.ne.s32.totalorder %s42, %s58
      %p60 = scmp.eq.s32.totalorder %s18, 0
      %p61 = por %p59, %p60
      %s63 = sadd.s32 %s62, 1
      %p66 = scmp.eq.s32.totalorder %s12, 1
      %p67 = scmp.ne.s32.totalorder %s62, %s64
      %p68 = scmp.eq.s32.totalorder %s12, 0
      %p69 = por %p67, %p68
      %p70 = scmp.ne.s32.totalorder %s62, %s64
      %p71 = scmp.eq.s32.totalorder %s17, 1
      %p72 = por %p70, %p71
      %p73 = scmp.ne.s32.totalorder %s64, %s65
      %p74 = scmp.eq.s32.totalorder %s17, 0
      %p75 = por %p73, %p74
      %p76 = scmp.ne.s32.totalorder %s64, %s65
      %p77 = scmp.eq.s32.totalorder %s18, 1
      %p78 = por %p76, %p77
      %p80 = scmp.ne.s32.totalorder %s65, %s79
      %p81 = scmp.eq.s32.totalorder %s18, 0
      %p82 = por %p80, %p81
      %s84 = sadd.s32 %s83, 1
      %p87 = scmp.eq.s32.totalorder %s12, 1
      %p88 = scmp.ne.s32.totalorder %s83, %s85
      %p89 = scmp.eq.s32.totalorder %s12, 0
      %p90 = por %p88, %p89
      %p91 = scmp.ne.s32.totalorder %s83, %s85
      %p92 = scmp.eq.s32.totalorder %s17, 1
      %p93 = por %p91, %p92
      %p94 = scmp.ne.s32.totalorder %s85, %s86
      %p95 = scmp.eq.s32.totalorder %s17, 0
      %p96 = por %p94, %p95
      %p97 = scmp.ne.s32.totalorder %s85, %s86
      %p98 = scmp.eq.s32.totalorder %s18, 1
      %p99 = por %p97, %p98
      %p101 = scmp.ne.s32.totalorder %s86, %s100
      %p102 = scmp.eq.s32.totalorder %s18, 0
      %p103 = por %p101, %p102
      %s105 = sadd.s32 %s104, 1
      %p108 = scmp.eq.s32.totalorder %s12, 1
      %p109 = scmp.ne.s32.totalorder %s104, %s106
      %p110 = scmp.eq.s32.totalorder %s12, 0
      %p111 = por %p109, %p110
      %p112 = scmp.ne.s32.totalorder %s104, %s106
      %p113 = scmp.eq.s32.totalorder %s17, 1
      %p114 = por %p112, %p113
      %p115 = scmp.ne.s32.totalorder %s106, %s107
      %p116 = scmp.eq.s32.totalorder %s17, 0
      %p117 = por %p115, %p116
      %p118 = scmp.ne.s32.totalorder %s106, %s107
      %p119 = scmp.eq.s32.totalorder %s18, 1
      %p120 = por %p118, %p119
      %p122 = scmp.ne.s32.totalorder %s107, %s121
      %p123 = scmp.eq.s32.totalorder %s18, 0
      %p124 = por %p122, %p123
      %s125 = smul.u32 %s20, %s19
      %s126 = smul.u32 %s27, %s31
      %s127 = ssub.s32 %s125, %s126
      %p128 = scmp.eq.s32.totalorder %s127, 0
      %s130 = sadd.s32 %s129, 1
      %s131 = scalar_select %p128, %s129, %s130
      %p134 = pneg %p128
      %p135 = scmp.eq.s32.totalorder %s12, 1
      %p136 = por %p134, %p135
      %p137 = scmp.ne.s32.totalorder %s129, %s132
      %p138 = scmp.eq.s32.totalorder %s12, 0
      %p139 = por %p137, %p138
      %p140 = scmp.ne.s32.totalorder %s129, %s132
      %p141 = scmp.eq.s32.totalorder %s17, 1
      %p142 = por %p140, %p141
      %p143 = scmp.ne.s32.totalorder %s132, %s133
      %p144 = scmp.eq.s32.totalorder %s17, 0
      %p145 = por %p143, %p144
      %p146 = scmp.ne.s32.totalorder %s132, %s133
      %p147 = scmp.eq.s32.totalorder %s18, 1
      %p148 = por %p146, %p147
      %p150 = scmp.ne.s32.totalorder %s133, %s149
      %p151 = scmp.eq.s32.totalorder %s18, 0
      %p152 = por %p150, %p151
      %p153 = scmp.le.s32.totalorder 1, %s12
      %p154 = scmp.lt.s32.totalorder %s12, 3
      %p155 = pnand %p153, %p154
      %p156 = pneg %p155
      // Predicated region
      $region9: #{generator_forward.5} parent=5 // pred_check
        _
      $region10: #{generator_forward.5} parent=5 // pred_check_branch
        %158 = sbr.rel (%p155) target = $region12
      $region11: #{generator_forward.5} parent=5 // pred_region
        %s159 = ssub.s32 %s12, 1
        // Predicated region
        $region13: #{generator_forward.5} parent=11 // pred_check
          %p160 = pneg %p75
        $region14: #{generator_forward.5} parent=11 // pred_check_branch
          %162 = sbr.rel (%p160) target = $region16
        $region15: #{generator_forward.5} parent=11 // pred_region
          %164 = vsyncadd [#allocation8], 0
          %s165 = sshll.u32 %s1, 4
          %s166 = int_to_ptr.hbm [resolvable:$true] %s165
          %s167 = sshll.u32 [#allocation7], 4
          %s168 = int_to_ptr.vmem [resolvable:$true] %s167
          %173 = dma.hbm_to_vmem [thread:$0]  %s166, 1024, %s168, [#allocation8], 512, 512, 32
        $region16: #{generator_forward.5} parent=11 // pred_fallthru
          _
        // Predicated region
        $region17: #{generator_forward.5} parent=11 // pred_check
          %p174 = pneg %p96
        $region18: #{generator_forward.5} parent=11 // pred_check_branch
          %176 = sbr.rel (%p174) target = $region20
        $region19: #{generator_forward.5} parent=11 // pred_region
          %178 = vsyncadd [#allocation10], 0
          %s180 = sshll.u32 %s2, 4
          %s181 = int_to_ptr.hbm [resolvable:$true] %s180
          %s182 = sshll.u32 [#allocation9], 4
          %s183 = int_to_ptr.vmem [resolvable:$true] %s182
          %185 = dma.hbm_to_vmem [thread:$0]  %s181, 16, %s183, [#allocation10]
        $region20: #{generator_forward.5} parent=11 // pred_fallthru
          _
        // Predicated region
        $region21: #{generator_forward.5} parent=11 // pred_check
          %p186 = pneg %p117
        $region22: #{generator_forward.5} parent=11 // pred_check_branch
          %188 = sbr.rel (%p186) target = $region24
        $region23: #{generator_forward.5} parent=11 // pred_region
          %190 = vsyncadd [#allocation10], 0
          %s192 = sshll.u32 %s3, 4
          %s193 = int_to_ptr.hbm [resolvable:$true] %s192
          %s194 = sshll.u32 [#allocation11], 4
          %s195 = int_to_ptr.vmem [resolvable:$true] %s194
          %197 = dma.hbm_to_vmem [thread:$0]  %s193, 16, %s195, [#allocation10]
        $region24: #{generator_forward.5} parent=11 // pred_fallthru
          _
      $region12: #{generator_forward.5} parent=5 // pred_fallthru
        _
      %p198 = scmp.lt.s32.totalorder %s12, 2
      // Predicated region
      $region25: #{generator_forward.5} parent=5 // pred_check
        %p199 = pneg %p198
      $region26: #{generator_forward.5} parent=5 // pred_check_branch
        %201 = sbr.rel (%p199) target = $region28
      $region27: #{generator_forward.5} parent=5 // pred_region
        // Predicated region
        $region29: #{generator_forward.5} parent=27 // pred_check
          %p202 = pneg %p48
        $region30: #{generator_forward.5} parent=27 // pred_check_branch
          %204 = sbr.rel (%p202) target = $region32
        $region31: #{generator_forward.5} parent=27 // pred_region
          %s205 = ssub.s32 1, %s19
          %s206 = smul.u32 %s205, %s20
          %s207 = smul.u32 2, %s206
          %p208 = scmp.lt.s32.totalorder %s207, 1
          %s209 = scalar_select %p208, %s207, 1
          %s210 = smul.addr %s209, 4
          %s211 = scalar_lea.vmem %s0, %s210
          %s212 = ssub.s32 1, %s19
          %s213 = smul.u32 %s212, %s20
          %s214 = smul.u32 2, %s213
        $region32: #{generator_forward.5} parent=27 // pred_fallthru
          _
      $region28: #{generator_forward.5} parent=5 // pred_fallthru
        _
      %p215 = scmp.le.s32.totalorder 1, %s12
      %p216 = scmp.lt.s32.totalorder %s12, 3
      %p217 = pnand %p215, %p216
      %p218 = pneg %p217
      // Predicated region
      $region33: #{generator_forward.5} parent=5 // pred_check
        _
      $region34: #{generator_forward.5} parent=5 // pred_check_branch
        %220 = sbr.rel (%p217) target = $region36
      $region35: #{generator_forward.5} parent=5 // pred_region
        %s221 = ssub.s32 %s12, 1
        // Predicated region
        $region37: #{generator_forward.5} parent=35 // pred_check
          %p222 = pneg %p75
        $region38: #{generator_forward.5} parent=35 // pred_check_branch
          %224 = sbr.rel (%p222) target = $region40
        $region39: #{generator_forward.5} parent=35 // pred_region
          %226 = dma.done [#allocation8], 1024
        $region40: #{generator_forward.5} parent=35 // pred_fallthru
          _
        // Predicated region
        $region41: #{generator_forward.5} parent=35 // pred_check
          %p227 = pneg %p96
        $region42: #{generator_forward.5} parent=35 // pred_check_branch
          %229 = sbr.rel (%p227) target = $region44
        $region43: #{generator_forward.5} parent=35 // pred_region
          %231 = dma.done [#allocation10], 16
        $region44: #{generator_forward.5} parent=35 // pred_fallthru
          _
        // Predicated region
        $region45: #{generator_forward.5} parent=35 // pred_check
          %p232 = pneg %p117
        $region46: #{generator_forward.5} parent=35 // pred_check_branch
          %234 = sbr.rel (%p232) target = $region48
        $region47: #{generator_forward.5} parent=35 // pred_region
          %236 = dma.done [#allocation10], 16
        $region48: #{generator_forward.5} parent=35 // pred_fallthru
          _
        %s237 = ssub.s32 1, %s21
        %s238 = smul.u32 %s237, %s22
        %s239 = smul.u32 2, %s238
        %p240 = scmp.lt.s32.totalorder %s239, 1
        %s241 = scalar_select %p240, %s239, 1
        %s242 = smul.addr %s241, 4
        %s243 = scalar_lea.vmem %s0, %s242
        %p244 = pneg %p54
        %p245 = pneg %p51
        %p246 = pneg %p75
        %p247 = pneg %p72
        %p248 = pneg %p96
        %p249 = pneg %p93
        %p250 = pneg %p117
        %p251 = pneg %p114
        %p252 = pneg %p145
        %p253 = pneg %p142
        %s254 = smul.u32 %s22, %s21
        %s255 = smul.u32 2, %s254
        %p256 = scmp.lt.s32.totalorder %s255, 1
        %s257 = scalar_select %p256, %s255, 1
        %s258 = smul.addr %s257, 8
        %s259 = smul.addr %s258, 4
        %s260 = scalar_lea.vmem %s4, %s259
        %s261 = ssub.s32 1, %s21
        %s262 = smul.u32 %s261, %s22
        %s263 = smul.u32 2, %s262
        %p264 = scmp.lt.s32.totalorder %s263, 1
        %s265 = scalar_select %p264, %s263, 1
        %s266 = smul.addr %s265, 4
        %s267 = scalar_lea.vmem %s0, %s266
        %s268 = ssub.s32 1, %s21
        %s269 = smul.u32 %s268, %s22
        %s270 = smul.u32 2, %s269
        %s271 = smul.u32 %s22, %s21
        %s272 = smul.u32 2, %s271
        %p273 = scmp.lt.s32.totalorder %s272, 1
        %s274 = scalar_select %p273, %s272, 1
        %s275 = smul.addr %s274, 8
        %s276 = smul.addr %s275, 4
        %s277 = scalar_lea.vmem %s4, %s276
        %s278 = smul.u32 %s22, %s21
        %s279 = smul.u32 2, %s278
        %s281 = smul.u32 %s22, 16
        %p282 = scmp.eq.s32.totalorder %s21, 0
        %p283 = scmp.eq.s32.totalorder %s22, 0
        %p284 = pnand %p282, %p283
        %p285 = pneg %p284
        // Predicated region
        $region49: #{generator_forward.5} parent=35 // pred_check
          _
        $region50: #{generator_forward.5} parent=35 // pred_check_branch
          %287 = sbr.rel (%p284) target = $region52
        $region51: #{generator_forward.5} parent=35 // pred_region
          %288 = vst [vmem:[#allocation3] sm:$0xff] 0.0
          %289 = vst [vmem:[#allocation3 + $0x8] sm:$0xff] 0.0
          %290 = vst [vmem:[#allocation3 + $0x10] sm:$0xff] 0.0
          %291 = vst [vmem:[#allocation3 + $0x18] sm:$0xff] 0.0
          %292 = vst [vmem:[#allocation3 + $0x20] sm:$0xff] 0.0
          %293 = vst [vmem:[#allocation3 + $0x28] sm:$0xff] 0.0
          %294 = vst [vmem:[#allocation3 + $0x30] sm:$0xff] 0.0
          %295 = vst [vmem:[#allocation3 + $0x38] sm:$0xff] 0.0
          %296 = vst [vmem:[#allocation4] sm:$0xff] 0.0
          %297 = vst [vmem:[#allocation4 + $0x8] sm:$0xff] 0.0
          %298 = vst [vmem:[#allocation4 + $0x10] sm:$0xff] 0.0
          %299 = vst [vmem:[#allocation4 + $0x18] sm:$0xff] 0.0
          %300 = vst [vmem:[#allocation4 + $0x20] sm:$0xff] 0.0
          %301 = vst [vmem:[#allocation4 + $0x28] sm:$0xff] 0.0
          %302 = vst [vmem:[#allocation4 + $0x30] sm:$0xff] 0.0
          %303 = vst [vmem:[#allocation4 + $0x38] sm:$0xff] 0.0
        $region52: #{generator_forward.5} parent=35 // pred_fallthru
          _
        // Predicated region
        $region53: #{generator_forward.5} parent=35 // pred_check
          %p304 = pneg %p282
        $region54: #{generator_forward.5} parent=35 // pred_check_branch
          %306 = sbr.rel (%p304) target = $region56
        $region55: #{generator_forward.5} parent=35 // pred_region
          %v307 = vld [vmem:[%s267] sm:$0xf]
          %v308 = vld [vmem:[%s267 + $0x4] sm:$0xf]
          %v309 = vld [vmem:[#allocation7] sm:$0xff]
          %v310 = vld [vmem:[#allocation7 + $0x8] sm:$0xff]
          %v311 = vld [vmem:[#allocation7 + $0x10] sm:$0xff]
          %v312 = vld [vmem:[#allocation7 + $0x18] sm:$0xff]
          %v313 = vld [vmem:[#allocation7 + $0x20] sm:$0xff]
          %v314 = vld [vmem:[#allocation7 + $0x28] sm:$0xff]
          %v315 = vld [vmem:[#allocation7 + $0x30] sm:$0xff]
          %v316 = vld [vmem:[#allocation7 + $0x38] sm:$0xff]
          %v319 = vunpack.c.l.b16 %v307
          %v320 = vunpack.c.l.b16 %v308
          %v321 = vpack.c.b16 %v320, %v319
          %v330 = vunpack.c.l.b16 %v309
          %v331 = vunpack.c.h.b16 %v309
          %v332 = vunpack.c.l.b16 %v310
          %v333 = vunpack.c.h.b16 %v310
          %v334 = vunpack.c.l.b16 %v311
          %v335 = vunpack.c.h.b16 %v311
          %v336 = vunpack.c.l.b16 %v312
          %v337 = vunpack.c.h.b16 %v312
          %v338 = vunpack.c.l.b16 %v313
          %v339 = vunpack.c.h.b16 %v313
          %v340 = vunpack.c.l.b16 %v314
          %v341 = vunpack.c.h.b16 %v314
          %v342 = vunpack.c.l.b16 %v315
          %v343 = vunpack.c.h.b16 %v315
          %v344 = vunpack.c.l.b16 %v316
          %v345 = vunpack.c.h.b16 %v316
          %v346 = vpack.c.b16 %v338, %v330
          %v347 = vpack.c.b16 %v339, %v331
          %v348 = vpack.c.b16 %v340, %v332
          %v349 = vpack.c.b16 %v341, %v333
          %v350 = vpack.c.b16 %v342, %v334
          %v351 = vpack.c.b16 %v343, %v335
          %v352 = vpack.c.b16 %v344, %v336
          %v353 = vpack.c.b16 %v345, %v337
          %vm362 = vcmask 130048
          %v364 = vsel %vm362, %v321, 0
          %366 = vmatpush.bf16.msra.mxu0 0
          %367 = vmatpush.bf16.msra.mxu0 0
          %368 = vmatpush.bf16.msra.mxu0 0
          %369 = vmatpush.bf16.msra.mxu0 0
          %370 = vmatpush.bf16.msra.mxu0 0
          %371 = vmatpush.bf16.msra.mxu0 0
          %372 = vmatpush.bf16.msra.mxu0 0
          %373 = vmatpush.bf16.msra.mxu0 %v346
          %374 = vmatmul.bf16.gmra.mxu0 %v364
          %v375 = vpop.f32.mrf.mxu0
          %v376 = vadd.f32 0.0, %v375
          %v377 = vpop.f32.mrf.mxu0
          %v378 = vadd.f32 0.0, %v377
          %379 = vdwg.mxu0
          %380 = vmatpush.bf16.msra.mxu0 0
          %381 = vmatpush.bf16.msra.mxu0 0
          %382 = vmatpush.bf16.msra.mxu0 0
          %383 = vmatpush.bf16.msra.mxu0 0
          %384 = vmatpush.bf16.msra.mxu0 0
          %385 = vmatpush.bf16.msra.mxu0 0
          %386 = vmatpush.bf16.msra.mxu0 0
          %387 = vmatpush.bf16.msra.mxu0 %v347
          %388 = vmatmul.bf16.gmra.mxu0 %v364
          %v389 = vpop.f32.mrf.mxu0
          %v390 = vadd.f32 0.0, %v389
          %v391 = vpop.f32.mrf.mxu0
          %v392 = vadd.f32 0.0, %v391
          %393 = vdwg.mxu0
          %394 = vmatpush.bf16.msra.mxu0 0
          %395 = vmatpush.bf16.msra.mxu0 0
          %396 = vmatpush.bf16.msra.mxu0 0
          %397 = vmatpush.bf16.msra.mxu0 0
          %398 = vmatpush.bf16.msra.mxu0 0
          %399 = vmatpush.bf16.msra.mxu0 0
          %400 = vmatpush.bf16.msra.mxu0 0
          %401 = vmatpush.bf16.msra.mxu0 %v348
          %402 = vmatmul.bf16.gmra.mxu0 %v364
          %v403 = vpop.f32.mrf.mxu0
          %v404 = vadd.f32 0.0, %v403
          %v405 = vpop.f32.mrf.mxu0
          %v406 = vadd.f32 0.0, %v405
          %407 = vdwg.mxu0
          %408 = vmatpush.bf16.msra.mxu0 0
          %409 = vmatpush.bf16.msra.mxu0 0
          %410 = vmatpush.bf16.msra.mxu0 0
          %411 = vmatpush.bf16.msra.mxu0 0
          %412 = vmatpush.bf16.msra.mxu0 0
          %413 = vmatpush.bf16.msra.mxu0 0
          %414 = vmatpush.bf16.msra.mxu0 0
          %415 = vmatpush.bf16.msra.mxu0 %v349
          %416 = vmatmul.bf16.gmra.mxu0 %v364
          %v417 = vpop.f32.mrf.mxu0
          %v418 = vadd.f32 0.0, %v417
          %v419 = vpop.f32.mrf.mxu0
          %v420 = vadd.f32 0.0, %v419
          %421 = vdwg.mxu0
          %422 = vmatpush.bf16.msra.mxu0 0
          %423 = vmatpush.bf16.msra.mxu0 0
          %424 = vmatpush.bf16.msra.mxu0 0
          %425 = vmatpush.bf16.msra.mxu0 0
          %426 = vmatpush.bf16.msra.mxu0 0
          %427 = vmatpush.bf16.msra.mxu0 0
          %428 = vmatpush.bf16.msra.mxu0 0
          %429 = vmatpush.bf16.msra.mxu0 %v350
          %430 = vmatmul.bf16.gmra.mxu0 %v364
          %v431 = vpop.f32.mrf.mxu0
          %v432 = vadd.f32 0.0, %v431
          %v433 = vpop.f32.mrf.mxu0
          %v434 = vadd.f32 0.0, %v433
          %435 = vdwg.mxu0
          %436 = vmatpush.bf16.msra.mxu0 0
          %437 = vmatpush.bf16.msra.mxu0 0
          %438 = vmatpush.bf16.msra.mxu0 0
          %439 = vmatpush.bf16.msra.mxu0 0
          %440 = vmatpush.bf16.msra.mxu0 0
          %441 = vmatpush.bf16.msra.mxu0 0
          %442 = vmatpush.bf16.msra.mxu0 0
          %443 = vmatpush.bf16.msra.mxu0 %v351
          %444 = vmatmul.bf16.gmra.mxu0 %v364
          %v445 = vpop.f32.mrf.mxu0
          %v446 = vadd.f32 0.0, %v445
          %v447 = vpop.f32.mrf.mxu0
          %v448 = vadd.f32 0.0, %v447
          %449 = vdwg.mxu0
          %450 = vmatpush.bf16.msra.mxu0 0
          %451 = vmatpush.bf16.msra.mxu0 0
          %452 = vmatpush.bf16.msra.mxu0 0
          %453 = vmatpush.bf16.msra.mxu0 0
          %454 = vmatpush.bf16.msra.mxu0 0
          %455 = vmatpush.bf16.msra.mxu0 0
          %456 = vmatpush.bf16.msra.mxu0 0
          %457 = vmatpush.bf16.msra.mxu0 %v352
          %458 = vmatmul.bf16.gmra.mxu0 %v364
          %v459 = vpop.f32.mrf.mxu0
          %v460 = vadd.f32 0.0, %v459
          %v461 = vpop.f32.mrf.mxu0
          %v462 = vadd.f32 0.0, %v461
          %463 = vdwg.mxu0
          %464 = vmatpush.bf16.msra.mxu0 0
          %465 = vmatpush.bf16.msra.mxu0 0
          %466 = vmatpush.bf16.msra.mxu0 0
          %467 = vmatpush.bf16.msra.mxu0 0
          %468 = vmatpush.bf16.msra.mxu0 0
          %469 = vmatpush.bf16.msra.mxu0 0
          %470 = vmatpush.bf16.msra.mxu0 0
          %471 = vmatpush.bf16.msra.mxu0 %v353
          %472 = vmatmul.bf16.gmra.mxu0 %v364
          %v473 = vpop.f32.mrf.mxu0
          %v474 = vadd.f32 0.0, %v473
          %v475 = vpop.f32.mrf.mxu0
          %v476 = vadd.f32 0.0, %v475
          %477 = vdwg.mxu0
          %v478 = vpack.c.bf16 %v390, %v376
          %v479 = vpack.c.bf16 %v418, %v404
          %v480 = vpack.c.bf16 %v446, %v432
          %v481 = vpack.c.bf16 %v474, %v460
          %v482 = vpack.c.bf16 %v392, %v378
          %v483 = vpack.c.bf16 %v420, %v406
          %v484 = vpack.c.bf16 %v448, %v434
          %v485 = vpack.c.bf16 %v476, %v462
          %s486 = sshra.s32 %s281, 3
          %s487 = sand.u32 %s281, 7
          %s488 = smul.u32 %s486, 8
          %s489 = smul.addr %s488, 4
          %s490 = scalar_lea.vmem [#allocation2], %s489
          %491 = vst [vmem:[%s490] sm:$0xff] %v478
          %492 = vst [vmem:[%s490 + $0x8] sm:$0xff] %v479
          %493 = vst [vmem:[%s490 + $0x10] sm:$0xff] %v480
          %494 = vst [vmem:[%s490 + $0x18] sm:$0xff] %v481
          %495 = vst [vmem:[%s490 + $0x20] sm:$0xff] %v482
          %496 = vst [vmem:[%s490 + $0x28] sm:$0xff] %v483
          %497 = vst [vmem:[%s490 + $0x30] sm:$0xff] %v484
          %498 = vst [vmem:[%s490 + $0x38] sm:$0xff] %v485
          %v499 = vld [vmem:[#allocation3] sm:$0xff]
          %v500 = vld [vmem:[#allocation3 + $0x8] sm:$0xff]
          %v501 = vld [vmem:[#allocation3 + $0x10] sm:$0xff]
          %v502 = vld [vmem:[#allocation3 + $0x18] sm:$0xff]
          %v503 = vld [vmem:[#allocation3 + $0x20] sm:$0xff]
          %v504 = vld [vmem:[#allocation3 + $0x28] sm:$0xff]
          %v505 = vld [vmem:[#allocation3 + $0x30] sm:$0xff]
          %v506 = vld [vmem:[#allocation3 + $0x38] sm:$0xff]
          %v507 = vadd.f32 %v376, %v378
          %v508 = vadd.f32 %v390, %v392
          %v509 = vadd.f32 %v404, %v406
          %v510 = vadd.f32 %v418, %v420
          %v511 = vadd.f32 %v432, %v434
          %v512 = vadd.f32 %v446, %v448
          %v513 = vadd.f32 %v460, %v462
          %v514 = vadd.f32 %v474, %v476
          %v515 = vadd.f32 %v499, %v507
          %v516 = vadd.f32 %v500, %v508
          %v517 = vadd.f32 %v501, %v509
          %v518 = vadd.f32 %v502, %v510
          %v519 = vadd.f32 %v503, %v511
          %v520 = vadd.f32 %v504, %v512
          %v521 = vadd.f32 %v505, %v513
          %v522 = vadd.f32 %v506, %v514
          %523 = vst [vmem:[#allocation3] sm:$0xff] %v515
          %524 = vst [vmem:[#allocation3 + $0x8] sm:$0xff] %v516
          %525 = vst [vmem:[#allocation3 + $0x10] sm:$0xff] %v517
          %526 = vst [vmem:[#allocation3 + $0x18] sm:$0xff] %v518
          %527 = vst [vmem:[#allocation3 + $0x20] sm:$0xff] %v519
          %528 = vst [vmem:[#allocation3 + $0x28] sm:$0xff] %v520
          %529 = vst [vmem:[#allocation3 + $0x30] sm:$0xff] %v521
          %530 = vst [vmem:[#allocation3 + $0x38] sm:$0xff] %v522
          %v531 = vld [vmem:[#allocation4] sm:$0xff]
          %v532 = vld [vmem:[#allocation4 + $0x8] sm:$0xff]
          %v533 = vld [vmem:[#allocation4 + $0x10] sm:$0xff]
          %v534 = vld [vmem:[#allocation4 + $0x18] sm:$0xff]
          %v535 = vld [vmem:[#allocation4 + $0x20] sm:$0xff]
          %v536 = vld [vmem:[#allocation4 + $0x28] sm:$0xff]
          %v537 = vld [vmem:[#allocation4 + $0x30] sm:$0xff]
          %v538 = vld [vmem:[#allocation4 + $0x38] sm:$0xff]
          %v539 = vmul.f32 %v376, %v376
          %v540 = vmul.f32 %v390, %v390
          %v541 = vmul.f32 %v404, %v404
          %v542 = vmul.f32 %v418, %v418
          %v543 = vmul.f32 %v432, %v432
          %v544 = vmul.f32 %v446, %v446
          %v545 = vmul.f32 %v460, %v460
          %v546 = vmul.f32 %v474, %v474
          %v547 = vmul.f32 %v378, %v378
          %v548 = vmul.f32 %v392, %v392
          %v549 = vmul.f32 %v406, %v406
          %v550 = vmul.f32 %v420, %v420
          %v551 = vmul.f32 %v434, %v434
          %v552 = vmul.f32 %v448, %v448
          %v553 = vmul.f32 %v462, %v462
          %v554 = vmul.f32 %v476, %v476
          %v555 = vadd.f32 %v539, %v547
          %v556 = vadd.f32 %v540, %v548
          %v557 = vadd.f32 %v541, %v549
          %v558 = vadd.f32 %v542, %v550
          %v559 = vadd.f32 %v543, %v551
          %v560 = vadd.f32 %v544, %v552
          %v561 = vadd.f32 %v545, %v553
          %v562 = vadd.f32 %v546, %v554
          %v563 = vadd.f32 %v531, %v555
          %v564 = vadd.f32 %v532, %v556
          %v565 = vadd.f32 %v533, %v557
          %v566 = vadd.f32 %v534, %v558
          %v567 = vadd.f32 %v535, %v559
          %v568 = vadd.f32 %v536, %v560
          %v569 = vadd.f32 %v537, %v561
          %v570 = vadd.f32 %v538, %v562
          %571 = vst [vmem:[#allocation4] sm:$0xff] %v563
          %572 = vst [vmem:[#allocation4 + $0x8] sm:$0xff] %v564
          %573 = vst [vmem:[#allocation4 + $0x10] sm:$0xff] %v565
          %574 = vst [vmem:[#allocation4 + $0x18] sm:$0xff] %v566
          %575 = vst [vmem:[#allocation4 + $0x20] sm:$0xff] %v567
          %576 = vst [vmem:[#allocation4 + $0x28] sm:$0xff] %v568
          %577 = vst [vmem:[#allocation4 + $0x30] sm:$0xff] %v569
          %578 = vst [vmem:[#allocation4 + $0x38] sm:$0xff] %v570
        $region56: #{generator_forward.5} parent=35 // pred_fallthru
          _
        %p579 = scmp.eq.s32.totalorder %s21, 1
        %p580 = pnand %p579, %p283
        %p581 = pneg %p580
        // Predicated region
        $region57: #{generator_forward.5} parent=35 // pred_check
          _
        $region58: #{generator_forward.5} parent=35 // pred_check_branch
          %583 = sbr.rel (%p580) target = $region60
        $region59: #{generator_forward.5} parent=35 // pred_region
          %v584 = vld [vmem:[#allocation3] sm:$0xff]
          %v585 = vld [vmem:[#allocation3 + $0x8] sm:$0xff]
          %v586 = vld [vmem:[#allocation3 + $0x10] sm:$0xff]
          %v587 = vld [vmem:[#allocation3 + $0x18] sm:$0xff]
          %v588 = vld [vmem:[#allocation3 + $0x20] sm:$0xff]
          %v589 = vld [vmem:[#allocation3 + $0x28] sm:$0xff]
          %v590 = vld [vmem:[#allocation3 + $0x30] sm:$0xff]
          %v591 = vld [vmem:[#allocation3 + $0x38] sm:$0xff]
          %v592 = vld [vmem:[#allocation4] sm:$0xff]
          %v593 = vld [vmem:[#allocation4 + $0x8] sm:$0xff]
          %v594 = vld [vmem:[#allocation4 + $0x10] sm:$0xff]
          %v595 = vld [vmem:[#allocation4 + $0x18] sm:$0xff]
          %v596 = vld [vmem:[#allocation4 + $0x20] sm:$0xff]
          %v597 = vld [vmem:[#allocation4 + $0x28] sm:$0xff]
          %v598 = vld [vmem:[#allocation4 + $0x30] sm:$0xff]
          %v599 = vld [vmem:[#allocation4 + $0x38] sm:$0xff]
          %v600 = vadd.f32 %v584, 0.0
          %v601 = vadd.f32 %v592, 0.0
          %603 = vrot.lane.b32.xlu0 %v584, 64
          %v604 = vpop.permute.xlu0 %603
          %v606 = vadd.f32 %v600, %v604
          %608 = vrot.lane.b32.xlu0 %v592, 64
          %v609 = vpop.permute.xlu0 %608
          %v611 = vadd.f32 %v601, %v609
          %v612 = vadd.f32 %v606, %v585
          %v613 = vadd.f32 %v611, %v593
          %615 = vrot.lane.b32.xlu0 %v585, 64
          %v616 = vpop.permute.xlu0 %615
          %v618 = vadd.f32 %v612, %v616
          %620 = vrot.lane.b32.xlu0 %v593, 64
          %v621 = vpop.permute.xlu0 %620
          %v623 = vadd.f32 %v613, %v621
          %v624 = vadd.f32 %v618, %v586
          %v625 = vadd.f32 %v623, %v594
          %627 = vrot.lane.b32.xlu0 %v586, 64
          %v628 = vpop.permute.xlu0 %627
          %v630 = vadd.f32 %v624, %v628
          %632 = vrot.lane.b32.xlu0 %v594, 64
          %v633 = vpop.permute.xlu0 %632
          %v635 = vadd.f32 %v625, %v633
          %v636 = vadd.f32 %v630, %v587
          %v637 = vadd.f32 %v635, %v595
          %639 = vrot.lane.b32.xlu0 %v587, 64
          %v640 = vpop.permute.xlu0 %639
          %v642 = vadd.f32 %v636, %v640
          %644 = vrot.lane.b32.xlu0 %v595, 64
          %v645 = vpop.permute.xlu0 %644
          %v647 = vadd.f32 %v637, %v645
          %v648 = vadd.f32 %v642, %v588
          %v649 = vadd.f32 %v647, %v596
          %651 = vrot.lane.b32.xlu0 %v588, 64
          %v652 = vpop.permute.xlu0 %651
          %v654 = vadd.f32 %v648, %v652
          %656 = vrot.lane.b32.xlu0 %v596, 64
          %v657 = vpop.permute.xlu0 %656
          %v659 = vadd.f32 %v649, %v657
          %v660 = vadd.f32 %v654, %v589
          %v661 = vadd.f32 %v659, %v597
          %663 = vrot.lane.b32.xlu0 %v589, 64
          %v664 = vpop.permute.xlu0 %663
          %v666 = vadd.f32 %v660, %v664
          %668 = vrot.lane.b32.xlu0 %v597, 64
          %v669 = vpop.permute.xlu0 %668
          %v671 = vadd.f32 %v661, %v669
          %v672 = vadd.f32 %v666, %v590
          %v673 = vadd.f32 %v671, %v598
          %675 = vrot.lane.b32.xlu0 %v590, 64
          %v676 = vpop.permute.xlu0 %675
          %v678 = vadd.f32 %v672, %v676
          %680 = vrot.lane.b32.xlu0 %v598, 64
          %v681 = vpop.permute.xlu0 %680
          %v683 = vadd.f32 %v673, %v681
          %v684 = vadd.f32 %v678, %v591
          %v685 = vadd.f32 %v683, %v599
          %687 = vrot.lane.b32.xlu0 %v591, 64
          %v688 = vpop.permute.xlu0 %687
          %v690 = vadd.f32 %v684, %v688
          %692 = vrot.lane.b32.xlu0 %v599, 64
          %v693 = vpop.permute.xlu0 %692
          %v695 = vadd.f32 %v685, %v693
          %vm696 = vcmask 523264
          %v697 = vsel %vm696, %v690, 0.0
          %v698 = vrot.slane %v697, 4
          %v699 = vadd.f32 %v697, %v698
          %v700 = vrot.slane %v699, 2
          %v701 = vadd.f32 %v699, %v700
          %v702 = vrot.slane %v701, 1
          %v703 = vadd.f32 %v701, %v702
          %v704 = vmul.f32 %v703, 0.03125
          %v705 = vsel %vm696, %v695, 0.0
          %v706 = vrot.slane %v705, 4
          %v707 = vadd.f32 %v705, %v706
          %v708 = vrot.slane %v707, 2
          %v709 = vadd.f32 %v707, %v708
          %v710 = vrot.slane %v709, 1
          %v711 = vadd.f32 %v709, %v710
          %v712 = vmul.f32 %v711, 0.03125
          %v713 = vmul.f32 %v704, %v704
          %v714 = vsub.f32 %v712, %v713
          %v715 = vmax.f32 %v714, 0.0
          %v716 = vld [vmem:[#allocation9] sm:$0x1]
          %v717 = vadd.f32 %v715, 1e-05
          %v718 = vrsqrt.pop %v717
          %v719 = vmul.f32 %v718, %v717
          %v720 = vmul.f32 %v719, %v718
          %v721 = vmul.f32 0.5, %v720
          %v722 = vsub.f32 1.5, %v721
          %v723 = vmul.f32 %v718, %v722
          %vm724 = vweird.f32 %v717
          %vm725 = vweird.f32 %v718
          %vm726 = vmor %vm724, %vm725
          %v727 = vsel %vm726, %v718, %v723
          %v728 = vmul.f32 %v716, %v727
          %v729 = vld [vmem:[#allocation11] sm:$0x1]
          %v730 = vmul.f32 %v704, %v728
          %v731 = vsub.f32 %v729, %v730
          %v733 = vperm.slane %v728, 0
          %734 = vrot.lane.b32.xlu0 %v733, 64
          %v735 = vpop.permute.xlu0 %734
          %v737 = vsel %vm696, %v728, %v735
          %v739 = vrot.slane %v737, 7
          %v740 = vrot.slane %v737, 6
          %v741 = vrot.slane %v737, 5
          %v742 = vrot.slane %v737, 4
          %v743 = vrot.slane %v737, 3
          %v744 = vrot.slane %v737, 2
          %v745 = vrot.slane %v737, 1
          %vm746 = vcmask 1040384
          %v747 = vsel %vm746, %v737, %v739
          %vm748 = vcmask 1042434
          %v749 = vsel %vm748, %v740, %v741
          %vm750 = vcmask 1041408
          %v751 = vsel %vm750, %v747, %v749
          %vm752 = vcmask 1044484
          %v753 = vsel %vm752, %v742, %v743
          %vm754 = vcmask 1046534
          %v755 = vsel %vm754, %v744, %v745
          %vm756 = vcmask 1045508
          %v757 = vsel %vm756, %v753, %v755
          %vm758 = vcmask 1043456
          %v759 = vsel %vm758, %v751, %v757
          %761 = vst [vmem:[#allocation5] sm:$0xff] %v759
          %v763 = vperm.slane %v731, 0
          %764 = vrot.lane.b32.xlu0 %v763, 64
          %v765 = vpop.permute.xlu0 %764
          %v767 = vsel %vm696, %v731, %v765
          %v769 = vrot.slane %v767, 7
          %v770 = vrot.slane %v767, 6
          %v771 = vrot.slane %v767, 5
          %v772 = vrot.slane %v767, 4
          %v773 = vrot.slane %v767, 3
          %v774 = vrot.slane %v767, 2
          %v775 = vrot.slane %v767, 1
          %v776 = vsel %vm746, %v767, %v769
          %v777 = vsel %vm748, %v770, %v771
          %v778 = vsel %vm750, %v776, %v777
          %v779 = vsel %vm752, %v772, %v773
          %v780 = vsel %vm754, %v774, %v775
          %v781 = vsel %vm756, %v779, %v780
          %v782 = vsel %vm758, %v778, %v781
          %784 = vst [vmem:[#allocation6] sm:$0xff] %v782
        $region60: #{generator_forward.5} parent=35 // pred_fallthru
          _
        // Predicated region
        $region61: #{generator_forward.5} parent=35 // pred_check
          %p785 = pneg %p579
        $region62: #{generator_forward.5} parent=35 // pred_check_branch
          %787 = sbr.rel (%p785) target = $region64
        $region63: #{generator_forward.5} parent=35 // pred_region
          %s788 = sshra.s32 %s281, 3
          %s789 = sand.u32 %s281, 7
          %s790 = smul.u32 %s788, 8
          %s791 = smul.addr %s790, 4
          %s792 = scalar_lea.vmem [#allocation2], %s791
          %v793 = vld [vmem:[%s792] sm:$0xff]
          %v794 = vld [vmem:[%s792 + $0x8] sm:$0xff]
          %v795 = vld [vmem:[%s792 + $0x10] sm:$0xff]
          %v796 = vld [vmem:[%s792 + $0x18] sm:$0xff]
          %v797 = vld [vmem:[%s792 + $0x20] sm:$0xff]
          %v798 = vld [vmem:[%s792 + $0x28] sm:$0xff]
          %v799 = vld [vmem:[%s792 + $0x30] sm:$0xff]
          %v800 = vld [vmem:[%s792 + $0x38] sm:$0xff]
          %v801 = vunpack.c.l.bf16 %v793
          %v802 = vunpack.c.h.bf16 %v793
          %v803 = vunpack.c.l.bf16 %v794
          %v804 = vunpack.c.h.bf16 %v794
          %v805 = vunpack.c.l.bf16 %v795
          %v806 = vunpack.c.h.bf16 %v795
          %v807 = vunpack.c.l.bf16 %v796
          %v808 = vunpack.c.h.bf16 %v796
          %v809 = vunpack.c.l.bf16 %v797
          %v810 = vunpack.c.h.bf16 %v797
          %v811 = vunpack.c.l.bf16 %v798
          %v812 = vunpack.c.h.bf16 %v798
          %v813 = vunpack.c.l.bf16 %v799
          %v814 = vunpack.c.h.bf16 %v799
          %v815 = vunpack.c.l.bf16 %v800
          %v816 = vunpack.c.h.bf16 %v800
          %v817 = vld [vmem:[#allocation5] sm:$0xff]
          %v819 = vperm.slane %v817, 0
          %v820 = vperm.slane %v817, 1
          %v821 = vperm.slane %v817, 2
          %v822 = vperm.slane %v817, 3
          %v823 = vperm.slane %v817, 4
          %v824 = vperm.slane %v817, 5
          %v825 = vperm.slane %v817, 6
          %v826 = vperm.slane %v817, 7
          %v835 = vmul.f32 %v801, %v819
          %v836 = vmul.f32 %v802, %v820
          %v837 = vmul.f32 %v803, %v821
          %v838 = vmul.f32 %v804, %v822
          %v839 = vmul.f32 %v805, %v823
          %v840 = vmul.f32 %v806, %v824
          %v841 = vmul.f32 %v807, %v825
          %v842 = vmul.f32 %v808, %v826
          %v843 = vmul.f32 %v809, %v819
          %v844 = vmul.f32 %v810, %v820
          %v845 = vmul.f32 %v811, %v821
          %v846 = vmul.f32 %v812, %v822
          %v847 = vmul.f32 %v813, %v823
          %v848 = vmul.f32 %v814, %v824
          %v849 = vmul.f32 %v815, %v825
          %v850 = vmul.f32 %v816, %v826
          %v851 = vld [vmem:[#allocation6] sm:$0xff]
          %v853 = vperm.slane %v851, 0
          %v854 = vperm.slane %v851, 1
          %v855 = vperm.slane %v851, 2
          %v856 = vperm.slane %v851, 3
          %v857 = vperm.slane %v851, 4
          %v858 = vperm.slane %v851, 5
          %v859 = vperm.slane %v851, 6
          %v860 = vperm.slane %v851, 7
          %v869 = vadd.f32 %v835, %v853
          %v870 = vadd.f32 %v836, %v854
          %v871 = vadd.f32 %v837, %v855
          %v872 = vadd.f32 %v838, %v856
          %v873 = vadd.f32 %v839, %v857
          %v874 = vadd.f32 %v840, %v858
          %v875 = vadd.f32 %v841, %v859
          %v876 = vadd.f32 %v842, %v860
          %v877 = vadd.f32 %v843, %v853
          %v878 = vadd.f32 %v844, %v854
          %v879 = vadd.f32 %v845, %v855
          %v880 = vadd.f32 %v846, %v856
          %v881 = vadd.f32 %v847, %v857
          %v882 = vadd.f32 %v848, %v858
          %v883 = vadd.f32 %v849, %v859
          %v884 = vadd.f32 %v850, %v860
          %v885 = vmax.f32 %v869, 0.0
          %v886 = vmax.f32 %v870, 0.0
          %v887 = vmax.f32 %v871, 0.0
          %v888 = vmax.f32 %v872, 0.0
          %v889 = vmax.f32 %v873, 0.0
          %v890 = vmax.f32 %v874, 0.0
          %v891 = vmax.f32 %v875, 0.0
          %v892 = vmax.f32 %v876, 0.0
          %v893 = vmax.f32 %v877, 0.0
          %v894 = vmax.f32 %v878, 0.0
          %v895 = vmax.f32 %v879, 0.0
          %v896 = vmax.f32 %v880, 0.0
          %v897 = vmax.f32 %v881, 0.0
          %v898 = vmax.f32 %v882, 0.0
          %v899 = vmax.f32 %v883, 0.0
          %v900 = vmax.f32 %v884, 0.0
          %v901 = vpack.c.bf16 %v886, %v885
          %v902 = vpack.c.bf16 %v888, %v887
          %v903 = vpack.c.bf16 %v890, %v889
          %v904 = vpack.c.bf16 %v892, %v891
          %v905 = vpack.c.bf16 %v894, %v893
          %v906 = vpack.c.bf16 %v896, %v895
          %v907 = vpack.c.bf16 %v898, %v897
          %v908 = vpack.c.bf16 %v900, %v899
          %909 = vst [vmem:[%s277] sm:$0xff] %v901
          %910 = vst [vmem:[%s277 + $0x8] sm:$0xff] %v902
          %911 = vst [vmem:[%s277 + $0x10] sm:$0xff] %v903
          %912 = vst [vmem:[%s277 + $0x18] sm:$0xff] %v904
          %913 = vst [vmem:[%s277 + $0x20] sm:$0xff] %v905
          %914 = vst [vmem:[%s277 + $0x28] sm:$0xff] %v906
          %915 = vst [vmem:[%s277 + $0x30] sm:$0xff] %v907
          %916 = vst [vmem:[%s277 + $0x38] sm:$0xff] %v908
        $region64: #{generator_forward.5} parent=35 // pred_fallthru
          _
        %s917 = smul.u32 %s22, %s21
        %s918 = smul.u32 2, %s917
        %p919 = scmp.lt.s32.totalorder %s918, 1
        %s920 = scalar_select %p919, %s918, 1
        %s921 = smul.addr %s920, 8
        %s922 = smul.addr %s921, 4
        %s923 = scalar_lea.vmem %s4, %s922
        // Predicated region
        $region65: #{generator_forward.5} parent=35 // pred_check
          %p924 = pneg %p142
        $region66: #{generator_forward.5} parent=35 // pred_check_branch
          %926 = sbr.rel (%p924) target = $region68
        $region67: #{generator_forward.5} parent=35 // pred_region
          %s927 = smul.u32 %s22, %s21
          %s928 = smul.u32 2, %s927
        $region68: #{generator_forward.5} parent=35 // pred_fallthru
          _
      $region36: #{generator_forward.5} parent=5 // pred_fallthru
        _
      %p929 = scmp.le.s32.totalorder 2, %s12
      // Predicated region
      $region69: #{generator_forward.5} parent=5 // pred_check
        %p930 = pneg %p929
      $region70: #{generator_forward.5} parent=5 // pred_check_branch
        %932 = sbr.rel (%p930) target = $region72
      $region71: #{generator_forward.5} parent=5 // pred_region
        %s933 = ssub.s32 %s12, 2
        // Predicated region
        $region73: #{generator_forward.5} parent=71 // pred_check
          %p934 = pneg %p148
        $region74: #{generator_forward.5} parent=71 // pred_check_branch
          %936 = sbr.rel (%p934) target = $region76
        $region75: #{generator_forward.5} parent=71 // pred_region
          %s937 = smul.u32 %s24, %s23
          %s938 = smul.u32 2, %s937
          %p939 = scmp.lt.s32.totalorder %s938, 1
          %s940 = scalar_select %p939, %s938, 1
          %s941 = smul.addr %s940, 8
          %s942 = smul.addr %s941, 4
          %s943 = scalar_lea.vmem %s4, %s942
        $region76: #{generator_forward.5} parent=71 // pred_fallthru
          _
      $region72: #{generator_forward.5} parent=5 // pred_fallthru
        _
    $region6: #{generator_forward.5} parent=1 // loop_footer
      %s16 = sadd.s32 1, %s12
    $region7: #{generator_forward.5} parent=1 // loop_footer_branch
      %11 = sbr.rel target = $region3
    $region8: #{generator_forward.5} parent=1 // loop_exit
      _
    %944 = vsyncpa [#allocation8], 1
    %s945 = scalar_lea.sflag [#allocation8], 1
    %946 = vsyncpa %s945, 1
    %947 = vsyncpa [#allocation10], 1

// kernel: generator_forward.6
$region0: #{generator_forward.6}
  #allocation0 [shape = 'u32[]', space=smem, size = 0x4, offset = 0x4, fixed_abs, tag = 'smem constant byte address 0x4 - core index']
  #allocation1 [shape = 'u32[72,128]{1,0:T(1,128)}', space=vmem, size = 0x9000, scoped, tag = 'internal scratch']
  #allocation2 [shape = 'bf16[32,128]{1,0:T(8,128)(2,1)}', space=vmem, size = 0x2000, scoped, tag = 'scratch operand']
  #allocation3 [shape = 'f32[8,128]{1,0:T(8,128)}', space=vmem, size = 0x1000, scoped, tag = 'scratch operand']
  #allocation4 [shape = 'f32[8,128]{1,0:T(8,128)}', space=vmem, size = 0x1000, scoped, tag = 'scratch operand']
  #allocation5 [shape = 'f32[1,128]{1,0:T(1,128)}', space=vmem, size = 0x200, scoped, tag = 'scratch operand']
  #allocation6 [shape = 'f32[1,128]{1,0:T(1,128)}', space=vmem, size = 0x200, scoped, tag = 'scratch operand']
  %s0 = inlined_call_operand.vmem [shape: bf16[32,576], index: 0, kind: input, shape index: {}]
  %s1 = inlined_call_operand.hbm [shape: bf16[576,128], index: 1, kind: input, shape index: {}]
  %s2 = inlined_call_operand.hbm [shape: f32[1,32], index: 2, kind: input, shape index: {}]
  %s3 = inlined_call_operand.hbm [shape: f32[1,32], index: 3, kind: input, shape index: {}]
  %s4 = inlined_call_operand.vmem [shape: bf16[32,128], index: 4, kind: output, shape index: {}]
  %s5 = sld [smem:[#allocation0]]
  $region77: #{generator_forward.6} parent=0
    _
  %s7 = ssub.s32 1, %s5
  %s8 = scalar_select 0, %s7, %s5
  $region1: #{generator_forward.6} parent=0
    #allocation7 [shape = 'u8[147456]{0}', space=vmem, size = 0x24000, scoped, tag = 'input window, operand 1, single buffered']
    #allocation8 [shape = 's32[2]{0}', space=sflag, size = 0x8, scoped, tag = 'scoped memory for generator_forward.6']
    #allocation9 [shape = 'u8[512]{0}', space=vmem, size = 0x400, scoped, tag = 'input window, operand 2, single buffered']
    #allocation10 [shape = 's32[1]{0}', space=sflag, size = 0x4, scoped, tag = 'scoped memory for generator_forward.6']
    #allocation11 [shape = 'u8[512]{0}', space=vmem, size = 0x400, scoped, tag = 'input window, operand 3, single buffered']
    %9 = vsyncpa [#allocation8], 0
    %10 = vsyncpa [#allocation10], 0
    loop: start=0, step=1, limit=4
    $region2: #{generator_forward.6} parent=1 // loop_pre_header
      _
    $region3: #{generator_forward.6} parent=1 // loop_header
      %s12 = sphi 0, %s16
      %p13 = scmp.ge.s32.totalorder %s12, 4
      %s19 = sphi 0, %s31
      %s20 = sphi 0, %s27
      %s21 = sphi 0, %s19
      %s22 = sphi 0, %s20
      %s23 = sphi 0, %s21
      %s24 = sphi 0, %s22
      %s38 = sphi 0, %s40
      %s41 = sphi 0, %s38
      %s42 = sphi 0, %s41
      %s58 = sphi 0, %s42
      %s62 = sphi 0, %s62
      %s64 = sphi 0, %s62
      %s65 = sphi 0, %s64
      %s79 = sphi 0, %s65
      %s83 = sphi 0, %s83
      %s85 = sphi 0, %s83
      %s86 = sphi 0, %s85
      %s100 = sphi 0, %s86
      %s104 = sphi 0, %s104
      %s106 = sphi 0, %s104
      %s107 = sphi 0, %s106
      %s121 = sphi 0, %s107
      %s129 = sphi 0, %s131
      %s132 = sphi 0, %s129
      %s133 = sphi 0, %s132
      %s149 = sphi 0, %s133
    $region4: #{generator_forward.6} parent=1 // loop_header_branch
      %15 = sbr.rel (%p13) target = $region8
    $region5: #{generator_forward.6} parent=1 // loop_body
      %s17 = ssub.s32 %s12, 1
      %s18 = ssub.s32 %s12, 2
      %s25 = sadd.s32 1, %s20
      %p26 = scmp.ge.s32.totalorder %s25, 1
      %s27 = scalar_select %p26, 0, %s25
      %s28 = sadd.s32 1, %s19
      %s29 = scalar_select %p26, %s28, %s19
      %p30 = scmp.ge.s32.totalorder %s29, 2
      %s31 = scalar_select %p30, 0, %s29
      %s32 = ssub.s32 1, %s19
      %s33 = smul.u32 %s32, %s20
      %s34 = ssub.s32 1, %s31
      %s35 = smul.u32 %s34, %s27
      %s36 = ssub.s32 %s33, %s35
      %p37 = scmp.eq.s32.totalorder %s36, 0
      %s39 = sadd.s32 %s38, 1
      %s40 = scalar_select %p37, %s38, %s39
      %p43 = pneg %p37
      %p44 = scmp.eq.s32.totalorder %s12, 1
      %p45 = por %p43, %p44
      %p46 = scmp.ne.s32.totalorder %s38, %s41
      %p47 = scmp.eq.s32.totalorder %s12, 0
      %p48 = por %p46, %p47
      %p49 = scmp.ne.s32.totalorder %s38, %s41
      %p50 = scmp.eq.s32.totalorder %s17, 1
      %p51 = por %p49, %p50
      %p52 = scmp.ne.s32.totalorder %s41, %s42
      %p53 = scmp.eq.s32.totalorder %s17, 0
      %p54 = por %p52, %p53
      %p55 = scmp.ne.s32.totalorder %s41, %s42
      %p56 = scmp.eq.s32.totalorder %s18, 1
      %p57 = por %p55, %p56
      %p59 = scmp.ne.s32.totalorder %s42, %s58
      %p60 = scmp.eq.s32.totalorder %s18, 0
      %p61 = por %p59, %p60
      %s63 = sadd.s32 %s62, 1
      %p66 = scmp.eq.s32.totalorder %s12, 1
      %p67 = scmp.ne.s32.totalorder %s62, %s64
      %p68 = scmp.eq.s32.totalorder %s12, 0
      %p69 = por %p67, %p68
      %p70 = scmp.ne.s32.totalorder %s62, %s64
      %p71 = scmp.eq.s32.totalorder %s17, 1
      %p72 = por %p70, %p71
      %p73 = scmp.ne.s32.totalorder %s64, %s65
      %p74 = scmp.eq.s32.totalorder %s17, 0
      %p75 = por %p73, %p74
      %p76 = scmp.ne.s32.totalorder %s64, %s65
      %p77 = scmp.eq.s32.totalorder %s18, 1
      %p78 = por %p76, %p77
      %p80 = scmp.ne.s32.totalorder %s65, %s79
      %p81 = scmp.eq.s32.totalorder %s18, 0
      %p82 = por %p80, %p81
      %s84 = sadd.s32 %s83, 1
      %p87 = scmp.eq.s32.totalorder %s12, 1
      %p88 = scmp.ne.s32.totalorder %s83, %s85
      %p89 = scmp.eq.s32.totalorder %s12, 0
      %p90 = por %p88, %p89
      %p91 = scmp.ne.s32.totalorder %s83, %s85
      %p92 = scmp.eq.s32.totalorder %s17, 1
      %p93 = por %p91, %p92
      %p94 = scmp.ne.s32.totalorder %s85, %s86
      %p95 = scmp.eq.s32.totalorder %s17, 0
      %p96 = por %p94, %p95
      %p97 = scmp.ne.s32.totalorder %s85, %s86
      %p98 = scmp.eq.s32.totalorder %s18, 1
      %p99 = por %p97, %p98
      %p101 = scmp.ne.s32.totalorder %s86, %s100
      %p102 = scmp.eq.s32.totalorder %s18, 0
      %p103 = por %p101, %p102
      %s105 = sadd.s32 %s104, 1
      %p108 = scmp.eq.s32.totalorder %s12, 1
      %p109 = scmp.ne.s32.totalorder %s104, %s106
      %p110 = scmp.eq.s32.totalorder %s12, 0
      %p111 = por %p109, %p110
      %p112 = scmp.ne.s32.totalorder %s104, %s106
      %p113 = scmp.eq.s32.totalorder %s17, 1
      %p114 = por %p112, %p113
      %p115 = scmp.ne.s32.totalorder %s106, %s107
      %p116 = scmp.eq.s32.totalorder %s17, 0
      %p117 = por %p115, %p116
      %p118 = scmp.ne.s32.totalorder %s106, %s107
      %p119 = scmp.eq.s32.totalorder %s18, 1
      %p120 = por %p118, %p119
      %p122 = scmp.ne.s32.totalorder %s107, %s121
      %p123 = scmp.eq.s32.totalorder %s18, 0
      %p124 = por %p122, %p123
      %s125 = smul.u32 %s20, %s19
      %s126 = smul.u32 %s27, %s31
      %s127 = ssub.s32 %s125, %s126
      %p128 = scmp.eq.s32.totalorder %s127, 0
      %s130 = sadd.s32 %s129, 1
      %s131 = scalar_select %p128, %s129, %s130
      %p134 = pneg %p128
      %p135 = scmp.eq.s32.totalorder %s12, 1
      %p136 = por %p134, %p135
      %p137 = scmp.ne.s32.totalorder %s129, %s132
      %p138 = scmp.eq.s32.totalorder %s12, 0
      %p139 = por %p137, %p138
      %p140 = scmp.ne.s32.totalorder %s129, %s132
      %p141 = scmp.eq.s32.totalorder %s17, 1
      %p142 = por %p140, %p141
      %p143 = scmp.ne.s32.totalorder %s132, %s133
      %p144 = scmp.eq.s32.totalorder %s17, 0
      %p145 = por %p143, %p144
      %p146 = scmp.ne.s32.totalorder %s132, %s133
      %p147 = scmp.eq.s32.totalorder %s18, 1
      %p148 = por %p146, %p147
      %p150 = scmp.ne.s32.totalorder %s133, %s149
      %p151 = scmp.eq.s32.totalorder %s18, 0
      %p152 = por %p150, %p151
      %p153 = scmp.le.s32.totalorder 1, %s12
      %p154 = scmp.lt.s32.totalorder %s12, 3
      %p155 = pnand %p153, %p154
      %p156 = pneg %p155
      // Predicated region
      $region9: #{generator_forward.6} parent=5 // pred_check
        _
      $region10: #{generator_forward.6} parent=5 // pred_check_branch
        %158 = sbr.rel (%p155) target = $region12
      $region11: #{generator_forward.6} parent=5 // pred_region
        %s159 = ssub.s32 %s12, 1
        // Predicated region
        $region13: #{generator_forward.6} parent=11 // pred_check
          %p160 = pneg %p75
        $region14: #{generator_forward.6} parent=11 // pred_check_branch
          %162 = sbr.rel (%p160) target = $region16
        $region15: #{generator_forward.6} parent=11 // pred_region
          %164 = vsyncadd [#allocation8], 0
          %s165 = sshll.u32 %s1, 4
          %s166 = int_to_ptr.hbm [resolvable:$true] %s165
          %s167 = sshll.u32 [#allocation7], 4
          %s168 = int_to_ptr.vmem [resolvable:$true] %s167
          %173 = dma.hbm_to_vmem [thread:$0]  %s166, 4608, %s168, [#allocation8], 64, 64, 4
        $region16: #{generator_forward.6} parent=11 // pred_fallthru
          _
        // Predicated region
        $region17: #{generator_forward.6} parent=11 // pred_check
          %p174 = pneg %p96
        $region18: #{generator_forward.6} parent=11 // pred_check_branch
          %176 = sbr.rel (%p174) target = $region20
        $region19: #{generator_forward.6} parent=11 // pred_region
          %178 = vsyncadd [#allocation10], 0
          %s180 = sshll.u32 %s2, 4
          %s181 = int_to_ptr.hbm [resolvable:$true] %s180
          %s182 = sshll.u32 [#allocation9], 4
          %s183 = int_to_ptr.vmem [resolvable:$true] %s182
          %185 = dma.hbm_to_vmem [thread:$0]  %s181, 16, %s183, [#allocation10]
        $region20: #{generator_forward.6} parent=11 // pred_fallthru
          _
        // Predicated region
        $region21: #{generator_forward.6} parent=11 // pred_check
          %p186 = pneg %p117
        $region22: #{generator_forward.6} parent=11 // pred_check_branch
          %188 = sbr.rel (%p186) target = $region24
        $region23: #{generator_forward.6} parent=11 // pred_region
          %190 = vsyncadd [#allocation10], 0
          %s192 = sshll.u32 %s3, 4
          %s193 = int_to_ptr.hbm [resolvable:$true] %s192
          %s194 = sshll.u32 [#allocation11], 4
          %s195 = int_to_ptr.vmem [resolvable:$true] %s194
          %197 = dma.hbm_to_vmem [thread:$0]  %s193, 16, %s195, [#allocation10]
        $region24: #{generator_forward.6} parent=11 // pred_fallthru
          _
      $region12: #{generator_forward.6} parent=5 // pred_fallthru
        _
      %p198 = scmp.lt.s32.totalorder %s12, 2
      // Predicated region
      $region25: #{generator_forward.6} parent=5 // pred_check
        %p199 = pneg %p198
      $region26: #{generator_forward.6} parent=5 // pred_check_branch
        %201 = sbr.rel (%p199) target = $region28
      $region27: #{generator_forward.6} parent=5 // pred_region
        // Predicated region
        $region29: #{generator_forward.6} parent=27 // pred_check
          %p202 = pneg %p48
        $region30: #{generator_forward.6} parent=27 // pred_check_branch
          %204 = sbr.rel (%p202) target = $region32
        $region31: #{generator_forward.6} parent=27 // pred_region
          %s205 = ssub.s32 1, %s19
          %s206 = smul.u32 %s205, %s20
          %s207 = smul.u32 4, %s206
          %p208 = scmp.lt.s32.totalorder %s207, 3
          %s209 = scalar_select %p208, %s207, 3
          %s210 = smul.addr %s209, 5
          %s211 = smul.addr %s210, 4
          %s212 = scalar_lea.vmem %s0, %s211
          %s213 = ssub.s32 1, %s19
          %s214 = smul.u32 %s213, %s20
          %s215 = smul.u32 4, %s214
        $region32: #{generator_forward.6} parent=27 // pred_fallthru
          _
      $region28: #{generator_forward.6} parent=5 // pred_fallthru
        _
      %p216 = scmp.le.s32.totalorder 1, %s12
      %p217 = scmp.lt.s32.totalorder %s12, 3
      %p218 = pnand %p216, %p217
      %p219 = pneg %p218
      // Predicated region
      $region33: #{generator_forward.6} parent=5 // pred_check
        _
      $region34: #{generator_forward.6} parent=5 // pred_check_branch
        %221 = sbr.rel (%p218) target = $region36
      $region35: #{generator_forward.6} parent=5 // pred_region
        %s222 = ssub.s32 %s12, 1
        // Predicated region
        $region37: #{generator_forward.6} parent=35 // pred_check
          %p223 = pneg %p75
        $region38: #{generator_forward.6} parent=35 // pred_check_branch
          %225 = sbr.rel (%p223) target = $region40
        $region39: #{generator_forward.6} parent=35 // pred_region
          %227 = dma.done [#allocation8], 4608
        $region40: #{generator_forward.6} parent=35 // pred_fallthru
          _
        // Predicated region
        $region41: #{generator_forward.6} parent=35 // pred_check
          %p228 = pneg %p96
        $region42: #{generator_forward.6} parent=35 // pred_check_branch
          %230 = sbr.rel (%p228) target = $region44
        $region43: #{generator_forward.6} parent=35 // pred_region
          %232 = dma.done [#allocation10], 16
        $region44: #{generator_forward.6} parent=35 // pred_fallthru
          _
        // Predicated region
        $region45: #{generator_forward.6} parent=35 // pred_check
          %p233 = pneg %p117
        $region46: #{generator_forward.6} parent=35 // pred_check_branch
          %235 = sbr.rel (%p233) target = $region48
        $region47: #{generator_forward.6} parent=35 // pred_region
          %237 = dma.done [#allocation10], 16
        $region48: #{generator_forward.6} parent=35 // pred_fallthru
          _
        %s238 = ssub.s32 1, %s21
        %s239 = smul.u32 %s238, %s22
        %s240 = smul.u32 4, %s239
        %p241 = scmp.lt.s32.totalorder %s240, 3
        %s242 = scalar_select %p241, %s240, 3
        %s243 = smul.addr %s242, 5
        %s244 = smul.addr %s243, 4
        %s245 = scalar_lea.vmem %s0, %s244
        %p246 = pneg %p54
        %p247 = pneg %p51
        %p248 = pneg %p75
        %p249 = pneg %p72
        %p250 = pneg %p96
        %p251 = pneg %p93
        %p252 = pneg %p117
        %p253 = pneg %p114
        %p254 = pneg %p145
        %p255 = pneg %p142
        %s256 = smul.u32 %s22, %s21
        %s257 = smul.u32 4, %s256
        %p258 = scmp.lt.s32.totalorder %s257, 3
        %s259 = scalar_select %p258, %s257, 3
        %s260 = smul.addr %s259, 4
        %s261 = scalar_lea.vmem %s4, %s260
        %s262 = ssub.s32 1, %s21
        %s263 = smul.u32 %s262, %s22
        %s264 = smul.u32 4, %s263
        %p265 = scmp.lt.s32.totalorder %s264, 3
        %s266 = scalar_select %p265, %s264, 3
        %s267 = smul.addr %s266, 5
        %s268 = smul.addr %s267, 4
        %s269 = scalar_lea.vmem %s0, %s268
        %s270 = ssub.s32 1, %s21
        %s271 = smul.u32 %s270, %s22
        %s272 = smul.u32 4, %s271
        %s273 = smul.u32 %s22, %s21
        %s274 = smul.u32 4, %s273
        %p275 = scmp.lt.s32.totalorder %s274, 3
        %s276 = scalar_select %p275, %s274, 3
        %s277 = smul.addr %s276, 4
        %s278 = scalar_lea.vmem %s4, %s277
        %s279 = smul.u32 %s22, %s21
        %s280 = smul.u32 4, %s279
        %s282 = smul.u32 %s22, 32
        %p283 = scmp.eq.s32.totalorder %s21, 0
        %p284 = scmp.eq.s32.totalorder %s22, 0
        %p285 = pnand %p283, %p284
        %p286 = pneg %p285
        // Predicated region
        $region49: #{generator_forward.6} parent=35 // pred_check
          _
        $region50: #{generator_forward.6} parent=35 // pred_check_branch
          %288 = sbr.rel (%p285) target = $region52
        $region51: #{generator_forward.6} parent=35 // pred_region
          %289 = vst [vmem:[#allocation3] sm:$0xff] 0.0
          %290 = vst [vmem:[#allocation4] sm:$0xff] 0.0
        $region52: #{generator_forward.6} parent=35 // pred_fallthru
          _
        // Predicated region
        $region53: #{generator_forward.6} parent=35 // pred_check
          %p291 = pneg %p283
        $region54: #{generator_forward.6} parent=35 // pred_check_branch
          %293 = sbr.rel (%p291) target = $region56
        $region55: #{generator_forward.6} parent=35 // pred_region
          %v294 = vld [vmem:[%s269] sm:$0xff]
          %v295 = vld [vmem:[%s269 + $0x8] sm:$0xff]
          %v296 = vld [vmem:[%s269 + $0x10] sm:$0xf]
          %v297 = vld [vmem:[%s269 + $0x14] sm:$0xff]
          %v298 = vld [vmem:[%s269 + $0x1c] sm:$0xff]
          %v299 = vld [vmem:[%s269 + $0x24] sm:$0xf]
          %v300 = vld [vmem:[%s269 + $0x28] sm:$0xff]
          %v301 = vld [vmem:[%s269 + $0x30] sm:$0xff]
          %v302 = vld [vmem:[%s269 + $0x38] sm:$0xf]
          %v303 = vld [vmem:[%s269 + $0x3c] sm:$0xff]
          %v304 = vld [vmem:[%s269 + $0x44] sm:$0xff]
          %v305 = vld [vmem:[%s269 + $0x4c] sm:$0xf]
          %v306 = vld [vmem:[#allocation7] sm:$0xf]
          %v307 = vld [vmem:[#allocation7 + $0x4] sm:$0xf]
          %v308 = vld [vmem:[#allocation7 + $0x8] sm:$0xf]
          %v309 = vld [vmem:[#allocation7 + $0xc] sm:$0xf]
          %v310 = vld [vmem:[#allocation7 + $0x10] sm:$0xf]
          %v311 = vld [vmem:[#allocation7 + $0x14] sm:$0xf]
          %v312 = vld [vmem:[#allocation7 + $0x18] sm:$0xf]
          %v313 = vld [vmem:[#allocation7 + $0x1c] sm:$0xf]
          %v314 = vld [vmem:[#allocation7 + $0x20] sm:$0xf]
          %v315 = vld [vmem:[#allocation7 + $0x24] sm:$0xf]
          %v316 = vld [vmem:[#allocation7 + $0x28] sm:$0xf]
          %v317 = vld [vmem:[#allocation7 + $0x2c] sm:$0xf]
          %v318 = vld [vmem:[#allocation7 + $0x30] sm:$0xf]
          %v319 = vld [vmem:[#allocation7 + $0x34] sm:$0xf]
          %v320 = vld [vmem:[#allocation7 + $0x38] sm:$0xf]
          %v321 = vld [vmem:[#allocation7 + $0x3c] sm:$0xf]
          %v322 = vld [vmem:[#allocation7 + $0x40] sm:$0xf]
          %v323 = vld [vmem:[#allocation7 + $0x44] sm:$0xf]
          %v324 = vld [vmem:[#allocation7 + $0x48] sm:$0xf]
          %v325 = vld [vmem:[#allocation7 + $0x4c] sm:$0xf]
          %v326 = vld [vmem:[#allocation7 + $0x50] sm:$0xf]
          %v327 = vld [vmem:[#allocation7 + $0x54] sm:$0xf]
          %v328 = vld [vmem:[#allocation7 + $0x58] sm:$0xf]
          %v329 = vld [vmem:[#allocation7 + $0x5c] sm:$0xf]
          %v330 = vld [vmem:[#allocation7 + $0x60] sm:$0xf]
          %v331 = vld [vmem:[#allocation7 + $0x64] sm:$0xf]
          %v332 = vld [vmem:[#allocation7 + $0x68] sm:$0xf]
          %v333 = vld [vmem:[#allocation7 + $0x6c] sm:$0xf]
          %v334 = vld [vmem:[#allocation7 + $0x70] sm:$0xf]
          %v335 = vld [vmem:[#allocation7 + $0x74] sm:$0xf]
          %v336 = vld [vmem:[#allocation7 + $0x78] sm:$0xf]
          %v337 = vld [vmem:[#allocation7 + $0x7c] sm:$0xf]
          %v338 = vld [vmem:[#allocation7 + $0x80] sm:$0xf]
          %v339 = vld [vmem:[#allocation7 + $0x84] sm:$0xf]
          %v340 = vld [vmem:[#allocation7 + $0x88] sm:$0xf]
          %v341 = vld [vmem:[#allocation7 + $0x8c] sm:$0xf]
          %v342 = vld [vmem:[#allocation7 + $0x90] sm:$0xf]
          %v343 = vld [vmem:[#allocation7 + $0x94] sm:$0xf]
          %v344 = vld [vmem:[#allocation7 + $0x98] sm:$0xf]
          %v345 = vld [vmem:[#allocation7 + $0x9c] sm:$0xf]
          %v346 = vld [vmem:[#allocation7 + $0xa0] sm:$0xf]
          %v347 = vld [vmem:[#allocation7 + $0xa4] sm:$0xf]
          %v348 = vld [vmem:[#allocation7 + $0xa8] sm:$0xf]
          %v349 = vld [vmem:[#allocation7 + $0xac] sm:$0xf]
          %v350 = vld [vmem:[#allocation7 + $0xb0] sm:$0xf]
          %v351 = vld [vmem:[#allocation7 + $0xb4] sm:$0xf]
          %v352 = vld [vmem:[#allocation7 + $0xb8] sm:$0xf]
          %v353 = vld [vmem:[#allocation7 + $0xbc] sm:$0xf]
          %v354 = vld [vmem:[#allocation7 + $0xc0] sm:$0xf]
          %v355 = vld [vmem:[#allocation7 + $0xc4] sm:$0xf]
          %v356 = vld [vmem:[#allocation7 + $0xc8] sm:$0xf]
          %v357 = vld [vmem:[#allocation7 + $0xcc] sm:$0xf]
          %v358 = vld [vmem:[#allocation7 + $0xd0] sm:$0xf]
          %v359 = vld [vmem:[#allocation7 + $0xd4] sm:$0xf]
          %v360 = vld [vmem:[#allocation7 + $0xd8] sm:$0xf]
          %v361 = vld [vmem:[#allocation7 + $0xdc] sm:$0xf]
          %v362 = vld [vmem:[#allocation7 + $0xe0] sm:$0xf]
          %v363 = vld [vmem:[#allocation7 + $0xe4] sm:$0xf]
          %v364 = vld [vmem:[#allocation7 + $0xe8] sm:$0xf]
          %v365 = vld [vmem:[#allocation7 + $0xec] sm:$0xf]
          %v366 = vld [vmem:[#allocation7 + $0xf0] sm:$0xf]
          %v367 = vld [vmem:[#allocation7 + $0xf4] sm:$0xf]
          %v368 = vld [vmem:[#allocation7 + $0xf8] sm:$0xf]
          %v369 = vld [vmem:[#allocation7 + $0xfc] sm:$0xf]
          %v370 = vld [vmem:[#allocation7 + $0x100] sm:$0xf]
          %v371 = vld [vmem:[#allocation7 + $0x104] sm:$0xf]
          %v372 = vld [vmem:[#allocation7 + $0x108] sm:$0xf]
          %v373 = vld [vmem:[#allocation7 + $0x10c] sm:$0xf]
          %v374 = vld [vmem:[#allocation7 + $0x110] sm:$0xf]
          %v375 = vld [vmem:[#allocation7 + $0x114] sm:$0xf]
          %v376 = vld [vmem:[#allocation7 + $0x118] sm:$0xf]
          %v377 = vld [vmem:[#allocation7 + $0x11c] sm:$0xf]
          %v390 = vunpack.c.l.b16 %v294
          %v391 = vunpack.c.h.b16 %v294
          %v392 = vunpack.c.l.b16 %v295
          %v393 = vunpack.c.h.b16 %v295
          %v394 = vunpack.c.l.b16 %v296
          %v395 = vunpack.c.l.b16 %v297
          %v396 = vunpack.c.h.b16 %v297
          %v397 = vunpack.c.l.b16 %v298
          %v398 = vunpack.c.h.b16 %v298
          %v399 = vunpack.c.l.b16 %v299
          %v400 = vunpack.c.l.b16 %v300
          %v401 = vunpack.c.h.b16 %v300
          %v402 = vunpack.c.l.b16 %v301
          %v403 = vunpack.c.h.b16 %v301
          %v404 = vunpack.c.l.b16 %v302
          %v405 = vunpack.c.l.b16 %v303
          %v406 = vunpack.c.h.b16 %v303
          %v407 = vunpack.c.l.b16 %v304
          %v408 = vunpack.c.h.b16 %v304
          %v409 = vunpack.c.l.b16 %v305
          %v410 = vpack.c.b16 %v395, %v390
          %v411 = vpack.c.b16 %v396, %v391
          %v412 = vpack.c.b16 %v397, %v392
          %v413 = vpack.c.b16 %v398, %v393
          %v414 = vpack.c.b16 %v399, %v394
          %v415 = vpack.c.b16 %v405, %v400
          %v416 = vpack.c.b16 %v406, %v401
          %v417 = vpack.c.b16 %v407, %v402
          %v418 = vpack.c.b16 %v408, %v403
          %v419 = vpack.c.b16 %v409, %v404
          %v500 = vunpack.c.l.b16 %v306
          %v501 = vunpack.c.l.b16 %v307
          %v502 = vunpack.c.l.b16 %v308
          %v503 = vunpack.c.l.b16 %v309
          %v504 = vunpack.c.l.b16 %v310
          %v505 = vunpack.c.l.b16 %v311
          %v506 = vunpack.c.l.b16 %v312
          %v507 = vunpack.c.l.b16 %v313
          %v508 = vunpack.c.l.b16 %v314
          %v509 = vunpack.c.l.b16 %v315
          %v510 = vunpack.c.l.b16 %v316
          %v511 = vunpack.c.l.b16 %v317
          %v512 = vunpack.c.l.b16 %v318
          %v513 = vunpack.c.l.b16 %v319
          %v514 = vunpack.c.l.b16 %v320
          %v515 = vunpack.c.l.b16 %v321
          %v516 = vunpack.c.l.b16 %v322
          %v517 = vunpack.c.l.b16 %v323
          %v518 = vunpack.c.l.b16 %v324
          %v519 = vunpack.c.l.b16 %v325
          %v520 = vunpack.c.l.b16 %v326
          %v521 = vunpack.c.l.b16 %v327
          %v522 = vunpack.c.l.b16 %v328
          %v523 = vunpack.c.l.b16 %v329
          %v524 = vunpack.c.l.b16 %v330
          %v525 = vunpack.c.l.b16 %v331
          %v526 = vunpack.c.l.b16 %v332
          %v527 = vunpack.c.l.b16 %v333
          %v528 = vunpack.c.l.b16 %v334
          %v529 = vunpack.c.l.b16 %v335
          %v530 = vunpack.c.l.b16 %v336
          %v531 = vunpack.c.l.b16 %v337
          %v532 = vunpack.c.l.b16 %v338
          %v533 = vunpack.c.l.b16 %v339
          %v534 = vunpack.c.l.b16 %v340
          %v535 = vunpack.c.l.b16 %v341
          %v536 = vunpack.c.l.b16 %v342
          %v537 = vunpack.c.l.b16 %v343
          %v538 = vunpack.c.l.b16 %v344
          %v539 = vunpack.c.l.b16 %v345
          %v540 = vunpack.c.l.b16 %v346
          %v541 = vunpack.c.l.b16 %v347
          %v542 = vunpack.c.l.b16 %v348
          %v543 = vunpack.c.l.b16 %v349
          %v544 = vunpack.c.l.b16 %v350
          %v545 = vunpack.c.l.b16 %v351
          %v546 = vunpack.c.l.b16 %v352
          %v547 = vunpack.c.l.b16 %v353
          %v548 = vunpack.c.l.b16 %v354
          %v549 = vunpack.c.l.b16 %v355
          %v550 = vunpack.c.l.b16 %v356
          %v551 = vunpack.c.l.b16 %v357
          %v552 = vunpack.c.l.b16 %v358
          %v553 = vunpack.c.l.b16 %v359
          %v554 = vunpack.c.l.b16 %v360
          %v555 = vunpack.c.l.b16 %v361
          %v556 = vunpack.c.l.b16 %v362
          %v557 = vunpack.c.l.b16 %v363
          %v558 = vunpack.c.l.b16 %v364
          %v559 = vunpack.c.l.b16 %v365
          %v560 = vunpack.c.l.b16 %v366
          %v561 = vunpack.c.l.b16 %v367
          %v562 = vunpack.c.l.b16 %v368
          %v563 = vunpack.c.l.b16 %v369
          %v564 = vunpack.c.l.b16 %v370
          %v565 = vunpack.c.l.b16 %v371
          %v566 = vunpack.c.l.b16 %v372
          %v567 = vunpack.c.l.b16 %v373
          %v568 = vunpack.c.l.b16 %v374
          %v569 = vunpack.c.l.b16 %v375
          %v570 = vunpack.c.l.b16 %v376
          %v571 = vunpack.c.l.b16 %v377
          %v572 = vpack.c.b16 %v501, %v500
          %v573 = vpack.c.b16 %v503, %v502
          %v574 = vpack.c.b16 %v505, %v504
          %v575 = vpack.c.b16 %v507, %v506
          %v576 = vpack.c.b16 %v509, %v508
          %v577 = vpack.c.b16 %v511, %v510
          %v578 = vpack.c.b16 %v513, %v512
          %v579 = vpack.c.b16 %v515, %v514
          %v580 = vpack.c.b16 %v517, %v516
          %v581 = vpack.c.b16 %v519, %v518
          %v582 = vpack.c.b16 %v521, %v520
          %v583 = vpack.c.b16 %v523, %v522
          %v584 = vpack.c.b16 %v525, %v524
          %v585 = vpack.c.b16 %v527, %v526
          %v586 = vpack.c.b16 %v529, %v528
          %v587 = vpack.c.b16 %v531, %v530
          %v588 = vpack.c.b16 %v533, %v532
          %v589 = vpack.c.b16 %v535, %v534
          %v590 = vpack.c.b16 %v537, %v536
          %v591 = vpack.c.b16 %v539, %v538
          %v592 = vpack.c.b16 %v541, %v540
          %v593 = vpack.c.b16 %v543, %v542
          %v594 = vpack.c.b16 %v545, %v544
          %v595 = vpack.c.b16 %v547, %v546
          %v596 = vpack.c.b16 %v549, %v548
          %v597 = vpack.c.b16 %v551, %v550
          %v598 = vpack.c.b16 %v553, %v552
          %v599 = vpack.c.b16 %v555, %v554
          %v600 = vpack.c.b16 %v557, %v556
          %v601 = vpack.c.b16 %v559, %v558
          %v602 = vpack.c.b16 %v561, %v560
          %v603 = vpack.c.b16 %v563, %v562
          %v604 = vpack.c.b16 %v565, %v564
          %v605 = vpack.c.b16 %v567, %v566
          %v606 = vpack.c.b16 %v569, %v568
          %v607 = vpack.c.b16 %v571, %v570
          %vm644 = vcmask 523264
          %v646 = vsel %vm644, %v414, 0
          %v649 = vsel %vm644, %v419, 0
          %651 = vmatpush.bf16.msra.mxu0 %v579
          %652 = vmatpush.bf16.msra.mxu0 %v578
          %653 = vmatpush.bf16.msra.mxu0 %v577
          %654 = vmatpush.bf16.msra.mxu0 %v576
          %655 = vmatpush.bf16.msra.mxu0 %v575
          %656 = vmatpush.bf16.msra.mxu0 %v574
          %657 = vmatpush.bf16.msra.mxu0 %v573
          %658 = vmatpush.bf16.msra.mxu0 %v572
          %659 = vmatmul.bf16.gmra.mxu0 %v410
          %v660 = vpop.f32.mrf.mxu0
          %v661 = vadd.f32 0.0, %v660
          %v662 = vpop.f32.mrf.mxu0
          %v663 = vadd.f32 0.0, %v662
          %664 = vmatmul.bf16.gmra.mxu0 %v415
          %v665 = vpop.f32.mrf.mxu0
          %v666 = vadd.f32 0.0, %v665
          %v667 = vpop.f32.mrf.mxu0
          %v668 = vadd.f32 0.0, %v667
          %669 = vdwg.mxu0
          %670 = vmatpush.bf16.msra.mxu0 %v587
          %671 = vmatpush.bf16.msra.mxu0 %v586
          %672 = vmatpush.bf16.msra.mxu0 %v585
          %673 = vmatpush.bf16.msra.mxu0 %v584
          %674 = vmatpush.bf16.msra.mxu0 %v583
          %675 = vmatpush.bf16.msra.mxu0 %v582
          %676 = vmatpush.bf16.msra.mxu0 %v581
          %677 = vmatpush.bf16.msra.mxu0 %v580
          %678 = vmatmul.bf16.gmra.mxu0 %v411
          %v679 = vpop.f32.mrf.mxu0
          %v680 = vadd.f32 %v661, %v679
          %v681 = vpop.f32.mrf.mxu0
          %v682 = vadd.f32 %v663, %v681
          %683 = vmatmul.bf16.gmra.mxu0 %v416
          %v684 = vpop.f32.mrf.mxu0
          %v685 = vadd.f32 %v666, %v684
          %v686 = vpop.f32.mrf.mxu0
          %v687 = vadd.f32 %v668, %v686
          %688 = vdwg.mxu0
          %689 = vmatpush.bf16.msra.mxu0 %v595
          %690 = vmatpush.bf16.msra.mxu0 %v594
          %691 = vmatpush.bf16.msra.mxu0 %v593
          %692 = vmatpush.bf16.msra.mxu0 %v592
          %693 = vmatpush.bf16.msra.mxu0 %v591
          %694 = vmatpush.bf16.msra.mxu0 %v590
          %695 = vmatpush.bf16.msra.mxu0 %v589
          %696 = vmatpush.bf16.msra.mxu0 %v588
          %697 = vmatmul.bf16.gmra.mxu0 %v412
          %v698 = vpop.f32.mrf.mxu0
          %v699 = vadd.f32 %v680, %v698
          %v700 = vpop.f32.mrf.mxu0
          %v701 = vadd.f32 %v682, %v700
          %702 = vmatmul.bf16.gmra.mxu0 %v417
          %v703 = vpop.f32.mrf.mxu0
          %v704 = vadd.f32 %v685, %v703
          %v705 = vpop.f32.mrf.mxu0
          %v706 = vadd.f32 %v687, %v705
          %707 = vdwg.mxu0
          %708 = vmatpush.bf16.msra.mxu0 %v603
          %709 = vmatpush.bf16.msra.mxu0 %v602
          %710 = vmatpush.bf16.msra.mxu0 %v601
          %711 = vmatpush.bf16.msra.mxu0 %v600
          %712 = vmatpush.bf16.msra.mxu0 %v599
          %713 = vmatpush.bf16.msra.mxu0 %v598
          %714 = vmatpush.bf16.msra.mxu0 %v597
          %715 = vmatpush.bf16.msra.mxu0 %v596
          %716 = vmatmul.bf16.gmra.mxu0 %v413
          %v717 = vpop.f32.mrf.mxu0
          %v718 = vadd.f32 %v699, %v717
          %v719 = vpop.f32.mrf.mxu0
          %v720 = vadd.f32 %v701, %v719
          %721 = vmatmul.bf16.gmra.mxu0 %v418
          %v722 = vpop.f32.mrf.mxu0
          %v723 = vadd.f32 %v704, %v722
          %v724 = vpop.f32.mrf.mxu0
          %v725 = vadd.f32 %v706, %v724
          %726 = vdwg.mxu0
          %727 = vmatpush.bf16.msra.mxu0 0
          %728 = vmatpush.bf16.msra.mxu0 0
          %729 = vmatpush.bf16.msra.mxu0 0
          %730 = vmatpush.bf16.msra.mxu0 0
          %731 = vmatpush.bf16.msra.mxu0 %v607
          %732 = vmatpush.bf16.msra.mxu0 %v606
          %733 = vmatpush.bf16.msra.mxu0 %v605
          %734 = vmatpush.bf16.msra.mxu0 %v604
          %735 = vmatmul.bf16.gmra.mxu0 %v646
          %v736 = vpop.f32.mrf.mxu0
          %v737 = vadd.f32 %v718, %v736
          %v738 = vpop.f32.mrf.mxu0
          %v739 = vadd.f32 %v720, %v738
          %740 = vmatmul.bf16.gmra.mxu0 %v649
          %v741 = vpop.f32.mrf.mxu0
          %v742 = vadd.f32 %v723, %v741
          %v743 = vpop.f32.mrf.mxu0
          %v744 = vadd.f32 %v725, %v743
          %745 = vdwg.mxu0
          %v746 = vpack.c.bf16 %v737, %v737
          %v747 = vpack.c.bf16 %v739, %v739
          %v748 = vpack.c.bf16 %v742, %v742
          %v749 = vpack.c.bf16 %v744, %v744
          %s750 = sshra.s32 %s282, 3
          %s751 = sand.u32 %s282, 7
          %s752 = smul.addr %s750, 4
          %s753 = scalar_lea.vmem [#allocation2], %s752
          %754 = vst [vmem:[%s753] sm:$0xf] %v746
          %755 = vst [vmem:[%s753 + $0x4] sm:$0xf] %v747
          %756 = vst [vmem:[%s753 + $0x8] sm:$0xf] %v748
          %757 = vst [vmem:[%s753 + $0xc] sm:$0xf] %v749
          %v758 = vld [vmem:[#allocation3] sm:$0xff]
          %v759 = vadd.f32 %v737, %v739
          %v760 = vadd.f32 %v759, %v742
          %v761 = vadd.f32 %v760, %v744
          %v762 = vadd.f32 %v758, %v761
          %763 = vst [vmem:[#allocation3] sm:$0xff] %v762
          %v764 = vld [vmem:[#allocation4] sm:$0xff]
          %v765 = vmul.f32 %v737, %v737
          %v766 = vmul.f32 %v739, %v739
          %v767 = vmul.f32 %v742, %v742
          %v768 = vmul.f32 %v744, %v744
          %v769 = vadd.f32 %v765, %v766
          %v770 = vadd.f32 %v769, %v767
          %v771 = vadd.f32 %v770, %v768
          %v772 = vadd.f32 %v764, %v771
          %773 = vst [vmem:[#allocation4] sm:$0xff] %v772
        $region56: #{generator_forward.6} parent=35 // pred_fallthru
          _
        %p774 = scmp.eq.s32.totalorder %s21, 1
        %p775 = pnand %p774, %p284
        %p776 = pneg %p775
        // Predicated region
        $region57: #{generator_forward.6} parent=35 // pred_check
          _
        $region58: #{generator_forward.6} parent=35 // pred_check_branch
          %778 = sbr.rel (%p775) target = $region60
        $region59: #{generator_forward.6} parent=35 // pred_region
          %v779 = vld [vmem:[#allocation3] sm:$0xff]
          %v780 = vld [vmem:[#allocation4] sm:$0xff]
          %v781 = vadd.f32 %v779, 0.0
          %v782 = vadd.f32 %v780, 0.0
          %784 = vrot.lane.b32.xlu0 %v779, 96
          %v785 = vpop.permute.xlu0 %784
          %v787 = vadd.f32 %v781, %v785
          %789 = vrot.lane.b32.xlu0 %v780, 96
          %v790 = vpop.permute.xlu0 %789
          %v792 = vadd.f32 %v782, %v790
          %793 = vrot.lane.b32.xlu0 %v779, 64
          %v794 = vpop.permute.xlu0 %793
          %v796 = vadd.f32 %v787, %v794
          %797 = vrot.lane.b32.xlu0 %v780, 64
          %v798 = vpop.permute.xlu0 %797
          %v800 = vadd.f32 %v792, %v798
          %801 = vrot.lane.b32.xlu0 %v779, 32
          %v802 = vpop.permute.xlu0 %801
          %v804 = vadd.f32 %v796, %v802
          %805 = vrot.lane.b32.xlu0 %v780, 32
          %v806 = vpop.permute.xlu0 %805
          %v808 = vadd.f32 %v800, %v806
          %vm809 = vcmask 261120
          %v810 = vsel %vm809, %v804, 0.0
          %v811 = vrot.slane %v810, 4
          %v812 = vadd.f32 %v810, %v811
          %v813 = vrot.slane %v812, 2
          %v814 = vadd.f32 %v812, %v813
          %v815 = vrot.slane %v814, 1
          %v816 = vadd.f32 %v814, %v815
          %v817 = vmul.f32 %v816, 0.0078125
          %v818 = vsel %vm809, %v808, 0.0
          %v819 = vrot.slane %v818, 4
          %v820 = vadd.f32 %v818, %v819
          %v821 = vrot.slane %v820, 2
          %v822 = vadd.f32 %v820, %v821
          %v823 = vrot.slane %v822, 1
          %v824 = vadd.f32 %v822, %v823
          %v825 = vmul.f32 %v824, 0.0078125
          %v826 = vmul.f32 %v817, %v817
          %v827 = vsub.f32 %v825, %v826
          %v828 = vmax.f32 %v827, 0.0
          %v829 = vld [vmem:[#allocation9] sm:$0x1]
          %v830 = vadd.f32 %v828, 1e-05
          %v831 = vrsqrt.pop %v830
          %v832 = vmul.f32 %v831, %v830
          %v833 = vmul.f32 %v832, %v831
          %v834 = vmul.f32 0.5, %v833
          %v835 = vsub.f32 1.5, %v834
          %v836 = vmul.f32 %v831, %v835
          %vm837 = vweird.f32 %v830
          %vm838 = vweird.f32 %v831
          %vm839 = vmor %vm837, %vm838
          %v840 = vsel %vm839, %v831, %v836
          %v841 = vmul.f32 %v829, %v840
          %v842 = vld [vmem:[#allocation11] sm:$0x1]
          %v843 = vmul.f32 %v817, %v841
          %v844 = vsub.f32 %v842, %v843
          %v846 = vperm.slane %v841, 0
          %847 = vrot.lane.b32.xlu0 %v846, 32
          %v848 = vpop.permute.xlu0 %847
          %850 = vrot.lane.b32.xlu0 %v846, 64
          %v851 = vpop.permute.xlu0 %850
          %853 = vrot.lane.b32.xlu0 %v846, 96
          %v854 = vpop.permute.xlu0 %853
          %v856 = vsel %vm809, %v841, %v848
          %vm857 = vcmask 523264
          %v858 = vsel %vm857, %v856, %v851
          %vm859 = vcmask 785408
          %v860 = vsel %vm859, %v858, %v854
          %861 = vst [vmem:[#allocation5] sm:$0x1] %v860
          %v863 = vperm.slane %v844, 0
          %864 = vrot.lane.b32.xlu0 %v863, 32
          %v865 = vpop.permute.xlu0 %864
          %867 = vrot.lane.b32.xlu0 %v863, 64
          %v868 = vpop.permute.xlu0 %867
          %870 = vrot.lane.b32.xlu0 %v863, 96
          %v871 = vpop.permute.xlu0 %870
          %v873 = vsel %vm809, %v844, %v865
          %v874 = vsel %vm857, %v873, %v868
          %v875 = vsel %vm859, %v874, %v871
          %876 = vst [vmem:[#allocation6] sm:$0x1] %v875
        $region60: #{generator_forward.6} parent=35 // pred_fallthru
          _
        // Predicated region
        $region61: #{generator_forward.6} parent=35 // pred_check
          %p877 = pneg %p774
        $region62: #{generator_forward.6} parent=35 // pred_check_branch
          %879 = sbr.rel (%p877) target = $region64
        $region63: #{generator_forward.6} parent=35 // pred_region
          %s880 = sshra.s32 %s282, 3
          %s881 = sand.u32 %s282, 7
          %s882 = smul.addr %s880, 4
          %s883 = scalar_lea.vmem [#allocation2], %s882
          %v884 = vld [vmem:[%s883] sm:$0xf]
          %v885 = vld [vmem:[%s883 + $0x4] sm:$0xf]
          %v886 = vld [vmem:[%s883 + $0x8] sm:$0xf]
          %v887 = vld [vmem:[%s883 + $0xc] sm:$0xf]
          %v888 = vunpack.c.l.bf16 %v884
          %v889 = vunpack.c.l.bf16 %v885
          %v890 = vunpack.c.l.bf16 %v886
          %v891 = vunpack.c.l.bf16 %v887
          %v892 = vld [vmem:[#allocation5] sm:$0x1]
          %v894 = vperm.slane %v892, 0
          %v896 = vmul.f32 %v888, %v894
          %v897 = vmul.f32 %v889, %v894
          %v898 = vmul.f32 %v890, %v894
          %v899 = vmul.f32 %v891, %v894
          %v900 = vld [vmem:[#allocation6] sm:$0x1]
          %v902 = vperm.slane %v900, 0
          %v904 = vadd.f32 %v896, %v902
          %v905 = vadd.f32 %v897, %v902
          %v906 = vadd.f32 %v898, %v902
          %v907 = vadd.f32 %v899, %v902
          %v908 = vmax.f32 %v904, 0.0
          %v909 = vmax.f32 %v905, 0.0
          %v910 = vmax.f32 %v906, 0.0
          %v911 = vmax.f32 %v907, 0.0
          %v912 = vpack.c.bf16 %v908, %v908
          %v913 = vpack.c.bf16 %v909, %v909
          %v914 = vpack.c.bf16 %v910, %v910
          %v915 = vpack.c.bf16 %v911, %v911
          %916 = vst [vmem:[%s278] sm:$0xf] %v912
          %917 = vst [vmem:[%s278 + $0x4] sm:$0xf] %v913
          %918 = vst [vmem:[%s278 + $0x8] sm:$0xf] %v914
          %919 = vst [vmem:[%s278 + $0xc] sm:$0xf] %v915
        $region64: #{generator_forward.6} parent=35 // pred_fallthru
          _
        %s920 = smul.u32 %s22, %s21
        %s921 = smul.u32 4, %s920
        %p922 = scmp.lt.s32.totalorder %s921, 3
        %s923 = scalar_select %p922, %s921, 3
        %s924 = smul.addr %s923, 4
        %s925 = scalar_lea.vmem %s4, %s924
        // Predicated region
        $region65: #{generator_forward.6} parent=35 // pred_check
          %p926 = pneg %p142
        $region66: #{generator_forward.6} parent=35 // pred_check_branch
          %928 = sbr.rel (%p926) target = $region68
        $region67: #{generator_forward.6} parent=35 // pred_region
          %s929 = smul.u32 %s22, %s21
          %s930 = smul.u32 4, %s929
        $region68: #{generator_forward.6} parent=35 // pred_fallthru
          _
      $region36: #{generator_forward.6} parent=5 // pred_fallthru
        _
      %p931 = scmp.le.s32.totalorder 2, %s12
      // Predicated region
      $region69: #{generator_forward.6} parent=5 // pred_check
        %p932 = pneg %p931
      $region70: #{generator_forward.6} parent=5 // pred_check_branch
        %934 = sbr.rel (%p932) target = $region72
      $region71: #{generator_forward.6} parent=5 // pred_region
        %s935 = ssub.s32 %s12, 2
        // Predicated region
        $region73: #{generator_forward.6} parent=71 // pred_check
          %p936 = pneg %p148
        $region74: #{generator_forward.6} parent=71 // pred_check_branch
          %938 = sbr.rel (%p936) target = $region76
        $region75: #{generator_forward.6} parent=71 // pred_region
          %s939 = smul.u32 %s24, %s23
          %s940 = smul.u32 4, %s939
          %p941 = scmp.lt.s32.totalorder %s940, 3
          %s942 = scalar_select %p941, %s940, 3
          %s943 = smul.addr %s942, 4
          %s944 = scalar_lea.vmem %s4, %s943
        $region76: #{generator_forward.6} parent=71 // pred_fallthru
          _
      $region72: #{generator_forward.6} parent=5 // pred_fallthru
        _
    $region6: #{generator_forward.6} parent=1 // loop_footer
      %s16 = sadd.s32 1, %s12
    $region7: #{generator_forward.6} parent=1 // loop_footer_branch
      %11 = sbr.rel target = $region3
    $region8: #{generator_forward.6} parent=1 // loop_exit
      _
    %945 = vsyncpa [#allocation8], 1
    %s946 = scalar_lea.sflag [#allocation8], 1
    %947 = vsyncpa %s946, 1
    %948 = vsyncpa [#allocation10], 1

// kernel: generator_forward.7
$region0: #{generator_forward.7}
  #allocation0 [shape = 'u32[]', space=smem, size = 0x4, offset = 0x4, fixed_abs, tag = 'smem constant byte address 0x4 - core index']
  #allocation1 [shape = 'u32[72,128]{1,0:T(1,128)}', space=vmem, size = 0x9000, scoped, tag = 'internal scratch']
  #allocation2 [shape = 'bf16[128,64]{1,0:T(8,128)(2,1)}', space=vmem, size = 0x8000, scoped, tag = 'scratch operand']
  #allocation3 [shape = 'f32[8,64]{1,0:T(8,128)}', space=vmem, size = 0x1000, scoped, tag = 'scratch operand']
  #allocation4 [shape = 'f32[8,64]{1,0:T(8,128)}', space=vmem, size = 0x1000, scoped, tag = 'scratch operand']
  #allocation5 [shape = 'f32[1,64]{1,0:T(1,128)}', space=vmem, size = 0x200, scoped, tag = 'scratch operand']
  #allocation6 [shape = 'f32[1,64]{1,0:T(1,128)}', space=vmem, size = 0x200, scoped, tag = 'scratch operand']
  %s0 = inlined_call_operand.vmem [shape: bf16[128,288], index: 0, kind: input, shape index: {}]
  %s1 = inlined_call_operand.vmem [shape: bf16[288,64], index: 1, kind: input, shape index: {}]
  %s2 = inlined_call_operand.hbm [shape: f32[1,16], index: 2, kind: input, shape index: {}]
  %s3 = inlined_call_operand.hbm [shape: f32[1,16], index: 3, kind: input, shape index: {}]
  %s4 = inlined_call_operand.vmem [shape: bf16[128,64], index: 4, kind: output, shape index: {}]
  %s5 = sld [smem:[#allocation0]]
  $region73: #{generator_forward.7} parent=0
    _
  %s7 = ssub.s32 1, %s5
  %s8 = scalar_select 0, %s7, %s5
  $region1: #{generator_forward.7} parent=0
    #allocation7 [shape = 'u8[512]{0}', space=vmem, size = 0x400, scoped, tag = 'input window, operand 2, single buffered']
    #allocation8 [shape = 's32[2]{0}', space=sflag, size = 0x8, scoped, tag = 'scoped memory for generator_forward.7']
    #allocation9 [shape = 'u8[512]{0}', space=vmem, size = 0x400, scoped, tag = 'input window, operand 3, single buffered']
    #allocation10 [shape = 's32[1]{0}', space=sflag, size = 0x4, scoped, tag = 'scoped memory for generator_forward.7']
    %9 = vsyncpa [#allocation8], 0
    %10 = vsyncpa [#allocation10], 0
    loop: start=0, step=1, limit=4
    $region2: #{generator_forward.7} parent=1 // loop_pre_header
      _
    $region3: #{generator_forward.7} parent=1 // loop_header
      %s12 = sphi 0, %s16
      %p13 = scmp.ge.s32.totalorder %s12, 4
      %s19 = sphi 0, %s31
      %s20 = sphi 0, %s27
      %s21 = sphi 0, %s19
      %s22 = sphi 0, %s20
      %s23 = sphi 0, %s21
      %s24 = sphi 0, %s22
      %s38 = sphi 0, %s40
      %s41 = sphi 0, %s38
      %s42 = sphi 0, %s41
      %s58 = sphi 0, %s42
      %s62 = sphi 0, %s62
      %s64 = sphi 0, %s62
      %s65 = sphi 0, %s64
      %s79 = sphi 0, %s65
      %s83 = sphi 0, %s83
      %s85 = sphi 0, %s83
      %s86 = sphi 0, %s85
      %s100 = sphi 0, %s86
      %s104 = sphi 0, %s104
      %s106 = sphi 0, %s104
      %s107 = sphi 0, %s106
      %s121 = sphi 0, %s107
      %s129 = sphi 0, %s131
      %s132 = sphi 0, %s129
      %s133 = sphi 0, %s132
      %s149 = sphi 0, %s133
    $region4: #{generator_forward.7} parent=1 // loop_header_branch
      %15 = sbr.rel (%p13) target = $region8
    $region5: #{generator_forward.7} parent=1 // loop_body
      %s17 = ssub.s32 %s12, 1
      %s18 = ssub.s32 %s12, 2
      %s25 = sadd.s32 1, %s20
      %p26 = scmp.ge.s32.totalorder %s25, 1
      %s27 = scalar_select %p26, 0, %s25
      %s28 = sadd.s32 1, %s19
      %s29 = scalar_select %p26, %s28, %s19
      %p30 = scmp.ge.s32.totalorder %s29, 2
      %s31 = scalar_select %p30, 0, %s29
      %s32 = ssub.s32 1, %s19
      %s33 = smul.u32 %s32, %s20
      %s34 = ssub.s32 1, %s31
      %s35 = smul.u32 %s34, %s27
      %s36 = ssub.s32 %s33, %s35
      %p37 = scmp.eq.s32.totalorder %s36, 0
      %s39 = sadd.s32 %s38, 1
      %s40 = scalar_select %p37, %s38, %s39
      %p43 = pneg %p37
      %p44 = scmp.eq.s32.totalorder %s12, 1
      %p45 = por %p43, %p44
      %p46 = scmp.ne.s32.totalorder %s38, %s41
      %p47 = scmp.eq.s32.totalorder %s12, 0
      %p48 = por %p46, %p47
      %p49 = scmp.ne.s32.totalorder %s38, %s41
      %p50 = scmp.eq.s32.totalorder %s17, 1
      %p51 = por %p49, %p50
      %p52 = scmp.ne.s32.totalorder %s41, %s42
      %p53 = scmp.eq.s32.totalorder %s17, 0
      %p54 = por %p52, %p53
      %p55 = scmp.ne.s32.totalorder %s41, %s42
      %p56 = scmp.eq.s32.totalorder %s18, 1
      %p57 = por %p55, %p56
      %p59 = scmp.ne.s32.totalorder %s42, %s58
      %p60 = scmp.eq.s32.totalorder %s18, 0
      %p61 = por %p59, %p60
      %s63 = sadd.s32 %s62, 1
      %p66 = scmp.eq.s32.totalorder %s12, 1
      %p67 = scmp.ne.s32.totalorder %s62, %s64
      %p68 = scmp.eq.s32.totalorder %s12, 0
      %p69 = por %p67, %p68
      %p70 = scmp.ne.s32.totalorder %s62, %s64
      %p71 = scmp.eq.s32.totalorder %s17, 1
      %p72 = por %p70, %p71
      %p73 = scmp.ne.s32.totalorder %s64, %s65
      %p74 = scmp.eq.s32.totalorder %s17, 0
      %p75 = por %p73, %p74
      %p76 = scmp.ne.s32.totalorder %s64, %s65
      %p77 = scmp.eq.s32.totalorder %s18, 1
      %p78 = por %p76, %p77
      %p80 = scmp.ne.s32.totalorder %s65, %s79
      %p81 = scmp.eq.s32.totalorder %s18, 0
      %p82 = por %p80, %p81
      %s84 = sadd.s32 %s83, 1
      %p87 = scmp.eq.s32.totalorder %s12, 1
      %p88 = scmp.ne.s32.totalorder %s83, %s85
      %p89 = scmp.eq.s32.totalorder %s12, 0
      %p90 = por %p88, %p89
      %p91 = scmp.ne.s32.totalorder %s83, %s85
      %p92 = scmp.eq.s32.totalorder %s17, 1
      %p93 = por %p91, %p92
      %p94 = scmp.ne.s32.totalorder %s85, %s86
      %p95 = scmp.eq.s32.totalorder %s17, 0
      %p96 = por %p94, %p95
      %p97 = scmp.ne.s32.totalorder %s85, %s86
      %p98 = scmp.eq.s32.totalorder %s18, 1
      %p99 = por %p97, %p98
      %p101 = scmp.ne.s32.totalorder %s86, %s100
      %p102 = scmp.eq.s32.totalorder %s18, 0
      %p103 = por %p101, %p102
      %s105 = sadd.s32 %s104, 1
      %p108 = scmp.eq.s32.totalorder %s12, 1
      %p109 = scmp.ne.s32.totalorder %s104, %s106
      %p110 = scmp.eq.s32.totalorder %s12, 0
      %p111 = por %p109, %p110
      %p112 = scmp.ne.s32.totalorder %s104, %s106
      %p113 = scmp.eq.s32.totalorder %s17, 1
      %p114 = por %p112, %p113
      %p115 = scmp.ne.s32.totalorder %s106, %s107
      %p116 = scmp.eq.s32.totalorder %s17, 0
      %p117 = por %p115, %p116
      %p118 = scmp.ne.s32.totalorder %s106, %s107
      %p119 = scmp.eq.s32.totalorder %s18, 1
      %p120 = por %p118, %p119
      %p122 = scmp.ne.s32.totalorder %s107, %s121
      %p123 = scmp.eq.s32.totalorder %s18, 0
      %p124 = por %p122, %p123
      %s125 = smul.u32 %s20, %s19
      %s126 = smul.u32 %s27, %s31
      %s127 = ssub.s32 %s125, %s126
      %p128 = scmp.eq.s32.totalorder %s127, 0
      %s130 = sadd.s32 %s129, 1
      %s131 = scalar_select %p128, %s129, %s130
      %p134 = pneg %p128
      %p135 = scmp.eq.s32.totalorder %s12, 1
      %p136 = por %p134, %p135
      %p137 = scmp.ne.s32.totalorder %s129, %s132
      %p138 = scmp.eq.s32.totalorder %s12, 0
      %p139 = por %p137, %p138
      %p140 = scmp.ne.s32.totalorder %s129, %s132
      %p141 = scmp.eq.s32.totalorder %s17, 1
      %p142 = por %p140, %p141
      %p143 = scmp.ne.s32.totalorder %s132, %s133
      %p144 = scmp.eq.s32.totalorder %s17, 0
      %p145 = por %p143, %p144
      %p146 = scmp.ne.s32.totalorder %s132, %s133
      %p147 = scmp.eq.s32.totalorder %s18, 1
      %p148 = por %p146, %p147
      %p150 = scmp.ne.s32.totalorder %s133, %s149
      %p151 = scmp.eq.s32.totalorder %s18, 0
      %p152 = por %p150, %p151
      %p153 = scmp.le.s32.totalorder 1, %s12
      %p154 = scmp.lt.s32.totalorder %s12, 3
      %p155 = pnand %p153, %p154
      %p156 = pneg %p155
      // Predicated region
      $region9: #{generator_forward.7} parent=5 // pred_check
        _
      $region10: #{generator_forward.7} parent=5 // pred_check_branch
        %158 = sbr.rel (%p155) target = $region12
      $region11: #{generator_forward.7} parent=5 // pred_region
        %s159 = ssub.s32 %s12, 1
        // Predicated region
        $region13: #{generator_forward.7} parent=11 // pred_check
          %p160 = pneg %p75
        $region14: #{generator_forward.7} parent=11 // pred_check_branch
          %162 = sbr.rel (%p160) target = $region16
        $region15: #{generator_forward.7} parent=11 // pred_region
          _
        $region16: #{generator_forward.7} parent=11 // pred_fallthru
          _
        // Predicated region
        $region17: #{generator_forward.7} parent=11 // pred_check
          %p163 = pneg %p96
        $region18: #{generator_forward.7} parent=11 // pred_check_branch
          %165 = sbr.rel (%p163) target = $region20
        $region19: #{generator_forward.7} parent=11 // pred_region
          %167 = vsyncadd [#allocation8], 0
          %s169 = sshll.u32 %s2, 4
          %s170 = int_to_ptr.hbm [resolvable:$true] %s169
          %s171 = sshll.u32 [#allocation7], 4
          %s172 = int_to_ptr.vmem [resolvable:$true] %s171
          %174 = dma.hbm_to_vmem [thread:$0]  %s170, 16, %s172, [#allocation8]
        $region20: #{generator_forward.7} parent=11 // pred_fallthru
          _
        // Predicated region
        $region21: #{generator_forward.7} parent=11 // pred_check
          %p175 = pneg %p117
        $region22: #{generator_forward.7} parent=11 // pred_check_branch
          %177 = sbr.rel (%p175) target = $region24
        $region23: #{generator_forward.7} parent=11 // pred_region
          %179 = vsyncadd [#allocation10], 0
          %s181 = sshll.u32 %s3, 4
          %s182 = int_to_ptr.hbm [resolvable:$true] %s181
          %s183 = sshll.u32 [#allocation9], 4
          %s184 = int_to_ptr.vmem [resolvable:$true] %s183
          %186 = dma.hbm_to_vmem [thread:$0]  %s182, 16, %s184, [#allocation10]
        $region24: #{generator_forward.7} parent=11 // pred_fallthru
          _
      $region12: #{generator_forward.7} parent=5 // pred_fallthru
        _
      %p187 = scmp.lt.s32.totalorder %s12, 2
      // Predicated region
      $region25: #{generator_forward.7} parent=5 // pred_check
        %p188 = pneg %p187
      $region26: #{generator_forward.7} parent=5 // pred_check_branch
        %190 = sbr.rel (%p188) target = $region28
      $region27: #{generator_forward.7} parent=5 // pred_region
        // Predicated region
        $region29: #{generator_forward.7} parent=27 // pred_check
          %p191 = pneg %p48
        $region30: #{generator_forward.7} parent=27 // pred_check_branch
          %193 = sbr.rel (%p191) target = $region32
        $region31: #{generator_forward.7} parent=27 // pred_region
          %s194 = ssub.s32 1, %s19
          %s195 = smul.u32 %s194, %s20
          %s196 = smul.u32 16, %s195
          %p197 = scmp.lt.s32.totalorder %s196, 15
          %s198 = scalar_select %p197, %s196, 15
          %s199 = smul.addr %s198, 3
          %s200 = smul.addr %s199, 4
          %s201 = scalar_lea.vmem %s0, %s200
          %s202 = ssub.s32 1, %s19
          %s203 = smul.u32 %s202, %s20
          %s204 = smul.u32 16, %s203
        $region32: #{generator_forward.7} parent=27 // pred_fallthru
          _
      $region28: #{generator_forward.7} parent=5 // pred_fallthru
        _
      %p205 = scmp.le.s32.totalorder 1, %s12
      %p206 = scmp.lt.s32.totalorder %s12, 3
      %p207 = pnand %p205, %p206
      %p208 = pneg %p207
      // Predicated region
      $region33: #{generator_forward.7} parent=5 // pred_check
        _
      $region34: #{generator_forward.7} parent=5 // pred_check_branch
        %210 = sbr.rel (%p207) target = $region36
      $region35: #{generator_forward.7} parent=5 // pred_region
        %s211 = ssub.s32 %s12, 1
        // Predicated region
        $region37: #{generator_forward.7} parent=35 // pred_check
          %p212 = pneg %p96
        $region38: #{generator_forward.7} parent=35 // pred_check_branch
          %214 = sbr.rel (%p212) target = $region40
        $region39: #{generator_forward.7} parent=35 // pred_region
          %216 = dma.done [#allocation8], 16
        $region40: #{generator_forward.7} parent=35 // pred_fallthru
          _
        // Predicated region
        $region41: #{generator_forward.7} parent=35 // pred_check
          %p217 = pneg %p117
        $region42: #{generator_forward.7} parent=35 // pred_check_branch
          %219 = sbr.rel (%p217) target = $region44
        $region43: #{generator_forward.7} parent=35 // pred_region
          %221 = dma.done [#allocation10], 16
        $region44: #{generator_forward.7} parent=35 // pred_fallthru
          _
        %s222 = ssub.s32 1, %s21
        %s223 = smul.u32 %s222, %s22
        %s224 = smul.u32 16, %s223
        %p225 = scmp.lt.s32.totalorder %s224, 15
        %s226 = scalar_select %p225, %s224, 15
        %s227 = smul.addr %s226, 3
        %s228 = smul.addr %s227, 4
        %s229 = scalar_lea.vmem %s0, %s228
        %p230 = pneg %p54
        %p231 = pneg %p51
        %p232 = pneg %p75
        %p233 = pneg %p72
        %p234 = pneg %p96
        %p235 = pneg %p93
        %p236 = pneg %p117
        %p237 = pneg %p114
        %p238 = pneg %p145
        %p239 = pneg %p142
        %s240 = smul.u32 %s22, %s21
        %s241 = smul.u32 16, %s240
        %p242 = scmp.lt.s32.totalorder %s241, 15
        %s243 = scalar_select %p242, %s241, 15
        %s244 = smul.addr %s243, 4
        %s245 = scalar_lea.vmem %s4, %s244
        %s246 = ssub.s32 1, %s21
        %s247 = smul.u32 %s246, %s22
        %s248 = smul.u32 16, %s247
        %p249 = scmp.lt.s32.totalorder %s248, 15
        %s250 = scalar_select %p249, %s248, 15
        %s251 = smul.addr %s250, 3
        %s252 = smul.addr %s251, 4
        %s253 = scalar_lea.vmem %s0, %s252
        %s254 = ssub.s32 1, %s21
        %s255 = smul.u32 %s254, %s22
        %s256 = smul.u32 16, %s255
        %s257 = smul.u32 %s22, %s21
        %s258 = smul.u32 16, %s257
        %p259 = scmp.lt.s32.totalorder %s258, 15
        %s260 = scalar_select %p259, %s258, 15
        %s261 = smul.addr %s260, 4
        %s262 = scalar_lea.vmem %s4, %s261
        %s263 = smul.u32 %s22, %s21
        %s264 = smul.u32 16, %s263
        %s266 = smul.u32 %s22, 128
        %p267 = scmp.eq.s32.totalorder %s21, 0
        %p268 = scmp.eq.s32.totalorder %s22, 0
        %p269 = pnand %p267, %p268
        %p270 = pneg %p269
        // Predicated region
        $region45: #{generator_forward.7} parent=35 // pred_check
          _
        $region46: #{generator_forward.7} parent=35 // pred_check_branch
          %272 = sbr.rel (%p269) target = $region48
        $region47: #{generator_forward.7} parent=35 // pred_region
          %vm273 = vcmask 523264
          %274 = vst.msk [vmem:[#allocation3] sm:$0xff] %vm273, 0.0
          %275 = vst.msk [vmem:[#allocation4] sm:$0xff] %vm273, 0.0
        $region48: #{generator_forward.7} parent=35 // pred_fallthru
          _
        // Predicated region
        $region49: #{generator_forward.7} parent=35 // pred_check
          %p276 = pneg %p267
        $region50: #{generator_forward.7} parent=35 // pred_check_branch
          %278 = sbr.rel (%p276) target = $region52
        $region51: #{generator_forward.7} parent=35 // pred_region
          %v279 = vld [vmem:[%s253] sm:$0xff]
          %v280 = vld [vmem:[%s253 + $0x8] sm:$0xf]
          %v281 = vld [vmem:[%s253 + $0xc] sm:$0xff]
          %v282 = vld [vmem:[%s253 + $0x14] sm:$0xf]
          %v283 = vld [vmem:[%s253 + $0x18] sm:$0xff]
          %v284 = vld [vmem:[%s253 + $0x20] sm:$0xf]
          %v285 = vld [vmem:[%s253 + $0x24] sm:$0xff]
          %v286 = vld [vmem:[%s253 + $0x2c] sm:$0xf]
          %v287 = vld [vmem:[%s253 + $0x30] sm:$0xff]
          %v288 = vld [vmem:[%s253 + $0x38] sm:$0xf]
          %v289 = vld [vmem:[%s253 + $0x3c] sm:$0xff]
          %v290 = vld [vmem:[%s253 + $0x44] sm:$0xf]
          %v291 = vld [vmem:[%s253 + $0x48] sm:$0xff]
          %v292 = vld [vmem:[%s253 + $0x50] sm:$0xf]
          %v293 = vld [vmem:[%s253 + $0x54] sm:$0xff]
          %v294 = vld [vmem:[%s253 + $0x5c] sm:$0xf]
          %v295 = vld [vmem:[%s253 + $0x60] sm:$0xff]
          %v296 = vld [vmem:[%s253 + $0x68] sm:$0xf]
          %v297 = vld [vmem:[%s253 + $0x6c] sm:$0xff]
          %v298 = vld [vmem:[%s253 + $0x74] sm:$0xf]
          %v299 = vld [vmem:[%s253 + $0x78] sm:$0xff]
          %v300 = vld [vmem:[%s253 + $0x80] sm:$0xf]
          %v301 = vld [vmem:[%s253 + $0x84] sm:$0xff]
          %v302 = vld [vmem:[%s253 + $0x8c] sm:$0xf]
          %v303 = vld [vmem:[%s253 + $0x90] sm:$0xff]
          %v304 = vld [vmem:[%s253 + $0x98] sm:$0xf]
          %v305 = vld [vmem:[%s253 + $0x9c] sm:$0xff]
          %v306 = vld [vmem:[%s253 + $0xa4] sm:$0xf]
          %v307 = vld [vmem:[%s253 + $0xa8] sm:$0xff]
          %v308 = vld [vmem:[%s253 + $0xb0] sm:$0xf]
          %v309 = vld [vmem:[%s253 + $0xb4] sm:$0xff]
          %v310 = vld [vmem:[%s253 + $0xbc] sm:$0xf]
          %v311 = vld [vmem:[%s1] sm:$0xf]
          %v312 = vld [vmem:[%s1 + $0x4] sm:$0xf]
          %v313 = vld [vmem:[%s1 + $0x8] sm:$0xf]
          %v314 = vld [vmem:[%s1 + $0xc] sm:$0xf]
          %v315 = vld [vmem:[%s1 + $0x10] sm:$0xf]
          %v316 = vld [vmem:[%s1 + $0x14] sm:$0xf]
          %v317 = vld [vmem:[%s1 + $0x18] sm:$0xf]
          %v318 = vld [vmem:[%s1 + $0x1c] sm:$0xf]
          %v319 = vld [vmem:[%s1 + $0x20] sm:$0xf]
          %v320 = vld [vmem:[%s1 + $0x24] sm:$0xf]
          %v321 = vld [vmem:[%s1 + $0x28] sm:$0xf]
          %v322 = vld [vmem:[%s1 + $0x2c] sm:$0xf]
          %v323 = vld [vmem:[%s1 + $0x30] sm:$0xf]
          %v324 = vld [vmem:[%s1 + $0x34] sm:$0xf]
          %v325 = vld [vmem:[%s1 + $0x38] sm:$0xf]
          %v326 = vld [vmem:[%s1 + $0x3c] sm:$0xf]
          %v327 = vld [vmem:[%s1 + $0x40] sm:$0xf]
          %v328 = vld [vmem:[%s1 + $0x44] sm:$0xf]
          %v329 = vld [vmem:[%s1 + $0x48] sm:$0xf]
          %v330 = vld [vmem:[%s1 + $0x4c] sm:$0xf]
          %v331 = vld [vmem:[%s1 + $0x50] sm:$0xf]
          %v332 = vld [vmem:[%s1 + $0x54] sm:$0xf]
          %v333 = vld [vmem:[%s1 + $0x58] sm:$0xf]
          %v334 = vld [vmem:[%s1 + $0x5c] sm:$0xf]
          %v335 = vld [vmem:[%s1 + $0x60] sm:$0xf]
          %v336 = vld [vmem:[%s1 + $0x64] sm:$0xf]
          %v337 = vld [vmem:[%s1 + $0x68] sm:$0xf]
          %v338 = vld [vmem:[%s1 + $0x6c] sm:$0xf]
          %v339 = vld [vmem:[%s1 + $0x70] sm:$0xf]
          %v340 = vld [vmem:[%s1 + $0x74] sm:$0xf]
          %v341 = vld [vmem:[%s1 + $0x78] sm:$0xf]
          %v342 = vld [vmem:[%s1 + $0x7c] sm:$0xf]
          %v343 = vld [vmem:[%s1 + $0x80] sm:$0xf]
          %v344 = vld [vmem:[%s1 + $0x84] sm:$0xf]
          %v345 = vld [vmem:[%s1 + $0x88] sm:$0xf]
          %v346 = vld [vmem:[%s1 + $0x8c] sm:$0xf]
          %v379 = vunpack.c.l.b16 %v279
          %v380 = vunpack.c.h.b16 %v279
          %v381 = vunpack.c.l.b16 %v280
          %v382 = vunpack.c.l.b16 %v281
          %v383 = vunpack.c.h.b16 %v281
          %v384 = vunpack.c.l.b16 %v282
          %v385 = vunpack.c.l.b16 %v283
          %v386 = vunpack.c.h.b16 %v283
          %v387 = vunpack.c.l.b16 %v284
          %v388 = vunpack.c.l.b16 %v285
          %v389 = vunpack.c.h.b16 %v285
          %v390 = vunpack.c.l.b16 %v286
          %v391 = vunpack.c.l.b16 %v287
          %v392 = vunpack.c.h.b16 %v287
          %v393 = vunpack.c.l.b16 %v288
          %v394 = vunpack.c.l.b16 %v289
          %v395 = vunpack.c.h.b16 %v289
          %v396 = vunpack.c.l.b16 %v290
          %v397 = vunpack.c.l.b16 %v291
          %v398 = vunpack.c.h.b16 %v291
          %v399 = vunpack.c.l.b16 %v292
          %v400 = vunpack.c.l.b16 %v293
          %v401 = vunpack.c.h.b16 %v293
          %v402 = vunpack.c.l.b16 %v294
          %v403 = vunpack.c.l.b16 %v295
          %v404 = vunpack.c.h.b16 %v295
          %v405 = vunpack.c.l.b16 %v296
          %v406 = vunpack.c.l.b16 %v297
          %v407 = vunpack.c.h.b16 %v297
          %v408 = vunpack.c.l.b16 %v298
          %v409 = vunpack.c.l.b16 %v299
          %v410 = vunpack.c.h.b16 %v299
          %v411 = vunpack.c.l.b16 %v300
          %v412 = vunpack.c.l.b16 %v301
          %v413 = vunpack.c.h.b16 %v301
          %v414 = vunpack.c.l.b16 %v302
          %v415 = vunpack.c.l.b16 %v303
          %v416 = vunpack.c.h.b16 %v303
          %v417 = vunpack.c.l.b16 %v304
          %v418 = vunpack.c.l.b16 %v305
          %v419 = vunpack.c.h.b16 %v305
          %v420 = vunpack.c.l.b16 %v306
          %v421 = vunpack.c.l.b16 %v307
          %v422 = vunpack.c.h.b16 %v307
          %v423 = vunpack.c.l.b16 %v308
          %v424 = vunpack.c.l.b16 %v309
          %v425 = vunpack.c.h.b16 %v309
          %v426 = vunpack.c.l.b16 %v310
          %v427 = vpack.c.b16 %v382, %v379
          %v428 = vpack.c.b16 %v383, %v380
          %v429 = vpack.c.b16 %v384, %v381
          %v430 = vpack.c.b16 %v388, %v385
          %v431 = vpack.c.b16 %v389, %v386
          %v432 = vpack.c.b16 %v390, %v387
          %v433 = vpack.c.b16 %v394, %v391
          %v434 = vpack.c.b16 %v395, %v392
          %v435 = vpack.c.b16 %v396, %v393
          %v436 = vpack.c.b16 %v400, %v397
          %v437 = vpack.c.b16 %v401, %v398
          %v438 = vpack.c.b16 %v402, %v399
          %v439 = vpack.c.b16 %v406, %v403
          %v440 = vpack.c.b16 %v407, %v404
          %v441 = vpack.c.b16 %v408, %v405
          %v442 = vpack.c.b16 %v412, %v409
          %v443 = vpack.c.b16 %v413, %v410
          %v444 = vpack.c.b16 %v414, %v411
          %v445 = vpack.c.b16 %v418, %v415
          %v446 = vpack.c.b16 %v419, %v416
          %v447 = vpack.c.b16 %v420, %v417
          %v448 = vpack.c.b16 %v424, %v421
          %v449 = vpack.c.b16 %v425, %v422
          %v450 = vpack.c.b16 %v426, %v423
          %v503 = vunpack.c.l.b16 %v311
          %v504 = vunpack.c.l.b16 %v312
          %v505 = vunpack.c.l.b16 %v313
          %v506 = vunpack.c.l.b16 %v314
          %v507 = vunpack.c.l.b16 %v315
          %v508 = vunpack.c.l.b16 %v316
          %v509 = vunpack.c.l.b16 %v317
          %v510 = vunpack.c.l.b16 %v318
          %v511 = vunpack.c.l.b16 %v319
          %v512 = vunpack.c.l.b16 %v320
          %v513 = vunpack.c.l.b16 %v321
          %v514 = vunpack.c.l.b16 %v322
          %v515 = vunpack.c.l.b16 %v323
          %v516 = vunpack.c.l.b16 %v324
          %v517 = vunpack.c.l.b16 %v325
          %v518 = vunpack.c.l.b16 %v326
          %v519 = vunpack.c.l.b16 %v327
          %v520 = vunpack.c.l.b16 %v328
          %v521 = vunpack.c.l.b16 %v329
          %v522 = vunpack.c.l.b16 %v330
          %v523 = vunpack.c.l.b16 %v331
          %v524 = vunpack.c.l.b16 %v332
          %v525 = vunpack.c.l.b16 %v333
          %v526 = vunpack.c.l.b16 %v334
          %v527 = vunpack.c.l.b16 %v335
          %v528 = vunpack.c.l.b16 %v336
          %v529 = vunpack.c.l.b16 %v337
          %v530 = vunpack.c.l.b16 %v338
          %v531 = vunpack.c.l.b16 %v339
          %v532 = vunpack.c.l.b16 %v340
          %v533 = vunpack.c.l.b16 %v341
          %v534 = vunpack.c.l.b16 %v342
          %v535 = vunpack.c.l.b16 %v343
          %v536 = vunpack.c.l.b16 %v344
          %v537 = vunpack.c.l.b16 %v345
          %v538 = vunpack.c.l.b16 %v346
          %v539 = vpack.c.b16 %v504, %v503
          %v540 = vpack.c.b16 %v506, %v505
          %v541 = vpack.c.b16 %v508, %v507
          %v542 = vpack.c.b16 %v510, %v509
          %v543 = vpack.c.b16 %v512, %v511
          %v544 = vpack.c.b16 %v514, %v513
          %v545 = vpack.c.b16 %v516, %v515
          %v546 = vpack.c.b16 %v518, %v517
          %v547 = vpack.c.b16 %v520, %v519
          %v548 = vpack.c.b16 %v522, %v521
          %v549 = vpack.c.b16 %v524, %v523
          %v550 = vpack.c.b16 %v526, %v525
          %v551 = vpack.c.b16 %v528, %v527
          %v552 = vpack.c.b16 %v530, %v529
          %v553 = vpack.c.b16 %v532, %v531
          %v554 = vpack.c.b16 %v534, %v533
          %v555 = vpack.c.b16 %v536, %v535
          %v556 = vpack.c.b16 %v538, %v537
          %vm575 = vcmask 261120
          %v577 = vsel %vm575, %v429, 0
          %v580 = vsel %vm575, %v432, 0
          %v583 = vsel %vm575, %v435, 0
          %v586 = vsel %vm575, %v438, 0
          %v589 = vsel %vm575, %v441, 0
          %v592 = vsel %vm575, %v444, 0
          %v595 = vsel %vm575, %v447, 0
          %v598 = vsel %vm575, %v450, 0
          %600 = vmatpush.bf16.msra.mxu0 %v546
          %601 = vmatpush.bf16.msra.mxu0 %v545
          %602 = vmatpush.bf16.msra.mxu0 %v544
          %603 = vmatpush.bf16.msra.mxu0 %v543
          %604 = vmatpush.bf16.msra.mxu0 %v542
          %605 = vmatpush.bf16.msra.mxu0 %v541
          %606 = vmatpush.bf16.msra.mxu0 %v540
          %607 = vmatpush.bf16.msra.mxu0 %v539
          %608 = vmatmul.bf16.gmra.mxu0 %v427
          %v609 = vpop.f32.mrf.mxu0
          %v610 = vadd.f32 0.0, %v609
          %v611 = vpop.f32.mrf.mxu0
          %v612 = vadd.f32 0.0, %v611
          %613 = vmatmul.bf16.gmra.mxu0 %v430
          %v614 = vpop.f32.mrf.mxu0
          %v615 = vadd.f32 0.0, %v614
          %v616 = vpop.f32.mrf.mxu0
          %v617 = vadd.f32 0.0, %v616
          %618 = vmatmul.bf16.gmra.mxu0 %v433
          %v619 = vpop.f32.mrf.mxu0
          %v620 = vadd.f32 0.0, %v619
          %v621 = vpop.f32.mrf.mxu0
          %v622 = vadd.f32 0.0, %v621
          %623 = vmatmul.bf16.gmra.mxu0 %v436
          %v624 = vpop.f32.mrf.mxu0
          %v625 = vadd.f32 0.0, %v624
          %v626 = vpop.f32.mrf.mxu0
          %v627 = vadd.f32 0.0, %v626
          %628 = vmatmul.bf16.gmra.mxu0 %v439
          %v629 = vpop.f32.mrf.mxu0
          %v630 = vadd.f32 0.0, %v629
          %v631 = vpop.f32.mrf.mxu0
          %v632 = vadd.f32 0.0, %v631
          %633 = vmatmul.bf16.gmra.mxu0 %v442
          %v634 = vpop.f32.mrf.mxu0
          %v635 = vadd.f32 0.0, %v634
          %v636 = vpop.f32.mrf.mxu0
          %v637 = vadd.f32 0.0, %v636
          %638 = vmatmul.bf16.gmra.mxu0 %v445
          %v639 = vpop.f32.mrf.mxu0
          %v640 = vadd.f32 0.0, %v639
          %v641 = vpop.f32.mrf.mxu0
          %v642 = vadd.f32 0.0, %v641
          %643 = vmatmul.bf16.gmra.mxu0 %v448
          %v644 = vpop.f32.mrf.mxu0
          %v645 = vadd.f32 0.0, %v644
          %v646 = vpop.f32.mrf.mxu0
          %v647 = vadd.f32 0.0, %v646
          %648 = vdwg.mxu0
          %649 = vmatpush.bf16.msra.mxu0 %v554
          %650 = vmatpush.bf16.msra.mxu0 %v553
          %651 = vmatpush.bf16.msra.mxu0 %v552
          %652 = vmatpush.bf16.msra.mxu0 %v551
          %653 = vmatpush.bf16.msra.mxu0 %v550
          %654 = vmatpush.bf16.msra.mxu0 %v549
          %655 = vmatpush.bf16.msra.mxu0 %v548
          %656 = vmatpush.bf16.msra.mxu0 %v547
          %657 = vmatmul.bf16.gmra.mxu0 %v428
          %v658 = vpop.f32.mrf.mxu0
          %v659 = vadd.f32 %v610, %v658
          %v660 = vpop.f32.mrf.mxu0
          %v661 = vadd.f32 %v612, %v660
          %662 = vmatmul.bf16.gmra.mxu0 %v431
          %v663 = vpop.f32.mrf.mxu0
          %v664 = vadd.f32 %v615, %v663
          %v665 = vpop.f32.mrf.mxu0
          %v666 = vadd.f32 %v617, %v665
          %667 = vmatmul.bf16.gmra.mxu0 %v434
          %v668 = vpop.f32.mrf.mxu0
          %v669 = vadd.f32 %v620, %v668
          %v670 = vpop.f32.mrf.mxu0
          %v671 = vadd.f32 %v622, %v670
          %672 = vmatmul.bf16.gmra.mxu0 %v437
          %v673 = vpop.f32.mrf.mxu0
          %v674 = vadd.f32 %v625, %v673
          %v675 = vpop.f32.mrf.mxu0
          %v676 = vadd.f32 %v627, %v675
          %677 = vmatmul.bf16.gmra.mxu0 %v440
          %v678 = vpop.f32.mrf.mxu0
          %v679 = vadd.f32 %v630, %v678
          %v680 = vpop.f32.mrf.mxu0
          %v681 = vadd.f32 %v632, %v680
          %682 = vmatmul.bf16.gmra.mxu0 %v443
          %v683 = vpop.f32.mrf.mxu0
          %v684 = vadd.f32 %v635, %v683
          %v685 = vpop.f32.mrf.mxu0
          %v686 = vadd.f32 %v637, %v685
          %687 = vmatmul.bf16.gmra.mxu0 %v446
          %v688 = vpop.f32.mrf.mxu0
          %v689 = vadd.f32 %v640, %v688
          %v690 = vpop.f32.mrf.mxu0
          %v691 = vadd.f32 %v642, %v690
          %692 = vmatmul.bf16.gmra.mxu0 %v449
          %v693 = vpop.f32.mrf.mxu0
          %v694 = vadd.f32 %v645, %v693
          %v695 = vpop.f32.mrf.mxu0
          %v696 = vadd.f32 %v647, %v695
          %697 = vdwg.mxu0
          %698 = vmatpush.bf16.msra.mxu0 0
          %699 = vmatpush.bf16.msra.mxu0 0
          %700 = vmatpush.bf16.msra.mxu0 0
          %701 = vmatpush.bf16.msra.mxu0 0
          %702 = vmatpush.bf16.msra.mxu0 0
          %703 = vmatpush.bf16.msra.mxu0 0
          %704 = vmatpush.bf16.msra.mxu0 %v556
          %705 = vmatpush.bf16.msra.mxu0 %v555
          %706 = vmatmul.bf16.gmra.mxu0 %v577
          %v707 = vpop.f32.mrf.mxu0
          %v708 = vadd.f32 %v659, %v707
          %v709 = vpop.f32.mrf.mxu0
          %v710 = vadd.f32 %v661, %v709
          %711 = vmatmul.bf16.gmra.mxu0 %v580
          %v712 = vpop.f32.mrf.mxu0
          %v713 = vadd.f32 %v664, %v712
          %v714 = vpop.f32.mrf.mxu0
          %v715 = vadd.f32 %v666, %v714
          %716 = vmatmul.bf16.gmra.mxu0 %v583
          %v717 = vpop.f32.mrf.mxu0
          %v718 = vadd.f32 %v669, %v717
          %v719 = vpop.f32.mrf.mxu0
          %v720 = vadd.f32 %v671, %v719
          %721 = vmatmul.bf16.gmra.mxu0 %v586
          %v722 = vpop.f32.mrf.mxu0
          %v723 = vadd.f32 %v674, %v722
          %v724 = vpop.f32.mrf.mxu0
          %v725 = vadd.f32 %v676, %v724
          %726 = vmatmul.bf16.gmra.mxu0 %v589
          %v727 = vpop.f32.mrf.mxu0
          %v728 = vadd.f32 %v679, %v727
          %v729 = vpop.f32.mrf.mxu0
          %v730 = vadd.f32 %v681, %v729
          %731 = vmatmul.bf16.gmra.mxu0 %v592
          %v732 = vpop.f32.mrf.mxu0
          %v733 = vadd.f32 %v684, %v732
          %v734 = vpop.f32.mrf.mxu0
          %v735 = vadd.f32 %v686, %v734
          %736 = vmatmul.bf16.gmra.mxu0 %v595
          %v737 = vpop.f32.mrf.mxu0
          %v738 = vadd.f32 %v689, %v737
          %v739 = vpop.f32.mrf.mxu0
          %v740 = vadd.f32 %v691, %v739
          %741 = vmatmul.bf16.gmra.mxu0 %v598
          %v742 = vpop.f32.mrf.mxu0
          %v743 = vadd.f32 %v694, %v742
          %v744 = vpop.f32.mrf.mxu0
          %v745 = vadd.f32 %v696, %v744
          %746 = vdwg.mxu0
          %v747 = vpack.c.bf16 %v708, %v708
          %v748 = vpack.c.bf16 %v710, %v710
          %v749 = vpack.c.bf16 %v713, %v713
          %v750 = vpack.c.bf16 %v715, %v715
          %v751 = vpack.c.bf16 %v718, %v718
          %v752 = vpack.c.bf16 %v720, %v720
          %v753 = vpack.c.bf16 %v723, %v723
          %v754 = vpack.c.bf16 %v725, %v725
          %v755 = vpack.c.bf16 %v728, %v728
          %v756 = vpack.c.bf16 %v730, %v730
          %v757 = vpack.c.bf16 %v733, %v733
          %v758 = vpack.c.bf16 %v735, %v735
          %v759 = vpack.c.bf16 %v738, %v738
          %v760 = vpack.c.bf16 %v740, %v740
          %v761 = vpack.c.bf16 %v743, %v743
          %v762 = vpack.c.bf16 %v745, %v745
          %s763 = sshra.s32 %s266, 3
          %s764 = sand.u32 %s266, 7
          %s765 = smul.addr %s763, 4
          %s766 = scalar_lea.vmem [#allocation2], %s765
          %vm767 = vcmask 519168
          %768 = vst.msk [vmem:[%s766] sm:$0xf] %vm767, %v747
          %769 = vst.msk [vmem:[%s766 + $0x4] sm:$0xf] %vm767, %v748
          %770 = vst.msk [vmem:[%s766 + $0x8] sm:$0xf] %vm767, %v749
          %771 = vst.msk [vmem:[%s766 + $0xc] sm:$0xf] %vm767, %v750
          %772 = vst.msk [vmem:[%s766 + $0x10] sm:$0xf] %vm767, %v751
          %773 = vst.msk [vmem:[%s766 + $0x14] sm:$0xf] %vm767, %v752
          %774 = vst.msk [vmem:[%s766 + $0x18] sm:$0xf] %vm767, %v753
          %775 = vst.msk [vmem:[%s766 + $0x1c] sm:$0xf] %vm767, %v754
          %776 = vst.msk [vmem:[%s766 + $0x20] sm:$0xf] %vm767, %v755
          %777 = vst.msk [vmem:[%s766 + $0x24] sm:$0xf] %vm767, %v756
          %778 = vst.msk [vmem:[%s766 + $0x28] sm:$0xf] %vm767, %v757
          %779 = vst.msk [vmem:[%s766 + $0x2c] sm:$0xf] %vm767, %v758
          %780 = vst.msk [vmem:[%s766 + $0x30] sm:$0xf] %vm767, %v759
          %781 = vst.msk [vmem:[%s766 + $0x34] sm:$0xf] %vm767, %v760
          %782 = vst.msk [vmem:[%s766 + $0x38] sm:$0xf] %vm767, %v761
          %783 = vst.msk [vmem:[%s766 + $0x3c] sm:$0xf] %vm767, %v762
          %v784 = vld [vmem:[#allocation3] sm:$0xff]
          %vm785 = vcmask 523264
          %v786 = vsel %vm785, %v708, 0.0
          %v787 = vsel %vm785, %v710, 0.0
          %v788 = vadd.f32 %v786, %v787
          %v789 = vsel %vm785, %v713, 0.0
          %v790 = vadd.f32 %v788, %v789
          %v791 = vsel %vm785, %v715, 0.0
          %v792 = vadd.f32 %v790, %v791
          %v793 = vsel %vm785, %v718, 0.0
          %v794 = vadd.f32 %v792, %v793
          %v795 = vsel %vm785, %v720, 0.0
          %v796 = vadd.f32 %v794, %v795
          %v797 = vsel %vm785, %v723, 0.0
          %v798 = vadd.f32 %v796, %v797
          %v799 = vsel %vm785, %v725, 0.0
          %v800 = vadd.f32 %v798, %v799
          %v801 = vsel %vm785, %v728, 0.0
          %v802 = vadd.f32 %v800, %v801
          %v803 = vsel %vm785, %v730, 0.0
          %v804 = vadd.f32 %v802, %v803
          %v805 = vsel %vm785, %v733, 0.0
          %v806 = vadd.f32 %v804, %v805
          %v807 = vsel %vm785, %v735, 0.0
          %v808 = vadd.f32 %v806, %v807
          %v809 = vsel %vm785, %v738, 0.0
          %v810 = vadd.f32 %v808, %v809
          %v811 = vsel %vm785, %v740, 0.0
          %v812 = vadd.f32 %v810, %v811
          %v813 = vsel %vm785, %v743, 0.0
          %v814 = vadd.f32 %v812, %v813
          %v815 = vsel %vm785, %v745, 0.0
          %v816 = vadd.f32 %v814, %v815
          %v817 = vadd.f32 %v784, %v816
          %818 = vst.msk [vmem:[#allocation3] sm:$0xff] %vm785, %v817
          %v819 = vld [vmem:[#allocation4] sm:$0xff]
          %v820 = vmul.f32 %v708, %v708
          %v821 = vmul.f32 %v710, %v710
          %v822 = vmul.f32 %v713, %v713
          %v823 = vmul.f32 %v715, %v715
          %v824 = vmul.f32 %v718, %v718
          %v825 = vmul.f32 %v720, %v720
          %v826 = vmul.f32 %v723, %v723
          %v827 = vmul.f32 %v725, %v725
          %v828 = vmul.f32 %v728, %v728
          %v829 = vmul.f32 %v730, %v730
          %v830 = vmul.f32 %v733, %v733
          %v831 = vmul.f32 %v735, %v735
          %v832 = vmul.f32 %v738, %v738
          %v833 = vmul.f32 %v740, %v740
          %v834 = vmul.f32 %v743, %v743
          %v835 = vmul.f32 %v745, %v745
          %v836 = vsel %vm785, %v820, 0.0
          %v837 = vsel %vm785, %v821, 0.0
          %v838 = vadd.f32 %v836, %v837
          %v839 = vsel %vm785, %v822, 0.0
          %v840 = vadd.f32 %v838, %v839
          %v841 = vsel %vm785, %v823, 0.0
          %v842 = vadd.f32 %v840, %v841
          %v843 = vsel %vm785, %v824, 0.0
          %v844 = vadd.f32 %v842, %v843
          %v845 = vsel %vm785, %v825, 0.0
          %v846 = vadd.f32 %v844, %v845
          %v847 = vsel %vm785, %v826, 0.0
          %v848 = vadd.f32 %v846, %v847
          %v849 = vsel %vm785, %v827, 0.0
          %v850 = vadd.f32 %v848, %v849
          %v851 = vsel %vm785, %v828, 0.0
          %v852 = vadd.f32 %v850, %v851
          %v853 = vsel %vm785, %v829, 0.0
          %v854 = vadd.f32 %v852, %v853
          %v855 = vsel %vm785, %v830, 0.0
          %v856 = vadd.f32 %v854, %v855
          %v857 = vsel %vm785, %v831, 0.0
          %v858 = vadd.f32 %v856, %v857
          %v859 = vsel %vm785, %v832, 0.0
          %v860 = vadd.f32 %v858, %v859
          %v861 = vsel %vm785, %v833, 0.0
          %v862 = vadd.f32 %v860, %v861
          %v863 = vsel %vm785, %v834, 0.0
          %v864 = vadd.f32 %v862, %v863
          %v865 = vsel %vm785, %v835, 0.0
          %v866 = vadd.f32 %v864, %v865
          %v867 = vadd.f32 %v819, %v866
          %868 = vst.msk [vmem:[#allocation4] sm:$0xff] %vm785, %v867
        $region52: #{generator_forward.7} parent=35 // pred_fallthru
          _
        %p869 = scmp.eq.s32.totalorder %s21, 1
        %p870 = pnand %p869, %p268
        %p871 = pneg %p870
        // Predicated region
        $region53: #{generator_forward.7} parent=35 // pred_check
          _
        $region54: #{generator_forward.7} parent=35 // pred_check_branch
          %873 = sbr.rel (%p870) target = $region56
        $region55: #{generator_forward.7} parent=35 // pred_region
          %v874 = vld [vmem:[#allocation3] sm:$0xff]
          %v875 = vld [vmem:[#allocation4] sm:$0xff]
          %v876 = vadd.f32 %v874, 0.0
          %v877 = vadd.f32 %v875, 0.0
          %879 = vrot.lane.b32.xlu0 %v874, 112
          %v880 = vpop.permute.xlu0 %879
          %v882 = vadd.f32 %v876, %v880
          %884 = vrot.lane.b32.xlu0 %v875, 112
          %v885 = vpop.permute.xlu0 %884
          %v887 = vadd.f32 %v877, %v885
          %888 = vrot.lane.b32.xlu0 %v874, 96
          %v889 = vpop.permute.xlu0 %888
          %v891 = vadd.f32 %v882, %v889
          %892 = vrot.lane.b32.xlu0 %v875, 96
          %v893 = vpop.permute.xlu0 %892
          %v895 = vadd.f32 %v887, %v893
          %896 = vrot.lane.b32.xlu0 %v874, 80
          %v897 = vpop.permute.xlu0 %896
          %v899 = vadd.f32 %v891, %v897
          %900 = vrot.lane.b32.xlu0 %v875, 80
          %v901 = vpop.permute.xlu0 %900
          %v903 = vadd.f32 %v895, %v901
          %vm904 = vcmask 130048
          %v905 = vsel %vm904, %v899, 0.0
          %v906 = vrot.slane %v905, 4
          %v907 = vadd.f32 %v905, %v906
          %v908 = vrot.slane %v907, 2
          %v909 = vadd.f32 %v907, %v908
          %v910 = vrot.slane %v909, 1
          %v911 = vadd.f32 %v909, %v910
          %v912 = vmul.f32 %v911, 0.001953125
          %v913 = vsel %vm904, %v903, 0.0
          %v914 = vrot.slane %v913, 4
          %v915 = vadd.f32 %v913, %v914
          %v916 = vrot.slane %v915, 2
          %v917 = vadd.f32 %v915, %v916
          %v918 = vrot.slane %v917, 1
          %v919 = vadd.f32 %v917, %v918
          %v920 = vmul.f32 %v919, 0.001953125
          %v921 = vmul.f32 %v912, %v912
          %v922 = vsub.f32 %v920, %v921
          %v923 = vmax.f32 %v922, 0.0
          %v924 = vld [vmem:[#allocation7] sm:$0x1]
          %v925 = vadd.f32 %v923, 1e-05
          %v926 = vrsqrt.pop %v925
          %v927 = vmul.f32 %v926, %v925
          %v928 = vmul.f32 %v927, %v926
          %v929 = vmul.f32 0.5, %v928
          %v930 = vsub.f32 1.5, %v929
          %v931 = vmul.f32 %v926, %v930
          %vm932 = vweird.f32 %v925
          %vm933 = vweird.f32 %v926
          %vm934 = vmor %vm932, %vm933
          %v935 = vsel %vm934, %v926, %v931
          %v936 = vmul.f32 %v924, %v935
          %v937 = vld [vmem:[#allocation9] sm:$0x1]
          %v938 = vmul.f32 %v912, %v936
          %v939 = vsub.f32 %v937, %v938
          %v941 = vperm.slane %v936, 0
          %942 = vrot.lane.b32.xlu0 %v941, 16
          %v943 = vpop.permute.xlu0 %942
          %945 = vrot.lane.b32.xlu0 %v941, 32
          %v946 = vpop.permute.xlu0 %945
          %948 = vrot.lane.b32.xlu0 %v941, 48
          %v949 = vpop.permute.xlu0 %948
          %v951 = vsel %vm904, %v936, %v943
          %vm952 = vcmask 261120
          %v953 = vsel %vm952, %v951, %v946
          %vm954 = vcmask 392192
          %v955 = vsel %vm954, %v953, %v949
          %vm956 = vcmask 516096
          %957 = vst.msk [vmem:[#allocation5] sm:$0x1] %vm956, %v955
          %v959 = vperm.slane %v939, 0
          %960 = vrot.lane.b32.xlu0 %v959, 16
          %v961 = vpop.permute.xlu0 %960
          %963 = vrot.lane.b32.xlu0 %v959, 32
          %v964 = vpop.permute.xlu0 %963
          %966 = vrot.lane.b32.xlu0 %v959, 48
          %v967 = vpop.permute.xlu0 %966
          %v969 = vsel %vm904, %v939, %v961
          %v970 = vsel %vm952, %v969, %v964
          %v971 = vsel %vm954, %v970, %v967
          %972 = vst.msk [vmem:[#allocation6] sm:$0x1] %vm956, %v971
        $region56: #{generator_forward.7} parent=35 // pred_fallthru
          _
        // Predicated region
        $region57: #{generator_forward.7} parent=35 // pred_check
          %p973 = pneg %p869
        $region58: #{generator_forward.7} parent=35 // pred_check_branch
          %975 = sbr.rel (%p973) target = $region60
        $region59: #{generator_forward.7} parent=35 // pred_region
          %s976 = sshra.s32 %s266, 3
          %s977 = sand.u32 %s266, 7
          %s978 = smul.addr %s976, 4
          %s979 = scalar_lea.vmem [#allocation2], %s978
          %v980 = vld [vmem:[%s979] sm:$0xf]
          %v981 = vld [vmem:[%s979 + $0x4] sm:$0xf]
          %v982 = vld [vmem:[%s979 + $0x8] sm:$0xf]
          %v983 = vld [vmem:[%s979 + $0xc] sm:$0xf]
          %v984 = vld [vmem:[%s979 + $0x10] sm:$0xf]
          %v985 = vld [vmem:[%s979 + $0x14] sm:$0xf]
          %v986 = vld [vmem:[%s979 + $0x18] sm:$0xf]
          %v987 = vld [vmem:[%s979 + $0x1c] sm:$0xf]
          %v988 = vld [vmem:[%s979 + $0x20] sm:$0xf]
          %v989 = vld [vmem:[%s979 + $0x24] sm:$0xf]
          %v990 = vld [vmem:[%s979 + $0x28] sm:$0xf]
          %v991 = vld [vmem:[%s979 + $0x2c] sm:$0xf]
          %v992 = vld [vmem:[%s979 + $0x30] sm:$0xf]
          %v993 = vld [vmem:[%s979 + $0x34] sm:$0xf]
          %v994 = vld [vmem:[%s979 + $0x38] sm:$0xf]
          %v995 = vld [vmem:[%s979 + $0x3c] sm:$0xf]
          %v996 = vunpack.c.l.bf16 %v980
          %v997 = vunpack.c.l.bf16 %v981
          %v998 = vunpack.c.l.bf16 %v982
          %v999 = vunpack.c.l.bf16 %v983
          %v1000 = vunpack.c.l.bf16 %v984
          %v1001 = vunpack.c.l.bf16 %v985
          %v1002 = vunpack.c.l.bf16 %v986
          %v1003 = vunpack.c.l.bf16 %v987
          %v1004 = vunpack.c.l.bf16 %v988
          %v1005 = vunpack.c.l.bf16 %v989
          %v1006 = vunpack.c.l.bf16 %v990
          %v1007 = vunpack.c.l.bf16 %v991
          %v1008 = vunpack.c.l.bf16 %v992
          %v1009 = vunpack.c.l.bf16 %v993
          %v1010 = vunpack.c.l.bf16 %v994
          %v1011 = vunpack.c.l.bf16 %v995
          %v1012 = vld [vmem:[#allocation5] sm:$0x1]
          %v1014 = vperm.slane %v1012, 0
          %v1016 = vmul.f32 %v996, %v1014
          %v1017 = vmul.f32 %v997, %v1014
          %v1018 = vmul.f32 %v998, %v1014
          %v1019 = vmul.f32 %v999, %v1014
          %v1020 = vmul.f32 %v1000, %v1014
          %v1021 = vmul.f32 %v1001, %v1014
          %v1022 = vmul.f32 %v1002, %v1014
          %v1023 = vmul.f32 %v1003, %v1014
          %v1024 = vmul.f32 %v1004, %v1014
          %v1025 = vmul.f32 %v1005, %v1014
          %v1026 = vmul.f32 %v1006, %v1014
          %v1027 = vmul.f32 %v1007, %v1014
          %v1028 = vmul.f32 %v1008, %v1014
          %v1029 = vmul.f32 %v1009, %v1014
          %v1030 = vmul.f32 %v1010, %v1014
          %v1031 = vmul.f32 %v1011, %v1014
          %v1032 = vld [vmem:[#allocation6] sm:$0x1]
          %v1034 = vperm.slane %v1032, 0
          %v1036 = vadd.f32 %v1016, %v1034
          %v1037 = vadd.f32 %v1017, %v1034
          %v1038 = vadd.f32 %v1018, %v1034
          %v1039 = vadd.f32 %v1019, %v1034
          %v1040 = vadd.f32 %v1020, %v1034
          %v1041 = vadd.f32 %v1021, %v1034
          %v1042 = vadd.f32 %v1022, %v1034
          %v1043 = vadd.f32 %v1023, %v1034
          %v1044 = vadd.f32 %v1024, %v1034
          %v1045 = vadd.f32 %v1025, %v1034
          %v1046 = vadd.f32 %v1026, %v1034
          %v1047 = vadd.f32 %v1027, %v1034
          %v1048 = vadd.f32 %v1028, %v1034
          %v1049 = vadd.f32 %v1029, %v1034
          %v1050 = vadd.f32 %v1030, %v1034
          %v1051 = vadd.f32 %v1031, %v1034
          %v1052 = vmax.f32 %v1036, 0.0
          %v1053 = vmax.f32 %v1037, 0.0
          %v1054 = vmax.f32 %v1038, 0.0
          %v1055 = vmax.f32 %v1039, 0.0
          %v1056 = vmax.f32 %v1040, 0.0
          %v1057 = vmax.f32 %v1041, 0.0
          %v1058 = vmax.f32 %v1042, 0.0
          %v1059 = vmax.f32 %v1043, 0.0
          %v1060 = vmax.f32 %v1044, 0.0
          %v1061 = vmax.f32 %v1045, 0.0
          %v1062 = vmax.f32 %v1046, 0.0
          %v1063 = vmax.f32 %v1047, 0.0
          %v1064 = vmax.f32 %v1048, 0.0
          %v1065 = vmax.f32 %v1049, 0.0
          %v1066 = vmax.f32 %v1050, 0.0
          %v1067 = vmax.f32 %v1051, 0.0
          %v1068 = vpack.c.bf16 %v1052, %v1052
          %v1069 = vpack.c.bf16 %v1053, %v1053
          %v1070 = vpack.c.bf16 %v1054, %v1054
          %v1071 = vpack.c.bf16 %v1055, %v1055
          %v1072 = vpack.c.bf16 %v1056, %v1056
          %v1073 = vpack.c.bf16 %v1057, %v1057
          %v1074 = vpack.c.bf16 %v1058, %v1058
          %v1075 = vpack.c.bf16 %v1059, %v1059
          %v1076 = vpack.c.bf16 %v1060, %v1060
          %v1077 = vpack.c.bf16 %v1061, %v1061
          %v1078 = vpack.c.bf16 %v1062, %v1062
          %v1079 = vpack.c.bf16 %v1063, %v1063
          %v1080 = vpack.c.bf16 %v1064, %v1064
          %v1081 = vpack.c.bf16 %v1065, %v1065
          %v1082 = vpack.c.bf16 %v1066, %v1066
          %v1083 = vpack.c.bf16 %v1067, %v1067
          %vm1084 = vcmask 519168
          %1085 = vst.msk [vmem:[%s262] sm:$0xf] %vm1084, %v1068
          %1086 = vst.msk [vmem:[%s262 + $0x4] sm:$0xf] %vm1084, %v1069
          %1087 = vst.msk [vmem:[%s262 + $0x8] sm:$0xf] %vm1084, %v1070
          %1088 = vst.msk [vmem:[%s262 + $0xc] sm:$0xf] %vm1084, %v1071
          %1089 = vst.msk [vmem:[%s262 + $0x10] sm:$0xf] %vm1084, %v1072
          %1090 = vst.msk [vmem:[%s262 + $0x14] sm:$0xf] %vm1084, %v1073
          %1091 = vst.msk [vmem:[%s262 + $0x18] sm:$0xf] %vm1084, %v1074
          %1092 = vst.msk [vmem:[%s262 + $0x1c] sm:$0xf] %vm1084, %v1075
          %1093 = vst.msk [vmem:[%s262 + $0x20] sm:$0xf] %vm1084, %v1076
          %1094 = vst.msk [vmem:[%s262 + $0x24] sm:$0xf] %vm1084, %v1077
          %1095 = vst.msk [vmem:[%s262 + $0x28] sm:$0xf] %vm1084, %v1078
          %1096 = vst.msk [vmem:[%s262 + $0x2c] sm:$0xf] %vm1084, %v1079
          %1097 = vst.msk [vmem:[%s262 + $0x30] sm:$0xf] %vm1084, %v1080
          %1098 = vst.msk [vmem:[%s262 + $0x34] sm:$0xf] %vm1084, %v1081
          %1099 = vst.msk [vmem:[%s262 + $0x38] sm:$0xf] %vm1084, %v1082
          %1100 = vst.msk [vmem:[%s262 + $0x3c] sm:$0xf] %vm1084, %v1083
        $region60: #{generator_forward.7} parent=35 // pred_fallthru
          _
        %s1101 = smul.u32 %s22, %s21
        %s1102 = smul.u32 16, %s1101
        %p1103 = scmp.lt.s32.totalorder %s1102, 15
        %s1104 = scalar_select %p1103, %s1102, 15
        %s1105 = smul.addr %s1104, 4
        %s1106 = scalar_lea.vmem %s4, %s1105
        // Predicated region
        $region61: #{generator_forward.7} parent=35 // pred_check
          %p1107 = pneg %p142
        $region62: #{generator_forward.7} parent=35 // pred_check_branch
          %1109 = sbr.rel (%p1107) target = $region64
        $region63: #{generator_forward.7} parent=35 // pred_region
          %s1110 = smul.u32 %s22, %s21
          %s1111 = smul.u32 16, %s1110
        $region64: #{generator_forward.7} parent=35 // pred_fallthru
          _
      $region36: #{generator_forward.7} parent=5 // pred_fallthru
        _
      %p1112 = scmp.le.s32.totalorder 2, %s12
      // Predicated region
      $region65: #{generator_forward.7} parent=5 // pred_check
        %p1113 = pneg %p1112
      $region66: #{generator_forward.7} parent=5 // pred_check_branch
        %1115 = sbr.rel (%p1113) target = $region68
      $region67: #{generator_forward.7} parent=5 // pred_region
        %s1116 = ssub.s32 %s12, 2
        // Predicated region
        $region69: #{generator_forward.7} parent=67 // pred_check
          %p1117 = pneg %p148
        $region70: #{generator_forward.7} parent=67 // pred_check_branch
          %1119 = sbr.rel (%p1117) target = $region72
        $region71: #{generator_forward.7} parent=67 // pred_region
          %s1120 = smul.u32 %s24, %s23
          %s1121 = smul.u32 16, %s1120
          %p1122 = scmp.lt.s32.totalorder %s1121, 15
          %s1123 = scalar_select %p1122, %s1121, 15
          %s1124 = smul.addr %s1123, 4
          %s1125 = scalar_lea.vmem %s4, %s1124
        $region72: #{generator_forward.7} parent=67 // pred_fallthru
          _
      $region68: #{generator_forward.7} parent=5 // pred_fallthru
        _
    $region6: #{generator_forward.7} parent=1 // loop_footer
      %s16 = sadd.s32 1, %s12
    $region7: #{generator_forward.7} parent=1 // loop_footer_branch
      %11 = sbr.rel target = $region3
    $region8: #{generator_forward.7} parent=1 // loop_exit
      _
    %1126 = vsyncpa [#allocation8], 1
    %s1127 = scalar_lea.sflag [#allocation8], 1
    %1128 = vsyncpa %s1127, 1
    %1129 = vsyncpa [#allocation10], 1

// kernel: generator_forward.8
$region0: #{generator_forward.8}
  #allocation0 [shape = 'u32[]', space=smem, size = 0x4, offset = 0x4, fixed_abs, tag = 'smem constant byte address 0x4 - core index']
  #allocation1 [shape = 'u32[72,128]{1,0:T(1,128)}', space=vmem, size = 0x9000, scoped, tag = 'internal scratch']
  #allocation2 [shape = 'bf16[512,32]{1,0:T(8,128)(2,1)}', space=vmem, size = 0x20000, scoped, tag = 'scratch operand']
  #allocation3 [shape = 'f32[8,32]{1,0:T(8,128)}', space=vmem, size = 0x1000, scoped, tag = 'scratch operand']
  #allocation4 [shape = 'f32[8,32]{1,0:T(8,128)}', space=vmem, size = 0x1000, scoped, tag = 'scratch operand']
  #allocation5 [shape = 'f32[1,32]{1,0:T(1,128)}', space=vmem, size = 0x200, scoped, tag = 'scratch operand']
  #allocation6 [shape = 'f32[1,32]{1,0:T(1,128)}', space=vmem, size = 0x200, scoped, tag = 'scratch operand']
  %s0 = inlined_call_operand.vmem [shape: bf16[512,144], index: 0, kind: input, shape index: {}]
  %s1 = inlined_call_operand.vmem [shape: bf16[144,32], index: 1, kind: input, shape index: {}]
  %s2 = inlined_call_operand.hbm [shape: f32[1,8], index: 2, kind: input, shape index: {}]
  %s3 = inlined_call_operand.hbm [shape: f32[1,8], index: 3, kind: input, shape index: {}]
  %s4 = inlined_call_operand.vmem [shape: bf16[512,32], index: 4, kind: output, shape index: {}]
  %s5 = sld [smem:[#allocation0]]
  $region73: #{generator_forward.8} parent=0
    _
  %s7 = ssub.s32 1, %s5
  %s8 = scalar_select 0, %s7, %s5
  $region1: #{generator_forward.8} parent=0
    #allocation7 [shape = 'u8[512]{0}', space=vmem, size = 0x400, scoped, tag = 'input window, operand 2, single buffered']
    #allocation8 [shape = 's32[2]{0}', space=sflag, size = 0x8, scoped, tag = 'scoped memory for generator_forward.8']
    #allocation9 [shape = 'u8[512]{0}', space=vmem, size = 0x400, scoped, tag = 'input window, operand 3, single buffered']
    #allocation10 [shape = 's32[1]{0}', space=sflag, size = 0x4, scoped, tag = 'scoped memory for generator_forward.8']
    %9 = vsyncpa [#allocation8], 0
    %10 = vsyncpa [#allocation10], 0
    loop: start=0, step=1, limit=4
    $region2: #{generator_forward.8} parent=1 // loop_pre_header
      _
    $region3: #{generator_forward.8} parent=1 // loop_header
      %s12 = sphi 0, %s16
      %p13 = scmp.ge.s32.totalorder %s12, 4
      %s19 = sphi 0, %s31
      %s20 = sphi 0, %s27
      %s21 = sphi 0, %s19
      %s22 = sphi 0, %s20
      %s23 = sphi 0, %s21
      %s24 = sphi 0, %s22
      %s38 = sphi 0, %s40
      %s41 = sphi 0, %s38
      %s42 = sphi 0, %s41
      %s58 = sphi 0, %s42
      %s62 = sphi 0, %s62
      %s64 = sphi 0, %s62
      %s65 = sphi 0, %s64
      %s79 = sphi 0, %s65
      %s83 = sphi 0, %s83
      %s85 = sphi 0, %s83
      %s86 = sphi 0, %s85
      %s100 = sphi 0, %s86
      %s104 = sphi 0, %s104
      %s106 = sphi 0, %s104
      %s107 = sphi 0, %s106
      %s121 = sphi 0, %s107
      %s129 = sphi 0, %s131
      %s132 = sphi 0, %s129
      %s133 = sphi 0, %s132
      %s149 = sphi 0, %s133
    $region4: #{generator_forward.8} parent=1 // loop_header_branch
      %15 = sbr.rel (%p13) target = $region8
    $region5: #{generator_forward.8} parent=1 // loop_body
      %s17 = ssub.s32 %s12, 1
      %s18 = ssub.s32 %s12, 2
      %s25 = sadd.s32 1, %s20
      %p26 = scmp.ge.s32.totalorder %s25, 1
      %s27 = scalar_select %p26, 0, %s25
      %s28 = sadd.s32 1, %s19
      %s29 = scalar_select %p26, %s28, %s19
      %p30 = scmp.ge.s32.totalorder %s29, 2
      %s31 = scalar_select %p30, 0, %s29
      %s32 = ssub.s32 1, %s19
      %s33 = smul.u32 %s32, %s20
      %s34 = ssub.s32 1, %s31
      %s35 = smul.u32 %s34, %s27
      %s36 = ssub.s32 %s33, %s35
      %p37 = scmp.eq.s32.totalorder %s36, 0
      %s39 = sadd.s32 %s38, 1
      %s40 = scalar_select %p37, %s38, %s39
      %p43 = pneg %p37
      %p44 = scmp.eq.s32.totalorder %s12, 1
      %p45 = por %p43, %p44
      %p46 = scmp.ne.s32.totalorder %s38, %s41
      %p47 = scmp.eq.s32.totalorder %s12, 0
      %p48 = por %p46, %p47
      %p49 = scmp.ne.s32.totalorder %s38, %s41
      %p50 = scmp.eq.s32.totalorder %s17, 1
      %p51 = por %p49, %p50
      %p52 = scmp.ne.s32.totalorder %s41, %s42
      %p53 = scmp.eq.s32.totalorder %s17, 0
      %p54 = por %p52, %p53
      %p55 = scmp.ne.s32.totalorder %s41, %s42
      %p56 = scmp.eq.s32.totalorder %s18, 1
      %p57 = por %p55, %p56
      %p59 = scmp.ne.s32.totalorder %s42, %s58
      %p60 = scmp.eq.s32.totalorder %s18, 0
      %p61 = por %p59, %p60
      %s63 = sadd.s32 %s62, 1
      %p66 = scmp.eq.s32.totalorder %s12, 1
      %p67 = scmp.ne.s32.totalorder %s62, %s64
      %p68 = scmp.eq.s32.totalorder %s12, 0
      %p69 = por %p67, %p68
      %p70 = scmp.ne.s32.totalorder %s62, %s64
      %p71 = scmp.eq.s32.totalorder %s17, 1
      %p72 = por %p70, %p71
      %p73 = scmp.ne.s32.totalorder %s64, %s65
      %p74 = scmp.eq.s32.totalorder %s17, 0
      %p75 = por %p73, %p74
      %p76 = scmp.ne.s32.totalorder %s64, %s65
      %p77 = scmp.eq.s32.totalorder %s18, 1
      %p78 = por %p76, %p77
      %p80 = scmp.ne.s32.totalorder %s65, %s79
      %p81 = scmp.eq.s32.totalorder %s18, 0
      %p82 = por %p80, %p81
      %s84 = sadd.s32 %s83, 1
      %p87 = scmp.eq.s32.totalorder %s12, 1
      %p88 = scmp.ne.s32.totalorder %s83, %s85
      %p89 = scmp.eq.s32.totalorder %s12, 0
      %p90 = por %p88, %p89
      %p91 = scmp.ne.s32.totalorder %s83, %s85
      %p92 = scmp.eq.s32.totalorder %s17, 1
      %p93 = por %p91, %p92
      %p94 = scmp.ne.s32.totalorder %s85, %s86
      %p95 = scmp.eq.s32.totalorder %s17, 0
      %p96 = por %p94, %p95
      %p97 = scmp.ne.s32.totalorder %s85, %s86
      %p98 = scmp.eq.s32.totalorder %s18, 1
      %p99 = por %p97, %p98
      %p101 = scmp.ne.s32.totalorder %s86, %s100
      %p102 = scmp.eq.s32.totalorder %s18, 0
      %p103 = por %p101, %p102
      %s105 = sadd.s32 %s104, 1
      %p108 = scmp.eq.s32.totalorder %s12, 1
      %p109 = scmp.ne.s32.totalorder %s104, %s106
      %p110 = scmp.eq.s32.totalorder %s12, 0
      %p111 = por %p109, %p110
      %p112 = scmp.ne.s32.totalorder %s104, %s106
      %p113 = scmp.eq.s32.totalorder %s17, 1
      %p114 = por %p112, %p113
      %p115 = scmp.ne.s32.totalorder %s106, %s107
      %p116 = scmp.eq.s32.totalorder %s17, 0
      %p117 = por %p115, %p116
      %p118 = scmp.ne.s32.totalorder %s106, %s107
      %p119 = scmp.eq.s32.totalorder %s18, 1
      %p120 = por %p118, %p119
      %p122 = scmp.ne.s32.totalorder %s107, %s121
      %p123 = scmp.eq.s32.totalorder %s18, 0
      %p124 = por %p122, %p123
      %s125 = smul.u32 %s20, %s19
      %s126 = smul.u32 %s27, %s31
      %s127 = ssub.s32 %s125, %s126
      %p128 = scmp.eq.s32.totalorder %s127, 0
      %s130 = sadd.s32 %s129, 1
      %s131 = scalar_select %p128, %s129, %s130
      %p134 = pneg %p128
      %p135 = scmp.eq.s32.totalorder %s12, 1
      %p136 = por %p134, %p135
      %p137 = scmp.ne.s32.totalorder %s129, %s132
      %p138 = scmp.eq.s32.totalorder %s12, 0
      %p139 = por %p137, %p138
      %p140 = scmp.ne.s32.totalorder %s129, %s132
      %p141 = scmp.eq.s32.totalorder %s17, 1
      %p142 = por %p140, %p141
      %p143 = scmp.ne.s32.totalorder %s132, %s133
      %p144 = scmp.eq.s32.totalorder %s17, 0
      %p145 = por %p143, %p144
      %p146 = scmp.ne.s32.totalorder %s132, %s133
      %p147 = scmp.eq.s32.totalorder %s18, 1
      %p148 = por %p146, %p147
      %p150 = scmp.ne.s32.totalorder %s133, %s149
      %p151 = scmp.eq.s32.totalorder %s18, 0
      %p152 = por %p150, %p151
      %p153 = scmp.le.s32.totalorder 1, %s12
      %p154 = scmp.lt.s32.totalorder %s12, 3
      %p155 = pnand %p153, %p154
      %p156 = pneg %p155
      // Predicated region
      $region9: #{generator_forward.8} parent=5 // pred_check
        _
      $region10: #{generator_forward.8} parent=5 // pred_check_branch
        %158 = sbr.rel (%p155) target = $region12
      $region11: #{generator_forward.8} parent=5 // pred_region
        %s159 = ssub.s32 %s12, 1
        // Predicated region
        $region13: #{generator_forward.8} parent=11 // pred_check
          %p160 = pneg %p75
        $region14: #{generator_forward.8} parent=11 // pred_check_branch
          %162 = sbr.rel (%p160) target = $region16
        $region15: #{generator_forward.8} parent=11 // pred_region
          _
        $region16: #{generator_forward.8} parent=11 // pred_fallthru
          _
        // Predicated region
        $region17: #{generator_forward.8} parent=11 // pred_check
          %p163 = pneg %p96
        $region18: #{generator_forward.8} parent=11 // pred_check_branch
          %165 = sbr.rel (%p163) target = $region20
        $region19: #{generator_forward.8} parent=11 // pred_region
          %167 = vsyncadd [#allocation8], 0
          %s169 = sshll.u32 %s2, 4
          %s170 = int_to_ptr.hbm [resolvable:$true] %s169
          %s171 = sshll.u32 [#allocation7], 4
          %s172 = int_to_ptr.vmem [resolvable:$true] %s171
          %174 = dma.hbm_to_vmem [thread:$0]  %s170, 16, %s172, [#allocation8]
        $region20: #{generator_forward.8} parent=11 // pred_fallthru
          _
        // Predicated region
        $region21: #{generator_forward.8} parent=11 // pred_check
          %p175 = pneg %p117
        $region22: #{generator_forward.8} parent=11 // pred_check_branch
          %177 = sbr.rel (%p175) target = $region24
        $region23: #{generator_forward.8} parent=11 // pred_region
          %179 = vsyncadd [#allocation10], 0
          %s181 = sshll.u32 %s3, 4
          %s182 = int_to_ptr.hbm [resolvable:$true] %s181
          %s183 = sshll.u32 [#allocation9], 4
          %s184 = int_to_ptr.vmem [resolvable:$true] %s183
          %186 = dma.hbm_to_vmem [thread:$0]  %s182, 16, %s184, [#allocation10]
        $region24: #{generator_forward.8} parent=11 // pred_fallthru
          _
      $region12: #{generator_forward.8} parent=5 // pred_fallthru
        _
      %p187 = scmp.lt.s32.totalorder %s12, 2
      // Predicated region
      $region25: #{generator_forward.8} parent=5 // pred_check
        %p188 = pneg %p187
      $region26: #{generator_forward.8} parent=5 // pred_check_branch
        %190 = sbr.rel (%p188) target = $region28
      $region27: #{generator_forward.8} parent=5 // pred_region
        // Predicated region
        $region29: #{generator_forward.8} parent=27 // pred_check
          %p191 = pneg %p48
        $region30: #{generator_forward.8} parent=27 // pred_check_branch
          %193 = sbr.rel (%p191) target = $region32
        $region31: #{generator_forward.8} parent=27 // pred_region
          %s194 = ssub.s32 1, %s19
          %s195 = smul.u32 %s194, %s20
          %s196 = smul.u32 64, %s195
          %p197 = scmp.lt.s32.totalorder %s196, 63
          %s198 = scalar_select %p197, %s196, 63
          %s199 = smul.addr %s198, 2
          %s200 = smul.addr %s199, 4
          %s201 = scalar_lea.vmem %s0, %s200
          %s202 = ssub.s32 1, %s19
          %s203 = smul.u32 %s202, %s20
          %s204 = smul.u32 64, %s203
        $region32: #{generator_forward.8} parent=27 // pred_fallthru
          _
      $region28: #{generator_forward.8} parent=5 // pred_fallthru
        _
      %p205 = scmp.le.s32.totalorder 1, %s12
      %p206 = scmp.lt.s32.totalorder %s12, 3
      %p207 = pnand %p205, %p206
      %p208 = pneg %p207
      // Predicated region
      $region33: #{generator_forward.8} parent=5 // pred_check
        _
      $region34: #{generator_forward.8} parent=5 // pred_check_branch
        %210 = sbr.rel (%p207) target = $region36
      $region35: #{generator_forward.8} parent=5 // pred_region
        %s211 = ssub.s32 %s12, 1
        // Predicated region
        $region37: #{generator_forward.8} parent=35 // pred_check
          %p212 = pneg %p96
        $region38: #{generator_forward.8} parent=35 // pred_check_branch
          %214 = sbr.rel (%p212) target = $region40
        $region39: #{generator_forward.8} parent=35 // pred_region
          %216 = dma.done [#allocation8], 16
        $region40: #{generator_forward.8} parent=35 // pred_fallthru
          _
        // Predicated region
        $region41: #{generator_forward.8} parent=35 // pred_check
          %p217 = pneg %p117
        $region42: #{generator_forward.8} parent=35 // pred_check_branch
          %219 = sbr.rel (%p217) target = $region44
        $region43: #{generator_forward.8} parent=35 // pred_region
          %221 = dma.done [#allocation10], 16
        $region44: #{generator_forward.8} parent=35 // pred_fallthru
          _
        %s222 = ssub.s32 1, %s21
        %s223 = smul.u32 %s222, %s22
        %s224 = smul.u32 64, %s223
        %p225 = scmp.lt.s32.totalorder %s224, 63
        %s226 = scalar_select %p225, %s224, 63
        %s227 = smul.addr %s226, 2
        %s228 = smul.addr %s227, 4
        %s229 = scalar_lea.vmem %s0, %s228
        %p230 = pneg %p54
        %p231 = pneg %p51
        %p232 = pneg %p75
        %p233 = pneg %p72
        %p234 = pneg %p96
        %p235 = pneg %p93
        %p236 = pneg %p117
        %p237 = pneg %p114
        %p238 = pneg %p145
        %p239 = pneg %p142
        %s240 = smul.u32 %s22, %s21
        %s241 = smul.u32 64, %s240
        %p242 = scmp.lt.s32.totalorder %s241, 63
        %s243 = scalar_select %p242, %s241, 63
        %s244 = smul.addr %s243, 4
        %s245 = scalar_lea.vmem %s4, %s244
        %s246 = ssub.s32 1, %s21
        %s247 = smul.u32 %s246, %s22
        %s248 = smul.u32 64, %s247
        %p249 = scmp.lt.s32.totalorder %s248, 63
        %s250 = scalar_select %p249, %s248, 63
        %s251 = smul.addr %s250, 2
        %s252 = smul.addr %s251, 4
        %s253 = scalar_lea.vmem %s0, %s252
        %s254 = ssub.s32 1, %s21
        %s255 = smul.u32 %s254, %s22
        %s256 = smul.u32 64, %s255
        %s257 = smul.u32 %s22, %s21
        %s258 = smul.u32 64, %s257
        %p259 = scmp.lt.s32.totalorder %s258, 63
        %s260 = scalar_select %p259, %s258, 63
        %s261 = smul.addr %s260, 4
        %s262 = scalar_lea.vmem %s4, %s261
        %s263 = smul.u32 %s22, %s21
        %s264 = smul.u32 64, %s263
        %s266 = smul.u32 %s22, 512
        %p267 = scmp.eq.s32.totalorder %s21, 0
        %p268 = scmp.eq.s32.totalorder %s22, 0
        %p269 = pnand %p267, %p268
        %p270 = pneg %p269
        // Predicated region
        $region45: #{generator_forward.8} parent=35 // pred_check
          _
        $region46: #{generator_forward.8} parent=35 // pred_check_branch
          %272 = sbr.rel (%p269) target = $region48
        $region47: #{generator_forward.8} parent=35 // pred_region
          %vm273 = vcmask 261120
          %274 = vst.msk [vmem:[#allocation3] sm:$0xff] %vm273, 0.0
          %275 = vst.msk [vmem:[#allocation4] sm:$0xff] %vm273, 0.0
        $region48: #{generator_forward.8} parent=35 // pred_fallthru
          _
        // Predicated region
        $region49: #{generator_forward.8} parent=35 // pred_check
          %p276 = pneg %p267
        $region50: #{generator_forward.8} parent=35 // pred_check_branch
          %278 = sbr.rel (%p276) target = $region52
        $region51: #{generator_forward.8} parent=35 // pred_region
          %v279 = vld [vmem:[%s253] sm:$0xff]
          %v280 = vld [vmem:[%s253 + $0x8] sm:$0xff]
          %v281 = vld [vmem:[%s253 + $0x10] sm:$0xff]
          %v282 = vld [vmem:[%s253 + $0x18] sm:$0xff]
          %v283 = vld [vmem:[%s253 + $0x20] sm:$0xff]
          %v284 = vld [vmem:[%s253 + $0x28] sm:$0xff]
          %v285 = vld [vmem:[%s253 + $0x30] sm:$0xff]
          %v286 = vld [vmem:[%s253 + $0x38] sm:$0xff]
          %v287 = vld [vmem:[%s253 + $0x40] sm:$0xff]
          %v288 = vld [vmem:[%s253 + $0x48] sm:$0xff]
          %v289 = vld [vmem:[%s253 + $0x50] sm:$0xff]
          %v290 = vld [vmem:[%s253 + $0x58] sm:$0xff]
          %v291 = vld [vmem:[%s253 + $0x60] sm:$0xff]
          %v292 = vld [vmem:[%s253 + $0x68] sm:$0xff]
          %v293 = vld [vmem:[%s253 + $0x70] sm:$0xff]
          %v294 = vld [vmem:[%s253 + $0x78] sm:$0xff]
          %v295 = vld [vmem:[%s253 + $0x80] sm:$0xff]
          %v296 = vld [vmem:[%s253 + $0x88] sm:$0xff]
          %v297 = vld [vmem:[%s253 + $0x90] sm:$0xff]
          %v298 = vld [vmem:[%s253 + $0x98] sm:$0xff]
          %v299 = vld [vmem:[%s253 + $0xa0] sm:$0xff]
          %v300 = vld [vmem:[%s253 + $0xa8] sm:$0xff]
          %v301 = vld [vmem:[%s253 + $0xb0] sm:$0xff]
          %v302 = vld [vmem:[%s253 + $0xb8] sm:$0xff]
          %v303 = vld [vmem:[%s253 + $0xc0] sm:$0xff]
          %v304 = vld [vmem:[%s253 + $0xc8] sm:$0xff]
          %v305 = vld [vmem:[%s253 + $0xd0] sm:$0xff]
          %v306 = vld [vmem:[%s253 + $0xd8] sm:$0xff]
          %v307 = vld [vmem:[%s253 + $0xe0] sm:$0xff]
          %v308 = vld [vmem:[%s253 + $0xe8] sm:$0xff]
          %v309 = vld [vmem:[%s253 + $0xf0] sm:$0xff]
          %v310 = vld [vmem:[%s253 + $0xf8] sm:$0xff]
          %v311 = vld [vmem:[%s253 + $0x100] sm:$0xff]
          %v312 = vld [vmem:[%s253 + $0x108] sm:$0xff]
          %v313 = vld [vmem:[%s253 + $0x110] sm:$0xff]
          %v314 = vld [vmem:[%s253 + $0x118] sm:$0xff]
          %v315 = vld [vmem:[%s253 + $0x120] sm:$0xff]
          %v316 = vld [vmem:[%s253 + $0x128] sm:$0xff]
          %v317 = vld [vmem:[%s253 + $0x130] sm:$0xff]
          %v318 = vld [vmem:[%s253 + $0x138] sm:$0xff]
          %v319 = vld [vmem:[%s253 + $0x140] sm:$0xff]
          %v320 = vld [vmem:[%s253 + $0x148] sm:$0xff]
          %v321 = vld [vmem:[%s253 + $0x150] sm:$0xff]
          %v322 = vld [vmem:[%s253 + $0x158] sm:$0xff]
          %v323 = vld [vmem:[%s253 + $0x160] sm:$0xff]
          %v324 = vld [vmem:[%s253 + $0x168] sm:$0xff]
          %v325 = vld [vmem:[%s253 + $0x170] sm:$0xff]
          %v326 = vld [vmem:[%s253 + $0x178] sm:$0xff]
          %v327 = vld [vmem:[%s253 + $0x180] sm:$0xff]
          %v328 = vld [vmem:[%s253 + $0x188] sm:$0xff]
          %v329 = vld [vmem:[%s253 + $0x190] sm:$0xff]
          %v330 = vld [vmem:[%s253 + $0x198] sm:$0xff]
          %v331 = vld [vmem:[%s253 + $0x1a0] sm:$0xff]
          %v332 = vld [vmem:[%s253 + $0x1a8] sm:$0xff]
          %v333 = vld [vmem:[%s253 + $0x1b0] sm:$0xff]
          %v334 = vld [vmem:[%s253 + $0x1b8] sm:$0xff]
          %v335 = vld [vmem:[%s253 + $0x1c0] sm:$0xff]
          %v336 = vld [vmem:[%s253 + $0x1c8] sm:$0xff]
          %v337 = vld [vmem:[%s253 + $0x1d0] sm:$0xff]
          %v338 = vld [vmem:[%s253 + $0x1d8] sm:$0xff]
          %v339 = vld [vmem:[%s253 + $0x1e0] sm:$0xff]
          %v340 = vld [vmem:[%s253 + $0x1e8] sm:$0xff]
          %v341 = vld [vmem:[%s253 + $0x1f0] sm:$0xff]
          %v342 = vld [vmem:[%s253 + $0x1f8] sm:$0xff]
          %v343 = vld [vmem:[%s1] sm:$0xf]
          %v344 = vld [vmem:[%s1 + $0x4] sm:$0xf]
          %v345 = vld [vmem:[%s1 + $0x8] sm:$0xf]
          %v346 = vld [vmem:[%s1 + $0xc] sm:$0xf]
          %v347 = vld [vmem:[%s1 + $0x10] sm:$0xf]
          %v348 = vld [vmem:[%s1 + $0x14] sm:$0xf]
          %v349 = vld [vmem:[%s1 + $0x18] sm:$0xf]
          %v350 = vld [vmem:[%s1 + $0x1c] sm:$0xf]
          %v351 = vld [vmem:[%s1 + $0x20] sm:$0xf]
          %v352 = vld [vmem:[%s1 + $0x24] sm:$0xf]
          %v353 = vld [vmem:[%s1 + $0x28] sm:$0xf]
          %v354 = vld [vmem:[%s1 + $0x2c] sm:$0xf]
          %v355 = vld [vmem:[%s1 + $0x30] sm:$0xf]
          %v356 = vld [vmem:[%s1 + $0x34] sm:$0xf]
          %v357 = vld [vmem:[%s1 + $0x38] sm:$0xf]
          %v358 = vld [vmem:[%s1 + $0x3c] sm:$0xf]
          %v359 = vld [vmem:[%s1 + $0x40] sm:$0xf]
          %v360 = vld [vmem:[%s1 + $0x44] sm:$0xf]
          %v425 = vunpack.c.l.b16 %v279
          %v426 = vunpack.c.h.b16 %v279
          %v427 = vunpack.c.l.b16 %v280
          %v428 = vunpack.c.h.b16 %v280
          %v429 = vunpack.c.l.b16 %v281
          %v430 = vunpack.c.h.b16 %v281
          %v431 = vunpack.c.l.b16 %v282
          %v432 = vunpack.c.h.b16 %v282
          %v433 = vunpack.c.l.b16 %v283
          %v434 = vunpack.c.h.b16 %v283
          %v435 = vunpack.c.l.b16 %v284
          %v436 = vunpack.c.h.b16 %v284
          %v437 = vunpack.c.l.b16 %v285
          %v438 = vunpack.c.h.b16 %v285
          %v439 = vunpack.c.l.b16 %v286
          %v440 = vunpack.c.h.b16 %v286
          %v441 = vunpack.c.l.b16 %v287
          %v442 = vunpack.c.h.b16 %v287
          %v443 = vunpack.c.l.b16 %v288
          %v444 = vunpack.c.h.b16 %v288
          %v445 = vunpack.c.l.b16 %v289
          %v446 = vunpack.c.h.b16 %v289
          %v447 = vunpack.c.l.b16 %v290
          %v448 = vunpack.c.h.b16 %v290
          %v449 = vunpack.c.l.b16 %v291
          %v450 = vunpack.c.h.b16 %v291
          %v451 = vunpack.c.l.b16 %v292
          %v452 = vunpack.c.h.b16 %v292
          %v453 = vunpack.c.l.b16 %v293
          %v454 = vunpack.c.h.b16 %v293
          %v455 = vunpack.c.l.b16 %v294
          %v456 = vunpack.c.h.b16 %v294
          %v457 = vunpack.c.l.b16 %v295
          %v458 = vunpack.c.h.b16 %v295
          %v459 = vunpack.c.l.b16 %v296
          %v460 = vunpack.c.h.b16 %v296
          %v461 = vunpack.c.l.b16 %v297
          %v462 = vunpack.c.h.b16 %v297
          %v463 = vunpack.c.l.b16 %v298
          %v464 = vunpack.c.h.b16 %v298
          %v465 = vunpack.c.l.b16 %v299
          %v466 = vunpack.c.h.b16 %v299
          %v467 = vunpack.c.l.b16 %v300
          %v468 = vunpack.c.h.b16 %v300
          %v469 = vunpack.c.l.b16 %v301
          %v470 = vunpack.c.h.b16 %v301
          %v471 = vunpack.c.l.b16 %v302
          %v472 = vunpack.c.h.b16 %v302
          %v473 = vunpack.c.l.b16 %v303
          %v474 = vunpack.c.h.b16 %v303
          %v475 = vunpack.c.l.b16 %v304
          %v476 = vunpack.c.h.b16 %v304
          %v477 = vunpack.c.l.b16 %v305
          %v478 = vunpack.c.h.b16 %v305
          %v479 = vunpack.c.l.b16 %v306
          %v480 = vunpack.c.h.b16 %v306
          %v481 = vunpack.c.l.b16 %v307
          %v482 = vunpack.c.h.b16 %v307
          %v483 = vunpack.c.l.b16 %v308
          %v484 = vunpack.c.h.b16 %v308
          %v485 = vunpack.c.l.b16 %v309
          %v486 = vunpack.c.h.b16 %v309
          %v487 = vunpack.c.l.b16 %v310
          %v488 = vunpack.c.h.b16 %v310
          %v489 = vunpack.c.l.b16 %v311
          %v490 = vunpack.c.h.b16 %v311
          %v491 = vunpack.c.l.b16 %v312
          %v492 = vunpack.c.h.b16 %v312
          %v493 = vunpack.c.l.b16 %v313
          %v494 = vunpack.c.h.b16 %v313
          %v495 = vunpack.c.l.b16 %v314
          %v496 = vunpack.c.h.b16 %v314
          %v497 = vunpack.c.l.b16 %v315
          %v498 = vunpack.c.h.b16 %v315
          %v499 = vunpack.c.l.b16 %v316
          %v500 = vunpack.c.h.b16 %v316
          %v501 = vunpack.c.l.b16 %v317
          %v502 = vunpack.c.h.b16 %v317
          %v503 = vunpack.c.l.b16 %v318
          %v504 = vunpack.c.h.b16 %v318
          %v505 = vunpack.c.l.b16 %v319
          %v506 = vunpack.c.h.b16 %v319
          %v507 = vunpack.c.l.b16 %v320
          %v508 = vunpack.c.h.b16 %v320
          %v509 = vunpack.c.l.b16 %v321
          %v510 = vunpack.c.h.b16 %v321
          %v511 = vunpack.c.l.b16 %v322
          %v512 = vunpack.c.h.b16 %v322
          %v513 = vunpack.c.l.b16 %v323
          %v514 = vunpack.c.h.b16 %v323
          %v515 = vunpack.c.l.b16 %v324
          %v516 = vunpack.c.h.b16 %v324
          %v517 = vunpack.c.l.b16 %v325
          %v518 = vunpack.c.h.b16 %v325
          %v519 = vunpack.c.l.b16 %v326
          %v520 = vunpack.c.h.b16 %v326
          %v521 = vunpack.c.l.b16 %v327
          %v522 = vunpack.c.h.b16 %v327
          %v523 = vunpack.c.l.b16 %v328
          %v524 = vunpack.c.h.b16 %v328
          %v525 = vunpack.c.l.b16 %v329
          %v526 = vunpack.c.h.b16 %v329
          %v527 = vunpack.c.l.b16 %v330
          %v528 = vunpack.c.h.b16 %v330
          %v529 = vunpack.c.l.b16 %v331
          %v530 = vunpack.c.h.b16 %v331
          %v531 = vunpack.c.l.b16 %v332
          %v532 = vunpack.c.h.b16 %v332
          %v533 = vunpack.c.l.b16 %v333
          %v534 = vunpack.c.h.b16 %v333
          %v535 = vunpack.c.l.b16 %v334
          %v536 = vunpack.c.h.b16 %v334
          %v537 = vunpack.c.l.b16 %v335
          %v538 = vunpack.c.h.b16 %v335
          %v539 = vunpack.c.l.b16 %v336
          %v540 = vunpack.c.h.b16 %v336
          %v541 = vunpack.c.l.b16 %v337
          %v542 = vunpack.c.h.b16 %v337
          %v543 = vunpack.c.l.b16 %v338
          %v544 = vunpack.c.h.b16 %v338
          %v545 = vunpack.c.l.b16 %v339
          %v546 = vunpack.c.h.b16 %v339
          %v547 = vunpack.c.l.b16 %v340
          %v548 = vunpack.c.h.b16 %v340
          %v549 = vunpack.c.l.b16 %v341
          %v550 = vunpack.c.h.b16 %v341
          %v551 = vunpack.c.l.b16 %v342
          %v552 = vunpack.c.h.b16 %v342
          %v553 = vpack.c.b16 %v427, %v425
          %v554 = vpack.c.b16 %v428, %v426
          %v555 = vpack.c.b16 %v431, %v429
          %v556 = vpack.c.b16 %v432, %v430
          %v557 = vpack.c.b16 %v435, %v433
          %v558 = vpack.c.b16 %v436, %v434
          %v559 = vpack.c.b16 %v439, %v437
          %v560 = vpack.c.b16 %v440, %v438
          %v561 = vpack.c.b16 %v443, %v441
          %v562 = vpack.c.b16 %v444, %v442
          %v563 = vpack.c.b16 %v447, %v445
          %v564 = vpack.c.b16 %v448, %v446
          %v565 = vpack.c.b16 %v451, %v449
          %v566 = vpack.c.b16 %v452, %v450
          %v567 = vpack.c.b16 %v455, %v453
          %v568 = vpack.c.b16 %v456, %v454
          %v569 = vpack.c.b16 %v459, %v457
          %v570 = vpack.c.b16 %v460, %v458
          %v571 = vpack.c.b16 %v463, %v461
          %v572 = vpack.c.b16 %v464, %v462
          %v573 = vpack.c.b16 %v467, %v465
          %v574 = vpack.c.b16 %v468, %v466
          %v575 = vpack.c.b16 %v471, %v469
          %v576 = vpack.c.b16 %v472, %v470
          %v577 = vpack.c.b16 %v475, %v473
          %v578 = vpack.c.b16 %v476, %v474
          %v579 = vpack.c.b16 %v479, %v477
          %v580 = vpack.c.b16 %v480, %v478
          %v581 = vpack.c.b16 %v483, %v481
          %v582 = vpack.c.b16 %v484, %v482
          %v583 = vpack.c.b16 %v487, %v485
          %v584 = vpack.c.b16 %v488, %v486
          %v585 = vpack.c.b16 %v491, %v489
          %v586 = vpack.c.b16 %v492, %v490
          %v587 = vpack.c.b16 %v495, %v493
          %v588 = vpack.c.b16 %v496, %v494
          %v589 = vpack.c.b16 %v499, %v497
          %v590 = vpack.c.b16 %v500, %v498
          %v591 = vpack.c.b16 %v503, %v501
          %v592 = vpack.c.b16 %v504, %v502
          %v593 = vpack.c.b16 %v507, %v505
          %v594 = vpack.c.b16 %v508, %v506
          %v595 = vpack.c.b16 %v511, %v509
          %v596 = vpack.c.b16 %v512, %v510
          %v597 = vpack.c.b16 %v515, %v513
          %v598 = vpack.c.b16 %v516, %v514
          %v599 = vpack.c.b16 %v519, %v517
          %v600 = vpack.c.b16 %v520, %v518
          %v601 = vpack.c.b16 %v523, %v521
          %v602 = vpack.c.b16 %v524, %v522
          %v603 = vpack.c.b16 %v527, %v525
          %v604 = vpack.c.b16 %v528, %v526
          %v605 = vpack.c.b16 %v531, %v529
          %v606 = vpack.c.b16 %v532, %v530
          %v607 = vpack.c.b16 %v535, %v533
          %v608 = vpack.c.b16 %v536, %v534
          %v609 = vpack.c.b16 %v539, %v537
          %v610 = vpack.c.b16 %v540, %v538
          %v611 = vpack.c.b16 %v543, %v541
          %v612 = vpack.c.b16 %v544, %v542
          %v613 = vpack.c.b16 %v547, %v545
          %v614 = vpack.c.b16 %v548, %v546
          %v615 = vpack.c.b16 %v551, %v549
          %v616 = vpack.c.b16 %v552, %v550
          %v667 = vunpack.c.l.b16 %v343
          %v668 = vunpack.c.l.b16 %v344
          %v669 = vunpack.c.l.b16 %v345
          %v670 = vunpack.c.l.b16 %v346
          %v671 = vunpack.c.l.b16 %v347
          %v672 = vunpack.c.l.b16 %v348
          %v673 = vunpack.c.l.b16 %v349
          %v674 = vunpack.c.l.b16 %v350
          %v675 = vunpack.c.l.b16 %v351
          %v676 = vunpack.c.l.b16 %v352
          %v677 = vunpack.c.l.b16 %v353
          %v678 = vunpack.c.l.b16 %v354
          %v679 = vunpack.c.l.b16 %v355
          %v680 = vunpack.c.l.b16 %v356
          %v681 = vunpack.c.l.b16 %v357
          %v682 = vunpack.c.l.b16 %v358
          %v683 = vunpack.c.l.b16 %v359
          %v684 = vunpack.c.l.b16 %v360
          %v685 = vpack.c.b16 %v668, %v667
          %v686 = vpack.c.b16 %v670, %v669
          %v687 = vpack.c.b16 %v672, %v671
          %v688 = vpack.c.b16 %v674, %v673
          %v689 = vpack.c.b16 %v676, %v675
          %v690 = vpack.c.b16 %v678, %v677
          %v691 = vpack.c.b16 %v680, %v679
          %v692 = vpack.c.b16 %v682, %v681
          %v693 = vpack.c.b16 %v684, %v683
          %vm703 = vcmask 130048
          %v705 = vsel %vm703, %v554, 0
          %v708 = vsel %vm703, %v556, 0
          %v711 = vsel %vm703, %v558, 0
          %v714 = vsel %vm703, %v560, 0
          %v717 = vsel %vm703, %v562, 0
          %v720 = vsel %vm703, %v564, 0
          %v723 = vsel %vm703, %v566, 0
          %v726 = vsel %vm703, %v568, 0
          %v729 = vsel %vm703, %v570, 0
          %v732 = vsel %vm703, %v572, 0
          %v735 = vsel %vm703, %v574, 0
          %v738 = vsel %vm703, %v576, 0
          %v741 = vsel %vm703, %v578, 0
          %v744 = vsel %vm703, %v580, 0
          %v747 = vsel %vm703, %v582, 0
          %v750 = vsel %vm703, %v584, 0
          %v753 = vsel %vm703, %v586, 0
          %v756 = vsel %vm703, %v588, 0
          %v759 = vsel %vm703, %v590, 0
          %v762 = vsel %vm703, %v592, 0
          %v765 = vsel %vm703, %v594, 0
          %v768 = vsel %vm703, %v596, 0
          %v771 = vsel %vm703, %v598, 0
          %v774 = vsel %vm703, %v600, 0
          %v777 = vsel %vm703, %v602, 0
          %v780 = vsel %vm703, %v604, 0
          %v783 = vsel %vm703, %v606, 0
          %v786 = vsel %vm703, %v608, 0
          %v789 = vsel %vm703, %v610, 0
          %v792 = vsel %vm703, %v612, 0
          %v795 = vsel %vm703, %v614, 0
          %v798 = vsel %vm703, %v616, 0
          %800 = vmatpush.bf16.msra.mxu0 %v692
          %801 = vmatpush.bf16.msra.mxu0 %v691
          %802 = vmatpush.bf16.msra.mxu0 %v690
          %803 = vmatpush.bf16.msra.mxu0 %v689
          %804 = vmatpush.bf16.msra.mxu0 %v688
          %805 = vmatpush.bf16.msra.mxu0 %v687
          %806 = vmatpush.bf16.msra.mxu0 %v686
          %807 = vmatpush.bf16.msra.mxu0 %v685
          %808 = vmatmul.bf16.gmra.mxu0 %v553
          %v809 = vpop.f32.mrf.mxu0
          %v810 = vadd.f32 0.0, %v809
          %v811 = vpop.f32.mrf.mxu0
          %v812 = vadd.f32 0.0, %v811
          %813 = vmatmul.bf16.gmra.mxu0 %v555
          %v814 = vpop.f32.mrf.mxu0
          %v815 = vadd.f32 0.0, %v814
          %v816 = vpop.f32.mrf.mxu0
          %v817 = vadd.f32 0.0, %v816
          %818 = vmatmul.bf16.gmra.mxu0 %v557
          %v819 = vpop.f32.mrf.mxu0
          %v820 = vadd.f32 0.0, %v819
          %v821 = vpop.f32.mrf.mxu0
          %v822 = vadd.f32 0.0, %v821
          %823 = vmatmul.bf16.gmra.mxu0 %v559
          %v824 = vpop.f32.mrf.mxu0
          %v825 = vadd.f32 0.0, %v824
          %v826 = vpop.f32.mrf.mxu0
          %v827 = vadd.f32 0.0, %v826
          %828 = vmatmul.bf16.gmra.mxu0 %v561
          %v829 = vpop.f32.mrf.mxu0
          %v830 = vadd.f32 0.0, %v829
          %v831 = vpop.f32.mrf.mxu0
          %v832 = vadd.f32 0.0, %v831
          %833 = vmatmul.bf16.gmra.mxu0 %v563
          %v834 = vpop.f32.mrf.mxu0
          %v835 = vadd.f32 0.0, %v834
          %v836 = vpop.f32.mrf.mxu0
          %v837 = vadd.f32 0.0, %v836
          %838 = vmatmul.bf16.gmra.mxu0 %v565
          %v839 = vpop.f32.mrf.mxu0
          %v840 = vadd.f32 0.0, %v839
          %v841 = vpop.f32.mrf.mxu0
          %v842 = vadd.f32 0.0, %v841
          %843 = vmatmul.bf16.gmra.mxu0 %v567
          %v844 = vpop.f32.mrf.mxu0
          %v845 = vadd.f32 0.0, %v844
          %v846 = vpop.f32.mrf.mxu0
          %v847 = vadd.f32 0.0, %v846
          %848 = vmatmul.bf16.gmra.mxu0 %v569
          %v849 = vpop.f32.mrf.mxu0
          %v850 = vadd.f32 0.0, %v849
          %v851 = vpop.f32.mrf.mxu0
          %v852 = vadd.f32 0.0, %v851
          %853 = vmatmul.bf16.gmra.mxu0 %v571
          %v854 = vpop.f32.mrf.mxu0
          %v855 = vadd.f32 0.0, %v854
          %v856 = vpop.f32.mrf.mxu0
          %v857 = vadd.f32 0.0, %v856
          %858 = vmatmul.bf16.gmra.mxu0 %v573
          %v859 = vpop.f32.mrf.mxu0
          %v860 = vadd.f32 0.0, %v859
          %v861 = vpop.f32.mrf.mxu0
          %v862 = vadd.f32 0.0, %v861
          %863 = vmatmul.bf16.gmra.mxu0 %v575
          %v864 = vpop.f32.mrf.mxu0
          %v865 = vadd.f32 0.0, %v864
          %v866 = vpop.f32.mrf.mxu0
          %v867 = vadd.f32 0.0, %v866
          %868 = vmatmul.bf16.gmra.mxu0 %v577
          %v869 = vpop.f32.mrf.mxu0
          %v870 = vadd.f32 0.0, %v869
          %v871 = vpop.f32.mrf.mxu0
          %v872 = vadd.f32 0.0, %v871
          %873 = vmatmul.bf16.gmra.mxu0 %v579
          %v874 = vpop.f32.mrf.mxu0
          %v875 = vadd.f32 0.0, %v874
          %v876 = vpop.f32.mrf.mxu0
          %v877 = vadd.f32 0.0, %v876
          %878 = vmatmul.bf16.gmra.mxu0 %v581
          %v879 = vpop.f32.mrf.mxu0
          %v880 = vadd.f32 0.0, %v879
          %v881 = vpop.f32.mrf.mxu0
          %v882 = vadd.f32 0.0, %v881
          %883 = vmatmul.bf16.gmra.mxu0 %v583
          %v884 = vpop.f32.mrf.mxu0
          %v885 = vadd.f32 0.0, %v884
          %v886 = vpop.f32.mrf.mxu0
          %v887 = vadd.f32 0.0, %v886
          %888 = vmatmul.bf16.gmra.mxu0 %v585
          %v889 = vpop.f32.mrf.mxu0
          %v890 = vadd.f32 0.0, %v889
          %v891 = vpop.f32.mrf.mxu0
          %v892 = vadd.f32 0.0, %v891
          %893 = vmatmul.bf16.gmra.mxu0 %v587
          %v894 = vpop.f32.mrf.mxu0
          %v895 = vadd.f32 0.0, %v894
          %v896 = vpop.f32.mrf.mxu0
          %v897 = vadd.f32 0.0, %v896
          %898 = vmatmul.bf16.gmra.mxu0 %v589
          %v899 = vpop.f32.mrf.mxu0
          %v900 = vadd.f32 0.0, %v899
          %v901 = vpop.f32.mrf.mxu0
          %v902 = vadd.f32 0.0, %v901
          %903 = vmatmul.bf16.gmra.mxu0 %v591
          %v904 = vpop.f32.mrf.mxu0
          %v905 = vadd.f32 0.0, %v904
          %v906 = vpop.f32.mrf.mxu0
          %v907 = vadd.f32 0.0, %v906
          %908 = vmatmul.bf16.gmra.mxu0 %v593
          %v909 = vpop.f32.mrf.mxu0
          %v910 = vadd.f32 0.0, %v909
          %v911 = vpop.f32.mrf.mxu0
          %v912 = vadd.f32 0.0, %v911
          %913 = vmatmul.bf16.gmra.mxu0 %v595
          %v914 = vpop.f32.mrf.mxu0
          %v915 = vadd.f32 0.0, %v914
          %v916 = vpop.f32.mrf.mxu0
          %v917 = vadd.f32 0.0, %v916
          %918 = vmatmul.bf16.gmra.mxu0 %v597
          %v919 = vpop.f32.mrf.mxu0
          %v920 = vadd.f32 0.0, %v919
          %v921 = vpop.f32.mrf.mxu0
          %v922 = vadd.f32 0.0, %v921
          %923 = vmatmul.bf16.gmra.mxu0 %v599
          %v924 = vpop.f32.mrf.mxu0
          %v925 = vadd.f32 0.0, %v924
          %v926 = vpop.f32.mrf.mxu0
          %v927 = vadd.f32 0.0, %v926
          %928 = vmatmul.bf16.gmra.mxu0 %v601
          %v929 = vpop.f32.mrf.mxu0
          %v930 = vadd.f32 0.0, %v929
          %v931 = vpop.f32.mrf.mxu0
          %v932 = vadd.f32 0.0, %v931
          %933 = vmatmul.bf16.gmra.mxu0 %v603
          %v934 = vpop.f32.mrf.mxu0
          %v935 = vadd.f32 0.0, %v934
          %v936 = vpop.f32.mrf.mxu0
          %v937 = vadd.f32 0.0, %v936
          %938 = vmatmul.bf16.gmra.mxu0 %v605
          %v939 = vpop.f32.mrf.mxu0
          %v940 = vadd.f32 0.0, %v939
          %v941 = vpop.f32.mrf.mxu0
          %v942 = vadd.f32 0.0, %v941
          %943 = vmatmul.bf16.gmra.mxu0 %v607
          %v944 = vpop.f32.mrf.mxu0
          %v945 = vadd.f32 0.0, %v944
          %v946 = vpop.f32.mrf.mxu0
          %v947 = vadd.f32 0.0, %v946
          %948 = vmatmul.bf16.gmra.mxu0 %v609
          %v949 = vpop.f32.mrf.mxu0
          %v950 = vadd.f32 0.0, %v949
          %v951 = vpop.f32.mrf.mxu0
          %v952 = vadd.f32 0.0, %v951
          %953 = vmatmul.bf16.gmra.mxu0 %v611
          %v954 = vpop.f32.mrf.mxu0
          %v955 = vadd.f32 0.0, %v954
          %v956 = vpop.f32.mrf.mxu0
          %v957 = vadd.f32 0.0, %v956
          %958 = vmatmul.bf16.gmra.mxu0 %v613
          %v959 = vpop.f32.mrf.mxu0
          %v960 = vadd.f32 0.0, %v959
          %v961 = vpop.f32.mrf.mxu0
          %v962 = vadd.f32 0.0, %v961
          %963 = vmatmul.bf16.gmra.mxu0 %v615
          %v964 = vpop.f32.mrf.mxu0
          %v965 = vadd.f32 0.0, %v964
          %v966 = vpop.f32.mrf.mxu0
          %v967 = vadd.f32 0.0, %v966
          %968 = vdwg.mxu0
          %969 = vmatpush.bf16.msra.mxu0 0
          %970 = vmatpush.bf16.msra.mxu0 0
          %971 = vmatpush.bf16.msra.mxu0 0
          %972 = vmatpush.bf16.msra.mxu0 0
          %973 = vmatpush.bf16.msra.mxu0 0
          %974 = vmatpush.bf16.msra.mxu0 0
          %975 = vmatpush.bf16.msra.mxu0 0
          %976 = vmatpush.bf16.msra.mxu0 %v693
          %977 = vmatmul.bf16.gmra.mxu0 %v705
          %v978 = vpop.f32.mrf.mxu0
          %v979 = vadd.f32 %v810, %v978
          %v980 = vpop.f32.mrf.mxu0
          %v981 = vadd.f32 %v812, %v980
          %982 = vmatmul.bf16.gmra.mxu0 %v708
          %v983 = vpop.f32.mrf.mxu0
          %v984 = vadd.f32 %v815, %v983
          %v985 = vpop.f32.mrf.mxu0
          %v986 = vadd.f32 %v817, %v985
          %987 = vmatmul.bf16.gmra.mxu0 %v711
          %v988 = vpop.f32.mrf.mxu0
          %v989 = vadd.f32 %v820, %v988
          %v990 = vpop.f32.mrf.mxu0
          %v991 = vadd.f32 %v822, %v990
          %992 = vmatmul.bf16.gmra.mxu0 %v714
          %v993 = vpop.f32.mrf.mxu0
          %v994 = vadd.f32 %v825, %v993
          %v995 = vpop.f32.mrf.mxu0
          %v996 = vadd.f32 %v827, %v995
          %997 = vmatmul.bf16.gmra.mxu0 %v717
          %v998 = vpop.f32.mrf.mxu0
          %v999 = vadd.f32 %v830, %v998
          %v1000 = vpop.f32.mrf.mxu0
          %v1001 = vadd.f32 %v832, %v1000
          %1002 = vmatmul.bf16.gmra.mxu0 %v720
          %v1003 = vpop.f32.mrf.mxu0
          %v1004 = vadd.f32 %v835, %v1003
          %v1005 = vpop.f32.mrf.mxu0
          %v1006 = vadd.f32 %v837, %v1005
          %1007 = vmatmul.bf16.gmra.mxu0 %v723
          %v1008 = vpop.f32.mrf.mxu0
          %v1009 = vadd.f32 %v840, %v1008
          %v1010 = vpop.f32.mrf.mxu0
          %v1011 = vadd.f32 %v842, %v1010
          %1012 = vmatmul.bf16.gmra.mxu0 %v726
          %v1013 = vpop.f32.mrf.mxu0
          %v1014 = vadd.f32 %v845, %v1013
          %v1015 = vpop.f32.mrf.mxu0
          %v1016 = vadd.f32 %v847, %v1015
          %1017 = vmatmul.bf16.gmra.mxu0 %v729
          %v1018 = vpop.f32.mrf.mxu0
          %v1019 = vadd.f32 %v850, %v1018
          %v1020 = vpop.f32.mrf.mxu0
          %v1021 = vadd.f32 %v852, %v1020
          %1022 = vmatmul.bf16.gmra.mxu0 %v732
          %v1023 = vpop.f32.mrf.mxu0
          %v1024 = vadd.f32 %v855, %v1023
          %v1025 = vpop.f32.mrf.mxu0
          %v1026 = vadd.f32 %v857, %v1025
          %1027 = vmatmul.bf16.gmra.mxu0 %v735
          %v1028 = vpop.f32.mrf.mxu0
          %v1029 = vadd.f32 %v860, %v1028
          %v1030 = vpop.f32.mrf.mxu0
          %v1031 = vadd.f32 %v862, %v1030
          %1032 = vmatmul.bf16.gmra.mxu0 %v738
          %v1033 = vpop.f32.mrf.mxu0
          %v1034 = vadd.f32 %v865, %v1033
          %v1035 = vpop.f32.mrf.mxu0
          %v1036 = vadd.f32 %v867, %v1035
          %1037 = vmatmul.bf16.gmra.mxu0 %v741
          %v1038 = vpop.f32.mrf.mxu0
          %v1039 = vadd.f32 %v870, %v1038
          %v1040 = vpop.f32.mrf.mxu0
          %v1041 = vadd.f32 %v872, %v1040
          %1042 = vmatmul.bf16.gmra.mxu0 %v744
          %v1043 = vpop.f32.mrf.mxu0
          %v1044 = vadd.f32 %v875, %v1043
          %v1045 = vpop.f32.mrf.mxu0
          %v1046 = vadd.f32 %v877, %v1045
          %1047 = vmatmul.bf16.gmra.mxu0 %v747
          %v1048 = vpop.f32.mrf.mxu0
          %v1049 = vadd.f32 %v880, %v1048
          %v1050 = vpop.f32.mrf.mxu0
          %v1051 = vadd.f32 %v882, %v1050
          %1052 = vmatmul.bf16.gmra.mxu0 %v750
          %v1053 = vpop.f32.mrf.mxu0
          %v1054 = vadd.f32 %v885, %v1053
          %v1055 = vpop.f32.mrf.mxu0
          %v1056 = vadd.f32 %v887, %v1055
          %1057 = vmatmul.bf16.gmra.mxu0 %v753
          %v1058 = vpop.f32.mrf.mxu0
          %v1059 = vadd.f32 %v890, %v1058
          %v1060 = vpop.f32.mrf.mxu0
          %v1061 = vadd.f32 %v892, %v1060
          %1062 = vmatmul.bf16.gmra.mxu0 %v756
          %v1063 = vpop.f32.mrf.mxu0
          %v1064 = vadd.f32 %v895, %v1063
          %v1065 = vpop.f32.mrf.mxu0
          %v1066 = vadd.f32 %v897, %v1065
          %1067 = vmatmul.bf16.gmra.mxu0 %v759
          %v1068 = vpop.f32.mrf.mxu0
          %v1069 = vadd.f32 %v900, %v1068
          %v1070 = vpop.f32.mrf.mxu0
          %v1071 = vadd.f32 %v902, %v1070
          %1072 = vmatmul.bf16.gmra.mxu0 %v762
          %v1073 = vpop.f32.mrf.mxu0
          %v1074 = vadd.f32 %v905, %v1073
          %v1075 = vpop.f32.mrf.mxu0
          %v1076 = vadd.f32 %v907, %v1075
          %1077 = vmatmul.bf16.gmra.mxu0 %v765
          %v1078 = vpop.f32.mrf.mxu0
          %v1079 = vadd.f32 %v910, %v1078
          %v1080 = vpop.f32.mrf.mxu0
          %v1081 = vadd.f32 %v912, %v1080
          %1082 = vmatmul.bf16.gmra.mxu0 %v768
          %v1083 = vpop.f32.mrf.mxu0
          %v1084 = vadd.f32 %v915, %v1083
          %v1085 = vpop.f32.mrf.mxu0
          %v1086 = vadd.f32 %v917, %v1085
          %1087 = vmatmul.bf16.gmra.mxu0 %v771
          %v1088 = vpop.f32.mrf.mxu0
          %v1089 = vadd.f32 %v920, %v1088
          %v1090 = vpop.f32.mrf.mxu0
          %v1091 = vadd.f32 %v922, %v1090
          %1092 = vmatmul.bf16.gmra.mxu0 %v774
          %v1093 = vpop.f32.mrf.mxu0
          %v1094 = vadd.f32 %v925, %v1093
          %v1095 = vpop.f32.mrf.mxu0
          %v1096 = vadd.f32 %v927, %v1095
          %1097 = vmatmul.bf16.gmra.mxu0 %v777
          %v1098 = vpop.f32.mrf.mxu0
          %v1099 = vadd.f32 %v930, %v1098
          %v1100 = vpop.f32.mrf.mxu0
          %v1101 = vadd.f32 %v932, %v1100
          %1102 = vmatmul.bf16.gmra.mxu0 %v780
          %v1103 = vpop.f32.mrf.mxu0
          %v1104 = vadd.f32 %v935, %v1103
          %v1105 = vpop.f32.mrf.mxu0
          %v1106 = vadd.f32 %v937, %v1105
          %1107 = vmatmul.bf16.gmra.mxu0 %v783
          %v1108 = vpop.f32.mrf.mxu0
          %v1109 = vadd.f32 %v940, %v1108
          %v1110 = vpop.f32.mrf.mxu0
          %v1111 = vadd.f32 %v942, %v1110
          %1112 = vmatmul.bf16.gmra.mxu0 %v786
          %v1113 = vpop.f32.mrf.mxu0
          %v1114 = vadd.f32 %v945, %v1113
          %v1115 = vpop.f32.mrf.mxu0
          %v1116 = vadd.f32 %v947, %v1115
          %1117 = vmatmul.bf16.gmra.mxu0 %v789
          %v1118 = vpop.f32.mrf.mxu0
          %v1119 = vadd.f32 %v950, %v1118
          %v1120 = vpop.f32.mrf.mxu0
          %v1121 = vadd.f32 %v952, %v1120
          %1122 = vmatmul.bf16.gmra.mxu0 %v792
          %v1123 = vpop.f32.mrf.mxu0
          %v1124 = vadd.f32 %v955, %v1123
          %v1125 = vpop.f32.mrf.mxu0
          %v1126 = vadd.f32 %v957, %v1125
          %1127 = vmatmul.bf16.gmra.mxu0 %v795
          %v1128 = vpop.f32.mrf.mxu0
          %v1129 = vadd.f32 %v960, %v1128
          %v1130 = vpop.f32.mrf.mxu0
          %v1131 = vadd.f32 %v962, %v1130
          %1132 = vmatmul.bf16.gmra.mxu0 %v798
          %v1133 = vpop.f32.mrf.mxu0
          %v1134 = vadd.f32 %v965, %v1133
          %v1135 = vpop.f32.mrf.mxu0
          %v1136 = vadd.f32 %v967, %v1135
          %1137 = vdwg.mxu0
          %v1138 = vpack.c.bf16 %v979, %v979
          %v1139 = vpack.c.bf16 %v981, %v981
          %v1140 = vpack.c.bf16 %v984, %v984
          %v1141 = vpack.c.bf16 %v986, %v986
          %v1142 = vpack.c.bf16 %v989, %v989
          %v1143 = vpack.c.bf16 %v991, %v991
          %v1144 = vpack.c.bf16 %v994, %v994
          %v1145 = vpack.c.bf16 %v996, %v996
          %v1146 = vpack.c.bf16 %v999, %v999
          %v1147 = vpack.c.bf16 %v1001, %v1001
          %v1148 = vpack.c.bf16 %v1004, %v1004
          %v1149 = vpack.c.bf16 %v1006, %v1006
          %v1150 = vpack.c.bf16 %v1009, %v1009
          %v1151 = vpack.c.bf16 %v1011, %v1011
          %v1152 = vpack.c.bf16 %v1014, %v1014
          %v1153 = vpack.c.bf16 %v1016, %v1016
          %v1154 = vpack.c.bf16 %v1019, %v1019
          %v1155 = vpack.c.bf16 %v1021, %v1021
          %v1156 = vpack.c.bf16 %v1024, %v1024
          %v1157 = vpack.c.bf16 %v1026, %v1026
          %v1158 = vpack.c.bf16 %v1029, %v1029
          %v1159 = vpack.c.bf16 %v1031, %v1031
          %v1160 = vpack.c.bf16 %v1034, %v1034
          %v1161 = vpack.c.bf16 %v1036, %v1036
          %v1162 = vpack.c.bf16 %v1039, %v1039
          %v1163 = vpack.c.bf16 %v1041, %v1041
          %v1164 = vpack.c.bf16 %v1044, %v1044
          %v1165 = vpack.c.bf16 %v1046, %v1046
          %v1166 = vpack.c.bf16 %v1049, %v1049
          %v1167 = vpack.c.bf16 %v1051, %v1051
          %v1168 = vpack.c.bf16 %v1054, %v1054
          %v1169 = vpack.c.bf16 %v1056, %v1056
          %v1170 = vpack.c.bf16 %v1059, %v1059
          %v1171 = vpack.c.bf16 %v1061, %v1061
          %v1172 = vpack.c.bf16 %v1064, %v1064
          %v1173 = vpack.c.bf16 %v1066, %v1066
          %v1174 = vpack.c.bf16 %v1069, %v1069
          %v1175 = vpack.c.bf16 %v1071, %v1071
          %v1176 = vpack.c.bf16 %v1074, %v1074
          %v1177 = vpack.c.bf16 %v1076, %v1076
          %v1178 = vpack.c.bf16 %v1079, %v1079
          %v1179 = vpack.c.bf16 %v1081, %v1081
          %v1180 = vpack.c.bf16 %v1084, %v1084
          %v1181 = vpack.c.bf16 %v1086, %v1086
          %v1182 = vpack.c.bf16 %v1089, %v1089
          %v1183 = vpack.c.bf16 %v1091, %v1091
          %v1184 = vpack.c.bf16 %v1094, %v1094
          %v1185 = vpack.c.bf16 %v1096, %v1096
          %v1186 = vpack.c.bf16 %v1099, %v1099
          %v1187 = vpack.c.bf16 %v1101, %v1101
          %v1188 = vpack.c.bf16 %v1104, %v1104
          %v1189 = vpack.c.bf16 %v1106, %v1106
          %v1190 = vpack.c.bf16 %v1109, %v1109
          %v1191 = vpack.c.bf16 %v1111, %v1111
          %v1192 = vpack.c.bf16 %v1114, %v1114
          %v1193 = vpack.c.bf16 %v1116, %v1116
          %v1194 = vpack.c.bf16 %v1119, %v1119
          %v1195 = vpack.c.bf16 %v1121, %v1121
          %v1196 = vpack.c.bf16 %v1124, %v1124
          %v1197 = vpack.c.bf16 %v1126, %v1126
          %v1198 = vpack.c.bf16 %v1129, %v1129
          %v1199 = vpack.c.bf16 %v1131, %v1131
          %v1200 = vpack.c.bf16 %v1134, %v1134
          %v1201 = vpack.c.bf16 %v1136, %v1136
          %s1202 = sshra.s32 %s266, 3
          %s1203 = sand.u32 %s266, 7
          %s1204 = smul.addr %s1202, 4
          %s1205 = scalar_lea.vmem [#allocation2], %s1204
          %vm1206 = vcmask 257024
          %1207 = vst.msk [vmem:[%s1205] sm:$0xf] %vm1206, %v1138
          %1208 = vst.msk [vmem:[%s1205 + $0x4] sm:$0xf] %vm1206, %v1139
          %1209 = vst.msk [vmem:[%s1205 + $0x8] sm:$0xf] %vm1206, %v1140
          %1210 = vst.msk [vmem:[%s1205 + $0xc] sm:$0xf] %vm1206, %v1141
          %1211 = vst.msk [vmem:[%s1205 + $0x10] sm:$0xf] %vm1206, %v1142
          %1212 = vst.msk [vmem:[%s1205 + $0x14] sm:$0xf] %vm1206, %v1143
          %1213 = vst.msk [vmem:[%s1205 + $0x18] sm:$0xf] %vm1206, %v1144
          %1214 = vst.msk [vmem:[%s1205 + $0x1c] sm:$0xf] %vm1206, %v1145
          %1215 = vst.msk [vmem:[%s1205 + $0x20] sm:$0xf] %vm1206, %v1146
          %1216 = vst.msk [vmem:[%s1205 + $0x24] sm:$0xf] %vm1206, %v1147
          %1217 = vst.msk [vmem:[%s1205 + $0x28] sm:$0xf] %vm1206, %v1148
          %1218 = vst.msk [vmem:[%s1205 + $0x2c] sm:$0xf] %vm1206, %v1149
          %1219 = vst.msk [vmem:[%s1205 + $0x30] sm:$0xf] %vm1206, %v1150
          %1220 = vst.msk [vmem:[%s1205 + $0x34] sm:$0xf] %vm1206, %v1151
          %1221 = vst.msk [vmem:[%s1205 + $0x38] sm:$0xf] %vm1206, %v1152
          %1222 = vst.msk [vmem:[%s1205 + $0x3c] sm:$0xf] %vm1206, %v1153
          %1223 = vst.msk [vmem:[%s1205 + $0x40] sm:$0xf] %vm1206, %v1154
          %1224 = vst.msk [vmem:[%s1205 + $0x44] sm:$0xf] %vm1206, %v1155
          %1225 = vst.msk [vmem:[%s1205 + $0x48] sm:$0xf] %vm1206, %v1156
          %1226 = vst.msk [vmem:[%s1205 + $0x4c] sm:$0xf] %vm1206, %v1157
          %1227 = vst.msk [vmem:[%s1205 + $0x50] sm:$0xf] %vm1206, %v1158
          %1228 = vst.msk [vmem:[%s1205 + $0x54] sm:$0xf] %vm1206, %v1159
          %1229 = vst.msk [vmem:[%s1205 + $0x58] sm:$0xf] %vm1206, %v1160
          %1230 = vst.msk [vmem:[%s1205 + $0x5c] sm:$0xf] %vm1206, %v1161
          %1231 = vst.msk [vmem:[%s1205 + $0x60] sm:$0xf] %vm1206, %v1162
          %1232 = vst.msk [vmem:[%s1205 + $0x64] sm:$0xf] %vm1206, %v1163
          %1233 = vst.msk [vmem:[%s1205 + $0x68] sm:$0xf] %vm1206, %v1164
          %1234 = vst.msk [vmem:[%s1205 + $0x6c] sm:$0xf] %vm1206, %v1165
          %1235 = vst.msk [vmem:[%s1205 + $0x70] sm:$0xf] %vm1206, %v1166
          %1236 = vst.msk [vmem:[%s1205 + $0x74] sm:$0xf] %vm1206, %v1167
          %1237 = vst.msk [vmem:[%s1205 + $0x78] sm:$0xf] %vm1206, %v1168
          %1238 = vst.msk [vmem:[%s1205 + $0x7c] sm:$0xf] %vm1206, %v1169
          %1239 = vst.msk [vmem:[%s1205 + $0x80] sm:$0xf] %vm1206, %v1170
          %1240 = vst.msk [vmem:[%s1205 + $0x84] sm:$0xf] %vm1206, %v1171
          %1241 = vst.msk [vmem:[%s1205 + $0x88] sm:$0xf] %vm1206, %v1172
          %1242 = vst.msk [vmem:[%s1205 + $0x8c] sm:$0xf] %vm1206, %v1173
          %1243 = vst.msk [vmem:[%s1205 + $0x90] sm:$0xf] %vm1206, %v1174
          %1244 = vst.msk [vmem:[%s1205 + $0x94] sm:$0xf] %vm1206, %v1175
          %1245 = vst.msk [vmem:[%s1205 + $0x98] sm:$0xf] %vm1206, %v1176
          %1246 = vst.msk [vmem:[%s1205 + $0x9c] sm:$0xf] %vm1206, %v1177
          %1247 = vst.msk [vmem:[%s1205 + $0xa0] sm:$0xf] %vm1206, %v1178
          %1248 = vst.msk [vmem:[%s1205 + $0xa4] sm:$0xf] %vm1206, %v1179
          %1249 = vst.msk [vmem:[%s1205 + $0xa8] sm:$0xf] %vm1206, %v1180
          %1250 = vst.msk [vmem:[%s1205 + $0xac] sm:$0xf] %vm1206, %v1181
          %1251 = vst.msk [vmem:[%s1205 + $0xb0] sm:$0xf] %vm1206, %v1182
          %1252 = vst.msk [vmem:[%s1205 + $0xb4] sm:$0xf] %vm1206, %v1183
          %1253 = vst.msk [vmem:[%s1205 + $0xb8] sm:$0xf] %vm1206, %v1184
          %1254 = vst.msk [vmem:[%s1205 + $0xbc] sm:$0xf] %vm1206, %v1185
          %1255 = vst.msk [vmem:[%s1205 + $0xc0] sm:$0xf] %vm1206, %v1186
          %1256 = vst.msk [vmem:[%s1205 + $0xc4] sm:$0xf] %vm1206, %v1187
          %1257 = vst.msk [vmem:[%s1205 + $0xc8] sm:$0xf] %vm1206, %v1188
          %1258 = vst.msk [vmem:[%s1205 + $0xcc] sm:$0xf] %vm1206, %v1189
          %1259 = vst.msk [vmem:[%s1205 + $0xd0] sm:$0xf] %vm1206, %v1190
          %1260 = vst.msk [vmem:[%s1205 + $0xd4] sm:$0xf] %vm1206, %v1191
          %1261 = vst.msk [vmem:[%s1205 + $0xd8] sm:$0xf] %vm1206, %v1192
          %1262 = vst.msk [vmem:[%s1205 + $0xdc] sm:$0xf] %vm1206, %v1193
          %1263 = vst.msk [vmem:[%s1205 + $0xe0] sm:$0xf] %vm1206, %v1194
          %1264 = vst.msk [vmem:[%s1205 + $0xe4] sm:$0xf] %vm1206, %v1195
          %1265 = vst.msk [vmem:[%s1205 + $0xe8] sm:$0xf] %vm1206, %v1196
          %1266 = vst.msk [vmem:[%s1205 + $0xec] sm:$0xf] %vm1206, %v1197
          %1267 = vst.msk [vmem:[%s1205 + $0xf0] sm:$0xf] %vm1206, %v1198
          %1268 = vst.msk [vmem:[%s1205 + $0xf4] sm:$0xf] %vm1206, %v1199
          %1269 = vst.msk [vmem:[%s1205 + $0xf8] sm:$0xf] %vm1206, %v1200
          %1270 = vst.msk [vmem:[%s1205 + $0xfc] sm:$0xf] %vm1206, %v1201
          %v1271 = vld [vmem:[#allocation3] sm:$0xff]
          %vm1272 = vcmask 261120
          %v1273 = vsel %vm1272, %v979, 0.0
          %v1274 = vsel %vm1272, %v981, 0.0
          %v1275 = vadd.f32 %v1273, %v1274
          %v1276 = vsel %vm1272, %v984, 0.0
          %v1277 = vadd.f32 %v1275, %v1276
          %v1278 = vsel %vm1272, %v986, 0.0
          %v1279 = vadd.f32 %v1277, %v1278
          %v1280 = vsel %vm1272, %v989, 0.0
          %v1281 = vadd.f32 %v1279, %v1280
          %v1282 = vsel %vm1272, %v991, 0.0
          %v1283 = vadd.f32 %v1281, %v1282
          %v1284 = vsel %vm1272, %v994, 0.0
          %v1285 = vadd.f32 %v1283, %v1284
          %v1286 = vsel %vm1272, %v996, 0.0
          %v1287 = vadd.f32 %v1285, %v1286
          %v1288 = vsel %vm1272, %v999, 0.0
          %v1289 = vadd.f32 %v1287, %v1288
          %v1290 = vsel %vm1272, %v1001, 0.0
          %v1291 = vadd.f32 %v1289, %v1290
          %v1292 = vsel %vm1272, %v1004, 0.0
          %v1293 = vadd.f32 %v1291, %v1292
          %v1294 = vsel %vm1272, %v1006, 0.0
          %v1295 = vadd.f32 %v1293, %v1294
          %v1296 = vsel %vm1272, %v1009, 0.0
          %v1297 = vadd.f32 %v1295, %v1296
          %v1298 = vsel %vm1272, %v1011, 0.0
          %v1299 = vadd.f32 %v1297, %v1298
          %v1300 = vsel %vm1272, %v1014, 0.0
          %v1301 = vadd.f32 %v1299, %v1300
          %v1302 = vsel %vm1272, %v1016, 0.0
          %v1303 = vadd.f32 %v1301, %v1302
          %v1304 = vsel %vm1272, %v1019, 0.0
          %v1305 = vadd.f32 %v1303, %v1304
          %v1306 = vsel %vm1272, %v1021, 0.0
          %v1307 = vadd.f32 %v1305, %v1306
          %v1308 = vsel %vm1272, %v1024, 0.0
          %v1309 = vadd.f32 %v1307, %v1308
          %v1310 = vsel %vm1272, %v1026, 0.0
          %v1311 = vadd.f32 %v1309, %v1310
          %v1312 = vsel %vm1272, %v1029, 0.0
          %v1313 = vadd.f32 %v1311, %v1312
          %v1314 = vsel %vm1272, %v1031, 0.0
          %v1315 = vadd.f32 %v1313, %v1314
          %v1316 = vsel %vm1272, %v1034, 0.0
          %v1317 = vadd.f32 %v1315, %v1316
          %v1318 = vsel %vm1272, %v1036, 0.0
          %v1319 = vadd.f32 %v1317, %v1318
          %v1320 = vsel %vm1272, %v1039, 0.0
          %v1321 = vadd.f32 %v1319, %v1320
          %v1322 = vsel %vm1272, %v1041, 0.0
          %v1323 = vadd.f32 %v1321, %v1322
          %v1324 = vsel %vm1272, %v1044, 0.0
          %v1325 = vadd.f32 %v1323, %v1324
          %v1326 = vsel %vm1272, %v1046, 0.0
          %v1327 = vadd.f32 %v1325, %v1326
          %v1328 = vsel %vm1272, %v1049, 0.0
          %v1329 = vadd.f32 %v1327, %v1328
          %v1330 = vsel %vm1272, %v1051, 0.0
          %v1331 = vadd.f32 %v1329, %v1330
          %v1332 = vsel %vm1272, %v1054, 0.0
          %v1333 = vadd.f32 %v1331, %v1332
          %v1334 = vsel %vm1272, %v1056, 0.0
          %v1335 = vadd.f32 %v1333, %v1334
          %v1336 = vsel %vm1272, %v1059, 0.0
          %v1337 = vadd.f32 %v1335, %v1336
          %v1338 = vsel %vm1272, %v1061, 0.0
          %v1339 = vadd.f32 %v1337, %v1338
          %v1340 = vsel %vm1272, %v1064, 0.0
          %v1341 = vadd.f32 %v1339, %v1340
          %v1342 = vsel %vm1272, %v1066, 0.0
          %v1343 = vadd.f32 %v1341, %v1342
          %v1344 = vsel %vm1272, %v1069, 0.0
          %v1345 = vadd.f32 %v1343, %v1344
          %v1346 = vsel %vm1272, %v1071, 0.0
          %v1347 = vadd.f32 %v1345, %v1346
          %v1348 = vsel %vm1272, %v1074, 0.0
          %v1349 = vadd.f32 %v1347, %v1348
          %v1350 = vsel %vm1272, %v1076, 0.0
          %v1351 = vadd.f32 %v1349, %v1350
          %v1352 = vsel %vm1272, %v1079, 0.0
          %v1353 = vadd.f32 %v1351, %v1352
          %v1354 = vsel %vm1272, %v1081, 0.0
          %v1355 = vadd.f32 %v1353, %v1354
          %v1356 = vsel %vm1272, %v1084, 0.0
          %v1357 = vadd.f32 %v1355, %v1356
          %v1358 = vsel %vm1272, %v1086, 0.0
          %v1359 = vadd.f32 %v1357, %v1358
          %v1360 = vsel %vm1272, %v1089, 0.0
          %v1361 = vadd.f32 %v1359, %v1360
          %v1362 = vsel %vm1272, %v1091, 0.0
          %v1363 = vadd.f32 %v1361, %v1362
          %v1364 = vsel %vm1272, %v1094, 0.0
          %v1365 = vadd.f32 %v1363, %v1364
          %v1366 = vsel %vm1272, %v1096, 0.0
          %v1367 = vadd.f32 %v1365, %v1366
          %v1368 = vsel %vm1272, %v1099, 0.0
          %v1369 = vadd.f32 %v1367, %v1368
          %v1370 = vsel %vm1272, %v1101, 0.0
          %v1371 = vadd.f32 %v1369, %v1370
          %v1372 = vsel %vm1272, %v1104, 0.0
          %v1373 = vadd.f32 %v1371, %v1372
          %v1374 = vsel %vm1272, %v1106, 0.0
          %v1375 = vadd.f32 %v1373, %v1374
          %v1376 = vsel %vm1272, %v1109, 0.0
          %v1377 = vadd.f32 %v1375, %v1376
          %v1378 = vsel %vm1272, %v1111, 0.0
          %v1379 = vadd.f32 %v1377, %v1378
          %v1380 = vsel %vm1272, %v1114, 0.0
          %v1381 = vadd.f32 %v1379, %v1380
          %v1382 = vsel %vm1272, %v1116, 0.0
          %v1383 = vadd.f32 %v1381, %v1382
          %v1384 = vsel %vm1272, %v1119, 0.0
          %v1385 = vadd.f32 %v1383, %v1384
          %v1386 = vsel %vm1272, %v1121, 0.0
          %v1387 = vadd.f32 %v1385, %v1386
          %v1388 = vsel %vm1272, %v1124, 0.0
          %v1389 = vadd.f32 %v1387, %v1388
          %v1390 = vsel %vm1272, %v1126, 0.0
          %v1391 = vadd.f32 %v1389, %v1390
          %v1392 = vsel %vm1272, %v1129, 0.0
          %v1393 = vadd.f32 %v1391, %v1392
          %v1394 = vsel %vm1272, %v1131, 0.0
          %v1395 = vadd.f32 %v1393, %v1394
          %v1396 = vsel %vm1272, %v1134, 0.0
          %v1397 = vadd.f32 %v1395, %v1396
          %v1398 = vsel %vm1272, %v1136, 0.0
          %v1399 = vadd.f32 %v1397, %v1398
          %v1400 = vadd.f32 %v1271, %v1399
          %1401 = vst.msk [vmem:[#allocation3] sm:$0xff] %vm1272, %v1400
          %v1402 = vld [vmem:[#allocation4] sm:$0xff]
          %v1403 = vmul.f32 %v979, %v979
          %v1404 = vmul.f32 %v981, %v981
          %v1405 = vmul.f32 %v984, %v984
          %v1406 = vmul.f32 %v986, %v986
          %v1407 = vmul.f32 %v989, %v989
          %v1408 = vmul.f32 %v991, %v991
          %v1409 = vmul.f32 %v994, %v994
          %v1410 = vmul.f32 %v996, %v996
          %v1411 = vmul.f32 %v999, %v999
          %v1412 = vmul.f32 %v1001, %v1001
          %v1413 = vmul.f32 %v1004, %v1004
          %v1414 = vmul.f32 %v1006, %v1006
          %v1415 = vmul.f32 %v1009, %v1009
          %v1416 = vmul.f32 %v1011, %v1011
          %v1417 = vmul.f32 %v1014, %v1014
          %v1418 = vmul.f32 %v1016, %v1016
          %v1419 = vmul.f32 %v1019, %v1019
          %v1420 = vmul.f32 %v1021, %v1021
          %v1421 = vmul.f32 %v1024, %v1024
          %v1422 = vmul.f32 %v1026, %v1026
          %v1423 = vmul.f32 %v1029, %v1029
          %v1424 = vmul.f32 %v1031, %v1031
          %v1425 = vmul.f32 %v1034, %v1034
          %v1426 = vmul.f32 %v1036, %v1036
          %v1427 = vmul.f32 %v1039, %v1039
          %v1428 = vmul.f32 %v1041, %v1041
          %v1429 = vmul.f32 %v1044, %v1044
          %v1430 = vmul.f32 %v1046, %v1046
          %v1431 = vmul.f32 %v1049, %v1049
          %v1432 = vmul.f32 %v1051, %v1051
          %v1433 = vmul.f32 %v1054, %v1054
          %v1434 = vmul.f32 %v1056, %v1056
          %v1435 = vmul.f32 %v1059, %v1059
          %v1436 = vmul.f32 %v1061, %v1061
          %v1437 = vmul.f32 %v1064, %v1064
          %v1438 = vmul.f32 %v1066, %v1066
          %v1439 = vmul.f32 %v1069, %v1069
          %v1440 = vmul.f32 %v1071, %v1071
          %v1441 = vmul.f32 %v1074, %v1074
          %v1442 = vmul.f32 %v1076, %v1076
          %v1443 = vmul.f32 %v1079, %v1079
          %v1444 = vmul.f32 %v1081, %v1081
          %v1445 = vmul.f32 %v1084, %v1084
          %v1446 = vmul.f32 %v1086, %v1086
          %v1447 = vmul.f32 %v1089, %v1089
          %v1448 = vmul.f32 %v1091, %v1091
          %v1449 = vmul.f32 %v1094, %v1094
          %v1450 = vmul.f32 %v1096, %v1096
          %v1451 = vmul.f32 %v1099, %v1099
          %v1452 = vmul.f32 %v1101, %v1101
          %v1453 = vmul.f32 %v1104, %v1104
          %v1454 = vmul.f32 %v1106, %v1106
          %v1455 = vmul.f32 %v1109, %v1109
          %v1456 = vmul.f32 %v1111, %v1111
          %v1457 = vmul.f32 %v1114, %v1114
          %v1458 = vmul.f32 %v1116, %v1116
          %v1459 = vmul.f32 %v1119, %v1119
          %v1460 = vmul.f32 %v1121, %v1121
          %v1461 = vmul.f32 %v1124, %v1124
          %v1462 = vmul.f32 %v1126, %v1126
          %v1463 = vmul.f32 %v1129, %v1129
          %v1464 = vmul.f32 %v1131, %v1131
          %v1465 = vmul.f32 %v1134, %v1134
          %v1466 = vmul.f32 %v1136, %v1136
          %v1467 = vsel %vm1272, %v1403, 0.0
          %v1468 = vsel %vm1272, %v1404, 0.0
          %v1469 = vadd.f32 %v1467, %v1468
          %v1470 = vsel %vm1272, %v1405, 0.0
          %v1471 = vadd.f32 %v1469, %v1470
          %v1472 = vsel %vm1272, %v1406, 0.0
          %v1473 = vadd.f32 %v1471, %v1472
          %v1474 = vsel %vm1272, %v1407, 0.0
          %v1475 = vadd.f32 %v1473, %v1474
          %v1476 = vsel %vm1272, %v1408, 0.0
          %v1477 = vadd.f32 %v1475, %v1476
          %v1478 = vsel %vm1272, %v1409, 0.0
          %v1479 = vadd.f32 %v1477, %v1478
          %v1480 = vsel %vm1272, %v1410, 0.0
          %v1481 = vadd.f32 %v1479, %v1480
          %v1482 = vsel %vm1272, %v1411, 0.0
          %v1483 = vadd.f32 %v1481, %v1482
          %v1484 = vsel %vm1272, %v1412, 0.0
          %v1485 = vadd.f32 %v1483, %v1484
          %v1486 = vsel %vm1272, %v1413, 0.0
          %v1487 = vadd.f32 %v1485, %v1486
          %v1488 = vsel %vm1272, %v1414, 0.0
          %v1489 = vadd.f32 %v1487, %v1488
          %v1490 = vsel %vm1272, %v1415, 0.0
          %v1491 = vadd.f32 %v1489, %v1490
          %v1492 = vsel %vm1272, %v1416, 0.0
          %v1493 = vadd.f32 %v1491, %v1492
          %v1494 = vsel %vm1272, %v1417, 0.0
          %v1495 = vadd.f32 %v1493, %v1494
          %v1496 = vsel %vm1272, %v1418, 0.0
          %v1497 = vadd.f32 %v1495, %v1496
          %v1498 = vsel %vm1272, %v1419, 0.0
          %v1499 = vadd.f32 %v1497, %v1498
          %v1500 = vsel %vm1272, %v1420, 0.0
          %v1501 = vadd.f32 %v1499, %v1500
          %v1502 = vsel %vm1272, %v1421, 0.0
          %v1503 = vadd.f32 %v1501, %v1502
          %v1504 = vsel %vm1272, %v1422, 0.0
          %v1505 = vadd.f32 %v1503, %v1504
          %v1506 = vsel %vm1272, %v1423, 0.0
          %v1507 = vadd.f32 %v1505, %v1506
          %v1508 = vsel %vm1272, %v1424, 0.0
          %v1509 = vadd.f32 %v1507, %v1508
          %v1510 = vsel %vm1272, %v1425, 0.0
          %v1511 = vadd.f32 %v1509, %v1510
          %v1512 = vsel %vm1272, %v1426, 0.0
          %v1513 = vadd.f32 %v1511, %v1512
          %v1514 = vsel %vm1272, %v1427, 0.0
          %v1515 = vadd.f32 %v1513, %v1514
          %v1516 = vsel %vm1272, %v1428, 0.0
          %v1517 = vadd.f32 %v1515, %v1516
          %v1518 = vsel %vm1272, %v1429, 0.0
          %v1519 = vadd.f32 %v1517, %v1518
          %v1520 = vsel %vm1272, %v1430, 0.0
          %v1521 = vadd.f32 %v1519, %v1520
          %v1522 = vsel %vm1272, %v1431, 0.0
          %v1523 = vadd.f32 %v1521, %v1522
          %v1524 = vsel %vm1272, %v1432, 0.0
          %v1525 = vadd.f32 %v1523, %v1524
          %v1526 = vsel %vm1272, %v1433, 0.0
          %v1527 = vadd.f32 %v1525, %v1526
          %v1528 = vsel %vm1272, %v1434, 0.0
          %v1529 = vadd.f32 %v1527, %v1528
          %v1530 = vsel %vm1272, %v1435, 0.0
          %v1531 = vadd.f32 %v1529, %v1530
          %v1532 = vsel %vm1272, %v1436, 0.0
          %v1533 = vadd.f32 %v1531, %v1532
          %v1534 = vsel %vm1272, %v1437, 0.0
          %v1535 = vadd.f32 %v1533, %v1534
          %v1536 = vsel %vm1272, %v1438, 0.0
          %v1537 = vadd.f32 %v1535, %v1536
          %v1538 = vsel %vm1272, %v1439, 0.0
          %v1539 = vadd.f32 %v1537, %v1538
          %v1540 = vsel %vm1272, %v1440, 0.0
          %v1541 = vadd.f32 %v1539, %v1540
          %v1542 = vsel %vm1272, %v1441, 0.0
          %v1543 = vadd.f32 %v1541, %v1542
          %v1544 = vsel %vm1272, %v1442, 0.0
          %v1545 = vadd.f32 %v1543, %v1544
          %v1546 = vsel %vm1272, %v1443, 0.0
          %v1547 = vadd.f32 %v1545, %v1546
          %v1548 = vsel %vm1272, %v1444, 0.0
          %v1549 = vadd.f32 %v1547, %v1548
          %v1550 = vsel %vm1272, %v1445, 0.0
          %v1551 = vadd.f32 %v1549, %v1550
          %v1552 = vsel %vm1272, %v1446, 0.0
          %v1553 = vadd.f32 %v1551, %v1552
          %v1554 = vsel %vm1272, %v1447, 0.0
          %v1555 = vadd.f32 %v1553, %v1554
          %v1556 = vsel %vm1272, %v1448, 0.0
          %v1557 = vadd.f32 %v1555, %v1556
          %v1558 = vsel %vm1272, %v1449, 0.0
          %v1559 = vadd.f32 %v1557, %v1558
          %v1560 = vsel %vm1272, %v1450, 0.0
          %v1561 = vadd.f32 %v1559, %v1560
          %v1562 = vsel %vm1272, %v1451, 0.0
          %v1563 = vadd.f32 %v1561, %v1562
          %v1564 = vsel %vm1272, %v1452, 0.0
          %v1565 = vadd.f32 %v1563, %v1564
          %v1566 = vsel %vm1272, %v1453, 0.0
          %v1567 = vadd.f32 %v1565, %v1566
          %v1568 = vsel %vm1272, %v1454, 0.0
          %v1569 = vadd.f32 %v1567, %v1568
          %v1570 = vsel %vm1272, %v1455, 0.0
          %v1571 = vadd.f32 %v1569, %v1570
          %v1572 = vsel %vm1272, %v1456, 0.0
          %v1573 = vadd.f32 %v1571, %v1572
          %v1574 = vsel %vm1272, %v1457, 0.0
          %v1575 = vadd.f32 %v1573, %v1574
          %v1576 = vsel %vm1272, %v1458, 0.0
          %v1577 = vadd.f32 %v1575, %v1576
          %v1578 = vsel %vm1272, %v1459, 0.0
          %v1579 = vadd.f32 %v1577, %v1578
          %v1580 = vsel %vm1272, %v1460, 0.0
          %v1581 = vadd.f32 %v1579, %v1580
          %v1582 = vsel %vm1272, %v1461, 0.0
          %v1583 = vadd.f32 %v1581, %v1582
          %v1584 = vsel %vm1272, %v1462, 0.0
          %v1585 = vadd.f32 %v1583, %v1584
          %v1586 = vsel %vm1272, %v1463, 0.0
          %v1587 = vadd.f32 %v1585, %v1586
          %v1588 = vsel %vm1272, %v1464, 0.0
          %v1589 = vadd.f32 %v1587, %v1588
          %v1590 = vsel %vm1272, %v1465, 0.0
          %v1591 = vadd.f32 %v1589, %v1590
          %v1592 = vsel %vm1272, %v1466, 0.0
          %v1593 = vadd.f32 %v1591, %v1592
          %v1594 = vadd.f32 %v1402, %v1593
          %1595 = vst.msk [vmem:[#allocation4] sm:$0xff] %vm1272, %v1594
        $region52: #{generator_forward.8} parent=35 // pred_fallthru
          _
        %p1596 = scmp.eq.s32.totalorder %s21, 1
        %p1597 = pnand %p1596, %p268
        %p1598 = pneg %p1597
        // Predicated region
        $region53: #{generator_forward.8} parent=35 // pred_check
          _
        $region54: #{generator_forward.8} parent=35 // pred_check_branch
          %1600 = sbr.rel (%p1597) target = $region56
        $region55: #{generator_forward.8} parent=35 // pred_region
          %v1601 = vld [vmem:[#allocation3] sm:$0xff]
          %v1602 = vld [vmem:[#allocation4] sm:$0xff]
          %v1603 = vadd.f32 %v1601, 0.0
          %v1604 = vadd.f32 %v1602, 0.0
          %1606 = vrot.lane.b32.xlu0 %v1601, 120
          %v1607 = vpop.permute.xlu0 %1606
          %v1609 = vadd.f32 %v1603, %v1607
          %1611 = vrot.lane.b32.xlu0 %v1602, 120
          %v1612 = vpop.permute.xlu0 %1611
          %v1614 = vadd.f32 %v1604, %v1612
          %1615 = vrot.lane.b32.xlu0 %v1601, 112
          %v1616 = vpop.permute.xlu0 %1615
          %v1618 = vadd.f32 %v1609, %v1616
          %1619 = vrot.lane.b32.xlu0 %v1602, 112
          %v1620 = vpop.permute.xlu0 %1619
          %v1622 = vadd.f32 %v1614, %v1620
          %1623 = vrot.lane.b32.xlu0 %v1601, 104
          %v1624 = vpop.permute.xlu0 %1623
          %v1626 = vadd.f32 %v1618, %v1624
          %1627 = vrot.lane.b32.xlu0 %v1602, 104
          %v1628 = vpop.permute.xlu0 %1627
          %v1630 = vadd.f32 %v1622, %v1628
          %vm1631 = vcmask 64512
          %v1632 = vsel %vm1631, %v1626, 0.0
          %v1633 = vrot.slane %v1632, 4
          %v1634 = vadd.f32 %v1632, %v1633
          %v1635 = vrot.slane %v1634, 2
          %v1636 = vadd.f32 %v1634, %v1635
          %v1637 = vrot.slane %v1636, 1
          %v1638 = vadd.f32 %v1636, %v1637
          %v1639 = vmul.f32 %v1638, 0.00048828125
          %v1640 = vsel %vm1631, %v1630, 0.0
          %v1641 = vrot.slane %v1640, 4
          %v1642 = vadd.f32 %v1640, %v1641
          %v1643 = vrot.slane %v1642, 2
          %v1644 = vadd.f32 %v1642, %v1643
          %v1645 = vrot.slane %v1644, 1
          %v1646 = vadd.f32 %v1644, %v1645
          %v1647 = vmul.f32 %v1646, 0.00048828125
          %v1648 = vmul.f32 %v1639, %v1639
          %v1649 = vsub.f32 %v1647, %v1648
          %v1650 = vmax.f32 %v1649, 0.0
          %v1651 = vld [vmem:[#allocation7] sm:$0x1]
          %v1652 = vadd.f32 %v1650, 1e-05
          %v1653 = vrsqrt.pop %v1652
          %v1654 = vmul.f32 %v1653, %v1652
          %v1655 = vmul.f32 %v1654, %v1653
          %v1656 = vmul.f32 0.5, %v1655
          %v1657 = vsub.f32 1.5, %v1656
          %v1658 = vmul.f32 %v1653, %v1657
          %vm1659 = vweird.f32 %v1652
          %vm1660 = vweird.f32 %v1653
          %vm1661 = vmor %vm1659, %vm1660
          %v1662 = vsel %vm1661, %v1653, %v1658
          %v1663 = vmul.f32 %v1651, %v1662
          %v1664 = vld [vmem:[#allocation9] sm:$0x1]
          %v1665 = vmul.f32 %v1639, %v1663
          %v1666 = vsub.f32 %v1664, %v1665
          %v1668 = vperm.slane %v1663, 0
          %1669 = vrot.lane.b32.xlu0 %v1668, 8
          %v1670 = vpop.permute.xlu0 %1669
          %1672 = vrot.lane.b32.xlu0 %v1668, 16
          %v1673 = vpop.permute.xlu0 %1672
          %1675 = vrot.lane.b32.xlu0 %v1668, 24
          %v1676 = vpop.permute.xlu0 %1675
          %v1678 = vsel %vm1631, %v1663, %v1670
          %vm1679 = vcmask 130048
          %v1680 = vsel %vm1679, %v1678, %v1673
          %vm1681 = vcmask 195584
          %v1682 = vsel %vm1681, %v1680, %v1676
          %vm1683 = vcmask 253952
          %1684 = vst.msk [vmem:[#allocation5] sm:$0x1] %vm1683, %v1682
          %v1686 = vperm.slane %v1666, 0
          %1687 = vrot.lane.b32.xlu0 %v1686, 8
          %v1688 = vpop.permute.xlu0 %1687
          %1690 = vrot.lane.b32.xlu0 %v1686, 16
          %v1691 = vpop.permute.xlu0 %1690
          %1693 = vrot.lane.b32.xlu0 %v1686, 24
          %v1694 = vpop.permute.xlu0 %1693
          %v1696 = vsel %vm1631, %v1666, %v1688
          %v1697 = vsel %vm1679, %v1696, %v1691
          %v1698 = vsel %vm1681, %v1697, %v1694
          %1699 = vst.msk [vmem:[#allocation6] sm:$0x1] %vm1683, %v1698
        $region56: #{generator_forward.8} parent=35 // pred_fallthru
          _
        // Predicated region
        $region57: #{generator_forward.8} parent=35 // pred_check
          %p1700 = pneg %p1596
        $region58: #{generator_forward.8} parent=35 // pred_check_branch
          %1702 = sbr.rel (%p1700) target = $region60
        $region59: #{generator_forward.8} parent=35 // pred_region
          %s1703 = sshra.s32 %s266, 3
          %s1704 = sand.u32 %s266, 7
          %s1705 = smul.addr %s1703, 4
          %s1706 = scalar_lea.vmem [#allocation2], %s1705
          %v1707 = vld [vmem:[%s1706] sm:$0xf]
          %v1708 = vld [vmem:[%s1706 + $0x4] sm:$0xf]
          %v1709 = vld [vmem:[%s1706 + $0x8] sm:$0xf]
          %v1710 = vld [vmem:[%s1706 + $0xc] sm:$0xf]
          %v1711 = vld [vmem:[%s1706 + $0x10] sm:$0xf]
          %v1712 = vld [vmem:[%s1706 + $0x14] sm:$0xf]
          %v1713 = vld [vmem:[%s1706 + $0x18] sm:$0xf]
          %v1714 = vld [vmem:[%s1706 + $0x1c] sm:$0xf]
          %v1715 = vld [vmem:[%s1706 + $0x20] sm:$0xf]
          %v1716 = vld [vmem:[%s1706 + $0x24] sm:$0xf]
          %v1717 = vld [vmem:[%s1706 + $0x28] sm:$0xf]
          %v1718 = vld [vmem:[%s1706 + $0x2c] sm:$0xf]
          %v1719 = vld [vmem:[%s1706 + $0x30] sm:$0xf]
          %v1720 = vld [vmem:[%s1706 + $0x34] sm:$0xf]
          %v1721 = vld [vmem:[%s1706 + $0x38] sm:$0xf]
          %v1722 = vld [vmem:[%s1706 + $0x3c] sm:$0xf]
          %v1723 = vld [vmem:[%s1706 + $0x40] sm:$0xf]
          %v1724 = vld [vmem:[%s1706 + $0x44] sm:$0xf]
          %v1725 = vld [vmem:[%s1706 + $0x48] sm:$0xf]
          %v1726 = vld [vmem:[%s1706 + $0x4c] sm:$0xf]
          %v1727 = vld [vmem:[%s1706 + $0x50] sm:$0xf]
          %v1728 = vld [vmem:[%s1706 + $0x54] sm:$0xf]
          %v1729 = vld [vmem:[%s1706 + $0x58] sm:$0xf]
          %v1730 = vld [vmem:[%s1706 + $0x5c] sm:$0xf]
          %v1731 = vld [vmem:[%s1706 + $0x60] sm:$0xf]
          %v1732 = vld [vmem:[%s1706 + $0x64] sm:$0xf]
          %v1733 = vld [vmem:[%s1706 + $0x68] sm:$0xf]
          %v1734 = vld [vmem:[%s1706 + $0x6c] sm:$0xf]
          %v1735 = vld [vmem:[%s1706 + $0x70] sm:$0xf]
          %v1736 = vld [vmem:[%s1706 + $0x74] sm:$0xf]
          %v1737 = vld [vmem:[%s1706 + $0x78] sm:$0xf]
          %v1738 = vld [vmem:[%s1706 + $0x7c] sm:$0xf]
          %v1739 = vld [vmem:[%s1706 + $0x80] sm:$0xf]
          %v1740 = vld [vmem:[%s1706 + $0x84] sm:$0xf]
          %v1741 = vld [vmem:[%s1706 + $0x88] sm:$0xf]
          %v1742 = vld [vmem:[%s1706 + $0x8c] sm:$0xf]
          %v1743 = vld [vmem:[%s1706 + $0x90] sm:$0xf]
          %v1744 = vld [vmem:[%s1706 + $0x94] sm:$0xf]
          %v1745 = vld [vmem:[%s1706 + $0x98] sm:$0xf]
          %v1746 = vld [vmem:[%s1706 + $0x9c] sm:$0xf]
          %v1747 = vld [vmem:[%s1706 + $0xa0] sm:$0xf]
          %v1748 = vld [vmem:[%s1706 + $0xa4] sm:$0xf]
          %v1749 = vld [vmem:[%s1706 + $0xa8] sm:$0xf]
          %v1750 = vld [vmem:[%s1706 + $0xac] sm:$0xf]
          %v1751 = vld [vmem:[%s1706 + $0xb0] sm:$0xf]
          %v1752 = vld [vmem:[%s1706 + $0xb4] sm:$0xf]
          %v1753 = vld [vmem:[%s1706 + $0xb8] sm:$0xf]
          %v1754 = vld [vmem:[%s1706 + $0xbc] sm:$0xf]
          %v1755 = vld [vmem:[%s1706 + $0xc0] sm:$0xf]
          %v1756 = vld [vmem:[%s1706 + $0xc4] sm:$0xf]
          %v1757 = vld [vmem:[%s1706 + $0xc8] sm:$0xf]
          %v1758 = vld [vmem:[%s1706 + $0xcc] sm:$0xf]
          %v1759 = vld [vmem:[%s1706 + $0xd0] sm:$0xf]
          %v1760 = vld [vmem:[%s1706 + $0xd4] sm:$0xf]
          %v1761 = vld [vmem:[%s1706 + $0xd8] sm:$0xf]
          %v1762 = vld [vmem:[%s1706 + $0xdc] sm:$0xf]
          %v1763 = vld [vmem:[%s1706 + $0xe0] sm:$0xf]
          %v1764 = vld [vmem:[%s1706 + $0xe4] sm:$0xf]
          %v1765 = vld [vmem:[%s1706 + $0xe8] sm:$0xf]
          %v1766 = vld [vmem:[%s1706 + $0xec] sm:$0xf]
          %v1767 = vld [vmem:[%s1706 + $0xf0] sm:$0xf]
          %v1768 = vld [vmem:[%s1706 + $0xf4] sm:$0xf]
          %v1769 = vld [vmem:[%s1706 + $0xf8] sm:$0xf]
          %v1770 = vld [vmem:[%s1706 + $0xfc] sm:$0xf]
          %v1771 = vunpack.c.l.bf16 %v1707
          %v1772 = vunpack.c.l.bf16 %v1708
          %v1773 = vunpack.c.l.bf16 %v1709
          %v1774 = vunpack.c.l.bf16 %v1710
          %v1775 = vunpack.c.l.bf16 %v1711
          %v1776 = vunpack.c.l.bf16 %v1712
          %v1777 = vunpack.c.l.bf16 %v1713
          %v1778 = vunpack.c.l.bf16 %v1714
          %v1779 = vunpack.c.l.bf16 %v1715
          %v1780 = vunpack.c.l.bf16 %v1716
          %v1781 = vunpack.c.l.bf16 %v1717
          %v1782 = vunpack.c.l.bf16 %v1718
          %v1783 = vunpack.c.l.bf16 %v1719
          %v1784 = vunpack.c.l.bf16 %v1720
          %v1785 = vunpack.c.l.bf16 %v1721
          %v1786 = vunpack.c.l.bf16 %v1722
          %v1787 = vunpack.c.l.bf16 %v1723
          %v1788 = vunpack.c.l.bf16 %v1724
          %v1789 = vunpack.c.l.bf16 %v1725
          %v1790 = vunpack.c.l.bf16 %v1726
          %v1791 = vunpack.c.l.bf16 %v1727
          %v1792 = vunpack.c.l.bf16 %v1728
          %v1793 = vunpack.c.l.bf16 %v1729
          %v1794 = vunpack.c.l.bf16 %v1730
          %v1795 = vunpack.c.l.bf16 %v1731
          %v1796 = vunpack.c.l.bf16 %v1732
          %v1797 = vunpack.c.l.bf16 %v1733
          %v1798 = vunpack.c.l.bf16 %v1734
          %v1799 = vunpack.c.l.bf16 %v1735
          %v1800 = vunpack.c.l.bf16 %v1736
          %v1801 = vunpack.c.l.bf16 %v1737
          %v1802 = vunpack.c.l.bf16 %v1738
          %v1803 = vunpack.c.l.bf16 %v1739
          %v1804 = vunpack.c.l.bf16 %v1740
          %v1805 = vunpack.c.l.bf16 %v1741
          %v1806 = vunpack.c.l.bf16 %v1742
          %v1807 = vunpack.c.l.bf16 %v1743
          %v1808 = vunpack.c.l.bf16 %v1744
          %v1809 = vunpack.c.l.bf16 %v1745
          %v1810 = vunpack.c.l.bf16 %v1746
          %v1811 = vunpack.c.l.bf16 %v1747
          %v1812 = vunpack.c.l.bf16 %v1748
          %v1813 = vunpack.c.l.bf16 %v1749
          %v1814 = vunpack.c.l.bf16 %v1750
          %v1815 = vunpack.c.l.bf16 %v1751
          %v1816 = vunpack.c.l.bf16 %v1752
          %v1817 = vunpack.c.l.bf16 %v1753
          %v1818 = vunpack.c.l.bf16 %v1754
          %v1819 = vunpack.c.l.bf16 %v1755
          %v1820 = vunpack.c.l.bf16 %v1756
          %v1821 = vunpack.c.l.bf16 %v1757
          %v1822 = vunpack.c.l.bf16 %v1758
          %v1823 = vunpack.c.l.bf16 %v1759
          %v1824 = vunpack.c.l.bf16 %v1760
          %v1825 = vunpack.c.l.bf16 %v1761
          %v1826 = vunpack.c.l.bf16 %v1762
          %v1827 = vunpack.c.l.bf16 %v1763
          %v1828 = vunpack.c.l.bf16 %v1764
          %v1829 = vunpack.c.l.bf16 %v1765
          %v1830 = vunpack.c.l.bf16 %v1766
          %v1831 = vunpack.c.l.bf16 %v1767
          %v1832 = vunpack.c.l.bf16 %v1768
          %v1833 = vunpack.c.l.bf16 %v1769
          %v1834 = vunpack.c.l.bf16 %v1770
          %v1835 = vld [vmem:[#allocation5] sm:$0x1]
          %v1837 = vperm.slane %v1835, 0
          %v1839 = vmul.f32 %v1771, %v1837
          %v1840 = vmul.f32 %v1772, %v1837
          %v1841 = vmul.f32 %v1773, %v1837
          %v1842 = vmul.f32 %v1774, %v1837
          %v1843 = vmul.f32 %v1775, %v1837
          %v1844 = vmul.f32 %v1776, %v1837
          %v1845 = vmul.f32 %v1777, %v1837
          %v1846 = vmul.f32 %v1778, %v1837
          %v1847 = vmul.f32 %v1779, %v1837
          %v1848 = vmul.f32 %v1780, %v1837
          %v1849 = vmul.f32 %v1781, %v1837
          %v1850 = vmul.f32 %v1782, %v1837
          %v1851 = vmul.f32 %v1783, %v1837
          %v1852 = vmul.f32 %v1784, %v1837
          %v1853 = vmul.f32 %v1785, %v1837
          %v1854 = vmul.f32 %v1786, %v1837
          %v1855 = vmul.f32 %v1787, %v1837
          %v1856 = vmul.f32 %v1788, %v1837
          %v1857 = vmul.f32 %v1789, %v1837
          %v1858 = vmul.f32 %v1790, %v1837
          %v1859 = vmul.f32 %v1791, %v1837
          %v1860 = vmul.f32 %v1792, %v1837
          %v1861 = vmul.f32 %v1793, %v1837
          %v1862 = vmul.f32 %v1794, %v1837
          %v1863 = vmul.f32 %v1795, %v1837
          %v1864 = vmul.f32 %v1796, %v1837
          %v1865 = vmul.f32 %v1797, %v1837
          %v1866 = vmul.f32 %v1798, %v1837
          %v1867 = vmul.f32 %v1799, %v1837
          %v1868 = vmul.f32 %v1800, %v1837
          %v1869 = vmul.f32 %v1801, %v1837
          %v1870 = vmul.f32 %v1802, %v1837
          %v1871 = vmul.f32 %v1803, %v1837
          %v1872 = vmul.f32 %v1804, %v1837
          %v1873 = vmul.f32 %v1805, %v1837
          %v1874 = vmul.f32 %v1806, %v1837
          %v1875 = vmul.f32 %v1807, %v1837
          %v1876 = vmul.f32 %v1808, %v1837
          %v1877 = vmul.f32 %v1809, %v1837
          %v1878 = vmul.f32 %v1810, %v1837
          %v1879 = vmul.f32 %v1811, %v1837
          %v1880 = vmul.f32 %v1812, %v1837
          %v1881 = vmul.f32 %v1813, %v1837
          %v1882 = vmul.f32 %v1814, %v1837
          %v1883 = vmul.f32 %v1815, %v1837
          %v1884 = vmul.f32 %v1816, %v1837
          %v1885 = vmul.f32 %v1817, %v1837
          %v1886 = vmul.f32 %v1818, %v1837
          %v1887 = vmul.f32 %v1819, %v1837
          %v1888 = vmul.f32 %v1820, %v1837
          %v1889 = vmul.f32 %v1821, %v1837
          %v1890 = vmul.f32 %v1822, %v1837
          %v1891 = vmul.f32 %v1823, %v1837
          %v1892 = vmul.f32 %v1824, %v1837
          %v1893 = vmul.f32 %v1825, %v1837
          %v1894 = vmul.f32 %v1826, %v1837
          %v1895 = vmul.f32 %v1827, %v1837
          %v1896 = vmul.f32 %v1828, %v1837
          %v1897 = vmul.f32 %v1829, %v1837
          %v1898 = vmul.f32 %v1830, %v1837
          %v1899 = vmul.f32 %v1831, %v1837
          %v1900 = vmul.f32 %v1832, %v1837
          %v1901 = vmul.f32 %v1833, %v1837
          %v1902 = vmul.f32 %v1834, %v1837
          %v1903 = vld [vmem:[#allocation6] sm:$0x1]
          %v1905 = vperm.slane %v1903, 0
          %v1907 = vadd.f32 %v1839, %v1905
          %v1908 = vadd.f32 %v1840, %v1905
          %v1909 = vadd.f32 %v1841, %v1905
          %v1910 = vadd.f32 %v1842, %v1905
          %v1911 = vadd.f32 %v1843, %v1905
          %v1912 = vadd.f32 %v1844, %v1905
          %v1913 = vadd.f32 %v1845, %v1905
          %v1914 = vadd.f32 %v1846, %v1905
          %v1915 = vadd.f32 %v1847, %v1905
          %v1916 = vadd.f32 %v1848, %v1905
          %v1917 = vadd.f32 %v1849, %v1905
          %v1918 = vadd.f32 %v1850, %v1905
          %v1919 = vadd.f32 %v1851, %v1905
          %v1920 = vadd.f32 %v1852, %v1905
          %v1921 = vadd.f32 %v1853, %v1905
          %v1922 = vadd.f32 %v1854, %v1905
          %v1923 = vadd.f32 %v1855, %v1905
          %v1924 = vadd.f32 %v1856, %v1905
          %v1925 = vadd.f32 %v1857, %v1905
          %v1926 = vadd.f32 %v1858, %v1905
          %v1927 = vadd.f32 %v1859, %v1905
          %v1928 = vadd.f32 %v1860, %v1905
          %v1929 = vadd.f32 %v1861, %v1905
          %v1930 = vadd.f32 %v1862, %v1905
          %v1931 = vadd.f32 %v1863, %v1905
          %v1932 = vadd.f32 %v1864, %v1905
          %v1933 = vadd.f32 %v1865, %v1905
          %v1934 = vadd.f32 %v1866, %v1905
          %v1935 = vadd.f32 %v1867, %v1905
          %v1936 = vadd.f32 %v1868, %v1905
          %v1937 = vadd.f32 %v1869, %v1905
          %v1938 = vadd.f32 %v1870, %v1905
          %v1939 = vadd.f32 %v1871, %v1905
          %v1940 = vadd.f32 %v1872, %v1905
          %v1941 = vadd.f32 %v1873, %v1905
          %v1942 = vadd.f32 %v1874, %v1905
          %v1943 = vadd.f32 %v1875, %v1905
          %v1944 = vadd.f32 %v1876, %v1905
          %v1945 = vadd.f32 %v1877, %v1905
          %v1946 = vadd.f32 %v1878, %v1905
          %v1947 = vadd.f32 %v1879, %v1905
          %v1948 = vadd.f32 %v1880, %v1905
          %v1949 = vadd.f32 %v1881, %v1905
          %v1950 = vadd.f32 %v1882, %v1905
          %v1951 = vadd.f32 %v1883, %v1905
          %v1952 = vadd.f32 %v1884, %v1905
          %v1953 = vadd.f32 %v1885, %v1905
          %v1954 = vadd.f32 %v1886, %v1905
          %v1955 = vadd.f32 %v1887, %v1905
          %v1956 = vadd.f32 %v1888, %v1905
          %v1957 = vadd.f32 %v1889, %v1905
          %v1958 = vadd.f32 %v1890, %v1905
          %v1959 = vadd.f32 %v1891, %v1905
          %v1960 = vadd.f32 %v1892, %v1905
          %v1961 = vadd.f32 %v1893, %v1905
          %v1962 = vadd.f32 %v1894, %v1905
          %v1963 = vadd.f32 %v1895, %v1905
          %v1964 = vadd.f32 %v1896, %v1905
          %v1965 = vadd.f32 %v1897, %v1905
          %v1966 = vadd.f32 %v1898, %v1905
          %v1967 = vadd.f32 %v1899, %v1905
          %v1968 = vadd.f32 %v1900, %v1905
          %v1969 = vadd.f32 %v1901, %v1905
          %v1970 = vadd.f32 %v1902, %v1905
          %v1971 = vmax.f32 %v1907, 0.0
          %v1972 = vmax.f32 %v1908, 0.0
          %v1973 = vmax.f32 %v1909, 0.0
          %v1974 = vmax.f32 %v1910, 0.0
          %v1975 = vmax.f32 %v1911, 0.0
          %v1976 = vmax.f32 %v1912, 0.0
          %v1977 = vmax.f32 %v1913, 0.0
          %v1978 = vmax.f32 %v1914, 0.0
          %v1979 = vmax.f32 %v1915, 0.0
          %v1980 = vmax.f32 %v1916, 0.0
          %v1981 = vmax.f32 %v1917, 0.0
          %v1982 = vmax.f32 %v1918, 0.0
          %v1983 = vmax.f32 %v1919, 0.0
          %v1984 = vmax.f32 %v1920, 0.0
          %v1985 = vmax.f32 %v1921, 0.0
          %v1986 = vmax.f32 %v1922, 0.0
          %v1987 = vmax.f32 %v1923, 0.0
          %v1988 = vmax.f32 %v1924, 0.0
          %v1989 = vmax.f32 %v1925, 0.0
          %v1990 = vmax.f32 %v1926, 0.0
          %v1991 = vmax.f32 %v1927, 0.0
          %v1992 = vmax.f32 %v1928, 0.0
          %v1993 = vmax.f32 %v1929, 0.0
          %v1994 = vmax.f32 %v1930, 0.0
          %v1995 = vmax.f32 %v1931, 0.0
          %v1996 = vmax.f32 %v1932, 0.0
          %v1997 = vmax.f32 %v1933, 0.0
          %v1998 = vmax.f32 %v1934, 0.0
          %v1999 = vmax.f32 %v1935, 0.0
          %v2000 = vmax.f32 %v1936, 0.0
          %v2001 = vmax.f32 %v1937, 0.0
          %v2002 = vmax.f32 %v1938, 0.0
          %v2003 = vmax.f32 %v1939, 0.0
          %v2004 = vmax.f32 %v1940, 0.0
          %v2005 = vmax.f32 %v1941, 0.0
          %v2006 = vmax.f32 %v1942, 0.0
          %v2007 = vmax.f32 %v1943, 0.0
          %v2008 = vmax.f32 %v1944, 0.0
          %v2009 = vmax.f32 %v1945, 0.0
          %v2010 = vmax.f32 %v1946, 0.0
          %v2011 = vmax.f32 %v1947, 0.0
          %v2012 = vmax.f32 %v1948, 0.0
          %v2013 = vmax.f32 %v1949, 0.0
          %v2014 = vmax.f32 %v1950, 0.0
          %v2015 = vmax.f32 %v1951, 0.0
          %v2016 = vmax.f32 %v1952, 0.0
          %v2017 = vmax.f32 %v1953, 0.0
          %v2018 = vmax.f32 %v1954, 0.0
          %v2019 = vmax.f32 %v1955, 0.0
          %v2020 = vmax.f32 %v1956, 0.0
          %v2021 = vmax.f32 %v1957, 0.0
          %v2022 = vmax.f32 %v1958, 0.0
          %v2023 = vmax.f32 %v1959, 0.0
          %v2024 = vmax.f32 %v1960, 0.0
          %v2025 = vmax.f32 %v1961, 0.0
          %v2026 = vmax.f32 %v1962, 0.0
          %v2027 = vmax.f32 %v1963, 0.0
          %v2028 = vmax.f32 %v1964, 0.0
          %v2029 = vmax.f32 %v1965, 0.0
          %v2030 = vmax.f32 %v1966, 0.0
          %v2031 = vmax.f32 %v1967, 0.0
          %v2032 = vmax.f32 %v1968, 0.0
          %v2033 = vmax.f32 %v1969, 0.0
          %v2034 = vmax.f32 %v1970, 0.0
          %v2035 = vpack.c.bf16 %v1971, %v1971
          %v2036 = vpack.c.bf16 %v1972, %v1972
          %v2037 = vpack.c.bf16 %v1973, %v1973
          %v2038 = vpack.c.bf16 %v1974, %v1974
          %v2039 = vpack.c.bf16 %v1975, %v1975
          %v2040 = vpack.c.bf16 %v1976, %v1976
          %v2041 = vpack.c.bf16 %v1977, %v1977
          %v2042 = vpack.c.bf16 %v1978, %v1978
          %v2043 = vpack.c.bf16 %v1979, %v1979
          %v2044 = vpack.c.bf16 %v1980, %v1980
          %v2045 = vpack.c.bf16 %v1981, %v1981
          %v2046 = vpack.c.bf16 %v1982, %v1982
          %v2047 = vpack.c.bf16 %v1983, %v1983
          %v2048 = vpack.c.bf16 %v1984, %v1984
          %v2049 = vpack.c.bf16 %v1985, %v1985
          %v2050 = vpack.c.bf16 %v1986, %v1986
          %v2051 = vpack.c.bf16 %v1987, %v1987
          %v2052 = vpack.c.bf16 %v1988, %v1988
          %v2053 = vpack.c.bf16 %v1989, %v1989
          %v2054 = vpack.c.bf16 %v1990, %v1990
          %v2055 = vpack.c.bf16 %v1991, %v1991
          %v2056 = vpack.c.bf16 %v1992, %v1992
          %v2057 = vpack.c.bf16 %v1993, %v1993
          %v2058 = vpack.c.bf16 %v1994, %v1994
          %v2059 = vpack.c.bf16 %v1995, %v1995
          %v2060 = vpack.c.bf16 %v1996, %v1996
          %v2061 = vpack.c.bf16 %v1997, %v1997
          %v2062 = vpack.c.bf16 %v1998, %v1998
          %v2063 = vpack.c.bf16 %v1999, %v1999
          %v2064 = vpack.c.bf16 %v2000, %v2000
          %v2065 = vpack.c.bf16 %v2001, %v2001
          %v2066 = vpack.c.bf16 %v2002, %v2002
          %v2067 = vpack.c.bf16 %v2003, %v2003
          %v2068 = vpack.c.bf16 %v2004, %v2004
          %v2069 = vpack.c.bf16 %v2005, %v2005
          %v2070 = vpack.c.bf16 %v2006, %v2006
          %v2071 = vpack.c.bf16 %v2007, %v2007
          %v2072 = vpack.c.bf16 %v2008, %v2008
          %v2073 = vpack.c.bf16 %v2009, %v2009
          %v2074 = vpack.c.bf16 %v2010, %v2010
          %v2075 = vpack.c.bf16 %v2011, %v2011
          %v2076 = vpack.c.bf16 %v2012, %v2012
          %v2077 = vpack.c.bf16 %v2013, %v2013
          %v2078 = vpack.c.bf16 %v2014, %v2014
          %v2079 = vpack.c.bf16 %v2015, %v2015
          %v2080 = vpack.c.bf16 %v2016, %v2016
          %v2081 = vpack.c.bf16 %v2017, %v2017
          %v2082 = vpack.c.bf16 %v2018, %v2018
          %v2083 = vpack.c.bf16 %v2019, %v2019
          %v2084 = vpack.c.bf16 %v2020, %v2020
          %v2085 = vpack.c.bf16 %v2021, %v2021
          %v2086 = vpack.c.bf16 %v2022, %v2022
          %v2087 = vpack.c.bf16 %v2023, %v2023
          %v2088 = vpack.c.bf16 %v2024, %v2024
          %v2089 = vpack.c.bf16 %v2025, %v2025
          %v2090 = vpack.c.bf16 %v2026, %v2026
          %v2091 = vpack.c.bf16 %v2027, %v2027
          %v2092 = vpack.c.bf16 %v2028, %v2028
          %v2093 = vpack.c.bf16 %v2029, %v2029
          %v2094 = vpack.c.bf16 %v2030, %v2030
          %v2095 = vpack.c.bf16 %v2031, %v2031
          %v2096 = vpack.c.bf16 %v2032, %v2032
          %v2097 = vpack.c.bf16 %v2033, %v2033
          %v2098 = vpack.c.bf16 %v2034, %v2034
          %vm2099 = vcmask 257024
          %2100 = vst.msk [vmem:[%s262] sm:$0xf] %vm2099, %v2035
          %2101 = vst.msk [vmem:[%s262 + $0x4] sm:$0xf] %vm2099, %v2036
          %2102 = vst.msk [vmem:[%s262 + $0x8] sm:$0xf] %vm2099, %v2037
          %2103 = vst.msk [vmem:[%s262 + $0xc] sm:$0xf] %vm2099, %v2038
          %2104 = vst.msk [vmem:[%s262 + $0x10] sm:$0xf] %vm2099, %v2039
          %2105 = vst.msk [vmem:[%s262 + $0x14] sm:$0xf] %vm2099, %v2040
          %2106 = vst.msk [vmem:[%s262 + $0x18] sm:$0xf] %vm2099, %v2041
          %2107 = vst.msk [vmem:[%s262 + $0x1c] sm:$0xf] %vm2099, %v2042
          %2108 = vst.msk [vmem:[%s262 + $0x20] sm:$0xf] %vm2099, %v2043
          %2109 = vst.msk [vmem:[%s262 + $0x24] sm:$0xf] %vm2099, %v2044
          %2110 = vst.msk [vmem:[%s262 + $0x28] sm:$0xf] %vm2099, %v2045
          %2111 = vst.msk [vmem:[%s262 + $0x2c] sm:$0xf] %vm2099, %v2046
          %2112 = vst.msk [vmem:[%s262 + $0x30] sm:$0xf] %vm2099, %v2047
          %2113 = vst.msk [vmem:[%s262 + $0x34] sm:$0xf] %vm2099, %v2048
          %2114 = vst.msk [vmem:[%s262 + $0x38] sm:$0xf] %vm2099, %v2049
          %2115 = vst.msk [vmem:[%s262 + $0x3c] sm:$0xf] %vm2099, %v2050
          %2116 = vst.msk [vmem:[%s262 + $0x40] sm:$0xf] %vm2099, %v2051
          %2117 = vst.msk [vmem:[%s262 + $0x44] sm:$0xf] %vm2099, %v2052
          %2118 = vst.msk [vmem:[%s262 + $0x48] sm:$0xf] %vm2099, %v2053
          %2119 = vst.msk [vmem:[%s262 + $0x4c] sm:$0xf] %vm2099, %v2054
          %2120 = vst.msk [vmem:[%s262 + $0x50] sm:$0xf] %vm2099, %v2055
          %2121 = vst.msk [vmem:[%s262 + $0x54] sm:$0xf] %vm2099, %v2056
          %2122 = vst.msk [vmem:[%s262 + $0x58] sm:$0xf] %vm2099, %v2057
          %2123 = vst.msk [vmem:[%s262 + $0x5c] sm:$0xf] %vm2099, %v2058
          %2124 = vst.msk [vmem:[%s262 + $0x60] sm:$0xf] %vm2099, %v2059
          %2125 = vst.msk [vmem:[%s262 + $0x64] sm:$0xf] %vm2099, %v2060
          %2126 = vst.msk [vmem:[%s262 + $0x68] sm:$0xf] %vm2099, %v2061
          %2127 = vst.msk [vmem:[%s262 + $0x6c] sm:$0xf] %vm2099, %v2062
          %2128 = vst.msk [vmem:[%s262 + $0x70] sm:$0xf] %vm2099, %v2063
          %2129 = vst.msk [vmem:[%s262 + $0x74] sm:$0xf] %vm2099, %v2064
          %2130 = vst.msk [vmem:[%s262 + $0x78] sm:$0xf] %vm2099, %v2065
          %2131 = vst.msk [vmem:[%s262 + $0x7c] sm:$0xf] %vm2099, %v2066
          %2132 = vst.msk [vmem:[%s262 + $0x80] sm:$0xf] %vm2099, %v2067
          %2133 = vst.msk [vmem:[%s262 + $0x84] sm:$0xf] %vm2099, %v2068
          %2134 = vst.msk [vmem:[%s262 + $0x88] sm:$0xf] %vm2099, %v2069
          %2135 = vst.msk [vmem:[%s262 + $0x8c] sm:$0xf] %vm2099, %v2070
          %2136 = vst.msk [vmem:[%s262 + $0x90] sm:$0xf] %vm2099, %v2071
          %2137 = vst.msk [vmem:[%s262 + $0x94] sm:$0xf] %vm2099, %v2072
          %2138 = vst.msk [vmem:[%s262 + $0x98] sm:$0xf] %vm2099, %v2073
          %2139 = vst.msk [vmem:[%s262 + $0x9c] sm:$0xf] %vm2099, %v2074
          %2140 = vst.msk [vmem:[%s262 + $0xa0] sm:$0xf] %vm2099, %v2075
          %2141 = vst.msk [vmem:[%s262 + $0xa4] sm:$0xf] %vm2099, %v2076
          %2142 = vst.msk [vmem:[%s262 + $0xa8] sm:$0xf] %vm2099, %v2077
          %2143 = vst.msk [vmem:[%s262 + $0xac] sm:$0xf] %vm2099, %v2078
          %2144 = vst.msk [vmem:[%s262 + $0xb0] sm:$0xf] %vm2099, %v2079
          %2145 = vst.msk [vmem:[%s262 + $0xb4] sm:$0xf] %vm2099, %v2080
          %2146 = vst.msk [vmem:[%s262 + $0xb8] sm:$0xf] %vm2099, %v2081
          %2147 = vst.msk [vmem:[%s262 + $0xbc] sm:$0xf] %vm2099, %v2082
          %2148 = vst.msk [vmem:[%s262 + $0xc0] sm:$0xf] %vm2099, %v2083
          %2149 = vst.msk [vmem:[%s262 + $0xc4] sm:$0xf] %vm2099, %v2084
          %2150 = vst.msk [vmem:[%s262 + $0xc8] sm:$0xf] %vm2099, %v2085
          %2151 = vst.msk [vmem:[%s262 + $0xcc] sm:$0xf] %vm2099, %v2086
          %2152 = vst.msk [vmem:[%s262 + $0xd0] sm:$0xf] %vm2099, %v2087
          %2153 = vst.msk [vmem:[%s262 + $0xd4] sm:$0xf] %vm2099, %v2088
          %2154 = vst.msk [vmem:[%s262 + $0xd8] sm:$0xf] %vm2099, %v2089
          %2155 = vst.msk [vmem:[%s262 + $0xdc] sm:$0xf] %vm2099, %v2090
          %2156 = vst.msk [vmem:[%s262 + $0xe0] sm:$0xf] %vm2099, %v2091
          %2157 = vst.msk [vmem:[%s262 + $0xe4] sm:$0xf] %vm2099, %v2092
          %2158 = vst.msk [vmem:[%s262 + $0xe8] sm:$0xf] %vm2099, %v2093
          %2159 = vst.msk [vmem:[%s262 + $0xec] sm:$0xf] %vm2099, %v2094
          %2160 = vst.msk [vmem:[%s262 + $0xf0] sm:$0xf] %vm2099, %v2095
          %2161 = vst.msk [vmem:[%s262 + $0xf4] sm:$0xf] %vm2099, %v2096
          %2162 = vst.msk [vmem:[%s262 + $0xf8] sm:$0xf] %vm2099, %v2097
          %2163 = vst.msk [vmem:[%s262 + $0xfc] sm:$0xf] %vm2099, %v2098
        $region60: #{generator_forward.8} parent=35 // pred_fallthru
          _
        %s2164 = smul.u32 %s22, %s21
        %s2165 = smul.u32 64, %s2164
        %p2166 = scmp.lt.s32.totalorder %s2165, 63
        %s2167 = scalar_select %p2166, %s2165, 63
        %s2168 = smul.addr %s2167, 4
        %s2169 = scalar_lea.vmem %s4, %s2168
        // Predicated region
        $region61: #{generator_forward.8} parent=35 // pred_check
          %p2170 = pneg %p142
        $region62: #{generator_forward.8} parent=35 // pred_check_branch
          %2172 = sbr.rel (%p2170) target = $region64
        $region63: #{generator_forward.8} parent=35 // pred_region
          %s2173 = smul.u32 %s22, %s21
          %s2174 = smul.u32 64, %s2173
        $region64: #{generator_forward.8} parent=35 // pred_fallthru
          _
      $region36: #{generator_forward.8} parent=5 // pred_fallthru
        _
      %p2175 = scmp.le.s32.totalorder 2, %s12
      // Predicated region
      $region65: #{generator_forward.8} parent=5 // pred_check
        %p2176 = pneg %p2175
      $region66: #{generator_forward.8} parent=5 // pred_check_branch
        %2178 = sbr.rel (%p2176) target = $region68
      $region67: #{generator_forward.8} parent=5 // pred_region
        %s2179 = ssub.s32 %s12, 2
        // Predicated region
        $region69: #{generator_forward.8} parent=67 // pred_check
          %p2180 = pneg %p148
        $region70: #{generator_forward.8} parent=67 // pred_check_branch
          %2182 = sbr.rel (%p2180) target = $region72
        $region71: #{generator_forward.8} parent=67 // pred_region
          %s2183 = smul.u32 %s24, %s23
          %s2184 = smul.u32 64, %s2183
          %p2185 = scmp.lt.s32.totalorder %s2184, 63
          %s2186 = scalar_select %p2185, %s2184, 63
          %s2187 = smul.addr %s2186, 4
          %s2188 = scalar_lea.vmem %s4, %s2187
        $region72: #{generator_forward.8} parent=67 // pred_fallthru
          _
      $region68: #{generator_forward.8} parent=5 // pred_fallthru
        _
    $region6: #{generator_forward.8} parent=1 // loop_footer
      %s16 = sadd.s32 1, %s12
    $region7: #{generator_forward.8} parent=1 // loop_footer_branch
      %11 = sbr.rel target = $region3
    $region8: #{generator_forward.8} parent=1 // loop_exit
      _
    %2189 = vsyncpa [#allocation8], 1
    %s2190 = scalar_lea.sflag [#allocation8], 1
    %2191 = vsyncpa %s2190, 1
    %2192 = vsyncpa [#allocation10], 1

// kernel: generator_forward.9
$region0: #{generator_forward.9}
  #allocation0 [shape = 'u32[]', space=smem, size = 0x4, offset = 0x4, fixed_abs, tag = 'smem constant byte address 0x4 - core index']
  #allocation1 [shape = 'u32[72,128]{1,0:T(1,128)}', space=vmem, size = 0x9000, scoped, tag = 'internal scratch']
  %s0 = inlined_call_operand.vmem [shape: bf16[2048,72], index: 0, kind: input, shape index: {}]
  %s1 = inlined_call_operand.vmem [shape: bf16[72,12], index: 1, kind: input, shape index: {}]
  %s2 = inlined_call_operand.vmem [shape: f32[2048,12], index: 2, kind: output, shape index: {}]
  %s3 = sld [smem:[#allocation0]]
  $region41: #{generator_forward.9} parent=0
    _
  %s5 = ssub.s32 1, %s3
  %s6 = scalar_select 0, %s5, %s3
  loop: start=0, step=1, limit=6
  $region2: #{generator_forward.9} parent=0 // loop_pre_header
    _
  $region3: #{generator_forward.9} parent=0 // loop_header
    %s8 = sphi 0, %s12
    %p9 = scmp.ge.s32.totalorder %s8, 6
    %s18 = sphi 0, %s20
    %s21 = sphi 0, %s18
    %s22 = sphi 0, %s21
    %s38 = sphi 0, %s22
    %s42 = sphi 0, %s42
    %s44 = sphi 0, %s42
    %s45 = sphi 0, %s44
    %s59 = sphi 0, %s45
    %s65 = sphi 0, %s67
    %s68 = sphi 0, %s65
    %s69 = sphi 0, %s68
    %s85 = sphi 0, %s69
  $region4: #{generator_forward.9} parent=0 // loop_header_branch
    %11 = sbr.rel (%p9) target = $region8
  $region5: #{generator_forward.9} parent=0 // loop_body
    %s13 = ssub.s32 %s8, 1
    %s14 = ssub.s32 %s8, 2
    %s15 = sadd.s32 %s8, 1
    %s16 = ssub.s32 %s8, %s15
    %p17 = scmp.eq.s32.totalorder %s16, 0
    %s19 = sadd.s32 %s18, 1
    %s20 = scalar_select %p17, %s18, %s19
    %p23 = pneg %p17
    %p24 = scmp.eq.s32.totalorder %s8, 3
    %p25 = por %p23, %p24
    %p26 = scmp.ne.s32.totalorder %s18, %s21
    %p27 = scmp.eq.s32.totalorder %s8, 0
    %p28 = por %p26, %p27
    %p29 = scmp.ne.s32.totalorder %s18, %s21
    %p30 = scmp.eq.s32.totalorder %s13, 3
    %p31 = por %p29, %p30
    %p32 = scmp.ne.s32.totalorder %s21, %s22
    %p33 = scmp.eq.s32.totalorder %s13, 0
    %p34 = por %p32, %p33
    %p35 = scmp.ne.s32.totalorder %s21, %s22
    %p36 = scmp.eq.s32.totalorder %s14, 3
    %p37 = por %p35, %p36
    %p39 = scmp.ne.s32.totalorder %s22, %s38
    %p40 = scmp.eq.s32.totalorder %s14, 0
    %p41 = por %p39, %p40
    %s43 = sadd.s32 %s42, 1
    %p46 = scmp.eq.s32.totalorder %s8, 3
    %p47 = scmp.ne.s32.totalorder %s42, %s44
    %p48 = scmp.eq.s32.totalorder %s8, 0
    %p49 = por %p47, %p48
    %p50 = scmp.ne.s32.totalorder %s42, %s44
    %p51 = scmp.eq.s32.totalorder %s13, 3
    %p52 = por %p50, %p51
    %p53 = scmp.ne.s32.totalorder %s44, %s45
    %p54 = scmp.eq.s32.totalorder %s13, 0
    %p55 = por %p53, %p54
    %p56 = scmp.ne.s32.totalorder %s44, %s45
    %p57 = scmp.eq.s32.totalorder %s14, 3
    %p58 = por %p56, %p57
    %p60 = scmp.ne.s32.totalorder %s45, %s59
    %p61 = scmp.eq.s32.totalorder %s14, 0
    %p62 = por %p60, %p61
    %s63 = ssub.s32 %s8, %s15
    %p64 = scmp.eq.s32.totalorder %s63, 0
    %s66 = sadd.s32 %s65, 1
    %s67 = scalar_select %p64, %s65, %s66
    %p70 = pneg %p64
    %p71 = scmp.eq.s32.totalorder %s8, 3
    %p72 = por %p70, %p71
    %p73 = scmp.ne.s32.totalorder %s65, %s68
    %p74 = scmp.eq.s32.totalorder %s8, 0
    %p75 = por %p73, %p74
    %p76 = scmp.ne.s32.totalorder %s65, %s68
    %p77 = scmp.eq.s32.totalorder %s13, 3
    %p78 = por %p76, %p77
    %p79 = scmp.ne.s32.totalorder %s68, %s69
    %p80 = scmp.eq.s32.totalorder %s13, 0
    %p81 = por %p79, %p80
    %p82 = scmp.ne.s32.totalorder %s68, %s69
    %p83 = scmp.eq.s32.totalorder %s14, 3
    %p84 = por %p82, %p83
    %p86 = scmp.ne.s32.totalorder %s69, %s85
    %p87 = scmp.eq.s32.totalorder %s14, 0
    %p88 = por %p86, %p87
    %p89 = scmp.le.s32.totalorder 1, %s8
    %p90 = scmp.lt.s32.totalorder %s8, 5
    %p91 = pnand %p89, %p90
    %p92 = pneg %p91
    // Predicated region
    $region9: #{generator_forward.9} parent=5 // pred_check
      _
    $region10: #{generator_forward.9} parent=5 // pred_check_branch
      %94 = sbr.rel (%p91) target = $region12
    $region11: #{generator_forward.9} parent=5 // pred_region
      %s95 = ssub.s32 %s8, 1
      // Predicated region
      $region13: #{generator_forward.9} parent=11 // pred_check
        %p96 = pneg %p55
      $region14: #{generator_forward.9} parent=11 // pred_check_branch
        %98 = sbr.rel (%p96) target = $region16
      $region15: #{generator_forward.9} parent=11 // pred_region
        _
      $region16: #{generator_forward.9} parent=11 // pred_fallthru
        _
    $region12: #{generator_forward.9} parent=5 // pred_fallthru
      _
    %p99 = scmp.lt.s32.totalorder %s8, 4
    // Predicated region
    $region17: #{generator_forward.9} parent=5 // pred_check
      %p100 = pneg %p99
    $region18: #{generator_forward.9} parent=5 // pred_check_branch
      %102 = sbr.rel (%p100) target = $region20
    $region19: #{generator_forward.9} parent=5 // pred_region
      // Predicated region
      $region21: #{generator_forward.9} parent=19 // pred_check
        %p103 = pneg %p28
      $region22: #{generator_forward.9} parent=19 // pred_check_branch
        %105 = sbr.rel (%p103) target = $region24
      $region23: #{generator_forward.9} parent=19 // pred_region
        %s106 = smul.u32 64, %s8
        %p107 = scmp.lt.s32.totalorder %s106, 255
        %s108 = scalar_select %p107, %s106, 255
        %s109 = smul.addr %s108, 4
        %s110 = scalar_lea.vmem %s0, %s109
        %s111 = smul.u32 64, %s8
      $region24: #{generator_forward.9} parent=19 // pred_fallthru
        _
    $region20: #{generator_forward.9} parent=5 // pred_fallthru
      _
    %p112 = scmp.le.s32.totalorder 1, %s8
    %p113 = scmp.lt.s32.totalorder %s8, 5
    %p114 = pnand %p112, %p113
    %p115 = pneg %p114
    // Predicated region
    $region25: #{generator_forward.9} parent=5 // pred_check
      _
    $region26: #{generator_forward.9} parent=5 // pred_check_branch
      %117 = sbr.rel (%p114) target = $region28
    $region27: #{generator_forward.9} parent=5 // pred_region
      %s118 = ssub.s32 %s8, 1
      %s119 = smul.u32 64, %s13
      %p120 = scmp.lt.s32.totalorder %s119, 255
      %s121 = scalar_select %p120, %s119, 255
      %s122 = smul.addr %s121, 4
      %s123 = scalar_lea.vmem %s0, %s122
      %p124 = pneg %p34
      %p125 = pneg %p31
      %p126 = pneg %p55
      %p127 = pneg %p52
      %p128 = pneg %p81
      %p129 = pneg %p78
      %s130 = smul.u32 64, %s13
      %p131 = scmp.lt.s32.totalorder %s130, 255
      %s132 = scalar_select %p131, %s130, 255
      %s133 = smul.addr %s132, 8
      %s134 = scalar_lea.vmem %s2, %s133
      %s135 = smul.u32 64, %s13
      %p136 = scmp.lt.s32.totalorder %s135, 255
      %s137 = scalar_select %p136, %s135, 255
      %s138 = smul.addr %s137, 4
      %s139 = scalar_lea.vmem %s0, %s138
      %s140 = smul.u32 64, %s13
      %s141 = smul.u32 64, %s13
      %p142 = scmp.lt.s32.totalorder %s141, 255
      %s143 = scalar_select %p142, %s141, 255
      %s144 = smul.addr %s143, 8
      %s145 = scalar_lea.vmem %s2, %s144
      %s146 = smul.u32 64, %s13
      %v148 = vld [vmem:[%s139] sm:$0xf]
      %v149 = vld [vmem:[%s139 + $0x4] sm:$0xf]
      %v150 = vld [vmem:[%s139 + $0x8] sm:$0xf]
      %v151 = vld [vmem:[%s139 + $0xc] sm:$0xf]
      %v152 = vld [vmem:[%s139 + $0x10] sm:$0xf]
      %v153 = vld [vmem:[%s139 + $0x14] sm:$0xf]
      %v154 = vld [vmem:[%s139 + $0x18] sm:$0xf]
      %v155 = vld [vmem:[%s139 + $0x1c] sm:$0xf]
      %v156 = vld [vmem:[%s139 + $0x20] sm:$0xf]
      %v157 = vld [vmem:[%s139 + $0x24] sm:$0xf]
      %v158 = vld [vmem:[%s139 + $0x28] sm:$0xf]
      %v159 = vld [vmem:[%s139 + $0x2c] sm:$0xf]
      %v160 = vld [vmem:[%s139 + $0x30] sm:$0xf]
      %v161 = vld [vmem:[%s139 + $0x34] sm:$0xf]
      %v162 = vld [vmem:[%s139 + $0x38] sm:$0xf]
      %v163 = vld [vmem:[%s139 + $0x3c] sm:$0xf]
      %v164 = vld [vmem:[%s139 + $0x40] sm:$0xf]
      %v165 = vld [vmem:[%s139 + $0x44] sm:$0xf]
      %v166 = vld [vmem:[%s139 + $0x48] sm:$0xf]
      %v167 = vld [vmem:[%s139 + $0x4c] sm:$0xf]
      %v168 = vld [vmem:[%s139 + $0x50] sm:$0xf]
      %v169 = vld [vmem:[%s139 + $0x54] sm:$0xf]
      %v170 = vld [vmem:[%s139 + $0x58] sm:$0xf]
      %v171 = vld [vmem:[%s139 + $0x5c] sm:$0xf]
      %v172 = vld [vmem:[%s139 + $0x60] sm:$0xf]
      %v173 = vld [vmem:[%s139 + $0x64] sm:$0xf]
      %v174 = vld [vmem:[%s139 + $0x68] sm:$0xf]
      %v175 = vld [vmem:[%s139 + $0x6c] sm:$0xf]
      %v176 = vld [vmem:[%s139 + $0x70] sm:$0xf]
      %v177 = vld [vmem:[%s139 + $0x74] sm:$0xf]
      %v178 = vld [vmem:[%s139 + $0x78] sm:$0xf]
      %v179 = vld [vmem:[%s139 + $0x7c] sm:$0xf]
      %v180 = vld [vmem:[%s139 + $0x80] sm:$0xf]
      %v181 = vld [vmem:[%s139 + $0x84] sm:$0xf]
      %v182 = vld [vmem:[%s139 + $0x88] sm:$0xf]
      %v183 = vld [vmem:[%s139 + $0x8c] sm:$0xf]
      %v184 = vld [vmem:[%s139 + $0x90] sm:$0xf]
      %v185 = vld [vmem:[%s139 + $0x94] sm:$0xf]
      %v186 = vld [vmem:[%s139 + $0x98] sm:$0xf]
      %v187 = vld [vmem:[%s139 + $0x9c] sm:$0xf]
      %v188 = vld [vmem:[%s139 + $0xa0] sm:$0xf]
      %v189 = vld [vmem:[%s139 + $0xa4] sm:$0xf]
      %v190 = vld [vmem:[%s139 + $0xa8] sm:$0xf]
      %v191 = vld [vmem:[%s139 + $0xac] sm:$0xf]
      %v192 = vld [vmem:[%s139 + $0xb0] sm:$0xf]
      %v193 = vld [vmem:[%s139 + $0xb4] sm:$0xf]
      %v194 = vld [vmem:[%s139 + $0xb8] sm:$0xf]
      %v195 = vld [vmem:[%s139 + $0xbc] sm:$0xf]
      %v196 = vld [vmem:[%s139 + $0xc0] sm:$0xf]
      %v197 = vld [vmem:[%s139 + $0xc4] sm:$0xf]
      %v198 = vld [vmem:[%s139 + $0xc8] sm:$0xf]
      %v199 = vld [vmem:[%s139 + $0xcc] sm:$0xf]
      %v200 = vld [vmem:[%s139 + $0xd0] sm:$0xf]
      %v201 = vld [vmem:[%s139 + $0xd4] sm:$0xf]
      %v202 = vld [vmem:[%s139 + $0xd8] sm:$0xf]
      %v203 = vld [vmem:[%s139 + $0xdc] sm:$0xf]
      %v204 = vld [vmem:[%s139 + $0xe0] sm:$0xf]
      %v205 = vld [vmem:[%s139 + $0xe4] sm:$0xf]
      %v206 = vld [vmem:[%s139 + $0xe8] sm:$0xf]
      %v207 = vld [vmem:[%s139 + $0xec] sm:$0xf]
      %v208 = vld [vmem:[%s139 + $0xf0] sm:$0xf]
      %v209 = vld [vmem:[%s139 + $0xf4] sm:$0xf]
      %v210 = vld [vmem:[%s139 + $0xf8] sm:$0xf]
      %v211 = vld [vmem:[%s139 + $0xfc] sm:$0xf]
      %v212 = vld [vmem:[%s1] sm:$0xf]
      %v213 = vld [vmem:[%s1 + $0x4] sm:$0xf]
      %v214 = vld [vmem:[%s1 + $0x8] sm:$0xf]
      %v215 = vld [vmem:[%s1 + $0xc] sm:$0xf]
      %v216 = vld [vmem:[%s1 + $0x10] sm:$0xf]
      %v217 = vld [vmem:[%s1 + $0x14] sm:$0xf]
      %v218 = vld [vmem:[%s1 + $0x18] sm:$0xf]
      %v219 = vld [vmem:[%s1 + $0x1c] sm:$0xf]
      %v220 = vld [vmem:[%s1 + $0x20] sm:$0xf]
      %v285 = vunpack.c.l.b16 %v148
      %v286 = vunpack.c.l.b16 %v149
      %v287 = vunpack.c.l.b16 %v150
      %v288 = vunpack.c.l.b16 %v151
      %v289 = vunpack.c.l.b16 %v152
      %v290 = vunpack.c.l.b16 %v153
      %v291 = vunpack.c.l.b16 %v154
      %v292 = vunpack.c.l.b16 %v155
      %v293 = vunpack.c.l.b16 %v156
      %v294 = vunpack.c.l.b16 %v157
      %v295 = vunpack.c.l.b16 %v158
      %v296 = vunpack.c.l.b16 %v159
      %v297 = vunpack.c.l.b16 %v160
      %v298 = vunpack.c.l.b16 %v161
      %v299 = vunpack.c.l.b16 %v162
      %v300 = vunpack.c.l.b16 %v163
      %v301 = vunpack.c.l.b16 %v164
      %v302 = vunpack.c.l.b16 %v165
      %v303 = vunpack.c.l.b16 %v166
      %v304 = vunpack.c.l.b16 %v167
      %v305 = vunpack.c.l.b16 %v168
      %v306 = vunpack.c.l.b16 %v169
      %v307 = vunpack.c.l.b16 %v170
      %v308 = vunpack.c.l.b16 %v171
      %v309 = vunpack.c.l.b16 %v172
      %v310 = vunpack.c.l.b16 %v173
      %v311 = vunpack.c.l.b16 %v174
      %v312 = vunpack.c.l.b16 %v175
      %v313 = vunpack.c.l.b16 %v176
      %v314 = vunpack.c.l.b16 %v177
      %v315 = vunpack.c.l.b16 %v178
      %v316 = vunpack.c.l.b16 %v179
      %v317 = vunpack.c.l.b16 %v180
      %v318 = vunpack.c.l.b16 %v181
      %v319 = vunpack.c.l.b16 %v182
      %v320 = vunpack.c.l.b16 %v183
      %v321 = vunpack.c.l.b16 %v184
      %v322 = vunpack.c.l.b16 %v185
      %v323 = vunpack.c.l.b16 %v186
      %v324 = vunpack.c.l.b16 %v187
      %v325 = vunpack.c.l.b16 %v188
      %v326 = vunpack.c.l.b16 %v189
      %v327 = vunpack.c.l.b16 %v190
      %v328 = vunpack.c.l.b16 %v191
      %v329 = vunpack.c.l.b16 %v192
      %v330 = vunpack.c.l.b16 %v193
      %v331 = vunpack.c.l.b16 %v194
      %v332 = vunpack.c.l.b16 %v195
      %v333 = vunpack.c.l.b16 %v196
      %v334 = vunpack.c.l.b16 %v197
      %v335 = vunpack.c.l.b16 %v198
      %v336 = vunpack.c.l.b16 %v199
      %v337 = vunpack.c.l.b16 %v200
      %v338 = vunpack.c.l.b16 %v201
      %v339 = vunpack.c.l.b16 %v202
      %v340 = vunpack.c.l.b16 %v203
      %v341 = vunpack.c.l.b16 %v204
      %v342 = vunpack.c.l.b16 %v205
      %v343 = vunpack.c.l.b16 %v206
      %v344 = vunpack.c.l.b16 %v207
      %v345 = vunpack.c.l.b16 %v208
      %v346 = vunpack.c.l.b16 %v209
      %v347 = vunpack.c.l.b16 %v210
      %v348 = vunpack.c.l.b16 %v211
      %v349 = vpack.c.b16 %v286, %v285
      %v350 = vpack.c.b16 %v288, %v287
      %v351 = vpack.c.b16 %v290, %v289
      %v352 = vpack.c.b16 %v292, %v291
      %v353 = vpack.c.b16 %v294, %v293
      %v354 = vpack.c.b16 %v296, %v295
      %v355 = vpack.c.b16 %v298, %v297
      %v356 = vpack.c.b16 %v300, %v299
      %v357 = vpack.c.b16 %v302, %v301
      %v358 = vpack.c.b16 %v304, %v303
      %v359 = vpack.c.b16 %v306, %v305
      %v360 = vpack.c.b16 %v308, %v307
      %v361 = vpack.c.b16 %v310, %v309
      %v362 = vpack.c.b16 %v312, %v311
      %v363 = vpack.c.b16 %v314, %v313
      %v364 = vpack.c.b16 %v316, %v315
      %v365 = vpack.c.b16 %v318, %v317
      %v366 = vpack.c.b16 %v320, %v319
      %v367 = vpack.c.b16 %v322, %v321
      %v368 = vpack.c.b16 %v324, %v323
      %v369 = vpack.c.b16 %v326, %v325
      %v370 = vpack.c.b16 %v328, %v327
      %v371 = vpack.c.b16 %v330, %v329
      %v372 = vpack.c.b16 %v332, %v331
      %v373 = vpack.c.b16 %v334, %v333
      %v374 = vpack.c.b16 %v336, %v335
      %v375 = vpack.c.b16 %v338, %v337
      %v376 = vpack.c.b16 %v340, %v339
      %v377 = vpack.c.b16 %v342, %v341
      %v378 = vpack.c.b16 %v344, %v343
      %v379 = vpack.c.b16 %v346, %v345
      %v380 = vpack.c.b16 %v348, %v347
      %v390 = vunpack.c.l.b16 %v212
      %v391 = vunpack.c.l.b16 %v213
      %v392 = vunpack.c.l.b16 %v214
      %v393 = vunpack.c.l.b16 %v215
      %v394 = vunpack.c.l.b16 %v216
      %v395 = vunpack.c.l.b16 %v217
      %v396 = vunpack.c.l.b16 %v218
      %v397 = vunpack.c.l.b16 %v219
      %v398 = vunpack.c.l.b16 %v220
      %v399 = vpack.c.b16 %v391, %v390
      %v400 = vpack.c.b16 %v393, %v392
      %v401 = vpack.c.b16 %v395, %v394
      %v402 = vpack.c.b16 %v397, %v396
      %v403 = vpack.c.b16 %v398, %v398
      %vm408 = vcmask 588800
      %v410 = vsel %vm408, %v349, 0
      %v413 = vsel %vm408, %v350, 0
      %v416 = vsel %vm408, %v351, 0
      %v419 = vsel %vm408, %v352, 0
      %v422 = vsel %vm408, %v353, 0
      %v425 = vsel %vm408, %v354, 0
      %v428 = vsel %vm408, %v355, 0
      %v431 = vsel %vm408, %v356, 0
      %v434 = vsel %vm408, %v357, 0
      %v437 = vsel %vm408, %v358, 0
      %v440 = vsel %vm408, %v359, 0
      %v443 = vsel %vm408, %v360, 0
      %v446 = vsel %vm408, %v361, 0
      %v449 = vsel %vm408, %v362, 0
      %v452 = vsel %vm408, %v363, 0
      %v455 = vsel %vm408, %v364, 0
      %v458 = vsel %vm408, %v365, 0
      %v461 = vsel %vm408, %v366, 0
      %v464 = vsel %vm408, %v367, 0
      %v467 = vsel %vm408, %v368, 0
      %v470 = vsel %vm408, %v369, 0
      %v473 = vsel %vm408, %v370, 0
      %v476 = vsel %vm408, %v371, 0
      %v479 = vsel %vm408, %v372, 0
      %v482 = vsel %vm408, %v373, 0
      %v485 = vsel %vm408, %v374, 0
      %v488 = vsel %vm408, %v375, 0
      %v491 = vsel %vm408, %v376, 0
      %v494 = vsel %vm408, %v377, 0
      %v497 = vsel %vm408, %v378, 0
      %v500 = vsel %vm408, %v379, 0
      %v503 = vsel %vm408, %v380, 0
      %vm505 = vcmask 1043456
      %v507 = vsel %vm505, %v403, 0
      %509 = vmatpush.bf16.msra.mxu0 0
      %510 = vmatpush.bf16.msra.mxu0 0
      %511 = vmatpush.bf16.msra.mxu0 0
      %512 = vmatpush.bf16.msra.mxu0 %v507
      %513 = vmatpush.bf16.msra.mxu0 %v402
      %514 = vmatpush.bf16.msra.mxu0 %v401
      %515 = vmatpush.bf16.msra.mxu0 %v400
      %516 = vmatpush.bf16.msra.mxu0 %v399
      %517 = vmatmul.bf16.gmra.mxu0 %v410
      %v518 = vpop.f32.mrf.mxu0
      %v519 = vadd.f32 0.0, %v518
      %v520 = vpop.f32.mrf.mxu0
      %v521 = vadd.f32 0.0, %v520
      %522 = vmatmul.bf16.gmra.mxu0 %v413
      %v523 = vpop.f32.mrf.mxu0
      %v524 = vadd.f32 0.0, %v523
      %v525 = vpop.f32.mrf.mxu0
      %v526 = vadd.f32 0.0, %v525
      %527 = vmatmul.bf16.gmra.mxu0 %v416
      %v528 = vpop.f32.mrf.mxu0
      %v529 = vadd.f32 0.0, %v528
      %v530 = vpop.f32.mrf.mxu0
      %v531 = vadd.f32 0.0, %v530
      %532 = vmatmul.bf16.gmra.mxu0 %v419
      %v533 = vpop.f32.mrf.mxu0
      %v534 = vadd.f32 0.0, %v533
      %v535 = vpop.f32.mrf.mxu0
      %v536 = vadd.f32 0.0, %v535
      %537 = vmatmul.bf16.gmra.mxu0 %v422
      %v538 = vpop.f32.mrf.mxu0
      %v539 = vadd.f32 0.0, %v538
      %v540 = vpop.f32.mrf.mxu0
      %v541 = vadd.f32 0.0, %v540
      %542 = vmatmul.bf16.gmra.mxu0 %v425
      %v543 = vpop.f32.mrf.mxu0
      %v544 = vadd.f32 0.0, %v543
      %v545 = vpop.f32.mrf.mxu0
      %v546 = vadd.f32 0.0, %v545
      %547 = vmatmul.bf16.gmra.mxu0 %v428
      %v548 = vpop.f32.mrf.mxu0
      %v549 = vadd.f32 0.0, %v548
      %v550 = vpop.f32.mrf.mxu0
      %v551 = vadd.f32 0.0, %v550
      %552 = vmatmul.bf16.gmra.mxu0 %v431
      %v553 = vpop.f32.mrf.mxu0
      %v554 = vadd.f32 0.0, %v553
      %v555 = vpop.f32.mrf.mxu0
      %v556 = vadd.f32 0.0, %v555
      %557 = vmatmul.bf16.gmra.mxu0 %v434
      %v558 = vpop.f32.mrf.mxu0
      %v559 = vadd.f32 0.0, %v558
      %v560 = vpop.f32.mrf.mxu0
      %v561 = vadd.f32 0.0, %v560
      %562 = vmatmul.bf16.gmra.mxu0 %v437
      %v563 = vpop.f32.mrf.mxu0
      %v564 = vadd.f32 0.0, %v563
      %v565 = vpop.f32.mrf.mxu0
      %v566 = vadd.f32 0.0, %v565
      %567 = vmatmul.bf16.gmra.mxu0 %v440
      %v568 = vpop.f32.mrf.mxu0
      %v569 = vadd.f32 0.0, %v568
      %v570 = vpop.f32.mrf.mxu0
      %v571 = vadd.f32 0.0, %v570
      %572 = vmatmul.bf16.gmra.mxu0 %v443
      %v573 = vpop.f32.mrf.mxu0
      %v574 = vadd.f32 0.0, %v573
      %v575 = vpop.f32.mrf.mxu0
      %v576 = vadd.f32 0.0, %v575
      %577 = vmatmul.bf16.gmra.mxu0 %v446
      %v578 = vpop.f32.mrf.mxu0
      %v579 = vadd.f32 0.0, %v578
      %v580 = vpop.f32.mrf.mxu0
      %v581 = vadd.f32 0.0, %v580
      %582 = vmatmul.bf16.gmra.mxu0 %v449
      %v583 = vpop.f32.mrf.mxu0
      %v584 = vadd.f32 0.0, %v583
      %v585 = vpop.f32.mrf.mxu0
      %v586 = vadd.f32 0.0, %v585
      %587 = vmatmul.bf16.gmra.mxu0 %v452
      %v588 = vpop.f32.mrf.mxu0
      %v589 = vadd.f32 0.0, %v588
      %v590 = vpop.f32.mrf.mxu0
      %v591 = vadd.f32 0.0, %v590
      %592 = vmatmul.bf16.gmra.mxu0 %v455
      %v593 = vpop.f32.mrf.mxu0
      %v594 = vadd.f32 0.0, %v593
      %v595 = vpop.f32.mrf.mxu0
      %v596 = vadd.f32 0.0, %v595
      %597 = vmatmul.bf16.gmra.mxu0 %v458
      %v598 = vpop.f32.mrf.mxu0
      %v599 = vadd.f32 0.0, %v598
      %v600 = vpop.f32.mrf.mxu0
      %v601 = vadd.f32 0.0, %v600
      %602 = vmatmul.bf16.gmra.mxu0 %v461
      %v603 = vpop.f32.mrf.mxu0
      %v604 = vadd.f32 0.0, %v603
      %v605 = vpop.f32.mrf.mxu0
      %v606 = vadd.f32 0.0, %v605
      %607 = vmatmul.bf16.gmra.mxu0 %v464
      %v608 = vpop.f32.mrf.mxu0
      %v609 = vadd.f32 0.0, %v608
      %v610 = vpop.f32.mrf.mxu0
      %v611 = vadd.f32 0.0, %v610
      %612 = vmatmul.bf16.gmra.mxu0 %v467
      %v613 = vpop.f32.mrf.mxu0
      %v614 = vadd.f32 0.0, %v613
      %v615 = vpop.f32.mrf.mxu0
      %v616 = vadd.f32 0.0, %v615
      %617 = vmatmul.bf16.gmra.mxu0 %v470
      %v618 = vpop.f32.mrf.mxu0
      %v619 = vadd.f32 0.0, %v618
      %v620 = vpop.f32.mrf.mxu0
      %v621 = vadd.f32 0.0, %v620
      %622 = vmatmul.bf16.gmra.mxu0 %v473
      %v623 = vpop.f32.mrf.mxu0
      %v624 = vadd.f32 0.0, %v623
      %v625 = vpop.f32.mrf.mxu0
      %v626 = vadd.f32 0.0, %v625
      %627 = vmatmul.bf16.gmra.mxu0 %v476
      %v628 = vpop.f32.mrf.mxu0
      %v629 = vadd.f32 0.0, %v628
      %v630 = vpop.f32.mrf.mxu0
      %v631 = vadd.f32 0.0, %v630
      %632 = vmatmul.bf16.gmra.mxu0 %v479
      %v633 = vpop.f32.mrf.mxu0
      %v634 = vadd.f32 0.0, %v633
      %v635 = vpop.f32.mrf.mxu0
      %v636 = vadd.f32 0.0, %v635
      %637 = vmatmul.bf16.gmra.mxu0 %v482
      %v638 = vpop.f32.mrf.mxu0
      %v639 = vadd.f32 0.0, %v638
      %v640 = vpop.f32.mrf.mxu0
      %v641 = vadd.f32 0.0, %v640
      %642 = vmatmul.bf16.gmra.mxu0 %v485
      %v643 = vpop.f32.mrf.mxu0
      %v644 = vadd.f32 0.0, %v643
      %v645 = vpop.f32.mrf.mxu0
      %v646 = vadd.f32 0.0, %v645
      %647 = vmatmul.bf16.gmra.mxu0 %v488
      %v648 = vpop.f32.mrf.mxu0
      %v649 = vadd.f32 0.0, %v648
      %v650 = vpop.f32.mrf.mxu0
      %v651 = vadd.f32 0.0, %v650
      %652 = vmatmul.bf16.gmra.mxu0 %v491
      %v653 = vpop.f32.mrf.mxu0
      %v654 = vadd.f32 0.0, %v653
      %v655 = vpop.f32.mrf.mxu0
      %v656 = vadd.f32 0.0, %v655
      %657 = vmatmul.bf16.gmra.mxu0 %v494
      %v658 = vpop.f32.mrf.mxu0
      %v659 = vadd.f32 0.0, %v658
      %v660 = vpop.f32.mrf.mxu0
      %v661 = vadd.f32 0.0, %v660
      %662 = vmatmul.bf16.gmra.mxu0 %v497
      %v663 = vpop.f32.mrf.mxu0
      %v664 = vadd.f32 0.0, %v663
      %v665 = vpop.f32.mrf.mxu0
      %v666 = vadd.f32 0.0, %v665
      %667 = vmatmul.bf16.gmra.mxu0 %v500
      %v668 = vpop.f32.mrf.mxu0
      %v669 = vadd.f32 0.0, %v668
      %v670 = vpop.f32.mrf.mxu0
      %v671 = vadd.f32 0.0, %v670
      %672 = vmatmul.bf16.gmra.mxu0 %v503
      %v673 = vpop.f32.mrf.mxu0
      %v674 = vadd.f32 0.0, %v673
      %v675 = vpop.f32.mrf.mxu0
      %v676 = vadd.f32 0.0, %v675
      %677 = vdwg.mxu0
      %v678 = vtanh.pop %v519
      %v679 = vtanh.pop %v521
      %v680 = vtanh.pop %v524
      %v681 = vtanh.pop %v526
      %v682 = vtanh.pop %v529
      %v683 = vtanh.pop %v531
      %v684 = vtanh.pop %v534
      %v685 = vtanh.pop %v536
      %v686 = vtanh.pop %v539
      %v687 = vtanh.pop %v541
      %v688 = vtanh.pop %v544
      %v689 = vtanh.pop %v546
      %v690 = vtanh.pop %v549
      %v691 = vtanh.pop %v551
      %v692 = vtanh.pop %v554
      %v693 = vtanh.pop %v556
      %v694 = vtanh.pop %v559
      %v695 = vtanh.pop %v561
      %v696 = vtanh.pop %v564
      %v697 = vtanh.pop %v566
      %v698 = vtanh.pop %v569
      %v699 = vtanh.pop %v571
      %v700 = vtanh.pop %v574
      %v701 = vtanh.pop %v576
      %v702 = vtanh.pop %v579
      %v703 = vtanh.pop %v581
      %v704 = vtanh.pop %v584
      %v705 = vtanh.pop %v586
      %v706 = vtanh.pop %v589
      %v707 = vtanh.pop %v591
      %v708 = vtanh.pop %v594
      %v709 = vtanh.pop %v596
      %v710 = vtanh.pop %v599
      %v711 = vtanh.pop %v601
      %v712 = vtanh.pop %v604
      %v713 = vtanh.pop %v606
      %v714 = vtanh.pop %v609
      %v715 = vtanh.pop %v611
      %v716 = vtanh.pop %v614
      %v717 = vtanh.pop %v616
      %v718 = vtanh.pop %v619
      %v719 = vtanh.pop %v621
      %v720 = vtanh.pop %v624
      %v721 = vtanh.pop %v626
      %v722 = vtanh.pop %v629
      %v723 = vtanh.pop %v631
      %v724 = vtanh.pop %v634
      %v725 = vtanh.pop %v636
      %v726 = vtanh.pop %v639
      %v727 = vtanh.pop %v641
      %v728 = vtanh.pop %v644
      %v729 = vtanh.pop %v646
      %v730 = vtanh.pop %v649
      %v731 = vtanh.pop %v651
      %v732 = vtanh.pop %v654
      %v733 = vtanh.pop %v656
      %v734 = vtanh.pop %v659
      %v735 = vtanh.pop %v661
      %v736 = vtanh.pop %v664
      %v737 = vtanh.pop %v666
      %v738 = vtanh.pop %v669
      %v739 = vtanh.pop %v671
      %v740 = vtanh.pop %v674
      %v741 = vtanh.pop %v676
      %vm742 = vcmask 97280
      %743 = vst.msk [vmem:[%s145] sm:$0xff] %vm742, %v678
      %744 = vst.msk [vmem:[%s145 + $0x8] sm:$0xff] %vm742, %v679
      %745 = vst.msk [vmem:[%s145 + $0x10] sm:$0xff] %vm742, %v680
      %746 = vst.msk [vmem:[%s145 + $0x18] sm:$0xff] %vm742, %v681
      %747 = vst.msk [vmem:[%s145 + $0x20] sm:$0xff] %vm742, %v682
      %748 = vst.msk [vmem:[%s145 + $0x28] sm:$0xff] %vm742, %v683
      %749 = vst.msk [vmem:[%s145 + $0x30] sm:$0xff] %vm742, %v684
      %750 = vst.msk [vmem:[%s145 + $0x38] sm:$0xff] %vm742, %v685
      %751 = vst.msk [vmem:[%s145 + $0x40] sm:$0xff] %vm742, %v686
      %752 = vst.msk [vmem:[%s145 + $0x48] sm:$0xff] %vm742, %v687
      %753 = vst.msk [vmem:[%s145 + $0x50] sm:$0xff] %vm742, %v688
      %754 = vst.msk [vmem:[%s145 + $0x58] sm:$0xff] %vm742, %v689
      %755 = vst.msk [vmem:[%s145 + $0x60] sm:$0xff] %vm742, %v690
      %756 = vst.msk [vmem:[%s145 + $0x68] sm:$0xff] %vm742, %v691
      %757 = vst.msk [vmem:[%s145 + $0x70] sm:$0xff] %vm742, %v692
      %758 = vst.msk [vmem:[%s145 + $0x78] sm:$0xff] %vm742, %v693
      %759 = vst.msk [vmem:[%s145 + $0x80] sm:$0xff] %vm742, %v694
      %760 = vst.msk [vmem:[%s145 + $0x88] sm:$0xff] %vm742, %v695
      %761 = vst.msk [vmem:[%s145 + $0x90] sm:$0xff] %vm742, %v696
      %762 = vst.msk [vmem:[%s145 + $0x98] sm:$0xff] %vm742, %v697
      %763 = vst.msk [vmem:[%s145 + $0xa0] sm:$0xff] %vm742, %v698
      %764 = vst.msk [vmem:[%s145 + $0xa8] sm:$0xff] %vm742, %v699
      %765 = vst.msk [vmem:[%s145 + $0xb0] sm:$0xff] %vm742, %v700
      %766 = vst.msk [vmem:[%s145 + $0xb8] sm:$0xff] %vm742, %v701
      %767 = vst.msk [vmem:[%s145 + $0xc0] sm:$0xff] %vm742, %v702
      %768 = vst.msk [vmem:[%s145 + $0xc8] sm:$0xff] %vm742, %v703
      %769 = vst.msk [vmem:[%s145 + $0xd0] sm:$0xff] %vm742, %v704
      %770 = vst.msk [vmem:[%s145 + $0xd8] sm:$0xff] %vm742, %v705
      %771 = vst.msk [vmem:[%s145 + $0xe0] sm:$0xff] %vm742, %v706
      %772 = vst.msk [vmem:[%s145 + $0xe8] sm:$0xff] %vm742, %v707
      %773 = vst.msk [vmem:[%s145 + $0xf0] sm:$0xff] %vm742, %v708
      %774 = vst.msk [vmem:[%s145 + $0xf8] sm:$0xff] %vm742, %v709
      %775 = vst.msk [vmem:[%s145 + $0x100] sm:$0xff] %vm742, %v710
      %776 = vst.msk [vmem:[%s145 + $0x108] sm:$0xff] %vm742, %v711
      %777 = vst.msk [vmem:[%s145 + $0x110] sm:$0xff] %vm742, %v712
      %778 = vst.msk [vmem:[%s145 + $0x118] sm:$0xff] %vm742, %v713
      %779 = vst.msk [vmem:[%s145 + $0x120] sm:$0xff] %vm742, %v714
      %780 = vst.msk [vmem:[%s145 + $0x128] sm:$0xff] %vm742, %v715
      %781 = vst.msk [vmem:[%s145 + $0x130] sm:$0xff] %vm742, %v716
      %782 = vst.msk [vmem:[%s145 + $0x138] sm:$0xff] %vm742, %v717
      %783 = vst.msk [vmem:[%s145 + $0x140] sm:$0xff] %vm742, %v718
      %784 = vst.msk [vmem:[%s145 + $0x148] sm:$0xff] %vm742, %v719
      %785 = vst.msk [vmem:[%s145 + $0x150] sm:$0xff] %vm742, %v720
      %786 = vst.msk [vmem:[%s145 + $0x158] sm:$0xff] %vm742, %v721
      %787 = vst.msk [vmem:[%s145 + $0x160] sm:$0xff] %vm742, %v722
      %788 = vst.msk [vmem:[%s145 + $0x168] sm:$0xff] %vm742, %v723
      %789 = vst.msk [vmem:[%s145 + $0x170] sm:$0xff] %vm742, %v724
      %790 = vst.msk [vmem:[%s145 + $0x178] sm:$0xff] %vm742, %v725
      %791 = vst.msk [vmem:[%s145 + $0x180] sm:$0xff] %vm742, %v726
      %792 = vst.msk [vmem:[%s145 + $0x188] sm:$0xff] %vm742, %v727
      %793 = vst.msk [vmem:[%s145 + $0x190] sm:$0xff] %vm742, %v728
      %794 = vst.msk [vmem:[%s145 + $0x198] sm:$0xff] %vm742, %v729
      %795 = vst.msk [vmem:[%s145 + $0x1a0] sm:$0xff] %vm742, %v730
      %796 = vst.msk [vmem:[%s145 + $0x1a8] sm:$0xff] %vm742, %v731
      %797 = vst.msk [vmem:[%s145 + $0x1b0] sm:$0xff] %vm742, %v732
      %798 = vst.msk [vmem:[%s145 + $0x1b8] sm:$0xff] %vm742, %v733
      %799 = vst.msk [vmem:[%s145 + $0x1c0] sm:$0xff] %vm742, %v734
      %800 = vst.msk [vmem:[%s145 + $0x1c8] sm:$0xff] %vm742, %v735
      %801 = vst.msk [vmem:[%s145 + $0x1d0] sm:$0xff] %vm742, %v736
      %802 = vst.msk [vmem:[%s145 + $0x1d8] sm:$0xff] %vm742, %v737
      %803 = vst.msk [vmem:[%s145 + $0x1e0] sm:$0xff] %vm742, %v738
      %804 = vst.msk [vmem:[%s145 + $0x1e8] sm:$0xff] %vm742, %v739
      %805 = vst.msk [vmem:[%s145 + $0x1f0] sm:$0xff] %vm742, %v740
      %806 = vst.msk [vmem:[%s145 + $0x1f8] sm:$0xff] %vm742, %v741
      %s807 = smul.u32 64, %s13
      %p808 = scmp.lt.s32.totalorder %s807, 255
      %s809 = scalar_select %p808, %s807, 255
      %s810 = smul.addr %s809, 8
      %s811 = scalar_lea.vmem %s2, %s810
      // Predicated region
      $region29: #{generator_forward.9} parent=27 // pred_check
        %p812 = pneg %p78
      $region30: #{generator_forward.9} parent=27 // pred_check_branch
        %814 = sbr.rel (%p812) target = $region32
      $region31: #{generator_forward.9} parent=27 // pred_region
        %s815 = smul.u32 64, %s13
      $region32: #{generator_forward.9} parent=27 // pred_fallthru
        _
    $region28: #{generator_forward.9} parent=5 // pred_fallthru
      _
    %p816 = scmp.le.s32.totalorder 2, %s8
    // Predicated region
    $region33: #{generator_forward.9} parent=5 // pred_check
      %p817 = pneg %p816
    $region34: #{generator_forward.9} parent=5 // pred_check_branch
      %819 = sbr.rel (%p817) target = $region36
    $region35: #{generator_forward.9} parent=5 // pred_region
      %s820 = ssub.s32 %s8, 2
      // Predicated region
      $region37: #{generator_forward.9} parent=35 // pred_check
        %p821 = pneg %p84
      $region38: #{generator_forward.9} parent=35 // pred_check_branch
        %823 = sbr.rel (%p821) target = $region40
      $region39: #{generator_forward.9} parent=35 // pred_region
        %s824 = smul.u32 64, %s14
        %p825 = scmp.lt.s32.totalorder %s824, 255
        %s826 = scalar_select %p825, %s824, 255
        %s827 = smul.addr %s826, 8
        %s828 = scalar_lea.vmem %s2, %s827
      $region40: #{generator_forward.9} parent=35 // pred_fallthru
        _
    $region36: #{generator_forward.9} parent=5 // pred_fallthru
      _
  $region6: #{generator_forward.9} parent=0 // loop_footer
    %s12 = sadd.s32 1, %s8
  $region7: #{generator_forward.9} parent=0 // loop_footer_branch
    %7 = sbr.rel target = $region3
  $region8: #{generator_forward.9} parent=0 // loop_exit
    _

</llo_original>
